<compile_context>
chip_gen: v5e
topology: v5e:2x2
jax: 0.10.0
libtpu: 0.0.40
codegen_flags: <defaults>
</compile_context>

<pallas_src>
import functools

import jax
import jax.numpy as jnp
from jax import lax
from jax.experimental import pallas as pl
from jax.experimental.pallas import tpu as pltpu

PARAM_DTYPE = jnp.float32      # parameters / per-channel vectors / stats
ACT_DTYPE = jnp.bfloat16       # inter-layer activations in HBM
MXU_DTYPE = jnp.bfloat16       # matmul operand dtype (f32 accumulation)
GN_EPS = 1e-5


# ----------------------------------------------------------------------------
# Small helpers
# ----------------------------------------------------------------------------

def _bytes(shape, dtype):
    n = 1
    for s in shape:
        n *= int(s)
    return n * jnp.dtype(dtype).itemsize


def _vmem_limit(blocks):
    """Explicit VMEM budget: double-buffered blocks + headroom (v7x: 64 MiB)."""
    need = 2 * sum(_bytes(s, d) for s, d in blocks) + (8 << 20)
    return int(min(max(need, 32 << 20), 112 << 20))


def _lane_tiling(n):
    """Pick (tile, padded_n): tile is a multiple of 128 dividing padded_n,
    preferring >=2 tiles so both v7x TensorCores get work."""
    n128 = -(-n // 128) * 128
    cands = [t for t in (1024, 512, 384, 256, 128) if t <= n128]
    for t in cands:
        if n128 % t == 0 and n128 // t >= 2:
            return t, n128
    for t in cands:
        if n128 % t == 0:
            return t, n128
    return 128, n128


def _q_tile(hw):
    if hw <= 512:
        return hw
    for t in (512, 256, 128):
        if hw % t == 0:
            return t
    return hw  # TODO(synk): pad ragged spatial sizes to a multiple of 128


# ----------------------------------------------------------------------------
# Pallas kernels
# ----------------------------------------------------------------------------

def _lane_conv_kernel(*refs, has_extra):
    """Lane-tiled conv-as-matmul: bf16 MXU matmul + bias [+ broadcast extra]."""
    if has_extra:
        x_ref, w_ref, b_ref, e_ref, o_ref = refs
    else:
        x_ref, w_ref, b_ref, o_ref = refs
    acc = jnp.dot(w_ref[...], x_ref[...],
                  preferred_element_type=jnp.float32)      # (Cout, TILE) f32
    acc = acc + b_ref[...]                                  # (Cout, 1) bias
    if has_extra:
        acc = acc + e_ref[...]                              # (1, TILE) time-emb
    o_ref[...] = acc.astype(o_ref.dtype)


def _gn_conv_kernel(*refs, has_skip, eps):
    """Per-sample fused conv + GroupNorm(1 group) [+ 1x1 residual] + ReLU.

    Ref order: col (1,K,HW) | w (Cout,K) | pp (Cout,4)=[bias,gamma,beta,skip_b]
               [xs (1,Cin,HW), ws (Cout,Cin)] | out (1,Cout,HW)
    """
    if has_skip:
        col_ref, w_ref, pp_ref, xs_ref, ws_ref, o_ref = refs
    else:
        col_ref, w_ref, pp_ref, o_ref = refs

    acc = jnp.dot(w_ref[...], col_ref[0],
                  preferred_element_type=jnp.float32)       # (Cout, HW) f32
    acc = acc + pp_ref[:, 0:1]                              # conv bias

    # GroupNorm(num_groups=1): per-sample stats over all (C, H, W); one-pass
    # E[x^2]-mu^2 stats, affine folded into a single scale/shift pass (f32).
    mean = jnp.mean(acc, keepdims=True)
    var = jnp.maximum(jnp.mean(acc * acc, keepdims=True) - mean * mean, 0.0)
    scale = pp_ref[:, 1:2] * lax.rsqrt(var + eps)           # gamma / std
    shift = pp_ref[:, 2:3] - mean * scale                   # beta - mu*scale
    acc = acc * scale + shift

    if has_skip:
        # Residual 1x1-conv branch fused as a second small matmul (not normed).
        acc = acc + jnp.dot(ws_ref[...], xs_ref[0],
                            preferred_element_type=jnp.float32) + pp_ref[:, 3:4]

    acc = jnp.maximum(acc, 0.0)                             # ReLU
    o_ref[0] = acc.astype(o_ref.dtype)


def _attn_core_kernel(q_ref, k_ref, v_ref, o_ref, *, scale):
    """softmax(q^T k / sqrt(E)) applied to v for one (sample, head, q-tile)."""
    q = q_ref[0]                                            # (E, TQ) bf16
    k = k_ref[0]                                            # (E, HW) bf16
    v = v_ref[0]                                            # (E, HW) bf16
    # scores[i, j] = q_i . k_j / sqrt(E)
    s = lax.dot_general(q, k, (((0,), (0,)), ((), ())),
                        preferred_element_type=jnp.float32) * scale   # (TQ, HW)
    s = s - jnp.max(s, axis=-1, keepdims=True)
    p = jnp.exp(s)
    p = p / jnp.sum(p, axis=-1, keepdims=True)              # exact softmax
    # out[e, i] = sum_j v[e, j] * p[i, j]
    o = lax.dot_general(v, p.astype(v.dtype), (((1,), (1,)), ((), ())),
                        preferred_element_type=jnp.float32)            # (E, TQ)
    o_ref[0] = o.astype(o_ref.dtype)


# ----------------------------------------------------------------------------
# Pallas wrappers
# ----------------------------------------------------------------------------

def lane_conv(x2d, w2d, b, extra=None, out_dtype=None):
    """Conv-as-matmul over (K, N=B*HW) with a parallel lane-tile grid.

    x2d: (K, N) any dtype (cast to bf16). w2d: (Cout, K). b: (Cout,).
    extra: optional (N,) channel-uniform add (f32). Returns (Cout, N)."""
    K, N = x2d.shape
    Cout = w2d.shape[0]
    out_dtype = out_dtype or ACT_DTYPE
    tile, n_pad = _lane_tiling(N)

    x2d = x2d.astype(MXU_DTYPE)
    if n_pad != N:
        x2d = jnp.pad(x2d, ((0, 0), (0, n_pad - N)))
    operands = [x2d, w2d.astype(MXU_DTYPE),
                b.reshape(Cout, 1).astype(jnp.float32)]
    in_specs = [pl.BlockSpec((K, tile), lambda i: (0, i)),
                pl.BlockSpec((Cout, K), lambda i: (0, 0)),
                pl.BlockSpec((Cout, 1), lambda i: (0, 0))]
    blocks = [((K, tile), MXU_DTYPE), ((Cout, K), MXU_DTYPE),
              ((Cout, 1), jnp.float32), ((Cout, tile), out_dtype),
              ((Cout, tile), jnp.float32)]
    if extra is not None:
        e = extra.reshape(1, N).astype(jnp.float32)
        if n_pad != N:
            e = jnp.pad(e, ((0, 0), (0, n_pad - N)))
        operands.append(e)
        in_specs.append(pl.BlockSpec((1, tile), lambda i: (0, i)))
        blocks.append(((1, tile), jnp.float32))

    out = pl.pallas_call(
        functools.partial(_lane_conv_kernel, has_extra=extra is not None),
        out_shape=jax.ShapeDtypeStruct((Cout, n_pad), out_dtype),
        grid=(n_pad // tile,),
        in_specs=in_specs,
        out_specs=pl.BlockSpec((Cout, tile), lambda i: (0, i)),
        compiler_params=pltpu.CompilerParams(
            dimension_semantics=("parallel",),
            vmem_limit_bytes=_vmem_limit(blocks)),
    )(*operands)
    return out[:, :N] if n_pad != N else out


def gn_conv(col, w2d, pp, skip=None, out_dtype=None, eps=GN_EPS):
    """Per-sample fused conv + GN(1) [+ residual 1x1 conv] + ReLU.

    col: (B, K, HW) bf16. w2d: (Cout, K). pp: (Cout, 4) packed per-channel
    params. skip: optional ((B, Cin, HW) bf16, (Cout, Cin) weight)."""
    B, K, hw = col.shape
    Cout = w2d.shape[0]
    out_dtype = out_dtype or ACT_DTYPE

    operands = [col.astype(MXU_DTYPE), w2d.astype(MXU_DTYPE),
                pp.astype(jnp.float32)]
    in_specs = [pl.BlockSpec((1, K, hw), lambda i: (i, 0, 0)),
                pl.BlockSpec((Cout, K), lambda i: (0, 0)),
                pl.BlockSpec((Cout, 4), lambda i: (0, 0))]
    blocks = [((1, K, hw), MXU_DTYPE), ((Cout, K), MXU_DTYPE),
              ((Cout, 4), jnp.float32), ((1, Cout, hw), out_dtype),
              ((Cout, hw), jnp.float32)]
    if skip is not None:
        xs, ws = skip
        Cin = xs.shape[1]
        operands += [xs.astype(MXU_DTYPE), ws.astype(MXU_DTYPE)]
        in_specs += [pl.BlockSpec((1, Cin, hw), lambda i: (i, 0, 0)),
                     pl.BlockSpec((Cout, Cin), lambda i: (0, 0))]
        blocks += [((1, Cin, hw), MXU_DTYPE), ((Cout, Cin), MXU_DTYPE)]

    return pl.pallas_call(
        functools.partial(_gn_conv_kernel, has_skip=skip is not None, eps=eps),
        out_shape=jax.ShapeDtypeStruct((B, Cout, hw), out_dtype),
        grid=(B,),
        in_specs=in_specs,
        out_specs=pl.BlockSpec((1, Cout, hw), lambda i: (i, 0, 0)),
        compiler_params=pltpu.CompilerParams(
            dimension_semantics=("parallel",),
            vmem_limit_bytes=_vmem_limit(blocks)),
    )(*operands)


# ----------------------------------------------------------------------------
# im2col / network glue (plain JAX; fused by XLA into a single copy fusion)
# ----------------------------------------------------------------------------

def im2col_3x3(x, stride=1):
    """(B, C, H, W) -> (B, C*9, Ho*Wo) bf16 patches (per-sample layout)."""
    B, C, H, W = x.shape
    xp = jnp.pad(x, ((0, 0), (0, 0), (1, 1), (1, 1)))
    Ho = (H + 2 - 3) // stride + 1
    Wo = (W + 2 - 3) // stride + 1
    pats = [xp[:, :, kh:kh + stride * Ho:stride, kw:kw + stride * Wo:stride]
            for kh in range(3) for kw in range(3)]
    col = jnp.stack(pats, axis=2)                 # (B, C, 9, Ho, Wo)
    return col.reshape(B, C * 9, Ho * Wo), Ho, Wo


def im2col_lanes(x, stride=1):
    """(B, C, H, W) -> (C*9, B*Ho*Wo) bf16 patches (batch folded on lanes)."""
    B, C, H, W = x.shape
    xp = jnp.pad(x, ((0, 0), (0, 0), (1, 1), (1, 1)))
    Ho = (H + 2 - 3) // stride + 1
    Wo = (W + 2 - 3) // stride + 1
    pats = [xp[:, :, kh:kh + stride * Ho:stride, kw:kw + stride * Wo:stride]
            for kh in range(3) for kw in range(3)]
    col = jnp.stack(pats, axis=2)                 # (B, C, 9, Ho, Wo)
    col = col.transpose(1, 2, 0, 3, 4)            # (C, 9, B, Ho, Wo)
    return col.reshape(C * 9, B * Ho * Wo), Ho, Wo


def conv2d_3x3_lane(x, w, b, stride=1, extra=None, out_dtype=None):
    """3x3 conv (no GN) via the lane-tiled kernel; returns (B, Cout, Ho, Wo)."""
    B, Cin, H, W = x.shape
    Cout = w.shape[0]
    col, Ho, Wo = im2col_lanes(x.astype(MXU_DTYPE), stride)
    out2d = lane_conv(col, w.reshape(Cout, Cin * 9), b,
                      extra=extra, out_dtype=out_dtype)     # (Cout, B*Ho*Wo)
    return out2d.reshape(Cout, B, Ho * Wo).transpose(1, 0, 2).reshape(
        B, Cout, Ho, Wo)


def _pack_channel_params(bias, gamma, beta, skip_bias=None):
    if skip_bias is None:
        skip_bias = jnp.zeros_like(bias)
    return jnp.stack([bias, gamma, beta, skip_bias], axis=1).astype(jnp.float32)


def resnet_block(x, p, out_dtype=None):
    B, Cin, H, W = x.shape
    Cout = p['conv1_w'].shape[0]
    xb = x.astype(MXU_DTYPE)
    # conv1 + GroupNorm + ReLU fused.
    col1, _, _ = im2col_3x3(xb)
    pp1 = _pack_channel_params(p['conv1_b'], p['gn1_g'], p['gn1_b'])
    h = gn_conv(col1, p['conv1_w'].reshape(Cout, Cin * 9), pp1)
    # conv2 + GroupNorm + fused 1x1 residual + ReLU in one kernel.
    col2, _, _ = im2col_3x3(h.reshape(B, Cout, H, W))
    pp2 = _pack_channel_params(p['conv2_b'], p['gn2_g'], p['gn2_b'], p['skip_b'])
    out = gn_conv(col2, p['conv2_w'].reshape(Cout, Cout * 9), pp2,
                  skip=(xb.reshape(B, Cin, H * W),
                        p['skip_w'].reshape(Cout, Cin)),
                  out_dtype=out_dtype)
    return out.reshape(B, Cout, H, W)


def attention_block(x, p, n_heads):
    # Dropout p=0 (eval mode) -> identity.
    B, C, H, W = x.shape
    hw = H * W
    E = C // n_heads
    scale = 1.0 / (E ** 0.5)

    # qkv 1x1 conv, lane-tiled over B*HW.
    x2d = x.reshape(B, C, hw).transpose(1, 0, 2).reshape(C, B * hw)
    qkv2d = lane_conv(x2d, p['qkv_w'].reshape(3 * C, C), p['qkv_b'])
    qkv = qkv2d.reshape(3 * C, B, hw).transpose(1, 0, 2)    # (B, 3C, hw) bf16

    tq = _q_tile(hw)
    n_qt = hw // tq
    blocks = [((1, E, tq), MXU_DTYPE), ((1, E, hw), MXU_DTYPE),
              ((1, E, hw), MXU_DTYPE), ((1, E, tq), ACT_DTYPE),
              ((tq, hw), jnp.float32), ((tq, hw), jnp.float32)]
    attn = pl.pallas_call(
        functools.partial(_attn_core_kernel, scale=scale),
        out_shape=jax.ShapeDtypeStruct((B, C, hw), ACT_DTYPE),
        grid=(B, n_heads, n_qt),
        in_specs=[
            # q tile for this head / query block
            pl.BlockSpec((1, E, tq), lambda b, h, qt: (b, h, qt)),
            # full K and V for this head: constant across the q-tile axis so
            # they stay VMEM-resident while q tiles stream through.
            pl.BlockSpec((1, E, hw), lambda b, h, qt: (b, n_heads + h, 0)),
            pl.BlockSpec((1, E, hw), lambda b, h, qt: (b, 2 * n_heads + h, 0)),
        ],
        out_specs=pl.BlockSpec((1, E, tq), lambda b, h, qt: (b, h, qt)),
        compiler_params=pltpu.CompilerParams(
            dimension_semantics=("parallel", "parallel", "parallel"),
            vmem_limit_bytes=_vmem_limit(blocks)),
    )(qkv, qkv, qkv)

    # output 1x1 projection, lane-tiled.
    attn2d = attn.transpose(1, 0, 2).reshape(C, B * hw)
    out2d = lane_conv(attn2d, p['proj_w'].reshape(C, C), p['proj_b'])
    return out2d.reshape(C, B, hw).transpose(1, 0, 2).reshape(B, C, H, W)


def interpolate_nearest(x, out_h, out_w):
    B, C, H, W = x.shape
    rows = (jnp.arange(out_h) * H) // out_h
    cols = (jnp.arange(out_w) * W) // out_w
    return x[:, :, rows[:, None], cols[None, :]]


def sample_block(x, p):
    for rp in p['res']:
        x = resnet_block(x, rp)
    if p.get('attn') is not None:
        x = attention_block(x, p['attn'], p['n_heads'])
    if p.get('sample') is not None:
        x = conv2d_3x3_lane(x, p['sample']['w'], p['sample']['b'],
                            stride=p['sample']['stride'])
    return x


def unet_forward(params, x, t):
    t_emb = jnp.take(params['time_emb'], t, axis=0)         # (B, H*W) f32
    # conv_in + channel-uniform time-embedding add fused into the lane conv.
    x = conv2d_3x3_lane(x, params['conv_in_w'], params['conv_in_b'],
                        extra=t_emb.reshape(-1))
    skips = [x]
    for bp in params['down']:
        x = sample_block(x, bp)
        skips.append(x)
    for i, bp in enumerate(params['up']):
        sc = skips.pop()
        if i > 0:
            x = jnp.concatenate(
                [interpolate_nearest(x, sc.shape[2], sc.shape[3]), sc], axis=1)
        x = sample_block(x, bp)
    sc = skips.pop()
    x = jnp.concatenate(
        [interpolate_nearest(x, sc.shape[2], sc.shape[3]), sc], axis=1)
    x = resnet_block(x, params['end'], out_dtype=jnp.float32)
    return x


# ----------------------------------------------------------------------------
# Deterministic parameter initialization (mirrors the PyTorch constructor)
# ----------------------------------------------------------------------------

def _init_conv(key, cout, cin, k):
    kw, kb = jax.random.split(key)
    fan_in = cin * k * k
    scale = 1.0 / (fan_in ** 0.5)
    w = jax.random.uniform(kw, (cout, cin, k, k), PARAM_DTYPE, -scale, scale)
    b = jax.random.uniform(kb, (cout,), PARAM_DTYPE, -scale, scale)
    return w, b


def _init_resnet(key, cin, cout):
    ks = jax.random.split(key, 3)
    c1w, c1b = _init_conv(ks[0], cout, cin, 3)
    c2w, c2b = _init_conv(ks[1], cout, cout, 3)
    sw, sb = _init_conv(ks[2], cout, cin, 1)
    ones = jnp.ones((cout,), PARAM_DTYPE)
    zeros = jnp.zeros((cout,), PARAM_DTYPE)
    return dict(conv1_w=c1w, conv1_b=c1b, gn1_g=ones, gn1_b=zeros,
                conv2_w=c2w, conv2_b=c2b, gn2_g=ones, gn2_b=zeros,
                skip_w=sw, skip_b=sb)


def _init_attn(key, c):
    k1, k2 = jax.random.split(key)
    qw, qb = _init_conv(k1, 3 * c, c, 1)
    pw, pb = _init_conv(k2, c, c, 1)
    return dict(qkv_w=qw, qkv_b=qb, proj_w=pw, proj_b=pb)


def init_unet_params(key, timeStep, originalSize, inChannels, channels,
                     strides, n_heads, resNetBlocks, attn):
    assert len(n_heads) == sum(attn)
    assert len(channels) == len(strides) + 1 == len(attn) == len(resNetBlocks)
    channels = [inChannels] + list(channels)
    length = len(channels)
    strides = list(strides) + [1]                     # dummy stride
    nh_down = list(n_heads); nh_down.reverse()
    nh_up = list(n_heads)
    keys = iter(jax.random.split(key, 128))

    params = {'orig_size': tuple(originalSize)}
    params['time_emb'] = jax.random.normal(
        next(keys), (timeStep, originalSize[0] * originalSize[1]), PARAM_DTYPE)
    w, b = _init_conv(next(keys), inChannels, inChannels, 3)
    params['conv_in_w'], params['conv_in_b'] = w, b

    def make_sample(in_c, out_c, stride, nh, n_res, upsample, do_sample):
        p = {'res': [_init_resnet(next(keys), in_c if i == 0 else out_c, out_c)
                     for i in range(n_res)]}
        if nh is not None:
            p['attn'] = _init_attn(next(keys), out_c)
            p['n_heads'] = nh
        if do_sample and not upsample:
            sw, sb = _init_conv(next(keys), out_c, out_c, 3)
            p['sample'] = dict(w=sw, b=sb, stride=stride)
        return p

    down = []
    for i in range(length - 1):
        nh = nh_down.pop() if attn[i] else None
        down.append(make_sample(channels[i], channels[i + 1], strides[i], nh,
                                resNetBlocks[i], upsample=False,
                                do_sample=(i < length - 1)))
    params['down'] = down

    up = []
    for i in range(length - 1, 0, -1):
        nh = nh_up.pop() if attn[i - 1] else None
        in_c = channels[i] + (0 if i == length - 1 else channels[i])
        up.append(make_sample(in_c, channels[i - 1], strides[i - 1], nh,
                              resNetBlocks[i - 1], upsample=True,
                              do_sample=(i < length - 1)))
    params['up'] = up

    params['end'] = _init_resnet(next(keys), 2 * channels[0], inChannels)
    return params


# ----------------------------------------------------------------------------

if __name__ == "__main__":
    key = jax.random.PRNGKey(0)
    kx, kt, kp = jax.random.split(key, 3)

    B = 2
    timeStep = 10
    originalSize = (16, 16)
    inChannels = 4
    channels = [8, 16]
    strides = [2]
    # NOTE: the reference PyTorch Attention uses .view on a non-contiguous
    # transpose which only works for n_heads == 1; the kernels support any
    # head count but we demo with 1 head to match the reference exactly.
    n_heads = [1]
    resNetBlocks = [1, 1]
    attn = [False, True]
    dropout = [0.0]  # p=0 -> dropout is identity

    x = jax.random.normal(kx, (B, inChannels, originalSize[0], originalSize[1]),
                          jnp.float32)
    t = jax.random.randint(kt, (B,), 0, timeStep)

    params = init_unet_params(kp, timeStep, originalSize, inChannels, channels,
                              strides, n_heads, resNetBlocks, attn)

    forward = jax.jit(lambda xx, tt: unet_forward(params, xx, tt))
    out = forward(x, t)
    out = jax.block_until_ready(out)

    assert out.shape == (B, inChannels, originalSize[0], originalSize[1]), out.shape
    assert bool(jnp.isfinite(out).all())
    print("KERNEL_OK")
</pallas_src>

<mosaic_0001>
module attributes {stable_mosaic.version = 11 : i64} {
  func.func @_lane_conv_kernel(%arg0: i32, %arg1: memref<36x256xbf16, #tpu.memory_space<vmem>>, %arg2: memref<4x36xbf16, #tpu.memory_space<vmem>>, %arg3: memref<4x1xf32, #tpu.memory_space<vmem>>, %arg4: memref<1x256xf32, #tpu.memory_space<vmem>>, %arg5: memref<4x256xbf16, #tpu.memory_space<vmem>>) attributes {dimension_semantics = [#tpu.dimension_semantics<parallel>], iteration_bounds = array<i64: 2>, scalar_prefetch = 0 : i64, scratch_operands = 0 : i64, tpu.core_type = #tpu.core_type<tc>, window_params = [{transform_indices = @transform_0, window_bounds = array<i64: 36, 256>}, {pipeline_mode = #tpu.pipeline_mode<synchronous>, transform_indices = @transform_1, window_bounds = array<i64: 4, 36>}, {pipeline_mode = #tpu.pipeline_mode<synchronous>, transform_indices = @transform_2, window_bounds = array<i64: 4, 1>}, {transform_indices = @transform_3, window_bounds = array<i64: 1, 256>}, {transform_indices = @transform_4, window_bounds = array<i64: 4, 256>}]} {
    %c0 = arith.constant 0 : index
    %c0_0 = arith.constant 0 : index
    %0 = vector.load %arg2[%c0, %c0_0] : memref<4x36xbf16, #tpu.memory_space<vmem>>, vector<4x36xbf16>
    %c0_1 = arith.constant 0 : index
    %c0_2 = arith.constant 0 : index
    %1 = vector.load %arg1[%c0_1, %c0_2] : memref<36x256xbf16, #tpu.memory_space<vmem>>, vector<36x256xbf16>
    %cst = arith.constant dense<0.000000e+00> : vector<4x256xf32>
    %2 = tpu.matmul %0, %1, %cst {dimension_numbers = #tpu.dot_dimension_numbers<[1], [0], [0], [1], [0, 0, 1, 1], [], []>} : vector<4x36xbf16>, vector<36x256xbf16>, vector<4x256xf32> -> vector<4x256xf32>
    %c0_3 = arith.constant 0 : index
    %c0_4 = arith.constant 0 : index
    %3 = vector.load %arg3[%c0_3, %c0_4] : memref<4x1xf32, #tpu.memory_space<vmem>>, vector<4x1xf32>
    %4 = vector.broadcast %3 : vector<4x1xf32> to vector<4x256xf32>
    %5 = arith.addf %2, %4 : vector<4x256xf32>
    %c0_5 = arith.constant 0 : index
    %c0_6 = arith.constant 0 : index
    %6 = vector.load %arg4[%c0_5, %c0_6] : memref<1x256xf32, #tpu.memory_space<vmem>>, vector<1x256xf32>
    %7 = vector.broadcast %6 : vector<1x256xf32> to vector<4x256xf32>
    %8 = arith.addf %5, %7 : vector<4x256xf32>
    %9 = arith.truncf %8 : vector<4x256xf32> to vector<4x256xbf16>
    %c0_7 = arith.constant 0 : index
    %c0_8 = arith.constant 0 : index
    %10 = vector.load %arg5[%c0_7, %c0_8] : memref<4x256xbf16, #tpu.memory_space<vmem>>, vector<4x256xbf16>
    tpu.vector_store %arg5[%c0_7, %c0_8], %9 {strides = array<i32>} : memref<4x256xbf16, #tpu.memory_space<vmem>>, vector<4x256xbf16>,
    return
  }
  func.func @transform_0(%arg0: i32) -> (i32, i32) {
    %c0_i32 = arith.constant 0 : i32
    %c0_i32_0 = arith.constant 0 : i32
    return %c0_i32, %arg0 : i32, i32
  }
  func.func @transform_1(%arg0: i32) -> (i32, i32) {
    %c0_i32 = arith.constant 0 : i32
    %c0_i32_0 = arith.constant 0 : i32
    %c0_i32_1 = arith.constant 0 : i32
    return %c0_i32, %c0_i32_0 : i32, i32
  }
  func.func @transform_2(%arg0: i32) -> (i32, i32) {
    %c0_i32 = arith.constant 0 : i32
    %c0_i32_0 = arith.constant 0 : i32
    %c0_i32_1 = arith.constant 0 : i32
    return %c0_i32, %c0_i32_0 : i32, i32
  }
  func.func @transform_3(%arg0: i32) -> (i32, i32) {
    %c0_i32 = arith.constant 0 : i32
    %c0_i32_0 = arith.constant 0 : i32
    return %c0_i32, %arg0 : i32, i32
  }
  func.func @transform_4(%arg0: i32) -> (i32, i32) {
    %c0_i32 = arith.constant 0 : i32
    %c0_i32_0 = arith.constant 0 : i32
    return %c0_i32, %arg0 : i32, i32
  }
}

module attributes {stable_mosaic.version = 11 : i64} {
  func.func @_gn_conv_kernel(%arg0: i32, %arg1: memref<1x36x256xbf16, #tpu.memory_space<vmem>>, %arg2: memref<8x36xbf16, #tpu.memory_space<vmem>>, %arg3: memref<8x4xf32, #tpu.memory_space<vmem>>, %arg4: memref<1x8x256xbf16, #tpu.memory_space<vmem>>) attributes {dimension_semantics = [#tpu.dimension_semantics<parallel>], iteration_bounds = array<i64: 2>, scalar_prefetch = 0 : i64, scratch_operands = 0 : i64, tpu.core_type = #tpu.core_type<tc>, window_params = [{transform_indices = @transform_0, window_bounds = array<i64: 1, 36, 256>}, {pipeline_mode = #tpu.pipeline_mode<synchronous>, transform_indices = @transform_1, window_bounds = array<i64: 8, 36>}, {pipeline_mode = #tpu.pipeline_mode<synchronous>, transform_indices = @transform_2, window_bounds = array<i64: 8, 4>}, {transform_indices = @transform_3, window_bounds = array<i64: 1, 8, 256>}]} {
    %c0 = arith.constant 0 : index
    %c0_0 = arith.constant 0 : index
    %0 = vector.load %arg2[%c0, %c0_0] : memref<8x36xbf16, #tpu.memory_space<vmem>>, vector<8x36xbf16>
    %c0_1 = arith.constant 0 : index
    %c0_2 = arith.constant 0 : index
    %c0_3 = arith.constant 0 : index
    %1 = vector.load %arg1[%c0_1, %c0_2, %c0_3] : memref<1x36x256xbf16, #tpu.memory_space<vmem>>, vector<1x36x256xbf16>
    %2 = vector.shape_cast %1 : vector<1x36x256xbf16> to vector<36x256xbf16>
    %cst = arith.constant dense<0.000000e+00> : vector<8x256xf32>
    %3 = tpu.matmul %0, %2, %cst {dimension_numbers = #tpu.dot_dimension_numbers<[1], [0], [0], [1], [0, 0, 1, 1], [], []>} : vector<8x36xbf16>, vector<36x256xbf16>, vector<8x256xf32> -> vector<8x256xf32>
    %c0_4 = arith.constant 0 : index
    %c0_5 = arith.constant 0 : index
    %4 = vector.load %arg3[%c0_4, %c0_5] : memref<8x4xf32, #tpu.memory_space<vmem>>, vector<8x1xf32>
    %5 = vector.broadcast %4 : vector<8x1xf32> to vector<8x256xf32>
    %6 = arith.addf %3, %5 : vector<8x256xf32>
    %7 = vector.shape_cast %6 : vector<8x256xf32> to vector<1x8x256xf32>
    %cst_6 = arith.constant dense<0.000000e+00> : vector<1xf32>
    %8 = vector.multi_reduction <add>, %7, %cst_6 [1, 2] : vector<1x8x256xf32> to vector<1xf32>
    %9 = vector.shape_cast %8 : vector<1xf32> to vector<1x1x1xf32>
    %10 = vector.extract %9[0, 0, 0] : f32 from vector<1x1x1xf32>
    %11 = vector.broadcast %10 : f32 to vector<1x1xf32>
    %cst_7 = arith.constant 2.048000e+03 : f32
    %12 = vector.broadcast %cst_7 : f32 to vector<1x1xf32>
    %13 = arith.divf %11, %12 : vector<1x1xf32>
    %14 = arith.mulf %6, %6 : vector<8x256xf32>
    %15 = vector.shape_cast %14 : vector<8x256xf32> to vector<1x8x256xf32>
    %cst_8 = arith.constant dense<0.000000e+00> : vector<1xf32>
    %16 = vector.multi_reduction <add>, %15, %cst_8 [1, 2] : vector<1x8x256xf32> to vector<1xf32>
    %17 = vector.shape_cast %16 : vector<1xf32> to vector<1x1x1xf32>
    %18 = vector.extract %17[0, 0, 0] : f32 from vector<1x1x1xf32>
    %19 = vector.broadcast %18 : f32 to vector<1x1xf32>
    %cst_9 = arith.constant 2.048000e+03 : f32
    %20 = vector.broadcast %cst_9 : f32 to vector<1x1xf32>
    %21 = arith.divf %19, %20 : vector<1x1xf32>
    %22 = arith.mulf %13, %13 : vector<1x1xf32>
    %23 = arith.subf %21, %22 : vector<1x1xf32>
    %cst_10 = arith.constant 0.000000e+00 : f32
    %24 = vector.broadcast %cst_10 : f32 to vector<1x1xf32>
    %25 = arith.maximumf %23, %24 : vector<1x1xf32>
    %c0_11 = arith.constant 0 : index
    %c1 = arith.constant 1 : index
    %26 = vector.load %arg3[%c0_11, %c1] : memref<8x4xf32, #tpu.memory_space<vmem>>, vector<8x1xf32>
    %cst_12 = arith.constant 9.99999974E-6 : f32
    %27 = vector.broadcast %cst_12 : f32 to vector<1x1xf32>
    %28 = arith.addf %25, %27 : vector<1x1xf32>
    %29 = math.rsqrt %28 : vector<1x1xf32>
    %30 = vector.broadcast %29 : vector<1x1xf32> to vector<8x1xf32>
    %31 = arith.mulf %26, %30 : vector<8x1xf32>
    %c0_13 = arith.constant 0 : index
    %c2 = arith.constant 2 : index
    %32 = vector.load %arg3[%c0_13, %c2] : memref<8x4xf32, #tpu.memory_space<vmem>>, vector<8x1xf32>
    %33 = vector.broadcast %13 : vector<1x1xf32> to vector<8x1xf32>
    %34 = arith.mulf %33, %31 : vector<8x1xf32>
    %35 = arith.subf %32, %34 : vector<8x1xf32>
    %36 = vector.broadcast %31 : vector<8x1xf32> to vector<8x256xf32>
    %37 = arith.mulf %6, %36 : vector<8x256xf32>
    %38 = vector.broadcast %35 : vector<8x1xf32> to vector<8x256xf32>
    %39 = arith.addf %37, %38 : vector<8x256xf32>
    %cst_14 = arith.constant 0.000000e+00 : f32
    %40 = vector.broadcast %cst_14 : f32 to vector<8x256xf32>
    %41 = arith.maximumf %39, %40 : vector<8x256xf32>
    %42 = arith.truncf %41 : vector<8x256xf32> to vector<8x256xbf16>
    %c0_15 = arith.constant 0 : index
    %c0_16 = arith.constant 0 : index
    %c0_17 = arith.constant 0 : index
    %43 = vector.load %arg4[%c0_15, %c0_16, %c0_17] : memref<1x8x256xbf16, #tpu.memory_space<vmem>>, vector<1x8x256xbf16>
    %44 = vector.shape_cast %43 : vector<1x8x256xbf16> to vector<8x256xbf16>
    %45 = vector.shape_cast %42 : vector<8x256xbf16> to vector<1x8x256xbf16>
    tpu.vector_store %arg4[%c0_15, %c0_16, %c0_17], %45 {strides = array<i32>} : memref<1x8x256xbf16, #tpu.memory_space<vmem>>, vector<1x8x256xbf16>,
    return
  }
  func.func @transform_0(%arg0: i32) -> (i32, i32, i32) {
    %c0_i32 = arith.constant 0 : i32
    %c0_i32_0 = arith.constant 0 : i32
    %c0_i32_1 = arith.constant 0 : i32
    return %arg0, %c0_i32, %c0_i32_0 : i32, i32, i32
  }
  func.func @transform_1(%arg0: i32) -> (i32, i32) {
    %c0_i32 = arith.constant 0 : i32
    %c0_i32_0 = arith.constant 0 : i32
    %c0_i32_1 = arith.constant 0 : i32
    return %c0_i32, %c0_i32_0 : i32, i32
  }
  func.func @transform_2(%arg0: i32) -> (i32, i32) {
    %c0_i32 = arith.constant 0 : i32
    %c0_i32_0 = arith.constant 0 : i32
    %c0_i32_1 = arith.constant 0 : i32
    return %c0_i32, %c0_i32_0 : i32, i32
  }
  func.func @transform_3(%arg0: i32) -> (i32, i32, i32) {
    %c0_i32 = arith.constant 0 : i32
    %c0_i32_0 = arith.constant 0 : i32
    %c0_i32_1 = arith.constant 0 : i32
    return %arg0, %c0_i32, %c0_i32_0 : i32, i32, i32
  }
}

module attributes {stable_mosaic.version = 11 : i64} {
  func.func @_gn_conv_kernel(%arg0: i32, %arg1: memref<1x72x256xbf16, #tpu.memory_space<vmem>>, %arg2: memref<8x72xbf16, #tpu.memory_space<vmem>>, %arg3: memref<8x4xf32, #tpu.memory_space<vmem>>, %arg4: memref<1x4x256xbf16, #tpu.memory_space<vmem>>, %arg5: memref<8x4xbf16, #tpu.memory_space<vmem>>, %arg6: memref<1x8x256xbf16, #tpu.memory_space<vmem>>) attributes {dimension_semantics = [#tpu.dimension_semantics<parallel>], iteration_bounds = array<i64: 2>, scalar_prefetch = 0 : i64, scratch_operands = 0 : i64, tpu.core_type = #tpu.core_type<tc>, window_params = [{transform_indices = @transform_0, window_bounds = array<i64: 1, 72, 256>}, {pipeline_mode = #tpu.pipeline_mode<synchronous>, transform_indices = @transform_1, window_bounds = array<i64: 8, 72>}, {pipeline_mode = #tpu.pipeline_mode<synchronous>, transform_indices = @transform_2, window_bounds = array<i64: 8, 4>}, {transform_indices = @transform_3, window_bounds = array<i64: 1, 4, 256>}, {pipeline_mode = #tpu.pipeline_mode<synchronous>, transform_indices = @transform_4, window_bounds = array<i64: 8, 4>}, {transform_indices = @transform_5, window_bounds = array<i64: 1, 8, 256>}]} {
    %c0 = arith.constant 0 : index
    %c0_0 = arith.constant 0 : index
    %0 = vector.load %arg2[%c0, %c0_0] : memref<8x72xbf16, #tpu.memory_space<vmem>>, vector<8x72xbf16>
    %c0_1 = arith.constant 0 : index
    %c0_2 = arith.constant 0 : index
    %c0_3 = arith.constant 0 : index
    %1 = vector.load %arg1[%c0_1, %c0_2, %c0_3] : memref<1x72x256xbf16, #tpu.memory_space<vmem>>, vector<1x72x256xbf16>
    %2 = vector.shape_cast %1 : vector<1x72x256xbf16> to vector<72x256xbf16>
    %cst = arith.constant dense<0.000000e+00> : vector<8x256xf32>
    %3 = tpu.matmul %0, %2, %cst {dimension_numbers = #tpu.dot_dimension_numbers<[1], [0], [0], [1], [0, 0, 1, 1], [], []>} : vector<8x72xbf16>, vector<72x256xbf16>, vector<8x256xf32> -> vector<8x256xf32>
    %c0_4 = arith.constant 0 : index
    %c0_5 = arith.constant 0 : index
    %4 = vector.load %arg3[%c0_4, %c0_5] : memref<8x4xf32, #tpu.memory_space<vmem>>, vector<8x1xf32>
    %5 = vector.broadcast %4 : vector<8x1xf32> to vector<8x256xf32>
    %6 = arith.addf %3, %5 : vector<8x256xf32>
    %7 = vector.shape_cast %6 : vector<8x256xf32> to vector<1x8x256xf32>
    %cst_6 = arith.constant dense<0.000000e+00> : vector<1xf32>
    %8 = vector.multi_reduction <add>, %7, %cst_6 [1, 2] : vector<1x8x256xf32> to vector<1xf32>
    %9 = vector.shape_cast %8 : vector<1xf32> to vector<1x1x1xf32>
    %10 = vector.extract %9[0, 0, 0] : f32 from vector<1x1x1xf32>
    %11 = vector.broadcast %10 : f32 to vector<1x1xf32>
    %cst_7 = arith.constant 2.048000e+03 : f32
    %12 = vector.broadcast %cst_7 : f32 to vector<1x1xf32>
    %13 = arith.divf %11, %12 : vector<1x1xf32>
    %14 = arith.mulf %6, %6 : vector<8x256xf32>
    %15 = vector.shape_cast %14 : vector<8x256xf32> to vector<1x8x256xf32>
    %cst_8 = arith.constant dense<0.000000e+00> : vector<1xf32>
    %16 = vector.multi_reduction <add>, %15, %cst_8 [1, 2] : vector<1x8x256xf32> to vector<1xf32>
    %17 = vector.shape_cast %16 : vector<1xf32> to vector<1x1x1xf32>
    %18 = vector.extract %17[0, 0, 0] : f32 from vector<1x1x1xf32>
    %19 = vector.broadcast %18 : f32 to vector<1x1xf32>
    %cst_9 = arith.constant 2.048000e+03 : f32
    %20 = vector.broadcast %cst_9 : f32 to vector<1x1xf32>
    %21 = arith.divf %19, %20 : vector<1x1xf32>
    %22 = arith.mulf %13, %13 : vector<1x1xf32>
    %23 = arith.subf %21, %22 : vector<1x1xf32>
    %cst_10 = arith.constant 0.000000e+00 : f32
    %24 = vector.broadcast %cst_10 : f32 to vector<1x1xf32>
    %25 = arith.maximumf %23, %24 : vector<1x1xf32>
    %c0_11 = arith.constant 0 : index
    %c1 = arith.constant 1 : index
    %26 = vector.load %arg3[%c0_11, %c1] : memref<8x4xf32, #tpu.memory_space<vmem>>, vector<8x1xf32>
    %cst_12 = arith.constant 9.99999974E-6 : f32
    %27 = vector.broadcast %cst_12 : f32 to vector<1x1xf32>
    %28 = arith.addf %25, %27 : vector<1x1xf32>
    %29 = math.rsqrt %28 : vector<1x1xf32>
    %30 = vector.broadcast %29 : vector<1x1xf32> to vector<8x1xf32>
    %31 = arith.mulf %26, %30 : vector<8x1xf32>
    %c0_13 = arith.constant 0 : index
    %c2 = arith.constant 2 : index
    %32 = vector.load %arg3[%c0_13, %c2] : memref<8x4xf32, #tpu.memory_space<vmem>>, vector<8x1xf32>
    %33 = vector.broadcast %13 : vector<1x1xf32> to vector<8x1xf32>
    %34 = arith.mulf %33, %31 : vector<8x1xf32>
    %35 = arith.subf %32, %34 : vector<8x1xf32>
    %36 = vector.broadcast %31 : vector<8x1xf32> to vector<8x256xf32>
    %37 = arith.mulf %6, %36 : vector<8x256xf32>
    %38 = vector.broadcast %35 : vector<8x1xf32> to vector<8x256xf32>
    %39 = arith.addf %37, %38 : vector<8x256xf32>
    %c0_14 = arith.constant 0 : index
    %c0_15 = arith.constant 0 : index
    %40 = vector.load %arg5[%c0_14, %c0_15] : memref<8x4xbf16, #tpu.memory_space<vmem>>, vector<8x4xbf16>
    %c0_16 = arith.constant 0 : index
    %c0_17 = arith.constant 0 : index
    %c0_18 = arith.constant 0 : index
    %41 = vector.load %arg4[%c0_16, %c0_17, %c0_18] : memref<1x4x256xbf16, #tpu.memory_space<vmem>>, vector<1x4x256xbf16>
    %42 = vector.shape_cast %41 : vector<1x4x256xbf16> to vector<4x256xbf16>
    %cst_19 = arith.constant dense<0.000000e+00> : vector<8x256xf32>
    %43 = tpu.matmul %40, %42, %cst_19 {dimension_numbers = #tpu.dot_dimension_numbers<[1], [0], [0], [1], [0, 0, 1, 1], [], []>} : vector<8x4xbf16>, vector<4x256xbf16>, vector<8x256xf32> -> vector<8x256xf32>
    %44 = arith.addf %39, %43 : vector<8x256xf32>
    %c0_20 = arith.constant 0 : index
    %c3 = arith.constant 3 : index
    %45 = vector.load %arg3[%c0_20, %c3] : memref<8x4xf32, #tpu.memory_space<vmem>>, vector<8x1xf32>
    %46 = vector.broadcast %45 : vector<8x1xf32> to vector<8x256xf32>
    %47 = arith.addf %44, %46 : vector<8x256xf32>
    %cst_21 = arith.constant 0.000000e+00 : f32
    %48 = vector.broadcast %cst_21 : f32 to vector<8x256xf32>
    %49 = arith.maximumf %47, %48 : vector<8x256xf32>
    %50 = arith.truncf %49 : vector<8x256xf32> to vector<8x256xbf16>
    %c0_22 = arith.constant 0 : index
    %c0_23 = arith.constant 0 : index
    %c0_24 = arith.constant 0 : index
    %51 = vector.load %arg6[%c0_22, %c0_23, %c0_24] : memref<1x8x256xbf16, #tpu.memory_space<vmem>>, vector<1x8x256xbf16>
    %52 = vector.shape_cast %51 : vector<1x8x256xbf16> to vector<8x256xbf16>
    %53 = vector.shape_cast %50 : vector<8x256xbf16> to vector<1x8x256xbf16>
    tpu.vector_store %arg6[%c0_22, %c0_23, %c0_24], %53 {strides = array<i32>} : memref<1x8x256xbf16, #tpu.memory_space<vmem>>, vector<1x8x256xbf16>,
    return
  }
  func.func @transform_0(%arg0: i32) -> (i32, i32, i32) {
    %c0_i32 = arith.constant 0 : i32
    %c0_i32_0 = arith.constant 0 : i32
    %c0_i32_1 = arith.constant 0 : i32
    return %arg0, %c0_i32, %c0_i32_0 : i32, i32, i32
  }
  func.func @transform_1(%arg0: i32) -> (i32, i32) {
    %c0_i32 = arith.constant 0 : i32
    %c0_i32_0 = arith.constant 0 : i32
    %c0_i32_1 = arith.constant 0 : i32
    return %c0_i32, %c0_i32_0 : i32, i32
  }
  func.func @transform_2(%arg0: i32) -> (i32, i32) {
    %c0_i32 = arith.constant 0 : i32
    %c0_i32_0 = arith.constant 0 : i32
    %c0_i32_1 = arith.constant 0 : i32
    return %c0_i32, %c0_i32_0 : i32, i32
  }
  func.func @transform_3(%arg0: i32) -> (i32, i32, i32) {
    %c0_i32 = arith.constant 0 : i32
    %c0_i32_0 = arith.constant 0 : i32
    %c0_i32_1 = arith.constant 0 : i32
    return %arg0, %c0_i32, %c0_i32_0 : i32, i32, i32
  }
  func.func @transform_4(%arg0: i32) -> (i32, i32) {
    %c0_i32 = arith.constant 0 : i32
    %c0_i32_0 = arith.constant 0 : i32
    %c0_i32_1 = arith.constant 0 : i32
    return %c0_i32, %c0_i32_0 : i32, i32
  }
  func.func @transform_5(%arg0: i32) -> (i32, i32, i32) {
    %c0_i32 = arith.constant 0 : i32
    %c0_i32_0 = arith.constant 0 : i32
    %c0_i32_1 = arith.constant 0 : i32
    return %arg0, %c0_i32, %c0_i32_0 : i32, i32, i32
  }
}

module attributes {stable_mosaic.version = 11 : i64} {
  func.func @_lane_conv_kernel(%arg0: i32, %arg1: memref<72x128xbf16, #tpu.memory_space<vmem>>, %arg2: memref<8x72xbf16, #tpu.memory_space<vmem>>, %arg3: memref<8x1xf32, #tpu.memory_space<vmem>>, %arg4: memref<8x128xbf16, #tpu.memory_space<vmem>>) attributes {dimension_semantics = [#tpu.dimension_semantics<parallel>], iteration_bounds = array<i64: 1>, scalar_prefetch = 0 : i64, scratch_operands = 0 : i64, tpu.core_type = #tpu.core_type<tc>, window_params = [{transform_indices = @transform_0, window_bounds = array<i64: 72, 128>}, {pipeline_mode = #tpu.pipeline_mode<synchronous>, transform_indices = @transform_1, window_bounds = array<i64: 8, 72>}, {pipeline_mode = #tpu.pipeline_mode<synchronous>, transform_indices = @transform_2, window_bounds = array<i64: 8, 1>}, {transform_indices = @transform_3, window_bounds = array<i64: 8, 128>}]} {
    %c0 = arith.constant 0 : index
    %c0_0 = arith.constant 0 : index
    %0 = vector.load %arg2[%c0, %c0_0] : memref<8x72xbf16, #tpu.memory_space<vmem>>, vector<8x72xbf16>
    %c0_1 = arith.constant 0 : index
    %c0_2 = arith.constant 0 : index
    %1 = vector.load %arg1[%c0_1, %c0_2] : memref<72x128xbf16, #tpu.memory_space<vmem>>, vector<72x128xbf16>
    %cst = arith.constant dense<0.000000e+00> : vector<8x128xf32>
    %2 = tpu.matmul %0, %1, %cst {dimension_numbers = #tpu.dot_dimension_numbers<[1], [0], [0], [1], [0, 0, 1, 1], [], []>} : vector<8x72xbf16>, vector<72x128xbf16>, vector<8x128xf32> -> vector<8x128xf32>
    %c0_3 = arith.constant 0 : index
    %c0_4 = arith.constant 0 : index
    %3 = vector.load %arg3[%c0_3, %c0_4] : memref<8x1xf32, #tpu.memory_space<vmem>>, vector<8x1xf32>
    %4 = vector.broadcast %3 : vector<8x1xf32> to vector<8x128xf32>
    %5 = arith.addf %2, %4 : vector<8x128xf32>
    %6 = arith.truncf %5 : vector<8x128xf32> to vector<8x128xbf16>
    %c0_5 = arith.constant 0 : index
    %c0_6 = arith.constant 0 : index
    %7 = vector.load %arg4[%c0_5, %c0_6] : memref<8x128xbf16, #tpu.memory_space<vmem>>, vector<8x128xbf16>
    tpu.vector_store %arg4[%c0_5, %c0_6], %6 {strides = array<i32>} : memref<8x128xbf16, #tpu.memory_space<vmem>>, vector<8x128xbf16>,
    return
  }
  func.func @transform_0(%arg0: i32) -> (i32, i32) {
    %c0_i32 = arith.constant 0 : i32
    %c0_i32_0 = arith.constant 0 : i32
    return %c0_i32, %arg0 : i32, i32
  }
  func.func @transform_1(%arg0: i32) -> (i32, i32) {
    %c0_i32 = arith.constant 0 : i32
    %c0_i32_0 = arith.constant 0 : i32
    %c0_i32_1 = arith.constant 0 : i32
    return %c0_i32, %c0_i32_0 : i32, i32
  }
  func.func @transform_2(%arg0: i32) -> (i32, i32) {
    %c0_i32 = arith.constant 0 : i32
    %c0_i32_0 = arith.constant 0 : i32
    %c0_i32_1 = arith.constant 0 : i32
    return %c0_i32, %c0_i32_0 : i32, i32
  }
  func.func @transform_3(%arg0: i32) -> (i32, i32) {
    %c0_i32 = arith.constant 0 : i32
    %c0_i32_0 = arith.constant 0 : i32
    return %c0_i32, %arg0 : i32, i32
  }
}

module attributes {stable_mosaic.version = 11 : i64} {
  func.func @_gn_conv_kernel(%arg0: i32, %arg1: memref<1x72x64xbf16, #tpu.memory_space<vmem>>, %arg2: memref<16x72xbf16, #tpu.memory_space<vmem>>, %arg3: memref<16x4xf32, #tpu.memory_space<vmem>>, %arg4: memref<1x16x64xbf16, #tpu.memory_space<vmem>>) attributes {dimension_semantics = [#tpu.dimension_semantics<parallel>], iteration_bounds = array<i64: 2>, scalar_prefetch = 0 : i64, scratch_operands = 0 : i64, tpu.core_type = #tpu.core_type<tc>, window_params = [{transform_indices = @transform_0, window_bounds = array<i64: 1, 72, 64>}, {pipeline_mode = #tpu.pipeline_mode<synchronous>, transform_indices = @transform_1, window_bounds = array<i64: 16, 72>}, {pipeline_mode = #tpu.pipeline_mode<synchronous>, transform_indices = @transform_2, window_bounds = array<i64: 16, 4>}, {transform_indices = @transform_3, window_bounds = array<i64: 1, 16, 64>}]} {
    %c0 = arith.constant 0 : index
    %c0_0 = arith.constant 0 : index
    %0 = vector.load %arg2[%c0, %c0_0] : memref<16x72xbf16, #tpu.memory_space<vmem>>, vector<16x72xbf16>
    %c0_1 = arith.constant 0 : index
    %c0_2 = arith.constant 0 : index
    %c0_3 = arith.constant 0 : index
    %1 = vector.load %arg1[%c0_1, %c0_2, %c0_3] : memref<1x72x64xbf16, #tpu.memory_space<vmem>>, vector<1x72x64xbf16>
    %2 = vector.shape_cast %1 : vector<1x72x64xbf16> to vector<72x64xbf16>
    %cst = arith.constant dense<0.000000e+00> : vector<16x64xf32>
    %3 = tpu.matmul %0, %2, %cst {dimension_numbers = #tpu.dot_dimension_numbers<[1], [0], [0], [1], [0, 0, 1, 1], [], []>} : vector<16x72xbf16>, vector<72x64xbf16>, vector<16x64xf32> -> vector<16x64xf32>
    %c0_4 = arith.constant 0 : index
    %c0_5 = arith.constant 0 : index
    %4 = vector.load %arg3[%c0_4, %c0_5] : memref<16x4xf32, #tpu.memory_space<vmem>>, vector<16x1xf32>
    %5 = vector.broadcast %4 : vector<16x1xf32> to vector<16x64xf32>
    %6 = arith.addf %3, %5 : vector<16x64xf32>
    %7 = vector.shape_cast %6 : vector<16x64xf32> to vector<1x16x64xf32>
    %cst_6 = arith.constant dense<0.000000e+00> : vector<1xf32>
    %8 = vector.multi_reduction <add>, %7, %cst_6 [1, 2] : vector<1x16x64xf32> to vector<1xf32>
    %9 = vector.shape_cast %8 : vector<1xf32> to vector<1x1x1xf32>
    %10 = vector.extract %9[0, 0, 0] : f32 from vector<1x1x1xf32>
    %11 = vector.broadcast %10 : f32 to vector<1x1xf32>
    %cst_7 = arith.constant 1.024000e+03 : f32
    %12 = vector.broadcast %cst_7 : f32 to vector<1x1xf32>
    %13 = arith.divf %11, %12 : vector<1x1xf32>
    %14 = arith.mulf %6, %6 : vector<16x64xf32>
    %15 = vector.shape_cast %14 : vector<16x64xf32> to vector<1x16x64xf32>
    %cst_8 = arith.constant dense<0.000000e+00> : vector<1xf32>
    %16 = vector.multi_reduction <add>, %15, %cst_8 [1, 2] : vector<1x16x64xf32> to vector<1xf32>
    %17 = vector.shape_cast %16 : vector<1xf32> to vector<1x1x1xf32>
    %18 = vector.extract %17[0, 0, 0] : f32 from vector<1x1x1xf32>
    %19 = vector.broadcast %18 : f32 to vector<1x1xf32>
    %cst_9 = arith.constant 1.024000e+03 : f32
    %20 = vector.broadcast %cst_9 : f32 to vector<1x1xf32>
    %21 = arith.divf %19, %20 : vector<1x1xf32>
    %22 = arith.mulf %13, %13 : vector<1x1xf32>
    %23 = arith.subf %21, %22 : vector<1x1xf32>
    %cst_10 = arith.constant 0.000000e+00 : f32
    %24 = vector.broadcast %cst_10 : f32 to vector<1x1xf32>
    %25 = arith.maximumf %23, %24 : vector<1x1xf32>
    %c0_11 = arith.constant 0 : index
    %c1 = arith.constant 1 : index
    %26 = vector.load %arg3[%c0_11, %c1] : memref<16x4xf32, #tpu.memory_space<vmem>>, vector<16x1xf32>
    %cst_12 = arith.constant 9.99999974E-6 : f32
    %27 = vector.broadcast %cst_12 : f32 to vector<1x1xf32>
    %28 = arith.addf %25, %27 : vector<1x1xf32>
    %29 = math.rsqrt %28 : vector<1x1xf32>
    %30 = vector.broadcast %29 : vector<1x1xf32> to vector<16x1xf32>
    %31 = arith.mulf %26, %30 : vector<16x1xf32>
    %c0_13 = arith.constant 0 : index
    %c2 = arith.constant 2 : index
    %32 = vector.load %arg3[%c0_13, %c2] : memref<16x4xf32, #tpu.memory_space<vmem>>, vector<16x1xf32>
    %33 = vector.broadcast %13 : vector<1x1xf32> to vector<16x1xf32>
    %34 = arith.mulf %33, %31 : vector<16x1xf32>
    %35 = arith.subf %32, %34 : vector<16x1xf32>
    %36 = vector.broadcast %31 : vector<16x1xf32> to vector<16x64xf32>
    %37 = arith.mulf %6, %36 : vector<16x64xf32>
    %38 = vector.broadcast %35 : vector<16x1xf32> to vector<16x64xf32>
    %39 = arith.addf %37, %38 : vector<16x64xf32>
    %cst_14 = arith.constant 0.000000e+00 : f32
    %40 = vector.broadcast %cst_14 : f32 to vector<16x64xf32>
    %41 = arith.maximumf %39, %40 : vector<16x64xf32>
    %42 = arith.truncf %41 : vector<16x64xf32> to vector<16x64xbf16>
    %c0_15 = arith.constant 0 : index
    %c0_16 = arith.constant 0 : index
    %c0_17 = arith.constant 0 : index
    %43 = vector.load %arg4[%c0_15, %c0_16, %c0_17] : memref<1x16x64xbf16, #tpu.memory_space<vmem>>, vector<1x16x64xbf16>
    %44 = vector.shape_cast %43 : vector<1x16x64xbf16> to vector<16x64xbf16>
    %45 = vector.shape_cast %42 : vector<16x64xbf16> to vector<1x16x64xbf16>
    tpu.vector_store %arg4[%c0_15, %c0_16, %c0_17], %45 {strides = array<i32>} : memref<1x16x64xbf16, #tpu.memory_space<vmem>>, vector<1x16x64xbf16>,
    return
  }
  func.func @transform_0(%arg0: i32) -> (i32, i32, i32) {
    %c0_i32 = arith.constant 0 : i32
    %c0_i32_0 = arith.constant 0 : i32
    %c0_i32_1 = arith.constant 0 : i32
    return %arg0, %c0_i32, %c0_i32_0 : i32, i32, i32
  }
  func.func @transform_1(%arg0: i32) -> (i32, i32) {
    %c0_i32 = arith.constant 0 : i32
    %c0_i32_0 = arith.constant 0 : i32
    %c0_i32_1 = arith.constant 0 : i32
    return %c0_i32, %c0_i32_0 : i32, i32
  }
  func.func @transform_2(%arg0: i32) -> (i32, i32) {
    %c0_i32 = arith.constant 0 : i32
    %c0_i32_0 = arith.constant 0 : i32
    %c0_i32_1 = arith.constant 0 : i32
    return %c0_i32, %c0_i32_0 : i32, i32
  }
  func.func @transform_3(%arg0: i32) -> (i32, i32, i32) {
    %c0_i32 = arith.constant 0 : i32
    %c0_i32_0 = arith.constant 0 : i32
    %c0_i32_1 = arith.constant 0 : i32
    return %arg0, %c0_i32, %c0_i32_0 : i32, i32, i32
  }
}

module attributes {stable_mosaic.version = 11 : i64} {
  func.func @_gn_conv_kernel(%arg0: i32, %arg1: memref<1x144x64xbf16, #tpu.memory_space<vmem>>, %arg2: memref<16x144xbf16, #tpu.memory_space<vmem>>, %arg3: memref<16x4xf32, #tpu.memory_space<vmem>>, %arg4: memref<1x8x64xbf16, #tpu.memory_space<vmem>>, %arg5: memref<16x8xbf16, #tpu.memory_space<vmem>>, %arg6: memref<1x16x64xbf16, #tpu.memory_space<vmem>>) attributes {dimension_semantics = [#tpu.dimension_semantics<parallel>], iteration_bounds = array<i64: 2>, scalar_prefetch = 0 : i64, scratch_operands = 0 : i64, tpu.core_type = #tpu.core_type<tc>, window_params = [{transform_indices = @transform_0, window_bounds = array<i64: 1, 144, 64>}, {pipeline_mode = #tpu.pipeline_mode<synchronous>, transform_indices = @transform_1, window_bounds = array<i64: 16, 144>}, {pipeline_mode = #tpu.pipeline_mode<synchronous>, transform_indices = @transform_2, window_bounds = array<i64: 16, 4>}, {transform_indices = @transform_3, window_bounds = array<i64: 1, 8, 64>}, {pipeline_mode = #tpu.pipeline_mode<synchronous>, transform_indices = @transform_4, window_bounds = array<i64: 16, 8>}, {transform_indices = @transform_5, window_bounds = array<i64: 1, 16, 64>}]} {
    %c0 = arith.constant 0 : index
    %c0_0 = arith.constant 0 : index
    %0 = vector.load %arg2[%c0, %c0_0] : memref<16x144xbf16, #tpu.memory_space<vmem>>, vector<16x144xbf16>
    %c0_1 = arith.constant 0 : index
    %c0_2 = arith.constant 0 : index
    %c0_3 = arith.constant 0 : index
    %1 = vector.load %arg1[%c0_1, %c0_2, %c0_3] : memref<1x144x64xbf16, #tpu.memory_space<vmem>>, vector<1x144x64xbf16>
    %2 = vector.shape_cast %1 : vector<1x144x64xbf16> to vector<144x64xbf16>
    %cst = arith.constant dense<0.000000e+00> : vector<16x64xf32>
    %3 = tpu.matmul %0, %2, %cst {dimension_numbers = #tpu.dot_dimension_numbers<[1], [0], [0], [1], [0, 0, 1, 1], [], []>} : vector<16x144xbf16>, vector<144x64xbf16>, vector<16x64xf32> -> vector<16x64xf32>
    %c0_4 = arith.constant 0 : index
    %c0_5 = arith.constant 0 : index
    %4 = vector.load %arg3[%c0_4, %c0_5] : memref<16x4xf32, #tpu.memory_space<vmem>>, vector<16x1xf32>
    %5 = vector.broadcast %4 : vector<16x1xf32> to vector<16x64xf32>
    %6 = arith.addf %3, %5 : vector<16x64xf32>
    %7 = vector.shape_cast %6 : vector<16x64xf32> to vector<1x16x64xf32>
    %cst_6 = arith.constant dense<0.000000e+00> : vector<1xf32>
    %8 = vector.multi_reduction <add>, %7, %cst_6 [1, 2] : vector<1x16x64xf32> to vector<1xf32>
    %9 = vector.shape_cast %8 : vector<1xf32> to vector<1x1x1xf32>
    %10 = vector.extract %9[0, 0, 0] : f32 from vector<1x1x1xf32>
    %11 = vector.broadcast %10 : f32 to vector<1x1xf32>
    %cst_7 = arith.constant 1.024000e+03 : f32
    %12 = vector.broadcast %cst_7 : f32 to vector<1x1xf32>
    %13 = arith.divf %11, %12 : vector<1x1xf32>
    %14 = arith.mulf %6, %6 : vector<16x64xf32>
    %15 = vector.shape_cast %14 : vector<16x64xf32> to vector<1x16x64xf32>
    %cst_8 = arith.constant dense<0.000000e+00> : vector<1xf32>
    %16 = vector.multi_reduction <add>, %15, %cst_8 [1, 2] : vector<1x16x64xf32> to vector<1xf32>
    %17 = vector.shape_cast %16 : vector<1xf32> to vector<1x1x1xf32>
    %18 = vector.extract %17[0, 0, 0] : f32 from vector<1x1x1xf32>
    %19 = vector.broadcast %18 : f32 to vector<1x1xf32>
    %cst_9 = arith.constant 1.024000e+03 : f32
    %20 = vector.broadcast %cst_9 : f32 to vector<1x1xf32>
    %21 = arith.divf %19, %20 : vector<1x1xf32>
    %22 = arith.mulf %13, %13 : vector<1x1xf32>
    %23 = arith.subf %21, %22 : vector<1x1xf32>
    %cst_10 = arith.constant 0.000000e+00 : f32
    %24 = vector.broadcast %cst_10 : f32 to vector<1x1xf32>
    %25 = arith.maximumf %23, %24 : vector<1x1xf32>
    %c0_11 = arith.constant 0 : index
    %c1 = arith.constant 1 : index
    %26 = vector.load %arg3[%c0_11, %c1] : memref<16x4xf32, #tpu.memory_space<vmem>>, vector<16x1xf32>
    %cst_12 = arith.constant 9.99999974E-6 : f32
    %27 = vector.broadcast %cst_12 : f32 to vector<1x1xf32>
    %28 = arith.addf %25, %27 : vector<1x1xf32>
    %29 = math.rsqrt %28 : vector<1x1xf32>
    %30 = vector.broadcast %29 : vector<1x1xf32> to vector<16x1xf32>
    %31 = arith.mulf %26, %30 : vector<16x1xf32>
    %c0_13 = arith.constant 0 : index
    %c2 = arith.constant 2 : index
    %32 = vector.load %arg3[%c0_13, %c2] : memref<16x4xf32, #tpu.memory_space<vmem>>, vector<16x1xf32>
    %33 = vector.broadcast %13 : vector<1x1xf32> to vector<16x1xf32>
    %34 = arith.mulf %33, %31 : vector<16x1xf32>
    %35 = arith.subf %32, %34 : vector<16x1xf32>
    %36 = vector.broadcast %31 : vector<16x1xf32> to vector<16x64xf32>
    %37 = arith.mulf %6, %36 : vector<16x64xf32>
    %38 = vector.broadcast %35 : vector<16x1xf32> to vector<16x64xf32>
    %39 = arith.addf %37, %38 : vector<16x64xf32>
    %c0_14 = arith.constant 0 : index
    %c0_15 = arith.constant 0 : index
    %40 = vector.load %arg5[%c0_14, %c0_15] : memref<16x8xbf16, #tpu.memory_space<vmem>>, vector<16x8xbf16>
    %c0_16 = arith.constant 0 : index
    %c0_17 = arith.constant 0 : index
    %c0_18 = arith.constant 0 : index
    %41 = vector.load %arg4[%c0_16, %c0_17, %c0_18] : memref<1x8x64xbf16, #tpu.memory_space<vmem>>, vector<1x8x64xbf16>
    %42 = vector.shape_cast %41 : vector<1x8x64xbf16> to vector<8x64xbf16>
    %cst_19 = arith.constant dense<0.000000e+00> : vector<16x64xf32>
    %43 = tpu.matmul %40, %42, %cst_19 {dimension_numbers = #tpu.dot_dimension_numbers<[1], [0], [0], [1], [0, 0, 1, 1], [], []>} : vector<16x8xbf16>, vector<8x64xbf16>, vector<16x64xf32> -> vector<16x64xf32>
    %44 = arith.addf %39, %43 : vector<16x64xf32>
    %c0_20 = arith.constant 0 : index
    %c3 = arith.constant 3 : index
    %45 = vector.load %arg3[%c0_20, %c3] : memref<16x4xf32, #tpu.memory_space<vmem>>, vector<16x1xf32>
    %46 = vector.broadcast %45 : vector<16x1xf32> to vector<16x64xf32>
    %47 = arith.addf %44, %46 : vector<16x64xf32>
    %cst_21 = arith.constant 0.000000e+00 : f32
    %48 = vector.broadcast %cst_21 : f32 to vector<16x64xf32>
    %49 = arith.maximumf %47, %48 : vector<16x64xf32>
    %50 = arith.truncf %49 : vector<16x64xf32> to vector<16x64xbf16>
    %c0_22 = arith.constant 0 : index
    %c0_23 = arith.constant 0 : index
    %c0_24 = arith.constant 0 : index
    %51 = vector.load %arg6[%c0_22, %c0_23, %c0_24] : memref<1x16x64xbf16, #tpu.memory_space<vmem>>, vector<1x16x64xbf16>
    %52 = vector.shape_cast %51 : vector<1x16x64xbf16> to vector<16x64xbf16>
    %53 = vector.shape_cast %50 : vector<16x64xbf16> to vector<1x16x64xbf16>
    tpu.vector_store %arg6[%c0_22, %c0_23, %c0_24], %53 {strides = array<i32>} : memref<1x16x64xbf16, #tpu.memory_space<vmem>>, vector<1x16x64xbf16>,
    return
  }
  func.func @transform_0(%arg0: i32) -> (i32, i32, i32) {
    %c0_i32 = arith.constant 0 : i32
    %c0_i32_0 = arith.constant 0 : i32
    %c0_i32_1 = arith.constant 0 : i32
    return %arg0, %c0_i32, %c0_i32_0 : i32, i32, i32
  }
  func.func @transform_1(%arg0: i32) -> (i32, i32) {
    %c0_i32 = arith.constant 0 : i32
    %c0_i32_0 = arith.constant 0 : i32
    %c0_i32_1 = arith.constant 0 : i32
    return %c0_i32, %c0_i32_0 : i32, i32
  }
  func.func @transform_2(%arg0: i32) -> (i32, i32) {
    %c0_i32 = arith.constant 0 : i32
    %c0_i32_0 = arith.constant 0 : i32
    %c0_i32_1 = arith.constant 0 : i32
    return %c0_i32, %c0_i32_0 : i32, i32
  }
  func.func @transform_3(%arg0: i32) -> (i32, i32, i32) {
    %c0_i32 = arith.constant 0 : i32
    %c0_i32_0 = arith.constant 0 : i32
    %c0_i32_1 = arith.constant 0 : i32
    return %arg0, %c0_i32, %c0_i32_0 : i32, i32, i32
  }
  func.func @transform_4(%arg0: i32) -> (i32, i32) {
    %c0_i32 = arith.constant 0 : i32
    %c0_i32_0 = arith.constant 0 : i32
    %c0_i32_1 = arith.constant 0 : i32
    return %c0_i32, %c0_i32_0 : i32, i32
  }
  func.func @transform_5(%arg0: i32) -> (i32, i32, i32) {
    %c0_i32 = arith.constant 0 : i32
    %c0_i32_0 = arith.constant 0 : i32
    %c0_i32_1 = arith.constant 0 : i32
    return %arg0, %c0_i32, %c0_i32_0 : i32, i32, i32
  }
}

module attributes {stable_mosaic.version = 11 : i64} {
  func.func @_lane_conv_kernel(%arg0: i32, %arg1: memref<16x128xbf16, #tpu.memory_space<vmem>>, %arg2: memref<48x16xbf16, #tpu.memory_space<vmem>>, %arg3: memref<48x1xf32, #tpu.memory_space<vmem>>, %arg4: memref<48x128xbf16, #tpu.memory_space<vmem>>) attributes {dimension_semantics = [#tpu.dimension_semantics<parallel>], iteration_bounds = array<i64: 1>, scalar_prefetch = 0 : i64, scratch_operands = 0 : i64, tpu.core_type = #tpu.core_type<tc>, window_params = [{transform_indices = @transform_0, window_bounds = array<i64: 16, 128>}, {pipeline_mode = #tpu.pipeline_mode<synchronous>, transform_indices = @transform_1, window_bounds = array<i64: 48, 16>}, {pipeline_mode = #tpu.pipeline_mode<synchronous>, transform_indices = @transform_2, window_bounds = array<i64: 48, 1>}, {transform_indices = @transform_3, window_bounds = array<i64: 48, 128>}]} {
    %c0 = arith.constant 0 : index
    %c0_0 = arith.constant 0 : index
    %0 = vector.load %arg2[%c0, %c0_0] : memref<48x16xbf16, #tpu.memory_space<vmem>>, vector<48x16xbf16>
    %c0_1 = arith.constant 0 : index
    %c0_2 = arith.constant 0 : index
    %1 = vector.load %arg1[%c0_1, %c0_2] : memref<16x128xbf16, #tpu.memory_space<vmem>>, vector<16x128xbf16>
    %cst = arith.constant dense<0.000000e+00> : vector<48x128xf32>
    %2 = tpu.matmul %0, %1, %cst {dimension_numbers = #tpu.dot_dimension_numbers<[1], [0], [0], [1], [0, 0, 1, 1], [], []>} : vector<48x16xbf16>, vector<16x128xbf16>, vector<48x128xf32> -> vector<48x128xf32>
    %c0_3 = arith.constant 0 : index
    %c0_4 = arith.constant 0 : index
    %3 = vector.load %arg3[%c0_3, %c0_4] : memref<48x1xf32, #tpu.memory_space<vmem>>, vector<48x1xf32>
    %4 = vector.broadcast %3 : vector<48x1xf32> to vector<48x128xf32>
    %5 = arith.addf %2, %4 : vector<48x128xf32>
    %6 = arith.truncf %5 : vector<48x128xf32> to vector<48x128xbf16>
    %c0_5 = arith.constant 0 : index
    %c0_6 = arith.constant 0 : index
    %7 = vector.load %arg4[%c0_5, %c0_6] : memref<48x128xbf16, #tpu.memory_space<vmem>>, vector<48x128xbf16>
    tpu.vector_store %arg4[%c0_5, %c0_6], %6 {strides = array<i32>} : memref<48x128xbf16, #tpu.memory_space<vmem>>, vector<48x128xbf16>,
    return
  }
  func.func @transform_0(%arg0: i32) -> (i32, i32) {
    %c0_i32 = arith.constant 0 : i32
    %c0_i32_0 = arith.constant 0 : i32
    return %c0_i32, %arg0 : i32, i32
  }
  func.func @transform_1(%arg0: i32) -> (i32, i32) {
    %c0_i32 = arith.constant 0 : i32
    %c0_i32_0 = arith.constant 0 : i32
    %c0_i32_1 = arith.constant 0 : i32
    return %c0_i32, %c0_i32_0 : i32, i32
  }
  func.func @transform_2(%arg0: i32) -> (i32, i32) {
    %c0_i32 = arith.constant 0 : i32
    %c0_i32_0 = arith.constant 0 : i32
    %c0_i32_1 = arith.constant 0 : i32
    return %c0_i32, %c0_i32_0 : i32, i32
  }
  func.func @transform_3(%arg0: i32) -> (i32, i32) {
    %c0_i32 = arith.constant 0 : i32
    %c0_i32_0 = arith.constant 0 : i32
    return %c0_i32, %arg0 : i32, i32
  }
}

module attributes {stable_mosaic.version = 11 : i64} {
  func.func @_attn_core_kernel(%arg0: i32, %arg1: i32, %arg2: i32, %arg3: memref<1x16x64xbf16, #tpu.memory_space<vmem>>, %arg4: memref<1x16x64xbf16, #tpu.memory_space<vmem>>, %arg5: memref<1x16x64xbf16, #tpu.memory_space<vmem>>, %arg6: memref<1x16x64xbf16, #tpu.memory_space<vmem>>) attributes {dimension_semantics = [#tpu.dimension_semantics<parallel>, #tpu.dimension_semantics<parallel>, #tpu.dimension_semantics<parallel>], iteration_bounds = array<i64: 2, 1, 1>, scalar_prefetch = 0 : i64, scratch_operands = 0 : i64, tpu.core_type = #tpu.core_type<tc>, window_params = [{transform_indices = @transform_0, window_bounds = array<i64: 1, 16, 64>}, {transform_indices = @transform_1, window_bounds = array<i64: 1, 16, 64>}, {transform_indices = @transform_2, window_bounds = array<i64: 1, 16, 64>}, {transform_indices = @transform_3, window_bounds = array<i64: 1, 16, 64>}]} {
    %c0 = arith.constant 0 : index
    %c0_0 = arith.constant 0 : index
    %c0_1 = arith.constant 0 : index
    %0 = vector.load %arg3[%c0, %c0_0, %c0_1] : memref<1x16x64xbf16, #tpu.memory_space<vmem>>, vector<1x16x64xbf16>
    %1 = vector.shape_cast %0 : vector<1x16x64xbf16> to vector<16x64xbf16>
    %c0_2 = arith.constant 0 : index
    %c0_3 = arith.constant 0 : index
    %c0_4 = arith.constant 0 : index
    %2 = vector.load %arg4[%c0_2, %c0_3, %c0_4] : memref<1x16x64xbf16, #tpu.memory_space<vmem>>, vector<1x16x64xbf16>
    %3 = vector.shape_cast %2 : vector<1x16x64xbf16> to vector<16x64xbf16>
    %c0_5 = arith.constant 0 : index
    %c0_6 = arith.constant 0 : index
    %c0_7 = arith.constant 0 : index
    %4 = vector.load %arg5[%c0_5, %c0_6, %c0_7] : memref<1x16x64xbf16, #tpu.memory_space<vmem>>, vector<1x16x64xbf16>
    %5 = vector.shape_cast %4 : vector<1x16x64xbf16> to vector<16x64xbf16>
    %cst = arith.constant dense<0.000000e+00> : vector<64x64xf32>
    %6 = tpu.matmul %1, %3, %cst {dimension_numbers = #tpu.dot_dimension_numbers<[0], [0], [1], [1], [0, 1, 1, 1], [], []>} : vector<16x64xbf16>, vector<16x64xbf16>, vector<64x64xf32> -> vector<64x64xf32>
    %cst_8 = arith.constant 2.500000e-01 : f32
    %7 = vector.broadcast %cst_8 : f32 to vector<64x64xf32>
    %8 = arith.mulf %6, %7 : vector<64x64xf32>
    %cst_9 = arith.constant dense<0xFF800000> : vector<64xf32>
    %9 = vector.multi_reduction <maximumf>, %8, %cst_9 [1] : vector<64x64xf32> to vector<64xf32>
    %10 = vector.shape_cast %9 : vector<64xf32> to vector<64x1xf32>
    %11 = vector.broadcast %10 : vector<64x1xf32> to vector<64x64xf32>
    %12 = arith.subf %8, %11 : vector<64x64xf32>
    %13 = math.exp %12 : vector<64x64xf32>
    %cst_10 = arith.constant dense<0.000000e+00> : vector<64xf32>
    %14 = vector.multi_reduction <add>, %13, %cst_10 [1] : vector<64x64xf32> to vector<64xf32>
    %15 = vector.shape_cast %14 : vector<64xf32> to vector<64x1xf32>
    %16 = vector.broadcast %15 : vector<64x1xf32> to vector<64x64xf32>
    %17 = arith.divf %13, %16 : vector<64x64xf32>
    %18 = arith.truncf %17 : vector<64x64xf32> to vector<64x64xbf16>
    %cst_11 = arith.constant dense<0.000000e+00> : vector<16x64xf32>
    %19 = tpu.matmul %5, %18, %cst_11 {dimension_numbers = #tpu.dot_dimension_numbers<[1], [1], [0], [0], [0, 0, 1, 0], [], []>} : vector<16x64xbf16>, vector<64x64xbf16>, vector<16x64xf32> -> vector<16x64xf32>
    %20 = arith.truncf %19 : vector<16x64xf32> to vector<16x64xbf16>
    %c0_12 = arith.constant 0 : index
    %c0_13 = arith.constant 0 : index
    %c0_14 = arith.constant 0 : index
    %21 = vector.load %arg6[%c0_12, %c0_13, %c0_14] : memref<1x16x64xbf16, #tpu.memory_space<vmem>>, vector<1x16x64xbf16>
    %22 = vector.shape_cast %21 : vector<1x16x64xbf16> to vector<16x64xbf16>
    %23 = vector.shape_cast %20 : vector<16x64xbf16> to vector<1x16x64xbf16>
    tpu.vector_store %arg6[%c0_12, %c0_13, %c0_14], %23 {strides = array<i32>} : memref<1x16x64xbf16, #tpu.memory_space<vmem>>, vector<1x16x64xbf16>,
    return
  }
  func.func @transform_0(%arg0: i32, %arg1: i32, %arg2: i32) -> (i32, i32, i32) {
    %c0_i32 = arith.constant 0 : i32
    return %arg0, %arg1, %arg2 : i32, i32, i32
  }
  func.func @transform_1(%arg0: i32, %arg1: i32, %arg2: i32) -> (i32, i32, i32) {
    %c1_i32 = arith.constant 1 : i32
    %0 = arith.addi %c1_i32, %arg1 : i32
    %c0_i32 = arith.constant 0 : i32
    %c0_i32_0 = arith.constant 0 : i32
    return %arg0, %0, %c0_i32 : i32, i32, i32
  }
  func.func @transform_2(%arg0: i32, %arg1: i32, %arg2: i32) -> (i32, i32, i32) {
    %c2_i32 = arith.constant 2 : i32
    %0 = arith.addi %c2_i32, %arg1 : i32
    %c0_i32 = arith.constant 0 : i32
    %c0_i32_0 = arith.constant 0 : i32
    return %arg0, %0, %c0_i32 : i32, i32, i32
  }
  func.func @transform_3(%arg0: i32, %arg1: i32, %arg2: i32) -> (i32, i32, i32) {
    %c0_i32 = arith.constant 0 : i32
    return %arg0, %arg1, %arg2 : i32, i32, i32
  }
}

module attributes {stable_mosaic.version = 11 : i64} {
  func.func @_lane_conv_kernel(%arg0: i32, %arg1: memref<16x128xbf16, #tpu.memory_space<vmem>>, %arg2: memref<16x16xbf16, #tpu.memory_space<vmem>>, %arg3: memref<16x1xf32, #tpu.memory_space<vmem>>, %arg4: memref<16x128xbf16, #tpu.memory_space<vmem>>) attributes {dimension_semantics = [#tpu.dimension_semantics<parallel>], iteration_bounds = array<i64: 1>, scalar_prefetch = 0 : i64, scratch_operands = 0 : i64, tpu.core_type = #tpu.core_type<tc>, window_params = [{transform_indices = @transform_0, window_bounds = array<i64: 16, 128>}, {pipeline_mode = #tpu.pipeline_mode<synchronous>, transform_indices = @transform_1, window_bounds = array<i64: 16, 16>}, {pipeline_mode = #tpu.pipeline_mode<synchronous>, transform_indices = @transform_2, window_bounds = array<i64: 16, 1>}, {transform_indices = @transform_3, window_bounds = array<i64: 16, 128>}]} {
    %c0 = arith.constant 0 : index
    %c0_0 = arith.constant 0 : index
    %0 = vector.load %arg2[%c0, %c0_0] : memref<16x16xbf16, #tpu.memory_space<vmem>>, vector<16x16xbf16>
    %c0_1 = arith.constant 0 : index
    %c0_2 = arith.constant 0 : index
    %1 = vector.load %arg1[%c0_1, %c0_2] : memref<16x128xbf16, #tpu.memory_space<vmem>>, vector<16x128xbf16>
    %cst = arith.constant dense<0.000000e+00> : vector<16x128xf32>
    %2 = tpu.matmul %0, %1, %cst {dimension_numbers = #tpu.dot_dimension_numbers<[1], [0], [0], [1], [0, 0, 1, 1], [], []>} : vector<16x16xbf16>, vector<16x128xbf16>, vector<16x128xf32> -> vector<16x128xf32>
    %c0_3 = arith.constant 0 : index
    %c0_4 = arith.constant 0 : index
    %3 = vector.load %arg3[%c0_3, %c0_4] : memref<16x1xf32, #tpu.memory_space<vmem>>, vector<16x1xf32>
    %4 = vector.broadcast %3 : vector<16x1xf32> to vector<16x128xf32>
    %5 = arith.addf %2, %4 : vector<16x128xf32>
    %6 = arith.truncf %5 : vector<16x128xf32> to vector<16x128xbf16>
    %c0_5 = arith.constant 0 : index
    %c0_6 = arith.constant 0 : index
    %7 = vector.load %arg4[%c0_5, %c0_6] : memref<16x128xbf16, #tpu.memory_space<vmem>>, vector<16x128xbf16>
    tpu.vector_store %arg4[%c0_5, %c0_6], %6 {strides = array<i32>} : memref<16x128xbf16, #tpu.memory_space<vmem>>, vector<16x128xbf16>,
    return
  }
  func.func @transform_0(%arg0: i32) -> (i32, i32) {
    %c0_i32 = arith.constant 0 : i32
    %c0_i32_0 = arith.constant 0 : i32
    return %c0_i32, %arg0 : i32, i32
  }
  func.func @transform_1(%arg0: i32) -> (i32, i32) {
    %c0_i32 = arith.constant 0 : i32
    %c0_i32_0 = arith.constant 0 : i32
    %c0_i32_1 = arith.constant 0 : i32
    return %c0_i32, %c0_i32_0 : i32, i32
  }
  func.func @transform_2(%arg0: i32) -> (i32, i32) {
    %c0_i32 = arith.constant 0 : i32
    %c0_i32_0 = arith.constant 0 : i32
    %c0_i32_1 = arith.constant 0 : i32
    return %c0_i32, %c0_i32_0 : i32, i32
  }
  func.func @transform_3(%arg0: i32) -> (i32, i32) {
    %c0_i32 = arith.constant 0 : i32
    %c0_i32_0 = arith.constant 0 : i32
    return %c0_i32, %arg0 : i32, i32
  }
}

module attributes {stable_mosaic.version = 11 : i64} {
  func.func @_lane_conv_kernel(%arg0: i32, %arg1: memref<144x128xbf16, #tpu.memory_space<vmem>>, %arg2: memref<16x144xbf16, #tpu.memory_space<vmem>>, %arg3: memref<16x1xf32, #tpu.memory_space<vmem>>, %arg4: memref<16x128xbf16, #tpu.memory_space<vmem>>) attributes {dimension_semantics = [#tpu.dimension_semantics<parallel>], iteration_bounds = array<i64: 1>, scalar_prefetch = 0 : i64, scratch_operands = 0 : i64, tpu.core_type = #tpu.core_type<tc>, window_params = [{transform_indices = @transform_0, window_bounds = array<i64: 144, 128>}, {pipeline_mode = #tpu.pipeline_mode<synchronous>, transform_indices = @transform_1, window_bounds = array<i64: 16, 144>}, {pipeline_mode = #tpu.pipeline_mode<synchronous>, transform_indices = @transform_2, window_bounds = array<i64: 16, 1>}, {transform_indices = @transform_3, window_bounds = array<i64: 16, 128>}]} {
    %c0 = arith.constant 0 : index
    %c0_0 = arith.constant 0 : index
    %0 = vector.load %arg2[%c0, %c0_0] : memref<16x144xbf16, #tpu.memory_space<vmem>>, vector<16x144xbf16>
    %c0_1 = arith.constant 0 : index
    %c0_2 = arith.constant 0 : index
    %1 = vector.load %arg1[%c0_1, %c0_2] : memref<144x128xbf16, #tpu.memory_space<vmem>>, vector<144x128xbf16>
    %cst = arith.constant dense<0.000000e+00> : vector<16x128xf32>
    %2 = tpu.matmul %0, %1, %cst {dimension_numbers = #tpu.dot_dimension_numbers<[1], [0], [0], [1], [0, 0, 1, 1], [], []>} : vector<16x144xbf16>, vector<144x128xbf16>, vector<16x128xf32> -> vector<16x128xf32>
    %c0_3 = arith.constant 0 : index
    %c0_4 = arith.constant 0 : index
    %3 = vector.load %arg3[%c0_3, %c0_4] : memref<16x1xf32, #tpu.memory_space<vmem>>, vector<16x1xf32>
    %4 = vector.broadcast %3 : vector<16x1xf32> to vector<16x128xf32>
    %5 = arith.addf %2, %4 : vector<16x128xf32>
    %6 = arith.truncf %5 : vector<16x128xf32> to vector<16x128xbf16>
    %c0_5 = arith.constant 0 : index
    %c0_6 = arith.constant 0 : index
    %7 = vector.load %arg4[%c0_5, %c0_6] : memref<16x128xbf16, #tpu.memory_space<vmem>>, vector<16x128xbf16>
    tpu.vector_store %arg4[%c0_5, %c0_6], %6 {strides = array<i32>} : memref<16x128xbf16, #tpu.memory_space<vmem>>, vector<16x128xbf16>,
    return
  }
  func.func @transform_0(%arg0: i32) -> (i32, i32) {
    %c0_i32 = arith.constant 0 : i32
    %c0_i32_0 = arith.constant 0 : i32
    return %c0_i32, %arg0 : i32, i32
  }
  func.func @transform_1(%arg0: i32) -> (i32, i32) {
    %c0_i32 = arith.constant 0 : i32
    %c0_i32_0 = arith.constant 0 : i32
    %c0_i32_1 = arith.constant 0 : i32
    return %c0_i32, %c0_i32_0 : i32, i32
  }
  func.func @transform_2(%arg0: i32) -> (i32, i32) {
    %c0_i32 = arith.constant 0 : i32
    %c0_i32_0 = arith.constant 0 : i32
    %c0_i32_1 = arith.constant 0 : i32
    return %c0_i32, %c0_i32_0 : i32, i32
  }
  func.func @transform_3(%arg0: i32) -> (i32, i32) {
    %c0_i32 = arith.constant 0 : i32
    %c0_i32_0 = arith.constant 0 : i32
    return %c0_i32, %arg0 : i32, i32
  }
}

module attributes {stable_mosaic.version = 11 : i64} {
  func.func @_gn_conv_kernel(%arg0: i32, %arg1: memref<1x72x64xbf16, #tpu.memory_space<vmem>>, %arg2: memref<8x72xbf16, #tpu.memory_space<vmem>>, %arg3: memref<8x4xf32, #tpu.memory_space<vmem>>, %arg4: memref<1x16x64xbf16, #tpu.memory_space<vmem>>, %arg5: memref<8x16xbf16, #tpu.memory_space<vmem>>, %arg6: memref<1x8x64xbf16, #tpu.memory_space<vmem>>) attributes {dimension_semantics = [#tpu.dimension_semantics<parallel>], iteration_bounds = array<i64: 2>, scalar_prefetch = 0 : i64, scratch_operands = 0 : i64, tpu.core_type = #tpu.core_type<tc>, window_params = [{transform_indices = @transform_0, window_bounds = array<i64: 1, 72, 64>}, {pipeline_mode = #tpu.pipeline_mode<synchronous>, transform_indices = @transform_1, window_bounds = array<i64: 8, 72>}, {pipeline_mode = #tpu.pipeline_mode<synchronous>, transform_indices = @transform_2, window_bounds = array<i64: 8, 4>}, {transform_indices = @transform_3, window_bounds = array<i64: 1, 16, 64>}, {pipeline_mode = #tpu.pipeline_mode<synchronous>, transform_indices = @transform_4, window_bounds = array<i64: 8, 16>}, {transform_indices = @transform_5, window_bounds = array<i64: 1, 8, 64>}]} {
    %c0 = arith.constant 0 : index
    %c0_0 = arith.constant 0 : index
    %0 = vector.load %arg2[%c0, %c0_0] : memref<8x72xbf16, #tpu.memory_space<vmem>>, vector<8x72xbf16>
    %c0_1 = arith.constant 0 : index
    %c0_2 = arith.constant 0 : index
    %c0_3 = arith.constant 0 : index
    %1 = vector.load %arg1[%c0_1, %c0_2, %c0_3] : memref<1x72x64xbf16, #tpu.memory_space<vmem>>, vector<1x72x64xbf16>
    %2 = vector.shape_cast %1 : vector<1x72x64xbf16> to vector<72x64xbf16>
    %cst = arith.constant dense<0.000000e+00> : vector<8x64xf32>
    %3 = tpu.matmul %0, %2, %cst {dimension_numbers = #tpu.dot_dimension_numbers<[1], [0], [0], [1], [0, 0, 1, 1], [], []>} : vector<8x72xbf16>, vector<72x64xbf16>, vector<8x64xf32> -> vector<8x64xf32>
    %c0_4 = arith.constant 0 : index
    %c0_5 = arith.constant 0 : index
    %4 = vector.load %arg3[%c0_4, %c0_5] : memref<8x4xf32, #tpu.memory_space<vmem>>, vector<8x1xf32>
    %5 = vector.broadcast %4 : vector<8x1xf32> to vector<8x64xf32>
    %6 = arith.addf %3, %5 : vector<8x64xf32>
    %7 = vector.shape_cast %6 : vector<8x64xf32> to vector<1x8x64xf32>
    %cst_6 = arith.constant dense<0.000000e+00> : vector<1xf32>
    %8 = vector.multi_reduction <add>, %7, %cst_6 [1, 2] : vector<1x8x64xf32> to vector<1xf32>
    %9 = vector.shape_cast %8 : vector<1xf32> to vector<1x1x1xf32>
    %10 = vector.extract %9[0, 0, 0] : f32 from vector<1x1x1xf32>
    %11 = vector.broadcast %10 : f32 to vector<1x1xf32>
    %cst_7 = arith.constant 5.120000e+02 : f32
    %12 = vector.broadcast %cst_7 : f32 to vector<1x1xf32>
    %13 = arith.divf %11, %12 : vector<1x1xf32>
    %14 = arith.mulf %6, %6 : vector<8x64xf32>
    %15 = vector.shape_cast %14 : vector<8x64xf32> to vector<1x8x64xf32>
    %cst_8 = arith.constant dense<0.000000e+00> : vector<1xf32>
    %16 = vector.multi_reduction <add>, %15, %cst_8 [1, 2] : vector<1x8x64xf32> to vector<1xf32>
    %17 = vector.shape_cast %16 : vector<1xf32> to vector<1x1x1xf32>
    %18 = vector.extract %17[0, 0, 0] : f32 from vector<1x1x1xf32>
    %19 = vector.broadcast %18 : f32 to vector<1x1xf32>
    %cst_9 = arith.constant 5.120000e+02 : f32
    %20 = vector.broadcast %cst_9 : f32 to vector<1x1xf32>
    %21 = arith.divf %19, %20 : vector<1x1xf32>
    %22 = arith.mulf %13, %13 : vector<1x1xf32>
    %23 = arith.subf %21, %22 : vector<1x1xf32>
    %cst_10 = arith.constant 0.000000e+00 : f32
    %24 = vector.broadcast %cst_10 : f32 to vector<1x1xf32>
    %25 = arith.maximumf %23, %24 : vector<1x1xf32>
    %c0_11 = arith.constant 0 : index
    %c1 = arith.constant 1 : index
    %26 = vector.load %arg3[%c0_11, %c1] : memref<8x4xf32, #tpu.memory_space<vmem>>, vector<8x1xf32>
    %cst_12 = arith.constant 9.99999974E-6 : f32
    %27 = vector.broadcast %cst_12 : f32 to vector<1x1xf32>
    %28 = arith.addf %25, %27 : vector<1x1xf32>
    %29 = math.rsqrt %28 : vector<1x1xf32>
    %30 = vector.broadcast %29 : vector<1x1xf32> to vector<8x1xf32>
    %31 = arith.mulf %26, %30 : vector<8x1xf32>
    %c0_13 = arith.constant 0 : index
    %c2 = arith.constant 2 : index
    %32 = vector.load %arg3[%c0_13, %c2] : memref<8x4xf32, #tpu.memory_space<vmem>>, vector<8x1xf32>
    %33 = vector.broadcast %13 : vector<1x1xf32> to vector<8x1xf32>
    %34 = arith.mulf %33, %31 : vector<8x1xf32>
    %35 = arith.subf %32, %34 : vector<8x1xf32>
    %36 = vector.broadcast %31 : vector<8x1xf32> to vector<8x64xf32>
    %37 = arith.mulf %6, %36 : vector<8x64xf32>
    %38 = vector.broadcast %35 : vector<8x1xf32> to vector<8x64xf32>
    %39 = arith.addf %37, %38 : vector<8x64xf32>
    %c0_14 = arith.constant 0 : index
    %c0_15 = arith.constant 0 : index
    %40 = vector.load %arg5[%c0_14, %c0_15] : memref<8x16xbf16, #tpu.memory_space<vmem>>, vector<8x16xbf16>
    %c0_16 = arith.constant 0 : index
    %c0_17 = arith.constant 0 : index
    %c0_18 = arith.constant 0 : index
    %41 = vector.load %arg4[%c0_16, %c0_17, %c0_18] : memref<1x16x64xbf16, #tpu.memory_space<vmem>>, vector<1x16x64xbf16>
    %42 = vector.shape_cast %41 : vector<1x16x64xbf16> to vector<16x64xbf16>
    %cst_19 = arith.constant dense<0.000000e+00> : vector<8x64xf32>
    %43 = tpu.matmul %40, %42, %cst_19 {dimension_numbers = #tpu.dot_dimension_numbers<[1], [0], [0], [1], [0, 0, 1, 1], [], []>} : vector<8x16xbf16>, vector<16x64xbf16>, vector<8x64xf32> -> vector<8x64xf32>
    %44 = arith.addf %39, %43 : vector<8x64xf32>
    %c0_20 = arith.constant 0 : index
    %c3 = arith.constant 3 : index
    %45 = vector.load %arg3[%c0_20, %c3] : memref<8x4xf32, #tpu.memory_space<vmem>>, vector<8x1xf32>
    %46 = vector.broadcast %45 : vector<8x1xf32> to vector<8x64xf32>
    %47 = arith.addf %44, %46 : vector<8x64xf32>
    %cst_21 = arith.constant 0.000000e+00 : f32
    %48 = vector.broadcast %cst_21 : f32 to vector<8x64xf32>
    %49 = arith.maximumf %47, %48 : vector<8x64xf32>
    %50 = arith.truncf %49 : vector<8x64xf32> to vector<8x64xbf16>
    %c0_22 = arith.constant 0 : index
    %c0_23 = arith.constant 0 : index
    %c0_24 = arith.constant 0 : index
    %51 = vector.load %arg6[%c0_22, %c0_23, %c0_24] : memref<1x8x64xbf16, #tpu.memory_space<vmem>>, vector<1x8x64xbf16>
    %52 = vector.shape_cast %51 : vector<1x8x64xbf16> to vector<8x64xbf16>
    %53 = vector.shape_cast %50 : vector<8x64xbf16> to vector<1x8x64xbf16>
    tpu.vector_store %arg6[%c0_22, %c0_23, %c0_24], %53 {strides = array<i32>} : memref<1x8x64xbf16, #tpu.memory_space<vmem>>, vector<1x8x64xbf16>,
    return
  }
  func.func @transform_0(%arg0: i32) -> (i32, i32, i32) {
    %c0_i32 = arith.constant 0 : i32
    %c0_i32_0 = arith.constant 0 : i32
    %c0_i32_1 = arith.constant 0 : i32
    return %arg0, %c0_i32, %c0_i32_0 : i32, i32, i32
  }
  func.func @transform_1(%arg0: i32) -> (i32, i32) {
    %c0_i32 = arith.constant 0 : i32
    %c0_i32_0 = arith.constant 0 : i32
    %c0_i32_1 = arith.constant 0 : i32
    return %c0_i32, %c0_i32_0 : i32, i32
  }
  func.func @transform_2(%arg0: i32) -> (i32, i32) {
    %c0_i32 = arith.constant 0 : i32
    %c0_i32_0 = arith.constant 0 : i32
    %c0_i32_1 = arith.constant 0 : i32
    return %c0_i32, %c0_i32_0 : i32, i32
  }
  func.func @transform_3(%arg0: i32) -> (i32, i32, i32) {
    %c0_i32 = arith.constant 0 : i32
    %c0_i32_0 = arith.constant 0 : i32
    %c0_i32_1 = arith.constant 0 : i32
    return %arg0, %c0_i32, %c0_i32_0 : i32, i32, i32
  }
  func.func @transform_4(%arg0: i32) -> (i32, i32) {
    %c0_i32 = arith.constant 0 : i32
    %c0_i32_0 = arith.constant 0 : i32
    %c0_i32_1 = arith.constant 0 : i32
    return %c0_i32, %c0_i32_0 : i32, i32
  }
  func.func @transform_5(%arg0: i32) -> (i32, i32, i32) {
    %c0_i32 = arith.constant 0 : i32
    %c0_i32_0 = arith.constant 0 : i32
    %c0_i32_1 = arith.constant 0 : i32
    return %arg0, %c0_i32, %c0_i32_0 : i32, i32, i32
  }
}

module attributes {stable_mosaic.version = 11 : i64} {
  func.func @_gn_conv_kernel(%arg0: i32, %arg1: memref<1x144x64xbf16, #tpu.memory_space<vmem>>, %arg2: memref<8x144xbf16, #tpu.memory_space<vmem>>, %arg3: memref<8x4xf32, #tpu.memory_space<vmem>>, %arg4: memref<1x8x64xbf16, #tpu.memory_space<vmem>>) attributes {dimension_semantics = [#tpu.dimension_semantics<parallel>], iteration_bounds = array<i64: 2>, scalar_prefetch = 0 : i64, scratch_operands = 0 : i64, tpu.core_type = #tpu.core_type<tc>, window_params = [{transform_indices = @transform_0, window_bounds = array<i64: 1, 144, 64>}, {pipeline_mode = #tpu.pipeline_mode<synchronous>, transform_indices = @transform_1, window_bounds = array<i64: 8, 144>}, {pipeline_mode = #tpu.pipeline_mode<synchronous>, transform_indices = @transform_2, window_bounds = array<i64: 8, 4>}, {transform_indices = @transform_3, window_bounds = array<i64: 1, 8, 64>}]} {
    %c0 = arith.constant 0 : index
    %c0_0 = arith.constant 0 : index
    %0 = vector.load %arg2[%c0, %c0_0] : memref<8x144xbf16, #tpu.memory_space<vmem>>, vector<8x144xbf16>
    %c0_1 = arith.constant 0 : index
    %c0_2 = arith.constant 0 : index
    %c0_3 = arith.constant 0 : index
    %1 = vector.load %arg1[%c0_1, %c0_2, %c0_3] : memref<1x144x64xbf16, #tpu.memory_space<vmem>>, vector<1x144x64xbf16>
    %2 = vector.shape_cast %1 : vector<1x144x64xbf16> to vector<144x64xbf16>
    %cst = arith.constant dense<0.000000e+00> : vector<8x64xf32>
    %3 = tpu.matmul %0, %2, %cst {dimension_numbers = #tpu.dot_dimension_numbers<[1], [0], [0], [1], [0, 0, 1, 1], [], []>} : vector<8x144xbf16>, vector<144x64xbf16>, vector<8x64xf32> -> vector<8x64xf32>
    %c0_4 = arith.constant 0 : index
    %c0_5 = arith.constant 0 : index
    %4 = vector.load %arg3[%c0_4, %c0_5] : memref<8x4xf32, #tpu.memory_space<vmem>>, vector<8x1xf32>
    %5 = vector.broadcast %4 : vector<8x1xf32> to vector<8x64xf32>
    %6 = arith.addf %3, %5 : vector<8x64xf32>
    %7 = vector.shape_cast %6 : vector<8x64xf32> to vector<1x8x64xf32>
    %cst_6 = arith.constant dense<0.000000e+00> : vector<1xf32>
    %8 = vector.multi_reduction <add>, %7, %cst_6 [1, 2] : vector<1x8x64xf32> to vector<1xf32>
    %9 = vector.shape_cast %8 : vector<1xf32> to vector<1x1x1xf32>
    %10 = vector.extract %9[0, 0, 0] : f32 from vector<1x1x1xf32>
    %11 = vector.broadcast %10 : f32 to vector<1x1xf32>
    %cst_7 = arith.constant 5.120000e+02 : f32
    %12 = vector.broadcast %cst_7 : f32 to vector<1x1xf32>
    %13 = arith.divf %11, %12 : vector<1x1xf32>
    %14 = arith.mulf %6, %6 : vector<8x64xf32>
    %15 = vector.shape_cast %14 : vector<8x64xf32> to vector<1x8x64xf32>
    %cst_8 = arith.constant dense<0.000000e+00> : vector<1xf32>
    %16 = vector.multi_reduction <add>, %15, %cst_8 [1, 2] : vector<1x8x64xf32> to vector<1xf32>
    %17 = vector.shape_cast %16 : vector<1xf32> to vector<1x1x1xf32>
    %18 = vector.extract %17[0, 0, 0] : f32 from vector<1x1x1xf32>
    %19 = vector.broadcast %18 : f32 to vector<1x1xf32>
    %cst_9 = arith.constant 5.120000e+02 : f32
    %20 = vector.broadcast %cst_9 : f32 to vector<1x1xf32>
    %21 = arith.divf %19, %20 : vector<1x1xf32>
    %22 = arith.mulf %13, %13 : vector<1x1xf32>
    %23 = arith.subf %21, %22 : vector<1x1xf32>
    %cst_10 = arith.constant 0.000000e+00 : f32
    %24 = vector.broadcast %cst_10 : f32 to vector<1x1xf32>
    %25 = arith.maximumf %23, %24 : vector<1x1xf32>
    %c0_11 = arith.constant 0 : index
    %c1 = arith.constant 1 : index
    %26 = vector.load %arg3[%c0_11, %c1] : memref<8x4xf32, #tpu.memory_space<vmem>>, vector<8x1xf32>
    %cst_12 = arith.constant 9.99999974E-6 : f32
    %27 = vector.broadcast %cst_12 : f32 to vector<1x1xf32>
    %28 = arith.addf %25, %27 : vector<1x1xf32>
    %29 = math.rsqrt %28 : vector<1x1xf32>
    %30 = vector.broadcast %29 : vector<1x1xf32> to vector<8x1xf32>
    %31 = arith.mulf %26, %30 : vector<8x1xf32>
    %c0_13 = arith.constant 0 : index
    %c2 = arith.constant 2 : index
    %32 = vector.load %arg3[%c0_13, %c2] : memref<8x4xf32, #tpu.memory_space<vmem>>, vector<8x1xf32>
    %33 = vector.broadcast %13 : vector<1x1xf32> to vector<8x1xf32>
    %34 = arith.mulf %33, %31 : vector<8x1xf32>
    %35 = arith.subf %32, %34 : vector<8x1xf32>
    %36 = vector.broadcast %31 : vector<8x1xf32> to vector<8x64xf32>
    %37 = arith.mulf %6, %36 : vector<8x64xf32>
    %38 = vector.broadcast %35 : vector<8x1xf32> to vector<8x64xf32>
    %39 = arith.addf %37, %38 : vector<8x64xf32>
    %cst_14 = arith.constant 0.000000e+00 : f32
    %40 = vector.broadcast %cst_14 : f32 to vector<8x64xf32>
    %41 = arith.maximumf %39, %40 : vector<8x64xf32>
    %42 = arith.truncf %41 : vector<8x64xf32> to vector<8x64xbf16>
    %c0_15 = arith.constant 0 : index
    %c0_16 = arith.constant 0 : index
    %c0_17 = arith.constant 0 : index
    %43 = vector.load %arg4[%c0_15, %c0_16, %c0_17] : memref<1x8x64xbf16, #tpu.memory_space<vmem>>, vector<1x8x64xbf16>
    %44 = vector.shape_cast %43 : vector<1x8x64xbf16> to vector<8x64xbf16>
    %45 = vector.shape_cast %42 : vector<8x64xbf16> to vector<1x8x64xbf16>
    tpu.vector_store %arg4[%c0_15, %c0_16, %c0_17], %45 {strides = array<i32>} : memref<1x8x64xbf16, #tpu.memory_space<vmem>>, vector<1x8x64xbf16>,
    return
  }
  func.func @transform_0(%arg0: i32) -> (i32, i32, i32) {
    %c0_i32 = arith.constant 0 : i32
    %c0_i32_0 = arith.constant 0 : i32
    %c0_i32_1 = arith.constant 0 : i32
    return %arg0, %c0_i32, %c0_i32_0 : i32, i32, i32
  }
  func.func @transform_1(%arg0: i32) -> (i32, i32) {
    %c0_i32 = arith.constant 0 : i32
    %c0_i32_0 = arith.constant 0 : i32
    %c0_i32_1 = arith.constant 0 : i32
    return %c0_i32, %c0_i32_0 : i32, i32
  }
  func.func @transform_2(%arg0: i32) -> (i32, i32) {
    %c0_i32 = arith.constant 0 : i32
    %c0_i32_0 = arith.constant 0 : i32
    %c0_i32_1 = arith.constant 0 : i32
    return %c0_i32, %c0_i32_0 : i32, i32
  }
  func.func @transform_3(%arg0: i32) -> (i32, i32, i32) {
    %c0_i32 = arith.constant 0 : i32
    %c0_i32_0 = arith.constant 0 : i32
    %c0_i32_1 = arith.constant 0 : i32
    return %arg0, %c0_i32, %c0_i32_0 : i32, i32, i32
  }
}

module attributes {stable_mosaic.version = 11 : i64} {
  func.func @_lane_conv_kernel(%arg0: i32, %arg1: memref<8x128xbf16, #tpu.memory_space<vmem>>, %arg2: memref<24x8xbf16, #tpu.memory_space<vmem>>, %arg3: memref<24x1xf32, #tpu.memory_space<vmem>>, %arg4: memref<24x128xbf16, #tpu.memory_space<vmem>>) attributes {dimension_semantics = [#tpu.dimension_semantics<parallel>], iteration_bounds = array<i64: 1>, scalar_prefetch = 0 : i64, scratch_operands = 0 : i64, tpu.core_type = #tpu.core_type<tc>, window_params = [{transform_indices = @transform_0, window_bounds = array<i64: 8, 128>}, {pipeline_mode = #tpu.pipeline_mode<synchronous>, transform_indices = @transform_1, window_bounds = array<i64: 24, 8>}, {pipeline_mode = #tpu.pipeline_mode<synchronous>, transform_indices = @transform_2, window_bounds = array<i64: 24, 1>}, {transform_indices = @transform_3, window_bounds = array<i64: 24, 128>}]} {
    %c0 = arith.constant 0 : index
    %c0_0 = arith.constant 0 : index
    %0 = vector.load %arg2[%c0, %c0_0] : memref<24x8xbf16, #tpu.memory_space<vmem>>, vector<24x8xbf16>
    %c0_1 = arith.constant 0 : index
    %c0_2 = arith.constant 0 : index
    %1 = vector.load %arg1[%c0_1, %c0_2] : memref<8x128xbf16, #tpu.memory_space<vmem>>, vector<8x128xbf16>
    %cst = arith.constant dense<0.000000e+00> : vector<24x128xf32>
    %2 = tpu.matmul %0, %1, %cst {dimension_numbers = #tpu.dot_dimension_numbers<[1], [0], [0], [1], [0, 0, 1, 1], [], []>} : vector<24x8xbf16>, vector<8x128xbf16>, vector<24x128xf32> -> vector<24x128xf32>
    %c0_3 = arith.constant 0 : index
    %c0_4 = arith.constant 0 : index
    %3 = vector.load %arg3[%c0_3, %c0_4] : memref<24x1xf32, #tpu.memory_space<vmem>>, vector<24x1xf32>
    %4 = vector.broadcast %3 : vector<24x1xf32> to vector<24x128xf32>
    %5 = arith.addf %2, %4 : vector<24x128xf32>
    %6 = arith.truncf %5 : vector<24x128xf32> to vector<24x128xbf16>
    %c0_5 = arith.constant 0 : index
    %c0_6 = arith.constant 0 : index
    %7 = vector.load %arg4[%c0_5, %c0_6] : memref<24x128xbf16, #tpu.memory_space<vmem>>, vector<24x128xbf16>
    tpu.vector_store %arg4[%c0_5, %c0_6], %6 {strides = array<i32>} : memref<24x128xbf16, #tpu.memory_space<vmem>>, vector<24x128xbf16>,
    return
  }
  func.func @transform_0(%arg0: i32) -> (i32, i32) {
    %c0_i32 = arith.constant 0 : i32
    %c0_i32_0 = arith.constant 0 : i32
    return %c0_i32, %arg0 : i32, i32
  }
  func.func @transform_1(%arg0: i32) -> (i32, i32) {
    %c0_i32 = arith.constant 0 : i32
    %c0_i32_0 = arith.constant 0 : i32
    %c0_i32_1 = arith.constant 0 : i32
    return %c0_i32, %c0_i32_0 : i32, i32
  }
  func.func @transform_2(%arg0: i32) -> (i32, i32) {
    %c0_i32 = arith.constant 0 : i32
    %c0_i32_0 = arith.constant 0 : i32
    %c0_i32_1 = arith.constant 0 : i32
    return %c0_i32, %c0_i32_0 : i32, i32
  }
  func.func @transform_3(%arg0: i32) -> (i32, i32) {
    %c0_i32 = arith.constant 0 : i32
    %c0_i32_0 = arith.constant 0 : i32
    return %c0_i32, %arg0 : i32, i32
  }
}

module attributes {stable_mosaic.version = 11 : i64} {
  func.func @_attn_core_kernel(%arg0: i32, %arg1: i32, %arg2: i32, %arg3: memref<1x8x64xbf16, #tpu.memory_space<vmem>>, %arg4: memref<1x8x64xbf16, #tpu.memory_space<vmem>>, %arg5: memref<1x8x64xbf16, #tpu.memory_space<vmem>>, %arg6: memref<1x8x64xbf16, #tpu.memory_space<vmem>>) attributes {dimension_semantics = [#tpu.dimension_semantics<parallel>, #tpu.dimension_semantics<parallel>, #tpu.dimension_semantics<parallel>], iteration_bounds = array<i64: 2, 1, 1>, scalar_prefetch = 0 : i64, scratch_operands = 0 : i64, tpu.core_type = #tpu.core_type<tc>, window_params = [{transform_indices = @transform_0, window_bounds = array<i64: 1, 8, 64>}, {transform_indices = @transform_1, window_bounds = array<i64: 1, 8, 64>}, {transform_indices = @transform_2, window_bounds = array<i64: 1, 8, 64>}, {transform_indices = @transform_3, window_bounds = array<i64: 1, 8, 64>}]} {
    %c0 = arith.constant 0 : index
    %c0_0 = arith.constant 0 : index
    %c0_1 = arith.constant 0 : index
    %0 = vector.load %arg3[%c0, %c0_0, %c0_1] : memref<1x8x64xbf16, #tpu.memory_space<vmem>>, vector<1x8x64xbf16>
    %1 = vector.shape_cast %0 : vector<1x8x64xbf16> to vector<8x64xbf16>
    %c0_2 = arith.constant 0 : index
    %c0_3 = arith.constant 0 : index
    %c0_4 = arith.constant 0 : index
    %2 = vector.load %arg4[%c0_2, %c0_3, %c0_4] : memref<1x8x64xbf16, #tpu.memory_space<vmem>>, vector<1x8x64xbf16>
    %3 = vector.shape_cast %2 : vector<1x8x64xbf16> to vector<8x64xbf16>
    %c0_5 = arith.constant 0 : index
    %c0_6 = arith.constant 0 : index
    %c0_7 = arith.constant 0 : index
    %4 = vector.load %arg5[%c0_5, %c0_6, %c0_7] : memref<1x8x64xbf16, #tpu.memory_space<vmem>>, vector<1x8x64xbf16>
    %5 = vector.shape_cast %4 : vector<1x8x64xbf16> to vector<8x64xbf16>
    %cst = arith.constant dense<0.000000e+00> : vector<64x64xf32>
    %6 = tpu.matmul %1, %3, %cst {dimension_numbers = #tpu.dot_dimension_numbers<[0], [0], [1], [1], [0, 1, 1, 1], [], []>} : vector<8x64xbf16>, vector<8x64xbf16>, vector<64x64xf32> -> vector<64x64xf32>
    %cst_8 = arith.constant 0.353553385 : f32
    %7 = vector.broadcast %cst_8 : f32 to vector<64x64xf32>
    %8 = arith.mulf %6, %7 : vector<64x64xf32>
    %cst_9 = arith.constant dense<0xFF800000> : vector<64xf32>
    %9 = vector.multi_reduction <maximumf>, %8, %cst_9 [1] : vector<64x64xf32> to vector<64xf32>
    %10 = vector.shape_cast %9 : vector<64xf32> to vector<64x1xf32>
    %11 = vector.broadcast %10 : vector<64x1xf32> to vector<64x64xf32>
    %12 = arith.subf %8, %11 : vector<64x64xf32>
    %13 = math.exp %12 : vector<64x64xf32>
    %cst_10 = arith.constant dense<0.000000e+00> : vector<64xf32>
    %14 = vector.multi_reduction <add>, %13, %cst_10 [1] : vector<64x64xf32> to vector<64xf32>
    %15 = vector.shape_cast %14 : vector<64xf32> to vector<64x1xf32>
    %16 = vector.broadcast %15 : vector<64x1xf32> to vector<64x64xf32>
    %17 = arith.divf %13, %16 : vector<64x64xf32>
    %18 = arith.truncf %17 : vector<64x64xf32> to vector<64x64xbf16>
    %cst_11 = arith.constant dense<0.000000e+00> : vector<8x64xf32>
    %19 = tpu.matmul %5, %18, %cst_11 {dimension_numbers = #tpu.dot_dimension_numbers<[1], [1], [0], [0], [0, 0, 1, 0], [], []>} : vector<8x64xbf16>, vector<64x64xbf16>, vector<8x64xf32> -> vector<8x64xf32>
    %20 = arith.truncf %19 : vector<8x64xf32> to vector<8x64xbf16>
    %c0_12 = arith.constant 0 : index
    %c0_13 = arith.constant 0 : index
    %c0_14 = arith.constant 0 : index
    %21 = vector.load %arg6[%c0_12, %c0_13, %c0_14] : memref<1x8x64xbf16, #tpu.memory_space<vmem>>, vector<1x8x64xbf16>
    %22 = vector.shape_cast %21 : vector<1x8x64xbf16> to vector<8x64xbf16>
    %23 = vector.shape_cast %20 : vector<8x64xbf16> to vector<1x8x64xbf16>
    tpu.vector_store %arg6[%c0_12, %c0_13, %c0_14], %23 {strides = array<i32>} : memref<1x8x64xbf16, #tpu.memory_space<vmem>>, vector<1x8x64xbf16>,
    return
  }
  func.func @transform_0(%arg0: i32, %arg1: i32, %arg2: i32) -> (i32, i32, i32) {
    %c0_i32 = arith.constant 0 : i32
    return %arg0, %arg1, %arg2 : i32, i32, i32
  }
  func.func @transform_1(%arg0: i32, %arg1: i32, %arg2: i32) -> (i32, i32, i32) {
    %c1_i32 = arith.constant 1 : i32
    %0 = arith.addi %c1_i32, %arg1 : i32
    %c0_i32 = arith.constant 0 : i32
    %c0_i32_0 = arith.constant 0 : i32
    return %arg0, %0, %c0_i32 : i32, i32, i32
  }
  func.func @transform_2(%arg0: i32, %arg1: i32, %arg2: i32) -> (i32, i32, i32) {
    %c2_i32 = arith.constant 2 : i32
    %0 = arith.addi %c2_i32, %arg1 : i32
    %c0_i32 = arith.constant 0 : i32
    %c0_i32_0 = arith.constant 0 : i32
    return %arg0, %0, %c0_i32 : i32, i32, i32
  }
  func.func @transform_3(%arg0: i32, %arg1: i32, %arg2: i32) -> (i32, i32, i32) {
    %c0_i32 = arith.constant 0 : i32
    return %arg0, %arg1, %arg2 : i32, i32, i32
  }
}

module attributes {stable_mosaic.version = 11 : i64} {
  func.func @_lane_conv_kernel(%arg0: i32, %arg1: memref<8x128xbf16, #tpu.memory_space<vmem>>, %arg2: memref<8x8xbf16, #tpu.memory_space<vmem>>, %arg3: memref<8x1xf32, #tpu.memory_space<vmem>>, %arg4: memref<8x128xbf16, #tpu.memory_space<vmem>>) attributes {dimension_semantics = [#tpu.dimension_semantics<parallel>], iteration_bounds = array<i64: 1>, scalar_prefetch = 0 : i64, scratch_operands = 0 : i64, tpu.core_type = #tpu.core_type<tc>, window_params = [{transform_indices = @transform_0, window_bounds = array<i64: 8, 128>}, {pipeline_mode = #tpu.pipeline_mode<synchronous>, transform_indices = @transform_1, window_bounds = array<i64: 8, 8>}, {pipeline_mode = #tpu.pipeline_mode<synchronous>, transform_indices = @transform_2, window_bounds = array<i64: 8, 1>}, {transform_indices = @transform_3, window_bounds = array<i64: 8, 128>}]} {
    %c0 = arith.constant 0 : index
    %c0_0 = arith.constant 0 : index
    %0 = vector.load %arg2[%c0, %c0_0] : memref<8x8xbf16, #tpu.memory_space<vmem>>, vector<8x8xbf16>
    %c0_1 = arith.constant 0 : index
    %c0_2 = arith.constant 0 : index
    %1 = vector.load %arg1[%c0_1, %c0_2] : memref<8x128xbf16, #tpu.memory_space<vmem>>, vector<8x128xbf16>
    %cst = arith.constant dense<0.000000e+00> : vector<8x128xf32>
    %2 = tpu.matmul %0, %1, %cst {dimension_numbers = #tpu.dot_dimension_numbers<[1], [0], [0], [1], [0, 0, 1, 1], [], []>} : vector<8x8xbf16>, vector<8x128xbf16>, vector<8x128xf32> -> vector<8x128xf32>
    %c0_3 = arith.constant 0 : index
    %c0_4 = arith.constant 0 : index
    %3 = vector.load %arg3[%c0_3, %c0_4] : memref<8x1xf32, #tpu.memory_space<vmem>>, vector<8x1xf32>
    %4 = vector.broadcast %3 : vector<8x1xf32> to vector<8x128xf32>
    %5 = arith.addf %2, %4 : vector<8x128xf32>
    %6 = arith.truncf %5 : vector<8x128xf32> to vector<8x128xbf16>
    %c0_5 = arith.constant 0 : index
    %c0_6 = arith.constant 0 : index
    %7 = vector.load %arg4[%c0_5, %c0_6] : memref<8x128xbf16, #tpu.memory_space<vmem>>, vector<8x128xbf16>
    tpu.vector_store %arg4[%c0_5, %c0_6], %6 {strides = array<i32>} : memref<8x128xbf16, #tpu.memory_space<vmem>>, vector<8x128xbf16>,
    return
  }
  func.func @transform_0(%arg0: i32) -> (i32, i32) {
    %c0_i32 = arith.constant 0 : i32
    %c0_i32_0 = arith.constant 0 : i32
    return %c0_i32, %arg0 : i32, i32
  }
  func.func @transform_1(%arg0: i32) -> (i32, i32) {
    %c0_i32 = arith.constant 0 : i32
    %c0_i32_0 = arith.constant 0 : i32
    %c0_i32_1 = arith.constant 0 : i32
    return %c0_i32, %c0_i32_0 : i32, i32
  }
  func.func @transform_2(%arg0: i32) -> (i32, i32) {
    %c0_i32 = arith.constant 0 : i32
    %c0_i32_0 = arith.constant 0 : i32
    %c0_i32_1 = arith.constant 0 : i32
    return %c0_i32, %c0_i32_0 : i32, i32
  }
  func.func @transform_3(%arg0: i32) -> (i32, i32) {
    %c0_i32 = arith.constant 0 : i32
    %c0_i32_0 = arith.constant 0 : i32
    return %c0_i32, %arg0 : i32, i32
  }
}

module attributes {stable_mosaic.version = 11 : i64} {
  func.func @_gn_conv_kernel(%arg0: i32, %arg1: memref<1x144x64xbf16, #tpu.memory_space<vmem>>, %arg2: memref<4x144xbf16, #tpu.memory_space<vmem>>, %arg3: memref<4x4xf32, #tpu.memory_space<vmem>>, %arg4: memref<1x4x64xbf16, #tpu.memory_space<vmem>>) attributes {dimension_semantics = [#tpu.dimension_semantics<parallel>], iteration_bounds = array<i64: 2>, scalar_prefetch = 0 : i64, scratch_operands = 0 : i64, tpu.core_type = #tpu.core_type<tc>, window_params = [{transform_indices = @transform_0, window_bounds = array<i64: 1, 144, 64>}, {pipeline_mode = #tpu.pipeline_mode<synchronous>, transform_indices = @transform_1, window_bounds = array<i64: 4, 144>}, {pipeline_mode = #tpu.pipeline_mode<synchronous>, transform_indices = @transform_2, window_bounds = array<i64: 4, 4>}, {transform_indices = @transform_3, window_bounds = array<i64: 1, 4, 64>}]} {
    %c0 = arith.constant 0 : index
    %c0_0 = arith.constant 0 : index
    %0 = vector.load %arg2[%c0, %c0_0] : memref<4x144xbf16, #tpu.memory_space<vmem>>, vector<4x144xbf16>
    %c0_1 = arith.constant 0 : index
    %c0_2 = arith.constant 0 : index
    %c0_3 = arith.constant 0 : index
    %1 = vector.load %arg1[%c0_1, %c0_2, %c0_3] : memref<1x144x64xbf16, #tpu.memory_space<vmem>>, vector<1x144x64xbf16>
    %2 = vector.shape_cast %1 : vector<1x144x64xbf16> to vector<144x64xbf16>
    %cst = arith.constant dense<0.000000e+00> : vector<4x64xf32>
    %3 = tpu.matmul %0, %2, %cst {dimension_numbers = #tpu.dot_dimension_numbers<[1], [0], [0], [1], [0, 0, 1, 1], [], []>} : vector<4x144xbf16>, vector<144x64xbf16>, vector<4x64xf32> -> vector<4x64xf32>
    %c0_4 = arith.constant 0 : index
    %c0_5 = arith.constant 0 : index
    %4 = vector.load %arg3[%c0_4, %c0_5] : memref<4x4xf32, #tpu.memory_space<vmem>>, vector<4x1xf32>
    %5 = vector.broadcast %4 : vector<4x1xf32> to vector<4x64xf32>
    %6 = arith.addf %3, %5 : vector<4x64xf32>
    %7 = vector.shape_cast %6 : vector<4x64xf32> to vector<1x4x64xf32>
    %cst_6 = arith.constant dense<0.000000e+00> : vector<1xf32>
    %8 = vector.multi_reduction <add>, %7, %cst_6 [1, 2] : vector<1x4x64xf32> to vector<1xf32>
    %9 = vector.shape_cast %8 : vector<1xf32> to vector<1x1x1xf32>
    %10 = vector.extract %9[0, 0, 0] : f32 from vector<1x1x1xf32>
    %11 = vector.broadcast %10 : f32 to vector<1x1xf32>
    %cst_7 = arith.constant 2.560000e+02 : f32
    %12 = vector.broadcast %cst_7 : f32 to vector<1x1xf32>
    %13 = arith.divf %11, %12 : vector<1x1xf32>
    %14 = arith.mulf %6, %6 : vector<4x64xf32>
    %15 = vector.shape_cast %14 : vector<4x64xf32> to vector<1x4x64xf32>
    %cst_8 = arith.constant dense<0.000000e+00> : vector<1xf32>
    %16 = vector.multi_reduction <add>, %15, %cst_8 [1, 2] : vector<1x4x64xf32> to vector<1xf32>
    %17 = vector.shape_cast %16 : vector<1xf32> to vector<1x1x1xf32>
    %18 = vector.extract %17[0, 0, 0] : f32 from vector<1x1x1xf32>
    %19 = vector.broadcast %18 : f32 to vector<1x1xf32>
    %cst_9 = arith.constant 2.560000e+02 : f32
    %20 = vector.broadcast %cst_9 : f32 to vector<1x1xf32>
    %21 = arith.divf %19, %20 : vector<1x1xf32>
    %22 = arith.mulf %13, %13 : vector<1x1xf32>
    %23 = arith.subf %21, %22 : vector<1x1xf32>
    %cst_10 = arith.constant 0.000000e+00 : f32
    %24 = vector.broadcast %cst_10 : f32 to vector<1x1xf32>
    %25 = arith.maximumf %23, %24 : vector<1x1xf32>
    %c0_11 = arith.constant 0 : index
    %c1 = arith.constant 1 : index
    %26 = vector.load %arg3[%c0_11, %c1] : memref<4x4xf32, #tpu.memory_space<vmem>>, vector<4x1xf32>
    %cst_12 = arith.constant 9.99999974E-6 : f32
    %27 = vector.broadcast %cst_12 : f32 to vector<1x1xf32>
    %28 = arith.addf %25, %27 : vector<1x1xf32>
    %29 = math.rsqrt %28 : vector<1x1xf32>
    %30 = vector.broadcast %29 : vector<1x1xf32> to vector<4x1xf32>
    %31 = arith.mulf %26, %30 : vector<4x1xf32>
    %c0_13 = arith.constant 0 : index
    %c2 = arith.constant 2 : index
    %32 = vector.load %arg3[%c0_13, %c2] : memref<4x4xf32, #tpu.memory_space<vmem>>, vector<4x1xf32>
    %33 = vector.broadcast %13 : vector<1x1xf32> to vector<4x1xf32>
    %34 = arith.mulf %33, %31 : vector<4x1xf32>
    %35 = arith.subf %32, %34 : vector<4x1xf32>
    %36 = vector.broadcast %31 : vector<4x1xf32> to vector<4x64xf32>
    %37 = arith.mulf %6, %36 : vector<4x64xf32>
    %38 = vector.broadcast %35 : vector<4x1xf32> to vector<4x64xf32>
    %39 = arith.addf %37, %38 : vector<4x64xf32>
    %cst_14 = arith.constant 0.000000e+00 : f32
    %40 = vector.broadcast %cst_14 : f32 to vector<4x64xf32>
    %41 = arith.maximumf %39, %40 : vector<4x64xf32>
    %42 = arith.truncf %41 : vector<4x64xf32> to vector<4x64xbf16>
    %c0_15 = arith.constant 0 : index
    %c0_16 = arith.constant 0 : index
    %c0_17 = arith.constant 0 : index
    %43 = vector.load %arg4[%c0_15, %c0_16, %c0_17] : memref<1x4x64xbf16, #tpu.memory_space<vmem>>, vector<1x4x64xbf16>
    %44 = vector.shape_cast %43 : vector<1x4x64xbf16> to vector<4x64xbf16>
    %45 = vector.shape_cast %42 : vector<4x64xbf16> to vector<1x4x64xbf16>
    tpu.vector_store %arg4[%c0_15, %c0_16, %c0_17], %45 {strides = array<i32>} : memref<1x4x64xbf16, #tpu.memory_space<vmem>>, vector<1x4x64xbf16>,
    return
  }
  func.func @transform_0(%arg0: i32) -> (i32, i32, i32) {
    %c0_i32 = arith.constant 0 : i32
    %c0_i32_0 = arith.constant 0 : i32
    %c0_i32_1 = arith.constant 0 : i32
    return %arg0, %c0_i32, %c0_i32_0 : i32, i32, i32
  }
  func.func @transform_1(%arg0: i32) -> (i32, i32) {
    %c0_i32 = arith.constant 0 : i32
    %c0_i32_0 = arith.constant 0 : i32
    %c0_i32_1 = arith.constant 0 : i32
    return %c0_i32, %c0_i32_0 : i32, i32
  }
  func.func @transform_2(%arg0: i32) -> (i32, i32) {
    %c0_i32 = arith.constant 0 : i32
    %c0_i32_0 = arith.constant 0 : i32
    %c0_i32_1 = arith.constant 0 : i32
    return %c0_i32, %c0_i32_0 : i32, i32
  }
  func.func @transform_3(%arg0: i32) -> (i32, i32, i32) {
    %c0_i32 = arith.constant 0 : i32
    %c0_i32_0 = arith.constant 0 : i32
    %c0_i32_1 = arith.constant 0 : i32
    return %arg0, %c0_i32, %c0_i32_0 : i32, i32, i32
  }
}

module attributes {stable_mosaic.version = 11 : i64} {
  func.func @_gn_conv_kernel(%arg0: i32, %arg1: memref<1x36x64xbf16, #tpu.memory_space<vmem>>, %arg2: memref<4x36xbf16, #tpu.memory_space<vmem>>, %arg3: memref<4x4xf32, #tpu.memory_space<vmem>>, %arg4: memref<1x16x64xbf16, #tpu.memory_space<vmem>>, %arg5: memref<4x16xbf16, #tpu.memory_space<vmem>>, %arg6: memref<1x4x64xbf16, #tpu.memory_space<vmem>>) attributes {dimension_semantics = [#tpu.dimension_semantics<parallel>], iteration_bounds = array<i64: 2>, scalar_prefetch = 0 : i64, scratch_operands = 0 : i64, tpu.core_type = #tpu.core_type<tc>, window_params = [{transform_indices = @transform_0, window_bounds = array<i64: 1, 36, 64>}, {pipeline_mode = #tpu.pipeline_mode<synchronous>, transform_indices = @transform_1, window_bounds = array<i64: 4, 36>}, {pipeline_mode = #tpu.pipeline_mode<synchronous>, transform_indices = @transform_2, window_bounds = array<i64: 4, 4>}, {transform_indices = @transform_3, window_bounds = array<i64: 1, 16, 64>}, {pipeline_mode = #tpu.pipeline_mode<synchronous>, transform_indices = @transform_4, window_bounds = array<i64: 4, 16>}, {transform_indices = @transform_5, window_bounds = array<i64: 1, 4, 64>}]} {
    %c0 = arith.constant 0 : index
    %c0_0 = arith.constant 0 : index
    %0 = vector.load %arg2[%c0, %c0_0] : memref<4x36xbf16, #tpu.memory_space<vmem>>, vector<4x36xbf16>
    %c0_1 = arith.constant 0 : index
    %c0_2 = arith.constant 0 : index
    %c0_3 = arith.constant 0 : index
    %1 = vector.load %arg1[%c0_1, %c0_2, %c0_3] : memref<1x36x64xbf16, #tpu.memory_space<vmem>>, vector<1x36x64xbf16>
    %2 = vector.shape_cast %1 : vector<1x36x64xbf16> to vector<36x64xbf16>
    %cst = arith.constant dense<0.000000e+00> : vector<4x64xf32>
    %3 = tpu.matmul %0, %2, %cst {dimension_numbers = #tpu.dot_dimension_numbers<[1], [0], [0], [1], [0, 0, 1, 1], [], []>} : vector<4x36xbf16>, vector<36x64xbf16>, vector<4x64xf32> -> vector<4x64xf32>
    %c0_4 = arith.constant 0 : index
    %c0_5 = arith.constant 0 : index
    %4 = vector.load %arg3[%c0_4, %c0_5] : memref<4x4xf32, #tpu.memory_space<vmem>>, vector<4x1xf32>
    %5 = vector.broadcast %4 : vector<4x1xf32> to vector<4x64xf32>
    %6 = arith.addf %3, %5 : vector<4x64xf32>
    %7 = vector.shape_cast %6 : vector<4x64xf32> to vector<1x4x64xf32>
    %cst_6 = arith.constant dense<0.000000e+00> : vector<1xf32>
    %8 = vector.multi_reduction <add>, %7, %cst_6 [1, 2] : vector<1x4x64xf32> to vector<1xf32>
    %9 = vector.shape_cast %8 : vector<1xf32> to vector<1x1x1xf32>
    %10 = vector.extract %9[0, 0, 0] : f32 from vector<1x1x1xf32>
    %11 = vector.broadcast %10 : f32 to vector<1x1xf32>
    %cst_7 = arith.constant 2.560000e+02 : f32
    %12 = vector.broadcast %cst_7 : f32 to vector<1x1xf32>
    %13 = arith.divf %11, %12 : vector<1x1xf32>
    %14 = arith.mulf %6, %6 : vector<4x64xf32>
    %15 = vector.shape_cast %14 : vector<4x64xf32> to vector<1x4x64xf32>
    %cst_8 = arith.constant dense<0.000000e+00> : vector<1xf32>
    %16 = vector.multi_reduction <add>, %15, %cst_8 [1, 2] : vector<1x4x64xf32> to vector<1xf32>
    %17 = vector.shape_cast %16 : vector<1xf32> to vector<1x1x1xf32>
    %18 = vector.extract %17[0, 0, 0] : f32 from vector<1x1x1xf32>
    %19 = vector.broadcast %18 : f32 to vector<1x1xf32>
    %cst_9 = arith.constant 2.560000e+02 : f32
    %20 = vector.broadcast %cst_9 : f32 to vector<1x1xf32>
    %21 = arith.divf %19, %20 : vector<1x1xf32>
    %22 = arith.mulf %13, %13 : vector<1x1xf32>
    %23 = arith.subf %21, %22 : vector<1x1xf32>
    %cst_10 = arith.constant 0.000000e+00 : f32
    %24 = vector.broadcast %cst_10 : f32 to vector<1x1xf32>
    %25 = arith.maximumf %23, %24 : vector<1x1xf32>
    %c0_11 = arith.constant 0 : index
    %c1 = arith.constant 1 : index
    %26 = vector.load %arg3[%c0_11, %c1] : memref<4x4xf32, #tpu.memory_space<vmem>>, vector<4x1xf32>
    %cst_12 = arith.constant 9.99999974E-6 : f32
    %27 = vector.broadcast %cst_12 : f32 to vector<1x1xf32>
    %28 = arith.addf %25, %27 : vector<1x1xf32>
    %29 = math.rsqrt %28 : vector<1x1xf32>
    %30 = vector.broadcast %29 : vector<1x1xf32> to vector<4x1xf32>
    %31 = arith.mulf %26, %30 : vector<4x1xf32>
    %c0_13 = arith.constant 0 : index
    %c2 = arith.constant 2 : index
    %32 = vector.load %arg3[%c0_13, %c2] : memref<4x4xf32, #tpu.memory_space<vmem>>, vector<4x1xf32>
    %33 = vector.broadcast %13 : vector<1x1xf32> to vector<4x1xf32>
    %34 = arith.mulf %33, %31 : vector<4x1xf32>
    %35 = arith.subf %32, %34 : vector<4x1xf32>
    %36 = vector.broadcast %31 : vector<4x1xf32> to vector<4x64xf32>
    %37 = arith.mulf %6, %36 : vector<4x64xf32>
    %38 = vector.broadcast %35 : vector<4x1xf32> to vector<4x64xf32>
    %39 = arith.addf %37, %38 : vector<4x64xf32>
    %c0_14 = arith.constant 0 : index
    %c0_15 = arith.constant 0 : index
    %40 = vector.load %arg5[%c0_14, %c0_15] : memref<4x16xbf16, #tpu.memory_space<vmem>>, vector<4x16xbf16>
    %c0_16 = arith.constant 0 : index
    %c0_17 = arith.constant 0 : index
    %c0_18 = arith.constant 0 : index
    %41 = vector.load %arg4[%c0_16, %c0_17, %c0_18] : memref<1x16x64xbf16, #tpu.memory_space<vmem>>, vector<1x16x64xbf16>
    %42 = vector.shape_cast %41 : vector<1x16x64xbf16> to vector<16x64xbf16>
    %cst_19 = arith.constant dense<0.000000e+00> : vector<4x64xf32>
    %43 = tpu.matmul %40, %42, %cst_19 {dimension_numbers = #tpu.dot_dimension_numbers<[1], [0], [0], [1], [0, 0, 1, 1], [], []>} : vector<4x16xbf16>, vector<16x64xbf16>, vector<4x64xf32> -> vector<4x64xf32>
    %44 = arith.addf %39, %43 : vector<4x64xf32>
    %c0_20 = arith.constant 0 : index
    %c3 = arith.constant 3 : index
    %45 = vector.load %arg3[%c0_20, %c3] : memref<4x4xf32, #tpu.memory_space<vmem>>, vector<4x1xf32>
    %46 = vector.broadcast %45 : vector<4x1xf32> to vector<4x64xf32>
    %47 = arith.addf %44, %46 : vector<4x64xf32>
    %cst_21 = arith.constant 0.000000e+00 : f32
    %48 = vector.broadcast %cst_21 : f32 to vector<4x64xf32>
    %49 = arith.maximumf %47, %48 : vector<4x64xf32>
    %50 = arith.truncf %49 : vector<4x64xf32> to vector<4x64xbf16>
    %c0_22 = arith.constant 0 : index
    %c0_23 = arith.constant 0 : index
    %c0_24 = arith.constant 0 : index
    %51 = vector.load %arg6[%c0_22, %c0_23, %c0_24] : memref<1x4x64xbf16, #tpu.memory_space<vmem>>, vector<1x4x64xbf16>
    %52 = vector.shape_cast %51 : vector<1x4x64xbf16> to vector<4x64xbf16>
    %53 = vector.shape_cast %50 : vector<4x64xbf16> to vector<1x4x64xbf16>
    tpu.vector_store %arg6[%c0_22, %c0_23, %c0_24], %53 {strides = array<i32>} : memref<1x4x64xbf16, #tpu.memory_space<vmem>>, vector<1x4x64xbf16>,
    return
  }
  func.func @transform_0(%arg0: i32) -> (i32, i32, i32) {
    %c0_i32 = arith.constant 0 : i32
    %c0_i32_0 = arith.constant 0 : i32
    %c0_i32_1 = arith.constant 0 : i32
    return %arg0, %c0_i32, %c0_i32_0 : i32, i32, i32
  }
  func.func @transform_1(%arg0: i32) -> (i32, i32) {
    %c0_i32 = arith.constant 0 : i32
    %c0_i32_0 = arith.constant 0 : i32
    %c0_i32_1 = arith.constant 0 : i32
    return %c0_i32, %c0_i32_0 : i32, i32
  }
  func.func @transform_2(%arg0: i32) -> (i32, i32) {
    %c0_i32 = arith.constant 0 : i32
    %c0_i32_0 = arith.constant 0 : i32
    %c0_i32_1 = arith.constant 0 : i32
    return %c0_i32, %c0_i32_0 : i32, i32
  }
  func.func @transform_3(%arg0: i32) -> (i32, i32, i32) {
    %c0_i32 = arith.constant 0 : i32
    %c0_i32_0 = arith.constant 0 : i32
    %c0_i32_1 = arith.constant 0 : i32
    return %arg0, %c0_i32, %c0_i32_0 : i32, i32, i32
  }
  func.func @transform_4(%arg0: i32) -> (i32, i32) {
    %c0_i32 = arith.constant 0 : i32
    %c0_i32_0 = arith.constant 0 : i32
    %c0_i32_1 = arith.constant 0 : i32
    return %c0_i32, %c0_i32_0 : i32, i32
  }
  func.func @transform_5(%arg0: i32) -> (i32, i32, i32) {
    %c0_i32 = arith.constant 0 : i32
    %c0_i32_0 = arith.constant 0 : i32
    %c0_i32_1 = arith.constant 0 : i32
    return %arg0, %c0_i32, %c0_i32_0 : i32, i32, i32
  }
}

module attributes {stable_mosaic.version = 11 : i64} {
  func.func @_gn_conv_kernel(%arg0: i32, %arg1: memref<1x72x256xbf16, #tpu.memory_space<vmem>>, %arg2: memref<4x72xbf16, #tpu.memory_space<vmem>>, %arg3: memref<4x4xf32, #tpu.memory_space<vmem>>, %arg4: memref<1x4x256xbf16, #tpu.memory_space<vmem>>) attributes {dimension_semantics = [#tpu.dimension_semantics<parallel>], iteration_bounds = array<i64: 2>, scalar_prefetch = 0 : i64, scratch_operands = 0 : i64, tpu.core_type = #tpu.core_type<tc>, window_params = [{transform_indices = @transform_0, window_bounds = array<i64: 1, 72, 256>}, {pipeline_mode = #tpu.pipeline_mode<synchronous>, transform_indices = @transform_1, window_bounds = array<i64: 4, 72>}, {pipeline_mode = #tpu.pipeline_mode<synchronous>, transform_indices = @transform_2, window_bounds = array<i64: 4, 4>}, {transform_indices = @transform_3, window_bounds = array<i64: 1, 4, 256>}]} {
    %c0 = arith.constant 0 : index
    %c0_0 = arith.constant 0 : index
    %0 = vector.load %arg2[%c0, %c0_0] : memref<4x72xbf16, #tpu.memory_space<vmem>>, vector<4x72xbf16>
    %c0_1 = arith.constant 0 : index
    %c0_2 = arith.constant 0 : index
    %c0_3 = arith.constant 0 : index
    %1 = vector.load %arg1[%c0_1, %c0_2, %c0_3] : memref<1x72x256xbf16, #tpu.memory_space<vmem>>, vector<1x72x256xbf16>
    %2 = vector.shape_cast %1 : vector<1x72x256xbf16> to vector<72x256xbf16>
    %cst = arith.constant dense<0.000000e+00> : vector<4x256xf32>
    %3 = tpu.matmul %0, %2, %cst {dimension_numbers = #tpu.dot_dimension_numbers<[1], [0], [0], [1], [0, 0, 1, 1], [], []>} : vector<4x72xbf16>, vector<72x256xbf16>, vector<4x256xf32> -> vector<4x256xf32>
    %c0_4 = arith.constant 0 : index
    %c0_5 = arith.constant 0 : index
    %4 = vector.load %arg3[%c0_4, %c0_5] : memref<4x4xf32, #tpu.memory_space<vmem>>, vector<4x1xf32>
    %5 = vector.broadcast %4 : vector<4x1xf32> to vector<4x256xf32>
    %6 = arith.addf %3, %5 : vector<4x256xf32>
    %7 = vector.shape_cast %6 : vector<4x256xf32> to vector<1x4x256xf32>
    %cst_6 = arith.constant dense<0.000000e+00> : vector<1xf32>
    %8 = vector.multi_reduction <add>, %7, %cst_6 [1, 2] : vector<1x4x256xf32> to vector<1xf32>
    %9 = vector.shape_cast %8 : vector<1xf32> to vector<1x1x1xf32>
    %10 = vector.extract %9[0, 0, 0] : f32 from vector<1x1x1xf32>
    %11 = vector.broadcast %10 : f32 to vector<1x1xf32>
    %cst_7 = arith.constant 1.024000e+03 : f32
    %12 = vector.broadcast %cst_7 : f32 to vector<1x1xf32>
    %13 = arith.divf %11, %12 : vector<1x1xf32>
    %14 = arith.mulf %6, %6 : vector<4x256xf32>
    %15 = vector.shape_cast %14 : vector<4x256xf32> to vector<1x4x256xf32>
    %cst_8 = arith.constant dense<0.000000e+00> : vector<1xf32>
    %16 = vector.multi_reduction <add>, %15, %cst_8 [1, 2] : vector<1x4x256xf32> to vector<1xf32>
    %17 = vector.shape_cast %16 : vector<1xf32> to vector<1x1x1xf32>
    %18 = vector.extract %17[0, 0, 0] : f32 from vector<1x1x1xf32>
    %19 = vector.broadcast %18 : f32 to vector<1x1xf32>
    %cst_9 = arith.constant 1.024000e+03 : f32
    %20 = vector.broadcast %cst_9 : f32 to vector<1x1xf32>
    %21 = arith.divf %19, %20 : vector<1x1xf32>
    %22 = arith.mulf %13, %13 : vector<1x1xf32>
    %23 = arith.subf %21, %22 : vector<1x1xf32>
    %cst_10 = arith.constant 0.000000e+00 : f32
    %24 = vector.broadcast %cst_10 : f32 to vector<1x1xf32>
    %25 = arith.maximumf %23, %24 : vector<1x1xf32>
    %c0_11 = arith.constant 0 : index
    %c1 = arith.constant 1 : index
    %26 = vector.load %arg3[%c0_11, %c1] : memref<4x4xf32, #tpu.memory_space<vmem>>, vector<4x1xf32>
    %cst_12 = arith.constant 9.99999974E-6 : f32
    %27 = vector.broadcast %cst_12 : f32 to vector<1x1xf32>
    %28 = arith.addf %25, %27 : vector<1x1xf32>
    %29 = math.rsqrt %28 : vector<1x1xf32>
    %30 = vector.broadcast %29 : vector<1x1xf32> to vector<4x1xf32>
    %31 = arith.mulf %26, %30 : vector<4x1xf32>
    %c0_13 = arith.constant 0 : index
    %c2 = arith.constant 2 : index
    %32 = vector.load %arg3[%c0_13, %c2] : memref<4x4xf32, #tpu.memory_space<vmem>>, vector<4x1xf32>
    %33 = vector.broadcast %13 : vector<1x1xf32> to vector<4x1xf32>
    %34 = arith.mulf %33, %31 : vector<4x1xf32>
    %35 = arith.subf %32, %34 : vector<4x1xf32>
    %36 = vector.broadcast %31 : vector<4x1xf32> to vector<4x256xf32>
    %37 = arith.mulf %6, %36 : vector<4x256xf32>
    %38 = vector.broadcast %35 : vector<4x1xf32> to vector<4x256xf32>
    %39 = arith.addf %37, %38 : vector<4x256xf32>
    %cst_14 = arith.constant 0.000000e+00 : f32
    %40 = vector.broadcast %cst_14 : f32 to vector<4x256xf32>
    %41 = arith.maximumf %39, %40 : vector<4x256xf32>
    %42 = arith.truncf %41 : vector<4x256xf32> to vector<4x256xbf16>
    %c0_15 = arith.constant 0 : index
    %c0_16 = arith.constant 0 : index
    %c0_17 = arith.constant 0 : index
    %43 = vector.load %arg4[%c0_15, %c0_16, %c0_17] : memref<1x4x256xbf16, #tpu.memory_space<vmem>>, vector<1x4x256xbf16>
    %44 = vector.shape_cast %43 : vector<1x4x256xbf16> to vector<4x256xbf16>
    %45 = vector.shape_cast %42 : vector<4x256xbf16> to vector<1x4x256xbf16>
    tpu.vector_store %arg4[%c0_15, %c0_16, %c0_17], %45 {strides = array<i32>} : memref<1x4x256xbf16, #tpu.memory_space<vmem>>, vector<1x4x256xbf16>,
    return
  }
  func.func @transform_0(%arg0: i32) -> (i32, i32, i32) {
    %c0_i32 = arith.constant 0 : i32
    %c0_i32_0 = arith.constant 0 : i32
    %c0_i32_1 = arith.constant 0 : i32
    return %arg0, %c0_i32, %c0_i32_0 : i32, i32, i32
  }
  func.func @transform_1(%arg0: i32) -> (i32, i32) {
    %c0_i32 = arith.constant 0 : i32
    %c0_i32_0 = arith.constant 0 : i32
    %c0_i32_1 = arith.constant 0 : i32
    return %c0_i32, %c0_i32_0 : i32, i32
  }
  func.func @transform_2(%arg0: i32) -> (i32, i32) {
    %c0_i32 = arith.constant 0 : i32
    %c0_i32_0 = arith.constant 0 : i32
    %c0_i32_1 = arith.constant 0 : i32
    return %c0_i32, %c0_i32_0 : i32, i32
  }
  func.func @transform_3(%arg0: i32) -> (i32, i32, i32) {
    %c0_i32 = arith.constant 0 : i32
    %c0_i32_0 = arith.constant 0 : i32
    %c0_i32_1 = arith.constant 0 : i32
    return %arg0, %c0_i32, %c0_i32_0 : i32, i32, i32
  }
}

module attributes {stable_mosaic.version = 11 : i64} {
  func.func @_gn_conv_kernel(%arg0: i32, %arg1: memref<1x36x256xbf16, #tpu.memory_space<vmem>>, %arg2: memref<4x36xbf16, #tpu.memory_space<vmem>>, %arg3: memref<4x4xf32, #tpu.memory_space<vmem>>, %arg4: memref<1x8x256xbf16, #tpu.memory_space<vmem>>, %arg5: memref<4x8xbf16, #tpu.memory_space<vmem>>, %arg6: memref<1x4x256xf32, #tpu.memory_space<vmem>>) attributes {dimension_semantics = [#tpu.dimension_semantics<parallel>], iteration_bounds = array<i64: 2>, scalar_prefetch = 0 : i64, scratch_operands = 0 : i64, tpu.core_type = #tpu.core_type<tc>, window_params = [{transform_indices = @transform_0, window_bounds = array<i64: 1, 36, 256>}, {pipeline_mode = #tpu.pipeline_mode<synchronous>, transform_indices = @transform_1, window_bounds = array<i64: 4, 36>}, {pipeline_mode = #tpu.pipeline_mode<synchronous>, transform_indices = @transform_2, window_bounds = array<i64: 4, 4>}, {transform_indices = @transform_3, window_bounds = array<i64: 1, 8, 256>}, {pipeline_mode = #tpu.pipeline_mode<synchronous>, transform_indices = @transform_4, window_bounds = array<i64: 4, 8>}, {transform_indices = @transform_5, window_bounds = array<i64: 1, 4, 256>}]} {
    %c0 = arith.constant 0 : index
    %c0_0 = arith.constant 0 : index
    %0 = vector.load %arg2[%c0, %c0_0] : memref<4x36xbf16, #tpu.memory_space<vmem>>, vector<4x36xbf16>
    %c0_1 = arith.constant 0 : index
    %c0_2 = arith.constant 0 : index
    %c0_3 = arith.constant 0 : index
    %1 = vector.load %arg1[%c0_1, %c0_2, %c0_3] : memref<1x36x256xbf16, #tpu.memory_space<vmem>>, vector<1x36x256xbf16>
    %2 = vector.shape_cast %1 : vector<1x36x256xbf16> to vector<36x256xbf16>
    %cst = arith.constant dense<0.000000e+00> : vector<4x256xf32>
    %3 = tpu.matmul %0, %2, %cst {dimension_numbers = #tpu.dot_dimension_numbers<[1], [0], [0], [1], [0, 0, 1, 1], [], []>} : vector<4x36xbf16>, vector<36x256xbf16>, vector<4x256xf32> -> vector<4x256xf32>
    %c0_4 = arith.constant 0 : index
    %c0_5 = arith.constant 0 : index
    %4 = vector.load %arg3[%c0_4, %c0_5] : memref<4x4xf32, #tpu.memory_space<vmem>>, vector<4x1xf32>
    %5 = vector.broadcast %4 : vector<4x1xf32> to vector<4x256xf32>
    %6 = arith.addf %3, %5 : vector<4x256xf32>
    %7 = vector.shape_cast %6 : vector<4x256xf32> to vector<1x4x256xf32>
    %cst_6 = arith.constant dense<0.000000e+00> : vector<1xf32>
    %8 = vector.multi_reduction <add>, %7, %cst_6 [1, 2] : vector<1x4x256xf32> to vector<1xf32>
    %9 = vector.shape_cast %8 : vector<1xf32> to vector<1x1x1xf32>
    %10 = vector.extract %9[0, 0, 0] : f32 from vector<1x1x1xf32>
    %11 = vector.broadcast %10 : f32 to vector<1x1xf32>
    %cst_7 = arith.constant 1.024000e+03 : f32
    %12 = vector.broadcast %cst_7 : f32 to vector<1x1xf32>
    %13 = arith.divf %11, %12 : vector<1x1xf32>
    %14 = arith.mulf %6, %6 : vector<4x256xf32>
    %15 = vector.shape_cast %14 : vector<4x256xf32> to vector<1x4x256xf32>
    %cst_8 = arith.constant dense<0.000000e+00> : vector<1xf32>
    %16 = vector.multi_reduction <add>, %15, %cst_8 [1, 2] : vector<1x4x256xf32> to vector<1xf32>
    %17 = vector.shape_cast %16 : vector<1xf32> to vector<1x1x1xf32>
    %18 = vector.extract %17[0, 0, 0] : f32 from vector<1x1x1xf32>
    %19 = vector.broadcast %18 : f32 to vector<1x1xf32>
    %cst_9 = arith.constant 1.024000e+03 : f32
    %20 = vector.broadcast %cst_9 : f32 to vector<1x1xf32>
    %21 = arith.divf %19, %20 : vector<1x1xf32>
    %22 = arith.mulf %13, %13 : vector<1x1xf32>
    %23 = arith.subf %21, %22 : vector<1x1xf32>
    %cst_10 = arith.constant 0.000000e+00 : f32
    %24 = vector.broadcast %cst_10 : f32 to vector<1x1xf32>
    %25 = arith.maximumf %23, %24 : vector<1x1xf32>
    %c0_11 = arith.constant 0 : index
    %c1 = arith.constant 1 : index
    %26 = vector.load %arg3[%c0_11, %c1] : memref<4x4xf32, #tpu.memory_space<vmem>>, vector<4x1xf32>
    %cst_12 = arith.constant 9.99999974E-6 : f32
    %27 = vector.broadcast %cst_12 : f32 to vector<1x1xf32>
    %28 = arith.addf %25, %27 : vector<1x1xf32>
    %29 = math.rsqrt %28 : vector<1x1xf32>
    %30 = vector.broadcast %29 : vector<1x1xf32> to vector<4x1xf32>
    %31 = arith.mulf %26, %30 : vector<4x1xf32>
    %c0_13 = arith.constant 0 : index
    %c2 = arith.constant 2 : index
    %32 = vector.load %arg3[%c0_13, %c2] : memref<4x4xf32, #tpu.memory_space<vmem>>, vector<4x1xf32>
    %33 = vector.broadcast %13 : vector<1x1xf32> to vector<4x1xf32>
    %34 = arith.mulf %33, %31 : vector<4x1xf32>
    %35 = arith.subf %32, %34 : vector<4x1xf32>
    %36 = vector.broadcast %31 : vector<4x1xf32> to vector<4x256xf32>
    %37 = arith.mulf %6, %36 : vector<4x256xf32>
    %38 = vector.broadcast %35 : vector<4x1xf32> to vector<4x256xf32>
    %39 = arith.addf %37, %38 : vector<4x256xf32>
    %c0_14 = arith.constant 0 : index
    %c0_15 = arith.constant 0 : index
    %40 = vector.load %arg5[%c0_14, %c0_15] : memref<4x8xbf16, #tpu.memory_space<vmem>>, vector<4x8xbf16>
    %c0_16 = arith.constant 0 : index
    %c0_17 = arith.constant 0 : index
    %c0_18 = arith.constant 0 : index
    %41 = vector.load %arg4[%c0_16, %c0_17, %c0_18] : memref<1x8x256xbf16, #tpu.memory_space<vmem>>, vector<1x8x256xbf16>
    %42 = vector.shape_cast %41 : vector<1x8x256xbf16> to vector<8x256xbf16>
    %cst_19 = arith.constant dense<0.000000e+00> : vector<4x256xf32>
    %43 = tpu.matmul %40, %42, %cst_19 {dimension_numbers = #tpu.dot_dimension_numbers<[1], [0], [0], [1], [0, 0, 1, 1], [], []>} : vector<4x8xbf16>, vector<8x256xbf16>, vector<4x256xf32> -> vector<4x256xf32>
    %44 = arith.addf %39, %43 : vector<4x256xf32>
    %c0_20 = arith.constant 0 : index
    %c3 = arith.constant 3 : index
    %45 = vector.load %arg3[%c0_20, %c3] : memref<4x4xf32, #tpu.memory_space<vmem>>, vector<4x1xf32>
    %46 = vector.broadcast %45 : vector<4x1xf32> to vector<4x256xf32>
    %47 = arith.addf %44, %46 : vector<4x256xf32>
    %cst_21 = arith.constant 0.000000e+00 : f32
    %48 = vector.broadcast %cst_21 : f32 to vector<4x256xf32>
    %49 = arith.maximumf %47, %48 : vector<4x256xf32>
    %c0_22 = arith.constant 0 : index
    %c0_23 = arith.constant 0 : index
    %c0_24 = arith.constant 0 : index
    %50 = vector.load %arg6[%c0_22, %c0_23, %c0_24] : memref<1x4x256xf32, #tpu.memory_space<vmem>>, vector<1x4x256xf32>
    %51 = vector.shape_cast %50 : vector<1x4x256xf32> to vector<4x256xf32>
    %52 = vector.shape_cast %49 : vector<4x256xf32> to vector<1x4x256xf32>
    tpu.vector_store %arg6[%c0_22, %c0_23, %c0_24], %52 {strides = array<i32>} : memref<1x4x256xf32, #tpu.memory_space<vmem>>, vector<1x4x256xf32>,
    return
  }
  func.func @transform_0(%arg0: i32) -> (i32, i32, i32) {
    %c0_i32 = arith.constant 0 : i32
    %c0_i32_0 = arith.constant 0 : i32
    %c0_i32_1 = arith.constant 0 : i32
    return %arg0, %c0_i32, %c0_i32_0 : i32, i32, i32
  }
  func.func @transform_1(%arg0: i32) -> (i32, i32) {
    %c0_i32 = arith.constant 0 : i32
    %c0_i32_0 = arith.constant 0 : i32
    %c0_i32_1 = arith.constant 0 : i32
    return %c0_i32, %c0_i32_0 : i32, i32
  }
  func.func @transform_2(%arg0: i32) -> (i32, i32) {
    %c0_i32 = arith.constant 0 : i32
    %c0_i32_0 = arith.constant 0 : i32
    %c0_i32_1 = arith.constant 0 : i32
    return %c0_i32, %c0_i32_0 : i32, i32
  }
  func.func @transform_3(%arg0: i32) -> (i32, i32, i32) {
    %c0_i32 = arith.constant 0 : i32
    %c0_i32_0 = arith.constant 0 : i32
    %c0_i32_1 = arith.constant 0 : i32
    return %arg0, %c0_i32, %c0_i32_0 : i32, i32, i32
  }
  func.func @transform_4(%arg0: i32) -> (i32, i32) {
    %c0_i32 = arith.constant 0 : i32
    %c0_i32_0 = arith.constant 0 : i32
    %c0_i32_1 = arith.constant 0 : i32
    return %c0_i32, %c0_i32_0 : i32, i32
  }
  func.func @transform_5(%arg0: i32) -> (i32, i32, i32) {
    %c0_i32 = arith.constant 0 : i32
    %c0_i32_0 = arith.constant 0 : i32
    %c0_i32_1 = arith.constant 0 : i32
    return %arg0, %c0_i32, %c0_i32_0 : i32, i32, i32
  }
}

</mosaic_0001>

<llo_original>
// kernel: _lambda_.19
$region0: #{_lambda_.19}
  #allocation0 [shape = 'u32[]', space=smem, size = 0x4, offset = 0x4, fixed_abs, tag = 'smem constant byte address 0x4 - core index']
  #allocation1 [shape = 'u32[72,128]{1,0:T(1,128)}', space=vmem, size = 0x9000, scoped, tag = 'internal scratch']
  %s0 = inlined_call_operand.vmem [shape: bf16[36,512], index: 0, kind: input, shape index: {}]
  %s1 = inlined_call_operand.vmem [shape: bf16[4,36], index: 1, kind: input, shape index: {}]
  %s2 = inlined_call_operand.vmem [shape: f32[4,1], index: 2, kind: input, shape index: {}]
  %s3 = inlined_call_operand.vmem [shape: f32[1,512], index: 3, kind: input, shape index: {}]
  %s4 = inlined_call_operand.vmem [shape: bf16[4,512], index: 4, kind: output, shape index: {}]
  %s5 = sld [smem:[#allocation0]]
  $region87: #{_lambda_.19} parent=0
    _
  %s7 = ssub.s32 1, %s5
  %s8 = scalar_select 0, %s7, %s5
  $region1: #{_lambda_.19} parent=0
    #allocation2 [shape = 'u8[40960]{0}', space=vmem, size = 0xa000, scoped, tag = 'input window, operand 0']
    loop: start=0, step=1, limit=4
    $region2: #{_lambda_.19} parent=1 // loop_pre_header
      _
    $region3: #{_lambda_.19} parent=1 // loop_header
      %s10 = sphi 0, %s14
      %p11 = scmp.ge.s32.totalorder %s10, 4
      %s20 = sphi 0, %s22
      %s23 = sphi 0, %s20
      %s24 = sphi 0, %s23
      %s40 = sphi 0, %s24
      %s44 = sphi 0, %s44
      %s46 = sphi 0, %s44
      %s47 = sphi 0, %s46
      %s61 = sphi 0, %s47
      %s65 = sphi 0, %s65
      %s67 = sphi 0, %s65
      %s68 = sphi 0, %s67
      %s82 = sphi 0, %s68
      %s88 = sphi 0, %s90
      %s91 = sphi 0, %s88
      %s92 = sphi 0, %s91
      %s108 = sphi 0, %s92
      %s114 = sphi 0, %s116
      %s117 = sphi 0, %s114
      %s118 = sphi 0, %s117
      %s134 = sphi 0, %s118
    $region4: #{_lambda_.19} parent=1 // loop_header_branch
      %13 = sbr.rel (%p11) target = $region8
    $region5: #{_lambda_.19} parent=1 // loop_body
      %s15 = ssub.s32 %s10, 1
      %s16 = ssub.s32 %s10, 2
      %s17 = sadd.s32 %s10, 1
      %s18 = ssub.s32 %s10, %s17
      %p19 = scmp.eq.s32.totalorder %s18, 0
      %s21 = sadd.s32 %s20, 1
      %s22 = scalar_select %p19, %s20, %s21
      %p25 = pneg %p19
      %p26 = scmp.eq.s32.totalorder %s10, 1
      %p27 = por %p25, %p26
      %p28 = scmp.ne.s32.totalorder %s20, %s23
      %p29 = scmp.eq.s32.totalorder %s10, 0
      %p30 = por %p28, %p29
      %p31 = scmp.ne.s32.totalorder %s20, %s23
      %p32 = scmp.eq.s32.totalorder %s15, 1
      %p33 = por %p31, %p32
      %p34 = scmp.ne.s32.totalorder %s23, %s24
      %p35 = scmp.eq.s32.totalorder %s15, 0
      %p36 = por %p34, %p35
      %p37 = scmp.ne.s32.totalorder %s23, %s24
      %p38 = scmp.eq.s32.totalorder %s16, 1
      %p39 = por %p37, %p38
      %p41 = scmp.ne.s32.totalorder %s24, %s40
      %p42 = scmp.eq.s32.totalorder %s16, 0
      %p43 = por %p41, %p42
      %s45 = sadd.s32 %s44, 1
      %p48 = scmp.eq.s32.totalorder %s10, 1
      %p49 = scmp.ne.s32.totalorder %s44, %s46
      %p50 = scmp.eq.s32.totalorder %s10, 0
      %p51 = por %p49, %p50
      %p52 = scmp.ne.s32.totalorder %s44, %s46
      %p53 = scmp.eq.s32.totalorder %s15, 1
      %p54 = por %p52, %p53
      %p55 = scmp.ne.s32.totalorder %s46, %s47
      %p56 = scmp.eq.s32.totalorder %s15, 0
      %p57 = por %p55, %p56
      %p58 = scmp.ne.s32.totalorder %s46, %s47
      %p59 = scmp.eq.s32.totalorder %s16, 1
      %p60 = por %p58, %p59
      %p62 = scmp.ne.s32.totalorder %s47, %s61
      %p63 = scmp.eq.s32.totalorder %s16, 0
      %p64 = por %p62, %p63
      %s66 = sadd.s32 %s65, 1
      %p69 = scmp.eq.s32.totalorder %s10, 1
      %p70 = scmp.ne.s32.totalorder %s65, %s67
      %p71 = scmp.eq.s32.totalorder %s10, 0
      %p72 = por %p70, %p71
      %p73 = scmp.ne.s32.totalorder %s65, %s67
      %p74 = scmp.eq.s32.totalorder %s15, 1
      %p75 = por %p73, %p74
      %p76 = scmp.ne.s32.totalorder %s67, %s68
      %p77 = scmp.eq.s32.totalorder %s15, 0
      %p78 = por %p76, %p77
      %p79 = scmp.ne.s32.totalorder %s67, %s68
      %p80 = scmp.eq.s32.totalorder %s16, 1
      %p81 = por %p79, %p80
      %p83 = scmp.ne.s32.totalorder %s68, %s82
      %p84 = scmp.eq.s32.totalorder %s16, 0
      %p85 = por %p83, %p84
      %s86 = ssub.s32 %s10, %s17
      %p87 = scmp.eq.s32.totalorder %s86, 0
      %s89 = sadd.s32 %s88, 1
      %s90 = scalar_select %p87, %s88, %s89
      %p93 = pneg %p87
      %p94 = scmp.eq.s32.totalorder %s10, 1
      %p95 = por %p93, %p94
      %p96 = scmp.ne.s32.totalorder %s88, %s91
      %p97 = scmp.eq.s32.totalorder %s10, 0
      %p98 = por %p96, %p97
      %p99 = scmp.ne.s32.totalorder %s88, %s91
      %p100 = scmp.eq.s32.totalorder %s15, 1
      %p101 = por %p99, %p100
      %p102 = scmp.ne.s32.totalorder %s91, %s92
      %p103 = scmp.eq.s32.totalorder %s15, 0
      %p104 = por %p102, %p103
      %p105 = scmp.ne.s32.totalorder %s91, %s92
      %p106 = scmp.eq.s32.totalorder %s16, 1
      %p107 = por %p105, %p106
      %p109 = scmp.ne.s32.totalorder %s92, %s108
      %p110 = scmp.eq.s32.totalorder %s16, 0
      %p111 = por %p109, %p110
      %s112 = ssub.s32 %s10, %s17
      %p113 = scmp.eq.s32.totalorder %s112, 0
      %s115 = sadd.s32 %s114, 1
      %s116 = scalar_select %p113, %s114, %s115
      %p119 = pneg %p113
      %p120 = scmp.eq.s32.totalorder %s10, 1
      %p121 = por %p119, %p120
      %p122 = scmp.ne.s32.totalorder %s114, %s117
      %p123 = scmp.eq.s32.totalorder %s10, 0
      %p124 = por %p122, %p123
      %p125 = scmp.ne.s32.totalorder %s114, %s117
      %p126 = scmp.eq.s32.totalorder %s15, 1
      %p127 = por %p125, %p126
      %p128 = scmp.ne.s32.totalorder %s117, %s118
      %p129 = scmp.eq.s32.totalorder %s15, 0
      %p130 = por %p128, %p129
      %p131 = scmp.ne.s32.totalorder %s117, %s118
      %p132 = scmp.eq.s32.totalorder %s16, 1
      %p133 = por %p131, %p132
      %p135 = scmp.ne.s32.totalorder %s118, %s134
      %p136 = scmp.eq.s32.totalorder %s16, 0
      %p137 = por %p135, %p136
      %p138 = scmp.le.s32.totalorder 1, %s10
      %p139 = scmp.lt.s32.totalorder %s10, 3
      %p140 = pnand %p138, %p139
      %p141 = pneg %p140
      // Predicated region
      $region9: #{_lambda_.19} parent=5 // pred_check
        _
      $region10: #{_lambda_.19} parent=5 // pred_check_branch
        %143 = sbr.rel (%p140) target = $region12
      $region11: #{_lambda_.19} parent=5 // pred_region
        %s144 = ssub.s32 %s10, 1
        // Predicated region
        $region13: #{_lambda_.19} parent=11 // pred_check
          %p145 = pneg %p57
        $region14: #{_lambda_.19} parent=11 // pred_check_branch
          %147 = sbr.rel (%p145) target = $region16
        $region15: #{_lambda_.19} parent=11 // pred_region
          _
        $region16: #{_lambda_.19} parent=11 // pred_fallthru
          _
        // Predicated region
        $region17: #{_lambda_.19} parent=11 // pred_check
          %p148 = pneg %p78
        $region18: #{_lambda_.19} parent=11 // pred_check_branch
          %150 = sbr.rel (%p148) target = $region20
        $region19: #{_lambda_.19} parent=11 // pred_region
          _
        $region20: #{_lambda_.19} parent=11 // pred_fallthru
          _
      $region12: #{_lambda_.19} parent=5 // pred_fallthru
        _
      %p151 = scmp.lt.s32.totalorder %s10, 2
      // Predicated region
      $region21: #{_lambda_.19} parent=5 // pred_check
        %p152 = pneg %p151
      $region22: #{_lambda_.19} parent=5 // pred_check_branch
        %154 = sbr.rel (%p152) target = $region24
      $region23: #{_lambda_.19} parent=5 // pred_region
        // Predicated region
        $region25: #{_lambda_.19} parent=23 // pred_check
          %p155 = pneg %p30
        $region26: #{_lambda_.19} parent=23 // pred_check_branch
          %157 = sbr.rel (%p155) target = $region28
        $region27: #{_lambda_.19} parent=23 // pred_region
          %s158 = sand.u32 %s20, 1
          %s159 = sand.u32 %s20, 1
          %s160 = smul.addr %s159, 40
          %s161 = scalar_lea.vmem [#allocation2], %s160
          %s162 = smul.u32 2, %s10
          %s163 = smul.addr %s162, 4
          %s164 = scalar_lea.vmem %s0, %s163
          // Predicated region
          $region29: #{_lambda_.19} parent=27 // pred_check
            _
          $region30: #{_lambda_.19} parent=27 // pred_check_branch
            %166 = sbr.rel (0) target = $region32
          $region31: #{_lambda_.19} parent=27 // pred_region
            // Predicated region
            $region33: #{_lambda_.19} parent=31 // pred_check
              _
            $region34: #{_lambda_.19} parent=31 // pred_check_branch
              %168 = sbr.rel (0) target = $region36
            $region35: #{_lambda_.19} parent=31 // pred_region
              // Predicated region
              $region48: #{_lambda_.19} parent=35 // pred_check
                _
              $region49: #{_lambda_.19} parent=35 // pred_check_branch
                %192 = sbr.rel (0) target = $region51
              $region50: #{_lambda_.19} parent=35 // pred_region
                loop: start=0, step=1, limit=1
                $region52: #{_lambda_.19} parent=50 // loop_pre_header
                  _
                $region53: #{_lambda_.19} parent=50 // loop_header
                  %s194 = sphi 0, %s198
                  %p195 = scmp.ge.s32.totalorder %s194, 1
                  %s199 = sphi %s164, %s164
                  %s200 = sphi %s161, %s161
                $region54: #{_lambda_.19} parent=50 // loop_header_branch
                  %197 = sbr.rel (%p195) target = $region58
                $region55: #{_lambda_.19} parent=50 // loop_body
                  %v201 = vld [vmem:[%s199] sm:$0xff]
                  %202 = vst [vmem:[%s200] sm:$0xff] %v201
                  %v203 = vld [vmem:[%s199 + $0x10] sm:$0xff]
                  %204 = vst [vmem:[%s200 + $0x8] sm:$0xff] %v203
                  %v205 = vld [vmem:[%s199 + $0x20] sm:$0xff]
                  %206 = vst [vmem:[%s200 + $0x10] sm:$0xff] %v205
                  %v207 = vld [vmem:[%s199 + $0x30] sm:$0xff]
                  %208 = vst [vmem:[%s200 + $0x18] sm:$0xff] %v207
                  %v209 = vld [vmem:[%s199 + $0x40] sm:$0xff]
                  %210 = vst [vmem:[%s200 + $0x20] sm:$0xff] %v209
                $region56: #{_lambda_.19} parent=50 // loop_footer
                  %s198 = sadd.s32 1, %s194
                $region57: #{_lambda_.19} parent=50 // loop_footer_branch
                  %193 = sbr.rel target = $region53
                $region58: #{_lambda_.19} parent=50 // loop_exit
                  _
              $region51: #{_lambda_.19} parent=35 // pred_fallthru
                _
              // Predicated region
              $region59: #{_lambda_.19} parent=35 // pred_check
                _
              $region60: #{_lambda_.19} parent=35 // pred_check_branch
                %212 = sbr.rel target = $region62
              $region61: #{_lambda_.19} parent=35 // pred_region
                _
              $region62: #{_lambda_.19} parent=35 // pred_fallthru
                _
            $region36: #{_lambda_.19} parent=31 // pred_fallthru
              _
            // Predicated region
            $region37: #{_lambda_.19} parent=31 // pred_check
              _
            $region38: #{_lambda_.19} parent=31 // pred_check_branch
              %170 = sbr.rel target = $region40
            $region39: #{_lambda_.19} parent=31 // pred_region
              %s172 = ssub.s32 256, 1
              loop: start=0, step=1, limit=1
              $region41: #{_lambda_.19} parent=39 // loop_pre_header
                _
              $region42: #{_lambda_.19} parent=39 // loop_header
                %s174 = sphi 0, %s178
                %p175 = scmp.ge.s32.totalorder %s174, 1
                %s179 = sphi %s164, %s164
                %s180 = sphi %s161, %s161
              $region43: #{_lambda_.19} parent=39 // loop_header_branch
                %177 = sbr.rel (%p175) target = $region47
              $region44: #{_lambda_.19} parent=39 // loop_body
                %v181 = vld [vmem:[%s179] sm:%s172]
                %182 = vst [vmem:[%s180] sm:%s172] %v181
                %v183 = vld [vmem:[%s179 + $0x10] sm:%s172]
                %184 = vst [vmem:[%s180 + $0x8] sm:%s172] %v183
                %v185 = vld [vmem:[%s179 + $0x20] sm:%s172]
                %186 = vst [vmem:[%s180 + $0x10] sm:%s172] %v185
                %v187 = vld [vmem:[%s179 + $0x30] sm:%s172]
                %188 = vst [vmem:[%s180 + $0x18] sm:%s172] %v187
                %v189 = vld [vmem:[%s179 + $0x40] sm:%s172]
                %190 = vst [vmem:[%s180 + $0x20] sm:%s172] %v189
              $region45: #{_lambda_.19} parent=39 // loop_footer
                %s178 = sadd.s32 1, %s174
              $region46: #{_lambda_.19} parent=39 // loop_footer_branch
                %173 = sbr.rel target = $region42
              $region47: #{_lambda_.19} parent=39 // loop_exit
                _
            $region40: #{_lambda_.19} parent=31 // pred_fallthru
              _
          $region32: #{_lambda_.19} parent=27 // pred_fallthru
            _
          %213 = vnop
        $region28: #{_lambda_.19} parent=23 // pred_fallthru
          _
        // Predicated region
        $region63: #{_lambda_.19} parent=23 // pred_check
          %p214 = pneg %p98
        $region64: #{_lambda_.19} parent=23 // pred_check_branch
          %216 = sbr.rel (%p214) target = $region66
        $region65: #{_lambda_.19} parent=23 // pred_region
          %s217 = smul.u32 2, %s10
          %p218 = scmp.lt.s32.totalorder %s217, 3
          %s219 = scalar_select %p218, %s217, 3
          %s220 = scalar_lea.vmem %s3, %s219
          %s221 = smul.u32 2, %s10
        $region66: #{_lambda_.19} parent=23 // pred_fallthru
          _
      $region24: #{_lambda_.19} parent=5 // pred_fallthru
        _
      %p222 = scmp.le.s32.totalorder 1, %s10
      %p223 = scmp.lt.s32.totalorder %s10, 3
      %p224 = pnand %p222, %p223
      %p225 = pneg %p224
      // Predicated region
      $region67: #{_lambda_.19} parent=5 // pred_check
        _
      $region68: #{_lambda_.19} parent=5 // pred_check_branch
        %227 = sbr.rel (%p224) target = $region70
      $region69: #{_lambda_.19} parent=5 // pred_region
        %s228 = ssub.s32 %s10, 1
        %s229 = sand.u32 %s23, 1
        %s230 = sand.u32 %s23, 1
        %s231 = smul.addr %s230, 40
        %s232 = scalar_lea.vmem [#allocation2], %s231
        // Predicated region
        $region71: #{_lambda_.19} parent=69 // pred_check
          %p233 = pneg %p36
        $region72: #{_lambda_.19} parent=69 // pred_check_branch
          %235 = sbr.rel (%p233) target = $region74
        $region73: #{_lambda_.19} parent=69 // pred_region
          _
        $region74: #{_lambda_.19} parent=69 // pred_fallthru
          _
        %s236 = sand.u32 %s23, 1
        %s237 = sand.u32 %s23, 1
        %s238 = smul.addr %s237, 40
        %s239 = scalar_lea.vmem [#allocation2], %s238
        %p240 = pneg %p36
        %p241 = pneg %p33
        %p242 = pneg %p57
        %p243 = pneg %p54
        %p244 = pneg %p78
        %p245 = pneg %p75
        %s246 = smul.u32 2, %s15
        %p247 = scmp.lt.s32.totalorder %s246, 3
        %s248 = scalar_select %p247, %s246, 3
        %s249 = scalar_lea.vmem %s3, %s248
        %p250 = pneg %p104
        %p251 = pneg %p101
        %p252 = pneg %p130
        %p253 = pneg %p127
        %s254 = smul.u32 2, %s15
        %p255 = scmp.lt.s32.totalorder %s254, 3
        %s256 = scalar_select %p255, %s254, 3
        %s257 = smul.addr %s256, 2
        %s258 = scalar_lea.vmem %s4, %s257
        %s259 = smul.u32 2, %s15
        %s260 = smul.u32 2, %s15
        %p261 = scmp.lt.s32.totalorder %s260, 3
        %s262 = scalar_select %p261, %s260, 3
        %s263 = scalar_lea.vmem %s3, %s262
        %s264 = smul.u32 2, %s15
        %s265 = smul.u32 2, %s15
        %p266 = scmp.lt.s32.totalorder %s265, 3
        %s267 = scalar_select %p266, %s265, 3
        %s268 = smul.addr %s267, 2
        %s269 = scalar_lea.vmem %s4, %s268
        %s270 = smul.u32 2, %s15
        %v272 = vld [vmem:[%s1] sm:$0x3]
        %v273 = vld [vmem:[%s232] sm:$0xff]
        %v274 = vld [vmem:[%s232 + $0x8] sm:$0xff]
        %v275 = vld [vmem:[%s232 + $0x10] sm:$0xff]
        %v276 = vld [vmem:[%s232 + $0x18] sm:$0xff]
        %v277 = vld [vmem:[%s232 + $0x20] sm:$0x33]
        %v278 = vld [vmem:[%s2] sm:$0xf]
        %280 = vset.pattern.permute.xlu0 0
        %281 = vperm.xlu0 %280, %v278
        %v282 = vpop.permute.xlu0 %281
        %v289 = vunpack.c.l.b16 %v273
        %v290 = vunpack.c.h.b16 %v273
        %v291 = vunpack.c.l.b16 %v274
        %v292 = vunpack.c.h.b16 %v274
        %v293 = vunpack.c.l.b16 %v275
        %v294 = vunpack.c.h.b16 %v275
        %v295 = vunpack.c.l.b16 %v276
        %v296 = vunpack.c.h.b16 %v276
        %v297 = vunpack.c.l.b16 %v277
        %v298 = vunpack.c.h.b16 %v277
        %v299 = vpack.c.b16 %v291, %v289
        %v300 = vpack.c.b16 %v292, %v290
        %v301 = vpack.c.b16 %v295, %v293
        %v302 = vpack.c.b16 %v296, %v294
        %v303 = vpack.c.b16 %v297, %v297
        %v304 = vpack.c.b16 %v298, %v298
        %vm309 = vcmask 293888
        %v311 = vsel %vm309, %v272, 0
        %vm313 = vcmask 1041408
        %v315 = vsel %vm313, %v303, 0
        %v318 = vsel %vm313, %v304, 0
        %320 = vmatpush.bf16.msra.mxu0 0
        %321 = vmatpush.bf16.msra.mxu0 0
        %322 = vmatpush.bf16.msra.mxu0 0
        %323 = vmatpush.bf16.msra.mxu0 0
        %324 = vmatpush.bf16.msra.mxu0 0
        %325 = vmatpush.bf16.msra.mxu0 %v315
        %326 = vmatpush.bf16.msra.mxu0 %v301
        %327 = vmatpush.bf16.msra.mxu0 %v299
        %328 = vmatmul.bf16.gmra.mxu0 %v311
        %v329 = vpop.f32.mrf.mxu0
        %v330 = vadd.f32 %v282, %v329
        %v331 = vpop.f32.mrf.mxu0
        %332 = vdwg.mxu0
        %333 = vmatpush.bf16.msra.mxu0 0
        %334 = vmatpush.bf16.msra.mxu0 0
        %335 = vmatpush.bf16.msra.mxu0 0
        %336 = vmatpush.bf16.msra.mxu0 0
        %337 = vmatpush.bf16.msra.mxu0 0
        %338 = vmatpush.bf16.msra.mxu0 %v318
        %339 = vmatpush.bf16.msra.mxu0 %v302
        %340 = vmatpush.bf16.msra.mxu0 %v300
        %341 = vmatmul.bf16.gmra.mxu0 %v311
        %v342 = vpop.f32.mrf.mxu0
        %v343 = vadd.f32 %v282, %v342
        %v344 = vpop.f32.mrf.mxu0
        %345 = vdwg.mxu0
        %v346 = vld [vmem:[%s263] sm:$0x3]
        %v348 = vperm.slane %v346, 0
        %v349 = vperm.slane %v346, 1
        %v352 = vadd.f32 %v330, %v348
        %v353 = vadd.f32 %v343, %v349
        %v354 = vpack.c.bf16 %v353, %v352
        %v356 = vrot.slane %v354, 2
        %v359 = vsel %vm313, %v354, %v356
        %361 = vst [vmem:[%s269] sm:$0xf] %v359
        %s362 = smul.u32 2, %s15
        %p363 = scmp.lt.s32.totalorder %s362, 3
        %s364 = scalar_select %p363, %s362, 3
        %s365 = smul.addr %s364, 2
        %s366 = scalar_lea.vmem %s4, %s365
        // Predicated region
        $region75: #{_lambda_.19} parent=69 // pred_check
          %p367 = pneg %p127
        $region76: #{_lambda_.19} parent=69 // pred_check_branch
          %369 = sbr.rel (%p367) target = $region78
        $region77: #{_lambda_.19} parent=69 // pred_region
          %s370 = smul.u32 2, %s15
        $region78: #{_lambda_.19} parent=69 // pred_fallthru
          _
      $region70: #{_lambda_.19} parent=5 // pred_fallthru
        _
      %p371 = scmp.le.s32.totalorder 2, %s10
      // Predicated region
      $region79: #{_lambda_.19} parent=5 // pred_check
        %p372 = pneg %p371
      $region80: #{_lambda_.19} parent=5 // pred_check_branch
        %374 = sbr.rel (%p372) target = $region82
      $region81: #{_lambda_.19} parent=5 // pred_region
        %s375 = ssub.s32 %s10, 2
        // Predicated region
        $region83: #{_lambda_.19} parent=81 // pred_check
          %p376 = pneg %p133
        $region84: #{_lambda_.19} parent=81 // pred_check_branch
          %378 = sbr.rel (%p376) target = $region86
        $region85: #{_lambda_.19} parent=81 // pred_region
          %s379 = smul.u32 2, %s16
          %p380 = scmp.lt.s32.totalorder %s379, 3
          %s381 = scalar_select %p380, %s379, 3
          %s382 = smul.addr %s381, 2
          %s383 = scalar_lea.vmem %s4, %s382
        $region86: #{_lambda_.19} parent=81 // pred_fallthru
          _
      $region82: #{_lambda_.19} parent=5 // pred_fallthru
        _
    $region6: #{_lambda_.19} parent=1 // loop_footer
      %s14 = sadd.s32 1, %s10
    $region7: #{_lambda_.19} parent=1 // loop_footer_branch
      %9 = sbr.rel target = $region3
    $region8: #{_lambda_.19} parent=1 // loop_exit
      _

// kernel: _lambda_.20
$region0: #{_lambda_.20}
  #allocation0 [shape = 'u32[]', space=smem, size = 0x4, offset = 0x4, fixed_abs, tag = 'smem constant byte address 0x4 - core index']
  #allocation1 [shape = 'u32[72,128]{1,0:T(1,128)}', space=vmem, size = 0x9000, scoped, tag = 'internal scratch']
  %s0 = inlined_call_operand.vmem [shape: bf16[2,36,256], index: 0, kind: input, shape index: {}]
  %s1 = inlined_call_operand.vmem [shape: bf16[8,36], index: 1, kind: input, shape index: {}]
  %s2 = inlined_call_operand.vmem [shape: f32[8,4], index: 2, kind: input, shape index: {}]
  %s3 = inlined_call_operand.vmem [shape: bf16[2,8,256], index: 3, kind: output, shape index: {}]
  %s4 = sld [smem:[#allocation0]]
  $region45: #{_lambda_.20} parent=0
    _
  %s6 = ssub.s32 1, %s4
  %s7 = scalar_select 0, %s6, %s4
  loop: start=0, step=1, limit=4
  $region2: #{_lambda_.20} parent=0 // loop_pre_header
    _
  $region3: #{_lambda_.20} parent=0 // loop_header
    %s9 = sphi 0, %s13
    %p10 = scmp.ge.s32.totalorder %s9, 4
    %s19 = sphi 0, %s21
    %s22 = sphi 0, %s19
    %s23 = sphi 0, %s22
    %s39 = sphi 0, %s23
    %s43 = sphi 0, %s43
    %s45 = sphi 0, %s43
    %s46 = sphi 0, %s45
    %s60 = sphi 0, %s46
    %s64 = sphi 0, %s64
    %s66 = sphi 0, %s64
    %s67 = sphi 0, %s66
    %s81 = sphi 0, %s67
    %s87 = sphi 0, %s89
    %s90 = sphi 0, %s87
    %s91 = sphi 0, %s90
    %s107 = sphi 0, %s91
  $region4: #{_lambda_.20} parent=0 // loop_header_branch
    %12 = sbr.rel (%p10) target = $region8
  $region5: #{_lambda_.20} parent=0 // loop_body
    %s14 = ssub.s32 %s9, 1
    %s15 = ssub.s32 %s9, 2
    %s16 = sadd.s32 %s9, 1
    %s17 = ssub.s32 %s9, %s16
    %p18 = scmp.eq.s32.totalorder %s17, 0
    %s20 = sadd.s32 %s19, 1
    %s21 = scalar_select %p18, %s19, %s20
    %p24 = pneg %p18
    %p25 = scmp.eq.s32.totalorder %s9, 1
    %p26 = por %p24, %p25
    %p27 = scmp.ne.s32.totalorder %s19, %s22
    %p28 = scmp.eq.s32.totalorder %s9, 0
    %p29 = por %p27, %p28
    %p30 = scmp.ne.s32.totalorder %s19, %s22
    %p31 = scmp.eq.s32.totalorder %s14, 1
    %p32 = por %p30, %p31
    %p33 = scmp.ne.s32.totalorder %s22, %s23
    %p34 = scmp.eq.s32.totalorder %s14, 0
    %p35 = por %p33, %p34
    %p36 = scmp.ne.s32.totalorder %s22, %s23
    %p37 = scmp.eq.s32.totalorder %s15, 1
    %p38 = por %p36, %p37
    %p40 = scmp.ne.s32.totalorder %s23, %s39
    %p41 = scmp.eq.s32.totalorder %s15, 0
    %p42 = por %p40, %p41
    %s44 = sadd.s32 %s43, 1
    %p47 = scmp.eq.s32.totalorder %s9, 1
    %p48 = scmp.ne.s32.totalorder %s43, %s45
    %p49 = scmp.eq.s32.totalorder %s9, 0
    %p50 = por %p48, %p49
    %p51 = scmp.ne.s32.totalorder %s43, %s45
    %p52 = scmp.eq.s32.totalorder %s14, 1
    %p53 = por %p51, %p52
    %p54 = scmp.ne.s32.totalorder %s45, %s46
    %p55 = scmp.eq.s32.totalorder %s14, 0
    %p56 = por %p54, %p55
    %p57 = scmp.ne.s32.totalorder %s45, %s46
    %p58 = scmp.eq.s32.totalorder %s15, 1
    %p59 = por %p57, %p58
    %p61 = scmp.ne.s32.totalorder %s46, %s60
    %p62 = scmp.eq.s32.totalorder %s15, 0
    %p63 = por %p61, %p62
    %s65 = sadd.s32 %s64, 1
    %p68 = scmp.eq.s32.totalorder %s9, 1
    %p69 = scmp.ne.s32.totalorder %s64, %s66
    %p70 = scmp.eq.s32.totalorder %s9, 0
    %p71 = por %p69, %p70
    %p72 = scmp.ne.s32.totalorder %s64, %s66
    %p73 = scmp.eq.s32.totalorder %s14, 1
    %p74 = por %p72, %p73
    %p75 = scmp.ne.s32.totalorder %s66, %s67
    %p76 = scmp.eq.s32.totalorder %s14, 0
    %p77 = por %p75, %p76
    %p78 = scmp.ne.s32.totalorder %s66, %s67
    %p79 = scmp.eq.s32.totalorder %s15, 1
    %p80 = por %p78, %p79
    %p82 = scmp.ne.s32.totalorder %s67, %s81
    %p83 = scmp.eq.s32.totalorder %s15, 0
    %p84 = por %p82, %p83
    %s85 = ssub.s32 %s9, %s16
    %p86 = scmp.eq.s32.totalorder %s85, 0
    %s88 = sadd.s32 %s87, 1
    %s89 = scalar_select %p86, %s87, %s88
    %p92 = pneg %p86
    %p93 = scmp.eq.s32.totalorder %s9, 1
    %p94 = por %p92, %p93
    %p95 = scmp.ne.s32.totalorder %s87, %s90
    %p96 = scmp.eq.s32.totalorder %s9, 0
    %p97 = por %p95, %p96
    %p98 = scmp.ne.s32.totalorder %s87, %s90
    %p99 = scmp.eq.s32.totalorder %s14, 1
    %p100 = por %p98, %p99
    %p101 = scmp.ne.s32.totalorder %s90, %s91
    %p102 = scmp.eq.s32.totalorder %s14, 0
    %p103 = por %p101, %p102
    %p104 = scmp.ne.s32.totalorder %s90, %s91
    %p105 = scmp.eq.s32.totalorder %s15, 1
    %p106 = por %p104, %p105
    %p108 = scmp.ne.s32.totalorder %s91, %s107
    %p109 = scmp.eq.s32.totalorder %s15, 0
    %p110 = por %p108, %p109
    %p111 = scmp.le.s32.totalorder 1, %s9
    %p112 = scmp.lt.s32.totalorder %s9, 3
    %p113 = pnand %p111, %p112
    %p114 = pneg %p113
    // Predicated region
    $region9: #{_lambda_.20} parent=5 // pred_check
      _
    $region10: #{_lambda_.20} parent=5 // pred_check_branch
      %116 = sbr.rel (%p113) target = $region12
    $region11: #{_lambda_.20} parent=5 // pred_region
      %s117 = ssub.s32 %s9, 1
      // Predicated region
      $region13: #{_lambda_.20} parent=11 // pred_check
        %p118 = pneg %p56
      $region14: #{_lambda_.20} parent=11 // pred_check_branch
        %120 = sbr.rel (%p118) target = $region16
      $region15: #{_lambda_.20} parent=11 // pred_region
        _
      $region16: #{_lambda_.20} parent=11 // pred_fallthru
        _
      // Predicated region
      $region17: #{_lambda_.20} parent=11 // pred_check
        %p121 = pneg %p77
      $region18: #{_lambda_.20} parent=11 // pred_check_branch
        %123 = sbr.rel (%p121) target = $region20
      $region19: #{_lambda_.20} parent=11 // pred_region
        _
      $region20: #{_lambda_.20} parent=11 // pred_fallthru
        _
    $region12: #{_lambda_.20} parent=5 // pred_fallthru
      _
    %p124 = scmp.lt.s32.totalorder %s9, 2
    // Predicated region
    $region21: #{_lambda_.20} parent=5 // pred_check
      %p125 = pneg %p124
    $region22: #{_lambda_.20} parent=5 // pred_check_branch
      %127 = sbr.rel (%p125) target = $region24
    $region23: #{_lambda_.20} parent=5 // pred_region
      // Predicated region
      $region25: #{_lambda_.20} parent=23 // pred_check
        %p128 = pneg %p29
      $region26: #{_lambda_.20} parent=23 // pred_check_branch
        %130 = sbr.rel (%p128) target = $region28
      $region27: #{_lambda_.20} parent=23 // pred_region
        %p131 = scmp.lt.s32.totalorder %s9, 1
        %s132 = scalar_select %p131, %s9, 1
        %s133 = smul.addr %s132, 10
        %s134 = smul.addr %s133, 4
        %s135 = scalar_lea.vmem %s0, %s134
      $region28: #{_lambda_.20} parent=23 // pred_fallthru
        _
    $region24: #{_lambda_.20} parent=5 // pred_fallthru
      _
    %p136 = scmp.le.s32.totalorder 1, %s9
    %p137 = scmp.lt.s32.totalorder %s9, 3
    %p138 = pnand %p136, %p137
    %p139 = pneg %p138
    // Predicated region
    $region29: #{_lambda_.20} parent=5 // pred_check
      _
    $region30: #{_lambda_.20} parent=5 // pred_check_branch
      %141 = sbr.rel (%p138) target = $region32
    $region31: #{_lambda_.20} parent=5 // pred_region
      %s142 = ssub.s32 %s9, 1
      %p143 = scmp.lt.s32.totalorder %s14, 1
      %s144 = scalar_select %p143, %s14, 1
      %s145 = smul.addr %s144, 10
      %s146 = smul.addr %s145, 4
      %s147 = scalar_lea.vmem %s0, %s146
      %p148 = pneg %p35
      %p149 = pneg %p32
      %p150 = pneg %p56
      %p151 = pneg %p53
      %p152 = pneg %p77
      %p153 = pneg %p74
      %p154 = pneg %p103
      %p155 = pneg %p100
      %p156 = scmp.lt.s32.totalorder %s14, 1
      %s157 = scalar_select %p156, %s14, 1
      %s158 = smul.addr %s157, 2
      %s159 = smul.addr %s158, 4
      %s160 = scalar_lea.vmem %s3, %s159
      %p161 = scmp.lt.s32.totalorder %s14, 1
      %s162 = scalar_select %p161, %s14, 1
      %s163 = smul.addr %s162, 10
      %s164 = smul.addr %s163, 4
      %s165 = scalar_lea.vmem %s0, %s164
      %p166 = scmp.lt.s32.totalorder %s14, 1
      %s167 = scalar_select %p166, %s14, 1
      %s168 = smul.addr %s167, 2
      %s169 = smul.addr %s168, 4
      %s170 = scalar_lea.vmem %s3, %s169
      %v172 = vld [vmem:[%s1] sm:$0xf]
      %v173 = vld [vmem:[%s165] sm:$0xff]
      %v174 = vld [vmem:[%s165 + $0x8] sm:$0xff]
      %v175 = vld [vmem:[%s165 + $0x10] sm:$0xff]
      %v176 = vld [vmem:[%s165 + $0x18] sm:$0xff]
      %v177 = vld [vmem:[%s165 + $0x20] sm:$0x33]
      %v178 = vld [vmem:[%s2] sm:$0xff]
      %180 = vset.pattern.permute.xlu0 0
      %181 = vperm.xlu0 %180, %v178
      %v182 = vpop.permute.xlu0 %181
      %v189 = vunpack.c.l.b16 %v173
      %v190 = vunpack.c.h.b16 %v173
      %v191 = vunpack.c.l.b16 %v174
      %v192 = vunpack.c.h.b16 %v174
      %v193 = vunpack.c.l.b16 %v175
      %v194 = vunpack.c.h.b16 %v175
      %v195 = vunpack.c.l.b16 %v176
      %v196 = vunpack.c.h.b16 %v176
      %v197 = vunpack.c.l.b16 %v177
      %v198 = vunpack.c.h.b16 %v177
      %v199 = vpack.c.b16 %v191, %v189
      %v200 = vpack.c.b16 %v192, %v190
      %v201 = vpack.c.b16 %v195, %v193
      %v202 = vpack.c.b16 %v196, %v194
      %v203 = vpack.c.b16 %v197, %v197
      %v204 = vpack.c.b16 %v198, %v198
      %vm209 = vcmask 293888
      %v211 = vsel %vm209, %v172, 0
      %vm213 = vcmask 1041408
      %v215 = vsel %vm213, %v203, 0
      %v218 = vsel %vm213, %v204, 0
      %220 = vmatpush.bf16.msra.mxu0 0
      %221 = vmatpush.bf16.msra.mxu0 0
      %222 = vmatpush.bf16.msra.mxu0 0
      %223 = vmatpush.bf16.msra.mxu0 0
      %224 = vmatpush.bf16.msra.mxu0 0
      %225 = vmatpush.bf16.msra.mxu0 %v215
      %226 = vmatpush.bf16.msra.mxu0 %v201
      %227 = vmatpush.bf16.msra.mxu0 %v199
      %228 = vmatmul.bf16.gmra.mxu0 %v211
      %v229 = vpop.f32.mrf.mxu0
      %v230 = vadd.f32 %v182, %v229
      %v231 = vpop.f32.mrf.mxu0
      %232 = vdwg.mxu0
      %233 = vmatpush.bf16.msra.mxu0 0
      %234 = vmatpush.bf16.msra.mxu0 0
      %235 = vmatpush.bf16.msra.mxu0 0
      %236 = vmatpush.bf16.msra.mxu0 0
      %237 = vmatpush.bf16.msra.mxu0 0
      %238 = vmatpush.bf16.msra.mxu0 %v218
      %239 = vmatpush.bf16.msra.mxu0 %v202
      %240 = vmatpush.bf16.msra.mxu0 %v200
      %241 = vmatmul.bf16.gmra.mxu0 %v211
      %v242 = vpop.f32.mrf.mxu0
      %v243 = vadd.f32 %v182, %v242
      %v244 = vpop.f32.mrf.mxu0
      %245 = vdwg.mxu0
      %v246 = vadd.f32 %v230, %v243
      %247 = vadd.xlane.f32.xlu0 %v246
      %v248 = vpop.xlane.xlu0 %247
      %v249 = vrot.slane %v248, 4
      %v250 = vadd.f32 %v248, %v249
      %v251 = vrot.slane %v250, 2
      %v252 = vadd.f32 %v250, %v251
      %v253 = vrot.slane %v252, 1
      %v254 = vadd.f32 %v252, %v253
      %s255 = vtos %v254
      %v256 = vstv %s255
      %v257 = vrcp.pop 2048.0
      %v258 = vmul.f32 2048.0, %v257
      %v259 = vsub.f32 1.0, %v258
      %v260 = vmul.f32 %v257, %v259
      %v261 = vadd.f32 %v257, %v260
      %vm262 = vweird.f32 %v257
      %v263 = vsel %vm262, %v257, %v261
      %v264 = vmul.f32 %v256, %v263
      %v265 = vmul.f32 %v230, %v230
      %v266 = vmul.f32 %v243, %v243
      %v267 = vadd.f32 %v265, %v266
      %268 = vadd.xlane.f32.xlu0 %v267
      %v269 = vpop.xlane.xlu0 %268
      %v270 = vrot.slane %v269, 4
      %v271 = vadd.f32 %v269, %v270
      %v272 = vrot.slane %v271, 2
      %v273 = vadd.f32 %v271, %v272
      %v274 = vrot.slane %v273, 1
      %v275 = vadd.f32 %v273, %v274
      %s276 = vtos %v275
      %v277 = vstv %s276
      %v278 = vmul.f32 %v277, %v263
      %v279 = vmul.f32 %v264, %v264
      %v280 = vsub.f32 %v278, %v279
      %v281 = vmax.f32 %v280, 0.0
      %v282 = vadd.f32 %v281, 1e-05
      %v283 = vrsqrt.pop %v282
      %v284 = vmul.f32 %v283, %v282
      %v285 = vmul.f32 %v284, %v283
      %v286 = vmul.f32 0.5, %v285
      %v287 = vsub.f32 1.5, %v286
      %v288 = vmul.f32 %v283, %v287
      %vm289 = vweird.f32 %v282
      %vm290 = vweird.f32 %v283
      %vm291 = vmor %vm289, %vm290
      %v292 = vsel %vm291, %v283, %v288
      %v293 = vmul.f32 %v178, %v292
      %v294 = vmul.f32 %v264, %v293
      %296 = vrot.lane.b32.xlu0 %v294, 1
      %v297 = vpop.permute.xlu0 %296
      %v299 = vsub.f32 %v178, %v297
      %301 = vset.pattern.permute.xlu0 1
      %302 = vperm.xlu0 %301, %v293
      %v303 = vpop.permute.xlu0 %302
      %v305 = vmul.f32 %v230, %v303
      %v306 = vmul.f32 %v243, %v303
      %308 = vset.pattern.permute.xlu0 2
      %309 = vperm.xlu0 %308, %v299
      %v310 = vpop.permute.xlu0 %309
      %v312 = vadd.f32 %v305, %v310
      %v313 = vadd.f32 %v306, %v310
      %v314 = vmax.f32 %v312, 0.0
      %v315 = vmax.f32 %v313, 0.0
      %v316 = vpack.c.bf16 %v315, %v314
      %317 = vst [vmem:[%s170] sm:$0xff] %v316
      %p318 = scmp.lt.s32.totalorder %s14, 1
      %s319 = scalar_select %p318, %s14, 1
      %s320 = smul.addr %s319, 2
      %s321 = smul.addr %s320, 4
      %s322 = scalar_lea.vmem %s3, %s321
      // Predicated region
      $region33: #{_lambda_.20} parent=31 // pred_check
        %p323 = pneg %p100
      $region34: #{_lambda_.20} parent=31 // pred_check_branch
        %325 = sbr.rel (%p323) target = $region36
      $region35: #{_lambda_.20} parent=31 // pred_region
        _
      $region36: #{_lambda_.20} parent=31 // pred_fallthru
        _
    $region32: #{_lambda_.20} parent=5 // pred_fallthru
      _
    %p326 = scmp.le.s32.totalorder 2, %s9
    // Predicated region
    $region37: #{_lambda_.20} parent=5 // pred_check
      %p327 = pneg %p326
    $region38: #{_lambda_.20} parent=5 // pred_check_branch
      %329 = sbr.rel (%p327) target = $region40
    $region39: #{_lambda_.20} parent=5 // pred_region
      %s330 = ssub.s32 %s9, 2
      // Predicated region
      $region41: #{_lambda_.20} parent=39 // pred_check
        %p331 = pneg %p106
      $region42: #{_lambda_.20} parent=39 // pred_check_branch
        %333 = sbr.rel (%p331) target = $region44
      $region43: #{_lambda_.20} parent=39 // pred_region
        %p334 = scmp.lt.s32.totalorder %s15, 1
        %s335 = scalar_select %p334, %s15, 1
        %s336 = smul.addr %s335, 2
        %s337 = smul.addr %s336, 4
        %s338 = scalar_lea.vmem %s3, %s337
      $region44: #{_lambda_.20} parent=39 // pred_fallthru
        _
    $region40: #{_lambda_.20} parent=5 // pred_fallthru
      _
  $region6: #{_lambda_.20} parent=0 // loop_footer
    %s13 = sadd.s32 1, %s9
  $region7: #{_lambda_.20} parent=0 // loop_footer_branch
    %8 = sbr.rel target = $region3
  $region8: #{_lambda_.20} parent=0 // loop_exit
    _

// kernel: _lambda_.21
$region0: #{_lambda_.21}
  #allocation0 [shape = 'u32[]', space=smem, size = 0x4, offset = 0x4, fixed_abs, tag = 'smem constant byte address 0x4 - core index']
  #allocation1 [shape = 'u32[72,128]{1,0:T(1,128)}', space=vmem, size = 0x9000, scoped, tag = 'internal scratch']
  %s0 = inlined_call_operand.vmem [shape: bf16[2,72,256], index: 0, kind: input, shape index: {}]
  %s1 = inlined_call_operand.vmem [shape: bf16[8,72], index: 1, kind: input, shape index: {}]
  %s2 = inlined_call_operand.vmem [shape: f32[8,4], index: 2, kind: input, shape index: {}]
  %s3 = inlined_call_operand.vmem [shape: bf16[2,4,256], index: 3, kind: input, shape index: {}]
  %s4 = inlined_call_operand.vmem [shape: bf16[8,4], index: 4, kind: input, shape index: {}]
  %s5 = inlined_call_operand.vmem [shape: bf16[2,8,256], index: 5, kind: output, shape index: {}]
  %s6 = sld [smem:[#allocation0]]
  $region53: #{_lambda_.21} parent=0
    _
  %s8 = ssub.s32 1, %s6
  %s9 = scalar_select 0, %s8, %s6
  loop: start=0, step=1, limit=4
  $region2: #{_lambda_.21} parent=0 // loop_pre_header
    _
  $region3: #{_lambda_.21} parent=0 // loop_header
    %s11 = sphi 0, %s15
    %p12 = scmp.ge.s32.totalorder %s11, 4
    %s21 = sphi 0, %s23
    %s24 = sphi 0, %s21
    %s25 = sphi 0, %s24
    %s41 = sphi 0, %s25
    %s45 = sphi 0, %s45
    %s47 = sphi 0, %s45
    %s48 = sphi 0, %s47
    %s62 = sphi 0, %s48
    %s66 = sphi 0, %s66
    %s68 = sphi 0, %s66
    %s69 = sphi 0, %s68
    %s83 = sphi 0, %s69
    %s89 = sphi 0, %s91
    %s92 = sphi 0, %s89
    %s93 = sphi 0, %s92
    %s109 = sphi 0, %s93
    %s113 = sphi 0, %s113
    %s115 = sphi 0, %s113
    %s116 = sphi 0, %s115
    %s130 = sphi 0, %s116
    %s136 = sphi 0, %s138
    %s139 = sphi 0, %s136
    %s140 = sphi 0, %s139
    %s156 = sphi 0, %s140
  $region4: #{_lambda_.21} parent=0 // loop_header_branch
    %14 = sbr.rel (%p12) target = $region8
  $region5: #{_lambda_.21} parent=0 // loop_body
    %s16 = ssub.s32 %s11, 1
    %s17 = ssub.s32 %s11, 2
    %s18 = sadd.s32 %s11, 1
    %s19 = ssub.s32 %s11, %s18
    %p20 = scmp.eq.s32.totalorder %s19, 0
    %s22 = sadd.s32 %s21, 1
    %s23 = scalar_select %p20, %s21, %s22
    %p26 = pneg %p20
    %p27 = scmp.eq.s32.totalorder %s11, 1
    %p28 = por %p26, %p27
    %p29 = scmp.ne.s32.totalorder %s21, %s24
    %p30 = scmp.eq.s32.totalorder %s11, 0
    %p31 = por %p29, %p30
    %p32 = scmp.ne.s32.totalorder %s21, %s24
    %p33 = scmp.eq.s32.totalorder %s16, 1
    %p34 = por %p32, %p33
    %p35 = scmp.ne.s32.totalorder %s24, %s25
    %p36 = scmp.eq.s32.totalorder %s16, 0
    %p37 = por %p35, %p36
    %p38 = scmp.ne.s32.totalorder %s24, %s25
    %p39 = scmp.eq.s32.totalorder %s17, 1
    %p40 = por %p38, %p39
    %p42 = scmp.ne.s32.totalorder %s25, %s41
    %p43 = scmp.eq.s32.totalorder %s17, 0
    %p44 = por %p42, %p43
    %s46 = sadd.s32 %s45, 1
    %p49 = scmp.eq.s32.totalorder %s11, 1
    %p50 = scmp.ne.s32.totalorder %s45, %s47
    %p51 = scmp.eq.s32.totalorder %s11, 0
    %p52 = por %p50, %p51
    %p53 = scmp.ne.s32.totalorder %s45, %s47
    %p54 = scmp.eq.s32.totalorder %s16, 1
    %p55 = por %p53, %p54
    %p56 = scmp.ne.s32.totalorder %s47, %s48
    %p57 = scmp.eq.s32.totalorder %s16, 0
    %p58 = por %p56, %p57
    %p59 = scmp.ne.s32.totalorder %s47, %s48
    %p60 = scmp.eq.s32.totalorder %s17, 1
    %p61 = por %p59, %p60
    %p63 = scmp.ne.s32.totalorder %s48, %s62
    %p64 = scmp.eq.s32.totalorder %s17, 0
    %p65 = por %p63, %p64
    %s67 = sadd.s32 %s66, 1
    %p70 = scmp.eq.s32.totalorder %s11, 1
    %p71 = scmp.ne.s32.totalorder %s66, %s68
    %p72 = scmp.eq.s32.totalorder %s11, 0
    %p73 = por %p71, %p72
    %p74 = scmp.ne.s32.totalorder %s66, %s68
    %p75 = scmp.eq.s32.totalorder %s16, 1
    %p76 = por %p74, %p75
    %p77 = scmp.ne.s32.totalorder %s68, %s69
    %p78 = scmp.eq.s32.totalorder %s16, 0
    %p79 = por %p77, %p78
    %p80 = scmp.ne.s32.totalorder %s68, %s69
    %p81 = scmp.eq.s32.totalorder %s17, 1
    %p82 = por %p80, %p81
    %p84 = scmp.ne.s32.totalorder %s69, %s83
    %p85 = scmp.eq.s32.totalorder %s17, 0
    %p86 = por %p84, %p85
    %s87 = ssub.s32 %s11, %s18
    %p88 = scmp.eq.s32.totalorder %s87, 0
    %s90 = sadd.s32 %s89, 1
    %s91 = scalar_select %p88, %s89, %s90
    %p94 = pneg %p88
    %p95 = scmp.eq.s32.totalorder %s11, 1
    %p96 = por %p94, %p95
    %p97 = scmp.ne.s32.totalorder %s89, %s92
    %p98 = scmp.eq.s32.totalorder %s11, 0
    %p99 = por %p97, %p98
    %p100 = scmp.ne.s32.totalorder %s89, %s92
    %p101 = scmp.eq.s32.totalorder %s16, 1
    %p102 = por %p100, %p101
    %p103 = scmp.ne.s32.totalorder %s92, %s93
    %p104 = scmp.eq.s32.totalorder %s16, 0
    %p105 = por %p103, %p104
    %p106 = scmp.ne.s32.totalorder %s92, %s93
    %p107 = scmp.eq.s32.totalorder %s17, 1
    %p108 = por %p106, %p107
    %p110 = scmp.ne.s32.totalorder %s93, %s109
    %p111 = scmp.eq.s32.totalorder %s17, 0
    %p112 = por %p110, %p111
    %s114 = sadd.s32 %s113, 1
    %p117 = scmp.eq.s32.totalorder %s11, 1
    %p118 = scmp.ne.s32.totalorder %s113, %s115
    %p119 = scmp.eq.s32.totalorder %s11, 0
    %p120 = por %p118, %p119
    %p121 = scmp.ne.s32.totalorder %s113, %s115
    %p122 = scmp.eq.s32.totalorder %s16, 1
    %p123 = por %p121, %p122
    %p124 = scmp.ne.s32.totalorder %s115, %s116
    %p125 = scmp.eq.s32.totalorder %s16, 0
    %p126 = por %p124, %p125
    %p127 = scmp.ne.s32.totalorder %s115, %s116
    %p128 = scmp.eq.s32.totalorder %s17, 1
    %p129 = por %p127, %p128
    %p131 = scmp.ne.s32.totalorder %s116, %s130
    %p132 = scmp.eq.s32.totalorder %s17, 0
    %p133 = por %p131, %p132
    %s134 = ssub.s32 %s11, %s18
    %p135 = scmp.eq.s32.totalorder %s134, 0
    %s137 = sadd.s32 %s136, 1
    %s138 = scalar_select %p135, %s136, %s137
    %p141 = pneg %p135
    %p142 = scmp.eq.s32.totalorder %s11, 1
    %p143 = por %p141, %p142
    %p144 = scmp.ne.s32.totalorder %s136, %s139
    %p145 = scmp.eq.s32.totalorder %s11, 0
    %p146 = por %p144, %p145
    %p147 = scmp.ne.s32.totalorder %s136, %s139
    %p148 = scmp.eq.s32.totalorder %s16, 1
    %p149 = por %p147, %p148
    %p150 = scmp.ne.s32.totalorder %s139, %s140
    %p151 = scmp.eq.s32.totalorder %s16, 0
    %p152 = por %p150, %p151
    %p153 = scmp.ne.s32.totalorder %s139, %s140
    %p154 = scmp.eq.s32.totalorder %s17, 1
    %p155 = por %p153, %p154
    %p157 = scmp.ne.s32.totalorder %s140, %s156
    %p158 = scmp.eq.s32.totalorder %s17, 0
    %p159 = por %p157, %p158
    %p160 = scmp.le.s32.totalorder 1, %s11
    %p161 = scmp.lt.s32.totalorder %s11, 3
    %p162 = pnand %p160, %p161
    %p163 = pneg %p162
    // Predicated region
    $region9: #{_lambda_.21} parent=5 // pred_check
      _
    $region10: #{_lambda_.21} parent=5 // pred_check_branch
      %165 = sbr.rel (%p162) target = $region12
    $region11: #{_lambda_.21} parent=5 // pred_region
      %s166 = ssub.s32 %s11, 1
      // Predicated region
      $region13: #{_lambda_.21} parent=11 // pred_check
        %p167 = pneg %p58
      $region14: #{_lambda_.21} parent=11 // pred_check_branch
        %169 = sbr.rel (%p167) target = $region16
      $region15: #{_lambda_.21} parent=11 // pred_region
        _
      $region16: #{_lambda_.21} parent=11 // pred_fallthru
        _
      // Predicated region
      $region17: #{_lambda_.21} parent=11 // pred_check
        %p170 = pneg %p79
      $region18: #{_lambda_.21} parent=11 // pred_check_branch
        %172 = sbr.rel (%p170) target = $region20
      $region19: #{_lambda_.21} parent=11 // pred_region
        _
      $region20: #{_lambda_.21} parent=11 // pred_fallthru
        _
      // Predicated region
      $region21: #{_lambda_.21} parent=11 // pred_check
        %p173 = pneg %p126
      $region22: #{_lambda_.21} parent=11 // pred_check_branch
        %175 = sbr.rel (%p173) target = $region24
      $region23: #{_lambda_.21} parent=11 // pred_region
        _
      $region24: #{_lambda_.21} parent=11 // pred_fallthru
        _
    $region12: #{_lambda_.21} parent=5 // pred_fallthru
      _
    %p176 = scmp.lt.s32.totalorder %s11, 2
    // Predicated region
    $region25: #{_lambda_.21} parent=5 // pred_check
      %p177 = pneg %p176
    $region26: #{_lambda_.21} parent=5 // pred_check_branch
      %179 = sbr.rel (%p177) target = $region28
    $region27: #{_lambda_.21} parent=5 // pred_region
      // Predicated region
      $region29: #{_lambda_.21} parent=27 // pred_check
        %p180 = pneg %p31
      $region30: #{_lambda_.21} parent=27 // pred_check_branch
        %182 = sbr.rel (%p180) target = $region32
      $region31: #{_lambda_.21} parent=27 // pred_region
        %p183 = scmp.lt.s32.totalorder %s11, 1
        %s184 = scalar_select %p183, %s11, 1
        %s185 = smul.addr %s184, 18
        %s186 = smul.addr %s185, 4
        %s187 = scalar_lea.vmem %s0, %s186
      $region32: #{_lambda_.21} parent=27 // pred_fallthru
        _
      // Predicated region
      $region33: #{_lambda_.21} parent=27 // pred_check
        %p188 = pneg %p99
      $region34: #{_lambda_.21} parent=27 // pred_check_branch
        %190 = sbr.rel (%p188) target = $region36
      $region35: #{_lambda_.21} parent=27 // pred_region
        %p191 = scmp.lt.s32.totalorder %s11, 1
        %s192 = scalar_select %p191, %s11, 1
        %s193 = smul.addr %s192, 2
        %s194 = smul.addr %s193, 2
        %s195 = scalar_lea.vmem %s3, %s194
      $region36: #{_lambda_.21} parent=27 // pred_fallthru
        _
    $region28: #{_lambda_.21} parent=5 // pred_fallthru
      _
    %p196 = scmp.le.s32.totalorder 1, %s11
    %p197 = scmp.lt.s32.totalorder %s11, 3
    %p198 = pnand %p196, %p197
    %p199 = pneg %p198
    // Predicated region
    $region37: #{_lambda_.21} parent=5 // pred_check
      _
    $region38: #{_lambda_.21} parent=5 // pred_check_branch
      %201 = sbr.rel (%p198) target = $region40
    $region39: #{_lambda_.21} parent=5 // pred_region
      %s202 = ssub.s32 %s11, 1
      %p203 = scmp.lt.s32.totalorder %s16, 1
      %s204 = scalar_select %p203, %s16, 1
      %s205 = smul.addr %s204, 18
      %s206 = smul.addr %s205, 4
      %s207 = scalar_lea.vmem %s0, %s206
      %p208 = pneg %p37
      %p209 = pneg %p34
      %p210 = pneg %p58
      %p211 = pneg %p55
      %p212 = pneg %p79
      %p213 = pneg %p76
      %p214 = scmp.lt.s32.totalorder %s16, 1
      %s215 = scalar_select %p214, %s16, 1
      %s216 = smul.addr %s215, 2
      %s217 = smul.addr %s216, 2
      %s218 = scalar_lea.vmem %s3, %s217
      %p219 = pneg %p105
      %p220 = pneg %p102
      %p221 = pneg %p126
      %p222 = pneg %p123
      %p223 = pneg %p152
      %p224 = pneg %p149
      %p225 = scmp.lt.s32.totalorder %s16, 1
      %s226 = scalar_select %p225, %s16, 1
      %s227 = smul.addr %s226, 2
      %s228 = smul.addr %s227, 4
      %s229 = scalar_lea.vmem %s5, %s228
      %p230 = scmp.lt.s32.totalorder %s16, 1
      %s231 = scalar_select %p230, %s16, 1
      %s232 = smul.addr %s231, 18
      %s233 = smul.addr %s232, 4
      %s234 = scalar_lea.vmem %s0, %s233
      %p235 = scmp.lt.s32.totalorder %s16, 1
      %s236 = scalar_select %p235, %s16, 1
      %s237 = smul.addr %s236, 2
      %s238 = smul.addr %s237, 2
      %s239 = scalar_lea.vmem %s3, %s238
      %p240 = scmp.lt.s32.totalorder %s16, 1
      %s241 = scalar_select %p240, %s16, 1
      %s242 = smul.addr %s241, 2
      %s243 = smul.addr %s242, 4
      %s244 = scalar_lea.vmem %s5, %s243
      %v246 = vld [vmem:[%s1] sm:$0xf]
      %v247 = vld [vmem:[%s234] sm:$0xff]
      %v248 = vld [vmem:[%s234 + $0x8] sm:$0xff]
      %v249 = vld [vmem:[%s234 + $0x10] sm:$0xff]
      %v250 = vld [vmem:[%s234 + $0x18] sm:$0xff]
      %v251 = vld [vmem:[%s234 + $0x20] sm:$0xff]
      %v252 = vld [vmem:[%s234 + $0x28] sm:$0xff]
      %v253 = vld [vmem:[%s234 + $0x30] sm:$0xff]
      %v254 = vld [vmem:[%s234 + $0x38] sm:$0xff]
      %v255 = vld [vmem:[%s234 + $0x40] sm:$0xff]
      %v256 = vld [vmem:[%s2] sm:$0xff]
      %258 = vset.pattern.permute.xlu0 0
      %259 = vperm.xlu0 %258, %v256
      %v260 = vpop.permute.xlu0 %259
      %v271 = vunpack.c.l.b16 %v247
      %v272 = vunpack.c.h.b16 %v247
      %v273 = vunpack.c.l.b16 %v248
      %v274 = vunpack.c.h.b16 %v248
      %v275 = vunpack.c.l.b16 %v249
      %v276 = vunpack.c.h.b16 %v249
      %v277 = vunpack.c.l.b16 %v250
      %v278 = vunpack.c.h.b16 %v250
      %v279 = vunpack.c.l.b16 %v251
      %v280 = vunpack.c.h.b16 %v251
      %v281 = vunpack.c.l.b16 %v252
      %v282 = vunpack.c.h.b16 %v252
      %v283 = vunpack.c.l.b16 %v253
      %v284 = vunpack.c.h.b16 %v253
      %v285 = vunpack.c.l.b16 %v254
      %v286 = vunpack.c.h.b16 %v254
      %v287 = vunpack.c.l.b16 %v255
      %v288 = vunpack.c.h.b16 %v255
      %v289 = vpack.c.b16 %v273, %v271
      %v290 = vpack.c.b16 %v274, %v272
      %v291 = vpack.c.b16 %v277, %v275
      %v292 = vpack.c.b16 %v278, %v276
      %v293 = vpack.c.b16 %v281, %v279
      %v294 = vpack.c.b16 %v282, %v280
      %v295 = vpack.c.b16 %v285, %v283
      %v296 = vpack.c.b16 %v286, %v284
      %v297 = vpack.c.b16 %v287, %v287
      %v298 = vpack.c.b16 %v288, %v288
      %vm307 = vcmask 588800
      %v309 = vsel %vm307, %v246, 0
      %vm311 = vcmask 1043456
      %v313 = vsel %vm311, %v297, 0
      %v316 = vsel %vm311, %v298, 0
      %318 = vmatpush.bf16.msra.mxu0 0
      %319 = vmatpush.bf16.msra.mxu0 0
      %320 = vmatpush.bf16.msra.mxu0 0
      %321 = vmatpush.bf16.msra.mxu0 %v313
      %322 = vmatpush.bf16.msra.mxu0 %v295
      %323 = vmatpush.bf16.msra.mxu0 %v293
      %324 = vmatpush.bf16.msra.mxu0 %v291
      %325 = vmatpush.bf16.msra.mxu0 %v289
      %326 = vmatmul.bf16.gmra.mxu0 %v309
      %v327 = vpop.f32.mrf.mxu0
      %v328 = vadd.f32 %v260, %v327
      %v329 = vpop.f32.mrf.mxu0
      %330 = vdwg.mxu0
      %331 = vmatpush.bf16.msra.mxu0 0
      %332 = vmatpush.bf16.msra.mxu0 0
      %333 = vmatpush.bf16.msra.mxu0 0
      %334 = vmatpush.bf16.msra.mxu0 %v316
      %335 = vmatpush.bf16.msra.mxu0 %v296
      %336 = vmatpush.bf16.msra.mxu0 %v294
      %337 = vmatpush.bf16.msra.mxu0 %v292
      %338 = vmatpush.bf16.msra.mxu0 %v290
      %339 = vmatmul.bf16.gmra.mxu0 %v309
      %v340 = vpop.f32.mrf.mxu0
      %v341 = vadd.f32 %v260, %v340
      %v342 = vpop.f32.mrf.mxu0
      %343 = vdwg.mxu0
      %v344 = vadd.f32 %v328, %v341
      %345 = vadd.xlane.f32.xlu0 %v344
      %v346 = vpop.xlane.xlu0 %345
      %v347 = vrot.slane %v346, 4
      %v348 = vadd.f32 %v346, %v347
      %v349 = vrot.slane %v348, 2
      %v350 = vadd.f32 %v348, %v349
      %v351 = vrot.slane %v350, 1
      %v352 = vadd.f32 %v350, %v351
      %s353 = vtos %v352
      %v354 = vstv %s353
      %v355 = vrcp.pop 2048.0
      %v356 = vmul.f32 2048.0, %v355
      %v357 = vsub.f32 1.0, %v356
      %v358 = vmul.f32 %v355, %v357
      %v359 = vadd.f32 %v355, %v358
      %vm360 = vweird.f32 %v355
      %v361 = vsel %vm360, %v355, %v359
      %v362 = vmul.f32 %v354, %v361
      %v363 = vmul.f32 %v328, %v328
      %v364 = vmul.f32 %v341, %v341
      %v365 = vadd.f32 %v363, %v364
      %366 = vadd.xlane.f32.xlu0 %v365
      %v367 = vpop.xlane.xlu0 %366
      %v368 = vrot.slane %v367, 4
      %v369 = vadd.f32 %v367, %v368
      %v370 = vrot.slane %v369, 2
      %v371 = vadd.f32 %v369, %v370
      %v372 = vrot.slane %v371, 1
      %v373 = vadd.f32 %v371, %v372
      %s374 = vtos %v373
      %v375 = vstv %s374
      %v376 = vmul.f32 %v375, %v361
      %v377 = vmul.f32 %v362, %v362
      %v378 = vsub.f32 %v376, %v377
      %v379 = vmax.f32 %v378, 0.0
      %v380 = vadd.f32 %v379, 1e-05
      %v381 = vrsqrt.pop %v380
      %v382 = vmul.f32 %v381, %v380
      %v383 = vmul.f32 %v382, %v381
      %v384 = vmul.f32 0.5, %v383
      %v385 = vsub.f32 1.5, %v384
      %v386 = vmul.f32 %v381, %v385
      %vm387 = vweird.f32 %v380
      %vm388 = vweird.f32 %v381
      %vm389 = vmor %vm387, %vm388
      %v390 = vsel %vm389, %v381, %v386
      %v391 = vmul.f32 %v256, %v390
      %v392 = vmul.f32 %v362, %v391
      %394 = vrot.lane.b32.xlu0 %v392, 1
      %v395 = vpop.permute.xlu0 %394
      %v397 = vsub.f32 %v256, %v395
      %399 = vset.pattern.permute.xlu0 1
      %400 = vperm.xlu0 %399, %v391
      %v401 = vpop.permute.xlu0 %400
      %v403 = vmul.f32 %v328, %v401
      %v404 = vmul.f32 %v341, %v401
      %406 = vset.pattern.permute.xlu0 2
      %407 = vperm.xlu0 %406, %v397
      %v408 = vpop.permute.xlu0 %407
      %v410 = vadd.f32 %v403, %v408
      %v411 = vadd.f32 %v404, %v408
      %v412 = vld [vmem:[%s4] sm:$0xf]
      %v413 = vld [vmem:[%s239] sm:$0xf]
      %415 = vst [vmem:[#allocation1] ss:$4 sm:$0xff] %v413
      %v416 = vld.sshfl [vmem:[#allocation1] sm:$0xff pattern:$0x73625140]
      %v417 = vld.sshfl [vmem:[#allocation1 + $0x8] sm:$0xff pattern:$0x73625140]
      %vm418 = vcmask 31744
      %v420 = vsel %vm418, %v412, 0
      %vm422 = vcmask 1041408
      %v423 = vsel %vm422, %v416, 0
      %v425 = vsel %vm422, %v417, 0
      %427 = vmatpush.bf16.msra.mxu0 0
      %428 = vmatpush.bf16.msra.mxu0 0
      %429 = vmatpush.bf16.msra.mxu0 0
      %430 = vmatpush.bf16.msra.mxu0 0
      %431 = vmatpush.bf16.msra.mxu0 0
      %432 = vmatpush.bf16.msra.mxu0 0
      %433 = vmatpush.bf16.msra.mxu0 0
      %434 = vmatpush.bf16.msra.mxu0 %v423
      %435 = vmatmul.bf16.gmra.mxu0 %v420
      %v436 = vpop.f32.mrf.mxu0
      %v437 = vadd.f32 0.0, %v436
      %v438 = vpop.f32.mrf.mxu0
      %439 = vdwg.mxu0
      %440 = vmatpush.bf16.msra.mxu0 0
      %441 = vmatpush.bf16.msra.mxu0 0
      %442 = vmatpush.bf16.msra.mxu0 0
      %443 = vmatpush.bf16.msra.mxu0 0
      %444 = vmatpush.bf16.msra.mxu0 0
      %445 = vmatpush.bf16.msra.mxu0 0
      %446 = vmatpush.bf16.msra.mxu0 0
      %447 = vmatpush.bf16.msra.mxu0 %v425
      %448 = vmatmul.bf16.gmra.mxu0 %v420
      %v449 = vpop.f32.mrf.mxu0
      %v450 = vadd.f32 0.0, %v449
      %v451 = vpop.f32.mrf.mxu0
      %452 = vdwg.mxu0
      %v453 = vadd.f32 %v410, %v437
      %v454 = vadd.f32 %v411, %v450
      %v455 = vld [vmem:[%s2] sm:$0xff]
      %457 = vset.pattern.permute.xlu0 3
      %458 = vperm.xlu0 %457, %v455
      %v459 = vpop.permute.xlu0 %458
      %v461 = vadd.f32 %v453, %v459
      %v462 = vadd.f32 %v454, %v459
      %v463 = vmax.f32 %v461, 0.0
      %v464 = vmax.f32 %v462, 0.0
      %v465 = vpack.c.bf16 %v464, %v463
      %466 = vst [vmem:[%s244] sm:$0xff] %v465
      %p467 = scmp.lt.s32.totalorder %s16, 1
      %s468 = scalar_select %p467, %s16, 1
      %s469 = smul.addr %s468, 2
      %s470 = smul.addr %s469, 4
      %s471 = scalar_lea.vmem %s5, %s470
      // Predicated region
      $region41: #{_lambda_.21} parent=39 // pred_check
        %p472 = pneg %p149
      $region42: #{_lambda_.21} parent=39 // pred_check_branch
        %474 = sbr.rel (%p472) target = $region44
      $region43: #{_lambda_.21} parent=39 // pred_region
        _
      $region44: #{_lambda_.21} parent=39 // pred_fallthru
        _
    $region40: #{_lambda_.21} parent=5 // pred_fallthru
      _
    %p475 = scmp.le.s32.totalorder 2, %s11
    // Predicated region
    $region45: #{_lambda_.21} parent=5 // pred_check
      %p476 = pneg %p475
    $region46: #{_lambda_.21} parent=5 // pred_check_branch
      %478 = sbr.rel (%p476) target = $region48
    $region47: #{_lambda_.21} parent=5 // pred_region
      %s479 = ssub.s32 %s11, 2
      // Predicated region
      $region49: #{_lambda_.21} parent=47 // pred_check
        %p480 = pneg %p155
      $region50: #{_lambda_.21} parent=47 // pred_check_branch
        %482 = sbr.rel (%p480) target = $region52
      $region51: #{_lambda_.21} parent=47 // pred_region
        %p483 = scmp.lt.s32.totalorder %s17, 1
        %s484 = scalar_select %p483, %s17, 1
        %s485 = smul.addr %s484, 2
        %s486 = smul.addr %s485, 4
        %s487 = scalar_lea.vmem %s5, %s486
      $region52: #{_lambda_.21} parent=47 // pred_fallthru
        _
    $region48: #{_lambda_.21} parent=5 // pred_fallthru
      _
  $region6: #{_lambda_.21} parent=0 // loop_footer
    %s15 = sadd.s32 1, %s11
  $region7: #{_lambda_.21} parent=0 // loop_footer_branch
    %10 = sbr.rel target = $region3
  $region8: #{_lambda_.21} parent=0 // loop_exit
    _

// kernel: _lambda_.22
$region0: #{_lambda_.22}
  #allocation0 [shape = 'u32[]', space=smem, size = 0x4, offset = 0x4, fixed_abs, tag = 'smem constant byte address 0x4 - core index']
  #allocation1 [shape = 'u32[72,128]{1,0:T(1,128)}', space=vmem, size = 0x9000, scoped, tag = 'internal scratch']
  %s0 = inlined_call_operand.vmem [shape: bf16[72,128], index: 0, kind: input, shape index: {}]
  %s1 = inlined_call_operand.vmem [shape: bf16[8,72], index: 1, kind: input, shape index: {}]
  %s2 = inlined_call_operand.vmem [shape: f32[8,1], index: 2, kind: input, shape index: {}]
  %s3 = inlined_call_operand.vmem [shape: bf16[8,128], index: 3, kind: output, shape index: {}]
  %s4 = sld [smem:[#allocation0]]
  $region22: #{_lambda_.22} parent=0
    _
  %s6 = ssub.s32 1, %s4
  %s7 = scalar_select 0, %s6, %s4
  // Predicated region
  $region2: #{_lambda_.22} parent=0 // pred_check
    _
  $region3: #{_lambda_.22} parent=0 // pred_check_branch
    %9 = sbr.rel (0) target = $region5
  $region4: #{_lambda_.22} parent=0 // pred_region
    _
  $region5: #{_lambda_.22} parent=0 // pred_fallthru
    _
  // Predicated region
  $region6: #{_lambda_.22} parent=0 // pred_check
    _
  $region7: #{_lambda_.22} parent=0 // pred_check_branch
    %11 = sbr.rel (0) target = $region9
  $region8: #{_lambda_.22} parent=0 // pred_region
    _
  $region9: #{_lambda_.22} parent=0 // pred_fallthru
    _
  // Predicated region
  $region10: #{_lambda_.22} parent=0 // pred_check
    _
  $region11: #{_lambda_.22} parent=0 // pred_check_branch
    %13 = sbr.rel (0) target = $region13
  $region12: #{_lambda_.22} parent=0 // pred_region
    _
  $region13: #{_lambda_.22} parent=0 // pred_fallthru
    _
  %v15 = vld [vmem:[%s1] sm:$0xf]
  %v16 = vld [vmem:[%s0] sm:$0xf]
  %v17 = vld [vmem:[%s0 + $0x4] sm:$0xf]
  %v18 = vld [vmem:[%s0 + $0x8] sm:$0xf]
  %v19 = vld [vmem:[%s0 + $0xc] sm:$0xf]
  %v20 = vld [vmem:[%s0 + $0x10] sm:$0xf]
  %v21 = vld [vmem:[%s0 + $0x14] sm:$0xf]
  %v22 = vld [vmem:[%s0 + $0x18] sm:$0xf]
  %v23 = vld [vmem:[%s0 + $0x1c] sm:$0xf]
  %v24 = vld [vmem:[%s0 + $0x20] sm:$0xf]
  %v25 = vld [vmem:[%s2] sm:$0xff]
  %27 = vset.pattern.permute.xlu0 0
  %28 = vperm.xlu0 %27, %v25
  %v29 = vpop.permute.xlu0 %28
  %v40 = vunpack.c.l.b16 %v16
  %v41 = vunpack.c.l.b16 %v17
  %v42 = vunpack.c.l.b16 %v18
  %v43 = vunpack.c.l.b16 %v19
  %v44 = vunpack.c.l.b16 %v20
  %v45 = vunpack.c.l.b16 %v21
  %v46 = vunpack.c.l.b16 %v22
  %v47 = vunpack.c.l.b16 %v23
  %v48 = vunpack.c.l.b16 %v24
  %v49 = vpack.c.b16 %v41, %v40
  %v50 = vpack.c.b16 %v43, %v42
  %v51 = vpack.c.b16 %v45, %v44
  %v52 = vpack.c.b16 %v47, %v46
  %v53 = vpack.c.b16 %v48, %v48
  %vm58 = vcmask 588800
  %v60 = vsel %vm58, %v15, 0
  %vm62 = vcmask 1043456
  %v64 = vsel %vm62, %v53, 0
  %66 = vmatpush.bf16.msra.mxu0 0
  %67 = vmatpush.bf16.msra.mxu0 0
  %68 = vmatpush.bf16.msra.mxu0 0
  %69 = vmatpush.bf16.msra.mxu0 %v64
  %70 = vmatpush.bf16.msra.mxu0 %v52
  %71 = vmatpush.bf16.msra.mxu0 %v51
  %72 = vmatpush.bf16.msra.mxu0 %v50
  %73 = vmatpush.bf16.msra.mxu0 %v49
  %74 = vmatmul.bf16.gmra.mxu0 %v60
  %v75 = vpop.f32.mrf.mxu0
  %v76 = vadd.f32 %v29, %v75
  %v77 = vpop.f32.mrf.mxu0
  %78 = vdwg.mxu0
  %v79 = vpack.c.bf16 %v76, %v76
  %80 = vst [vmem:[%s3] sm:$0xf] %v79
  // Predicated region
  $region14: #{_lambda_.22} parent=0 // pred_check
    _
  $region15: #{_lambda_.22} parent=0 // pred_check_branch
    %82 = sbr.rel (0) target = $region17
  $region16: #{_lambda_.22} parent=0 // pred_region
    _
  $region17: #{_lambda_.22} parent=0 // pred_fallthru
    _
  // Predicated region
  $region18: #{_lambda_.22} parent=0 // pred_check
    _
  $region19: #{_lambda_.22} parent=0 // pred_check_branch
    %84 = sbr.rel (0) target = $region21
  $region20: #{_lambda_.22} parent=0 // pred_region
    _
  $region21: #{_lambda_.22} parent=0 // pred_fallthru
    _

// kernel: _lambda_.23
$region0: #{_lambda_.23}
  #allocation0 [shape = 'u32[]', space=smem, size = 0x4, offset = 0x4, fixed_abs, tag = 'smem constant byte address 0x4 - core index']
  #allocation1 [shape = 'u32[72,128]{1,0:T(1,128)}', space=vmem, size = 0x9000, scoped, tag = 'internal scratch']
  %s0 = inlined_call_operand.vmem [shape: bf16[2,72,64], index: 0, kind: input, shape index: {}]
  %s1 = inlined_call_operand.vmem [shape: bf16[16,72], index: 1, kind: input, shape index: {}]
  %s2 = inlined_call_operand.vmem [shape: f32[16,4], index: 2, kind: input, shape index: {}]
  %s3 = inlined_call_operand.vmem [shape: bf16[2,16,64], index: 3, kind: output, shape index: {}]
  %s4 = sld [smem:[#allocation0]]
  $region45: #{_lambda_.23} parent=0
    _
  %s6 = ssub.s32 1, %s4
  %s7 = scalar_select 0, %s6, %s4
  loop: start=0, step=1, limit=4
  $region2: #{_lambda_.23} parent=0 // loop_pre_header
    _
  $region3: #{_lambda_.23} parent=0 // loop_header
    %s9 = sphi 0, %s13
    %p10 = scmp.ge.s32.totalorder %s9, 4
    %s19 = sphi 0, %s21
    %s22 = sphi 0, %s19
    %s23 = sphi 0, %s22
    %s39 = sphi 0, %s23
    %s43 = sphi 0, %s43
    %s45 = sphi 0, %s43
    %s46 = sphi 0, %s45
    %s60 = sphi 0, %s46
    %s64 = sphi 0, %s64
    %s66 = sphi 0, %s64
    %s67 = sphi 0, %s66
    %s81 = sphi 0, %s67
    %s87 = sphi 0, %s89
    %s90 = sphi 0, %s87
    %s91 = sphi 0, %s90
    %s107 = sphi 0, %s91
  $region4: #{_lambda_.23} parent=0 // loop_header_branch
    %12 = sbr.rel (%p10) target = $region8
  $region5: #{_lambda_.23} parent=0 // loop_body
    %s14 = ssub.s32 %s9, 1
    %s15 = ssub.s32 %s9, 2
    %s16 = sadd.s32 %s9, 1
    %s17 = ssub.s32 %s9, %s16
    %p18 = scmp.eq.s32.totalorder %s17, 0
    %s20 = sadd.s32 %s19, 1
    %s21 = scalar_select %p18, %s19, %s20
    %p24 = pneg %p18
    %p25 = scmp.eq.s32.totalorder %s9, 1
    %p26 = por %p24, %p25
    %p27 = scmp.ne.s32.totalorder %s19, %s22
    %p28 = scmp.eq.s32.totalorder %s9, 0
    %p29 = por %p27, %p28
    %p30 = scmp.ne.s32.totalorder %s19, %s22
    %p31 = scmp.eq.s32.totalorder %s14, 1
    %p32 = por %p30, %p31
    %p33 = scmp.ne.s32.totalorder %s22, %s23
    %p34 = scmp.eq.s32.totalorder %s14, 0
    %p35 = por %p33, %p34
    %p36 = scmp.ne.s32.totalorder %s22, %s23
    %p37 = scmp.eq.s32.totalorder %s15, 1
    %p38 = por %p36, %p37
    %p40 = scmp.ne.s32.totalorder %s23, %s39
    %p41 = scmp.eq.s32.totalorder %s15, 0
    %p42 = por %p40, %p41
    %s44 = sadd.s32 %s43, 1
    %p47 = scmp.eq.s32.totalorder %s9, 1
    %p48 = scmp.ne.s32.totalorder %s43, %s45
    %p49 = scmp.eq.s32.totalorder %s9, 0
    %p50 = por %p48, %p49
    %p51 = scmp.ne.s32.totalorder %s43, %s45
    %p52 = scmp.eq.s32.totalorder %s14, 1
    %p53 = por %p51, %p52
    %p54 = scmp.ne.s32.totalorder %s45, %s46
    %p55 = scmp.eq.s32.totalorder %s14, 0
    %p56 = por %p54, %p55
    %p57 = scmp.ne.s32.totalorder %s45, %s46
    %p58 = scmp.eq.s32.totalorder %s15, 1
    %p59 = por %p57, %p58
    %p61 = scmp.ne.s32.totalorder %s46, %s60
    %p62 = scmp.eq.s32.totalorder %s15, 0
    %p63 = por %p61, %p62
    %s65 = sadd.s32 %s64, 1
    %p68 = scmp.eq.s32.totalorder %s9, 1
    %p69 = scmp.ne.s32.totalorder %s64, %s66
    %p70 = scmp.eq.s32.totalorder %s9, 0
    %p71 = por %p69, %p70
    %p72 = scmp.ne.s32.totalorder %s64, %s66
    %p73 = scmp.eq.s32.totalorder %s14, 1
    %p74 = por %p72, %p73
    %p75 = scmp.ne.s32.totalorder %s66, %s67
    %p76 = scmp.eq.s32.totalorder %s14, 0
    %p77 = por %p75, %p76
    %p78 = scmp.ne.s32.totalorder %s66, %s67
    %p79 = scmp.eq.s32.totalorder %s15, 1
    %p80 = por %p78, %p79
    %p82 = scmp.ne.s32.totalorder %s67, %s81
    %p83 = scmp.eq.s32.totalorder %s15, 0
    %p84 = por %p82, %p83
    %s85 = ssub.s32 %s9, %s16
    %p86 = scmp.eq.s32.totalorder %s85, 0
    %s88 = sadd.s32 %s87, 1
    %s89 = scalar_select %p86, %s87, %s88
    %p92 = pneg %p86
    %p93 = scmp.eq.s32.totalorder %s9, 1
    %p94 = por %p92, %p93
    %p95 = scmp.ne.s32.totalorder %s87, %s90
    %p96 = scmp.eq.s32.totalorder %s9, 0
    %p97 = por %p95, %p96
    %p98 = scmp.ne.s32.totalorder %s87, %s90
    %p99 = scmp.eq.s32.totalorder %s14, 1
    %p100 = por %p98, %p99
    %p101 = scmp.ne.s32.totalorder %s90, %s91
    %p102 = scmp.eq.s32.totalorder %s14, 0
    %p103 = por %p101, %p102
    %p104 = scmp.ne.s32.totalorder %s90, %s91
    %p105 = scmp.eq.s32.totalorder %s15, 1
    %p106 = por %p104, %p105
    %p108 = scmp.ne.s32.totalorder %s91, %s107
    %p109 = scmp.eq.s32.totalorder %s15, 0
    %p110 = por %p108, %p109
    %p111 = scmp.le.s32.totalorder 1, %s9
    %p112 = scmp.lt.s32.totalorder %s9, 3
    %p113 = pnand %p111, %p112
    %p114 = pneg %p113
    // Predicated region
    $region9: #{_lambda_.23} parent=5 // pred_check
      _
    $region10: #{_lambda_.23} parent=5 // pred_check_branch
      %116 = sbr.rel (%p113) target = $region12
    $region11: #{_lambda_.23} parent=5 // pred_region
      %s117 = ssub.s32 %s9, 1
      // Predicated region
      $region13: #{_lambda_.23} parent=11 // pred_check
        %p118 = pneg %p56
      $region14: #{_lambda_.23} parent=11 // pred_check_branch
        %120 = sbr.rel (%p118) target = $region16
      $region15: #{_lambda_.23} parent=11 // pred_region
        _
      $region16: #{_lambda_.23} parent=11 // pred_fallthru
        _
      // Predicated region
      $region17: #{_lambda_.23} parent=11 // pred_check
        %p121 = pneg %p77
      $region18: #{_lambda_.23} parent=11 // pred_check_branch
        %123 = sbr.rel (%p121) target = $region20
      $region19: #{_lambda_.23} parent=11 // pred_region
        _
      $region20: #{_lambda_.23} parent=11 // pred_fallthru
        _
    $region12: #{_lambda_.23} parent=5 // pred_fallthru
      _
    %p124 = scmp.lt.s32.totalorder %s9, 2
    // Predicated region
    $region21: #{_lambda_.23} parent=5 // pred_check
      %p125 = pneg %p124
    $region22: #{_lambda_.23} parent=5 // pred_check_branch
      %127 = sbr.rel (%p125) target = $region24
    $region23: #{_lambda_.23} parent=5 // pred_region
      // Predicated region
      $region25: #{_lambda_.23} parent=23 // pred_check
        %p128 = pneg %p29
      $region26: #{_lambda_.23} parent=23 // pred_check_branch
        %130 = sbr.rel (%p128) target = $region28
      $region27: #{_lambda_.23} parent=23 // pred_region
        %p131 = scmp.lt.s32.totalorder %s9, 1
        %s132 = scalar_select %p131, %s9, 1
        %s133 = smul.addr %s132, 9
        %s134 = smul.addr %s133, 4
        %s135 = scalar_lea.vmem %s0, %s134
      $region28: #{_lambda_.23} parent=23 // pred_fallthru
        _
    $region24: #{_lambda_.23} parent=5 // pred_fallthru
      _
    %p136 = scmp.le.s32.totalorder 1, %s9
    %p137 = scmp.lt.s32.totalorder %s9, 3
    %p138 = pnand %p136, %p137
    %p139 = pneg %p138
    // Predicated region
    $region29: #{_lambda_.23} parent=5 // pred_check
      _
    $region30: #{_lambda_.23} parent=5 // pred_check_branch
      %141 = sbr.rel (%p138) target = $region32
    $region31: #{_lambda_.23} parent=5 // pred_region
      %s142 = ssub.s32 %s9, 1
      %p143 = scmp.lt.s32.totalorder %s14, 1
      %s144 = scalar_select %p143, %s14, 1
      %s145 = smul.addr %s144, 9
      %s146 = smul.addr %s145, 4
      %s147 = scalar_lea.vmem %s0, %s146
      %p148 = pneg %p35
      %p149 = pneg %p32
      %p150 = pneg %p56
      %p151 = pneg %p53
      %p152 = pneg %p77
      %p153 = pneg %p74
      %p154 = pneg %p103
      %p155 = pneg %p100
      %p156 = scmp.lt.s32.totalorder %s14, 1
      %s157 = scalar_select %p156, %s14, 1
      %s158 = smul.addr %s157, 2
      %s159 = smul.addr %s158, 4
      %s160 = scalar_lea.vmem %s3, %s159
      %p161 = scmp.lt.s32.totalorder %s14, 1
      %s162 = scalar_select %p161, %s14, 1
      %s163 = smul.addr %s162, 9
      %s164 = smul.addr %s163, 4
      %s165 = scalar_lea.vmem %s0, %s164
      %p166 = scmp.lt.s32.totalorder %s14, 1
      %s167 = scalar_select %p166, %s14, 1
      %s168 = smul.addr %s167, 2
      %s169 = smul.addr %s168, 4
      %s170 = scalar_lea.vmem %s3, %s169
      %v172 = vld [vmem:[%s1] sm:$0xf]
      %v173 = vld [vmem:[%s1 + $0x4] sm:$0xf]
      %v174 = vld [vmem:[%s165] sm:$0xf]
      %v175 = vld [vmem:[%s165 + $0x4] sm:$0xf]
      %v176 = vld [vmem:[%s165 + $0x8] sm:$0xf]
      %v177 = vld [vmem:[%s165 + $0xc] sm:$0xf]
      %v178 = vld [vmem:[%s165 + $0x10] sm:$0xf]
      %v179 = vld [vmem:[%s165 + $0x14] sm:$0xf]
      %v180 = vld [vmem:[%s165 + $0x18] sm:$0xf]
      %v181 = vld [vmem:[%s165 + $0x1c] sm:$0xf]
      %v182 = vld [vmem:[%s165 + $0x20] sm:$0xf]
      %v183 = vld [vmem:[%s2] sm:$0xff]
      %v184 = vld [vmem:[%s2 + $0x8] sm:$0xff]
      %186 = vset.pattern.permute.xlu0 0
      %187 = vperm.xlu0 %186, %v183
      %v188 = vpop.permute.xlu0 %187
      %191 = vset.pattern.permute.xlu0 0
      %192 = vperm.xlu0 %191, %v184
      %v193 = vpop.permute.xlu0 %192
      %v197 = vunpack.c.l.b16 %v172
      %v198 = vunpack.c.l.b16 %v173
      %v199 = vpack.c.b16 %v198, %v197
      %v209 = vunpack.c.l.b16 %v174
      %v210 = vunpack.c.l.b16 %v175
      %v211 = vunpack.c.l.b16 %v176
      %v212 = vunpack.c.l.b16 %v177
      %v213 = vunpack.c.l.b16 %v178
      %v214 = vunpack.c.l.b16 %v179
      %v215 = vunpack.c.l.b16 %v180
      %v216 = vunpack.c.l.b16 %v181
      %v217 = vunpack.c.l.b16 %v182
      %v218 = vpack.c.b16 %v210, %v209
      %v219 = vpack.c.b16 %v212, %v211
      %v220 = vpack.c.b16 %v214, %v213
      %v221 = vpack.c.b16 %v216, %v215
      %v222 = vpack.c.b16 %v217, %v217
      %vm227 = vcmask 588800
      %v229 = vsel %vm227, %v199, 0
      %vm231 = vcmask 1043456
      %v233 = vsel %vm231, %v222, 0
      %235 = vmatpush.bf16.msra.mxu0 0
      %236 = vmatpush.bf16.msra.mxu0 0
      %237 = vmatpush.bf16.msra.mxu0 0
      %238 = vmatpush.bf16.msra.mxu0 %v233
      %239 = vmatpush.bf16.msra.mxu0 %v221
      %240 = vmatpush.bf16.msra.mxu0 %v220
      %241 = vmatpush.bf16.msra.mxu0 %v219
      %242 = vmatpush.bf16.msra.mxu0 %v218
      %243 = vmatmul.bf16.gmra.mxu0 %v229
      %v244 = vpop.f32.mrf.mxu0
      %v245 = vadd.f32 %v188, %v244
      %v246 = vpop.f32.mrf.mxu0
      %v247 = vadd.f32 %v193, %v246
      %248 = vdwg.mxu0
      %vm249 = vcmask 523264
      %v250 = vsel %vm249, %v245, 0.0
      %v251 = vsel %vm249, %v247, 0.0
      %v252 = vadd.f32 %v250, %v251
      %253 = vadd.xlane.f32.xlu0 %v252
      %v254 = vpop.xlane.xlu0 %253
      %v255 = vrot.slane %v254, 4
      %v256 = vadd.f32 %v254, %v255
      %v257 = vrot.slane %v256, 2
      %v258 = vadd.f32 %v256, %v257
      %v259 = vrot.slane %v258, 1
      %v260 = vadd.f32 %v258, %v259
      %s261 = vtos %v260
      %v262 = vstv %s261
      %v263 = vrcp.pop 1024.0
      %v264 = vmul.f32 1024.0, %v263
      %v265 = vsub.f32 1.0, %v264
      %v266 = vmul.f32 %v263, %v265
      %v267 = vadd.f32 %v263, %v266
      %vm268 = vweird.f32 %v263
      %v269 = vsel %vm268, %v263, %v267
      %v270 = vmul.f32 %v262, %v269
      %v271 = vmul.f32 %v245, %v245
      %v272 = vmul.f32 %v247, %v247
      %v273 = vsel %vm249, %v271, 0.0
      %v274 = vsel %vm249, %v272, 0.0
      %v275 = vadd.f32 %v273, %v274
      %276 = vadd.xlane.f32.xlu0 %v275
      %v277 = vpop.xlane.xlu0 %276
      %v278 = vrot.slane %v277, 4
      %v279 = vadd.f32 %v277, %v278
      %v280 = vrot.slane %v279, 2
      %v281 = vadd.f32 %v279, %v280
      %v282 = vrot.slane %v281, 1
      %v283 = vadd.f32 %v281, %v282
      %s284 = vtos %v283
      %v285 = vstv %s284
      %v286 = vmul.f32 %v285, %v269
      %v287 = vmul.f32 %v270, %v270
      %v288 = vsub.f32 %v286, %v287
      %v289 = vmax.f32 %v288, 0.0
      %v290 = vadd.f32 %v289, 1e-05
      %v291 = vrsqrt.pop %v290
      %v292 = vmul.f32 %v291, %v290
      %v293 = vmul.f32 %v292, %v291
      %v294 = vmul.f32 0.5, %v293
      %v295 = vsub.f32 1.5, %v294
      %v296 = vmul.f32 %v291, %v295
      %vm297 = vweird.f32 %v290
      %vm298 = vweird.f32 %v291
      %vm299 = vmor %vm297, %vm298
      %v300 = vsel %vm299, %v291, %v296
      %v301 = vmul.f32 %v183, %v300
      %v302 = vmul.f32 %v184, %v300
      %v303 = vmul.f32 %v270, %v301
      %v304 = vmul.f32 %v270, %v302
      %307 = vrot.lane.b32.xlu0 %v303, 1
      %v308 = vpop.permute.xlu0 %307
      %309 = vrot.lane.b32.xlu0 %v304, 1
      %v310 = vpop.permute.xlu0 %309
      %v313 = vsub.f32 %v183, %v308
      %v314 = vsub.f32 %v184, %v310
      %316 = vset.pattern.permute.xlu0 1
      %317 = vperm.xlu0 %316, %v301
      %v318 = vpop.permute.xlu0 %317
      %321 = vset.pattern.permute.xlu0 1
      %322 = vperm.xlu0 %321, %v302
      %v323 = vpop.permute.xlu0 %322
      %v325 = vmul.f32 %v245, %v318
      %v326 = vmul.f32 %v247, %v323
      %328 = vset.pattern.permute.xlu0 2
      %329 = vperm.xlu0 %328, %v313
      %v330 = vpop.permute.xlu0 %329
      %333 = vset.pattern.permute.xlu0 2
      %334 = vperm.xlu0 %333, %v314
      %v335 = vpop.permute.xlu0 %334
      %v337 = vadd.f32 %v325, %v330
      %v338 = vadd.f32 %v326, %v335
      %v339 = vmax.f32 %v337, 0.0
      %v340 = vmax.f32 %v338, 0.0
      %v341 = vpack.c.bf16 %v339, %v339
      %v342 = vpack.c.bf16 %v340, %v340
      %vm343 = vcmask 519168
      %344 = vst.msk [vmem:[%s170] sm:$0xf] %vm343, %v341
      %345 = vst.msk [vmem:[%s170 + $0x4] sm:$0xf] %vm343, %v342
      %p346 = scmp.lt.s32.totalorder %s14, 1
      %s347 = scalar_select %p346, %s14, 1
      %s348 = smul.addr %s347, 2
      %s349 = smul.addr %s348, 4
      %s350 = scalar_lea.vmem %s3, %s349
      // Predicated region
      $region33: #{_lambda_.23} parent=31 // pred_check
        %p351 = pneg %p100
      $region34: #{_lambda_.23} parent=31 // pred_check_branch
        %353 = sbr.rel (%p351) target = $region36
      $region35: #{_lambda_.23} parent=31 // pred_region
        _
      $region36: #{_lambda_.23} parent=31 // pred_fallthru
        _
    $region32: #{_lambda_.23} parent=5 // pred_fallthru
      _
    %p354 = scmp.le.s32.totalorder 2, %s9
    // Predicated region
    $region37: #{_lambda_.23} parent=5 // pred_check
      %p355 = pneg %p354
    $region38: #{_lambda_.23} parent=5 // pred_check_branch
      %357 = sbr.rel (%p355) target = $region40
    $region39: #{_lambda_.23} parent=5 // pred_region
      %s358 = ssub.s32 %s9, 2
      // Predicated region
      $region41: #{_lambda_.23} parent=39 // pred_check
        %p359 = pneg %p106
      $region42: #{_lambda_.23} parent=39 // pred_check_branch
        %361 = sbr.rel (%p359) target = $region44
      $region43: #{_lambda_.23} parent=39 // pred_region
        %p362 = scmp.lt.s32.totalorder %s15, 1
        %s363 = scalar_select %p362, %s15, 1
        %s364 = smul.addr %s363, 2
        %s365 = smul.addr %s364, 4
        %s366 = scalar_lea.vmem %s3, %s365
      $region44: #{_lambda_.23} parent=39 // pred_fallthru
        _
    $region40: #{_lambda_.23} parent=5 // pred_fallthru
      _
  $region6: #{_lambda_.23} parent=0 // loop_footer
    %s13 = sadd.s32 1, %s9
  $region7: #{_lambda_.23} parent=0 // loop_footer_branch
    %8 = sbr.rel target = $region3
  $region8: #{_lambda_.23} parent=0 // loop_exit
    _

// kernel: _lambda_.24
$region0: #{_lambda_.24}
  #allocation0 [shape = 'u32[]', space=smem, size = 0x4, offset = 0x4, fixed_abs, tag = 'smem constant byte address 0x4 - core index']
  #allocation1 [shape = 'u32[72,128]{1,0:T(1,128)}', space=vmem, size = 0x9000, scoped, tag = 'internal scratch']
  %s0 = inlined_call_operand.vmem [shape: bf16[2,144,64], index: 0, kind: input, shape index: {}]
  %s1 = inlined_call_operand.vmem [shape: bf16[16,144], index: 1, kind: input, shape index: {}]
  %s2 = inlined_call_operand.vmem [shape: f32[16,4], index: 2, kind: input, shape index: {}]
  %s3 = inlined_call_operand.vmem [shape: bf16[2,8,64], index: 3, kind: input, shape index: {}]
  %s4 = inlined_call_operand.vmem [shape: bf16[16,8], index: 4, kind: input, shape index: {}]
  %s5 = inlined_call_operand.vmem [shape: bf16[2,16,64], index: 5, kind: output, shape index: {}]
  %s6 = sld [smem:[#allocation0]]
  $region53: #{_lambda_.24} parent=0
    _
  %s8 = ssub.s32 1, %s6
  %s9 = scalar_select 0, %s8, %s6
  loop: start=0, step=1, limit=4
  $region2: #{_lambda_.24} parent=0 // loop_pre_header
    _
  $region3: #{_lambda_.24} parent=0 // loop_header
    %s11 = sphi 0, %s15
    %p12 = scmp.ge.s32.totalorder %s11, 4
    %s21 = sphi 0, %s23
    %s24 = sphi 0, %s21
    %s25 = sphi 0, %s24
    %s41 = sphi 0, %s25
    %s45 = sphi 0, %s45
    %s47 = sphi 0, %s45
    %s48 = sphi 0, %s47
    %s62 = sphi 0, %s48
    %s66 = sphi 0, %s66
    %s68 = sphi 0, %s66
    %s69 = sphi 0, %s68
    %s83 = sphi 0, %s69
    %s89 = sphi 0, %s91
    %s92 = sphi 0, %s89
    %s93 = sphi 0, %s92
    %s109 = sphi 0, %s93
    %s113 = sphi 0, %s113
    %s115 = sphi 0, %s113
    %s116 = sphi 0, %s115
    %s130 = sphi 0, %s116
    %s136 = sphi 0, %s138
    %s139 = sphi 0, %s136
    %s140 = sphi 0, %s139
    %s156 = sphi 0, %s140
  $region4: #{_lambda_.24} parent=0 // loop_header_branch
    %14 = sbr.rel (%p12) target = $region8
  $region5: #{_lambda_.24} parent=0 // loop_body
    %s16 = ssub.s32 %s11, 1
    %s17 = ssub.s32 %s11, 2
    %s18 = sadd.s32 %s11, 1
    %s19 = ssub.s32 %s11, %s18
    %p20 = scmp.eq.s32.totalorder %s19, 0
    %s22 = sadd.s32 %s21, 1
    %s23 = scalar_select %p20, %s21, %s22
    %p26 = pneg %p20
    %p27 = scmp.eq.s32.totalorder %s11, 1
    %p28 = por %p26, %p27
    %p29 = scmp.ne.s32.totalorder %s21, %s24
    %p30 = scmp.eq.s32.totalorder %s11, 0
    %p31 = por %p29, %p30
    %p32 = scmp.ne.s32.totalorder %s21, %s24
    %p33 = scmp.eq.s32.totalorder %s16, 1
    %p34 = por %p32, %p33
    %p35 = scmp.ne.s32.totalorder %s24, %s25
    %p36 = scmp.eq.s32.totalorder %s16, 0
    %p37 = por %p35, %p36
    %p38 = scmp.ne.s32.totalorder %s24, %s25
    %p39 = scmp.eq.s32.totalorder %s17, 1
    %p40 = por %p38, %p39
    %p42 = scmp.ne.s32.totalorder %s25, %s41
    %p43 = scmp.eq.s32.totalorder %s17, 0
    %p44 = por %p42, %p43
    %s46 = sadd.s32 %s45, 1
    %p49 = scmp.eq.s32.totalorder %s11, 1
    %p50 = scmp.ne.s32.totalorder %s45, %s47
    %p51 = scmp.eq.s32.totalorder %s11, 0
    %p52 = por %p50, %p51
    %p53 = scmp.ne.s32.totalorder %s45, %s47
    %p54 = scmp.eq.s32.totalorder %s16, 1
    %p55 = por %p53, %p54
    %p56 = scmp.ne.s32.totalorder %s47, %s48
    %p57 = scmp.eq.s32.totalorder %s16, 0
    %p58 = por %p56, %p57
    %p59 = scmp.ne.s32.totalorder %s47, %s48
    %p60 = scmp.eq.s32.totalorder %s17, 1
    %p61 = por %p59, %p60
    %p63 = scmp.ne.s32.totalorder %s48, %s62
    %p64 = scmp.eq.s32.totalorder %s17, 0
    %p65 = por %p63, %p64
    %s67 = sadd.s32 %s66, 1
    %p70 = scmp.eq.s32.totalorder %s11, 1
    %p71 = scmp.ne.s32.totalorder %s66, %s68
    %p72 = scmp.eq.s32.totalorder %s11, 0
    %p73 = por %p71, %p72
    %p74 = scmp.ne.s32.totalorder %s66, %s68
    %p75 = scmp.eq.s32.totalorder %s16, 1
    %p76 = por %p74, %p75
    %p77 = scmp.ne.s32.totalorder %s68, %s69
    %p78 = scmp.eq.s32.totalorder %s16, 0
    %p79 = por %p77, %p78
    %p80 = scmp.ne.s32.totalorder %s68, %s69
    %p81 = scmp.eq.s32.totalorder %s17, 1
    %p82 = por %p80, %p81
    %p84 = scmp.ne.s32.totalorder %s69, %s83
    %p85 = scmp.eq.s32.totalorder %s17, 0
    %p86 = por %p84, %p85
    %s87 = ssub.s32 %s11, %s18
    %p88 = scmp.eq.s32.totalorder %s87, 0
    %s90 = sadd.s32 %s89, 1
    %s91 = scalar_select %p88, %s89, %s90
    %p94 = pneg %p88
    %p95 = scmp.eq.s32.totalorder %s11, 1
    %p96 = por %p94, %p95
    %p97 = scmp.ne.s32.totalorder %s89, %s92
    %p98 = scmp.eq.s32.totalorder %s11, 0
    %p99 = por %p97, %p98
    %p100 = scmp.ne.s32.totalorder %s89, %s92
    %p101 = scmp.eq.s32.totalorder %s16, 1
    %p102 = por %p100, %p101
    %p103 = scmp.ne.s32.totalorder %s92, %s93
    %p104 = scmp.eq.s32.totalorder %s16, 0
    %p105 = por %p103, %p104
    %p106 = scmp.ne.s32.totalorder %s92, %s93
    %p107 = scmp.eq.s32.totalorder %s17, 1
    %p108 = por %p106, %p107
    %p110 = scmp.ne.s32.totalorder %s93, %s109
    %p111 = scmp.eq.s32.totalorder %s17, 0
    %p112 = por %p110, %p111
    %s114 = sadd.s32 %s113, 1
    %p117 = scmp.eq.s32.totalorder %s11, 1
    %p118 = scmp.ne.s32.totalorder %s113, %s115
    %p119 = scmp.eq.s32.totalorder %s11, 0
    %p120 = por %p118, %p119
    %p121 = scmp.ne.s32.totalorder %s113, %s115
    %p122 = scmp.eq.s32.totalorder %s16, 1
    %p123 = por %p121, %p122
    %p124 = scmp.ne.s32.totalorder %s115, %s116
    %p125 = scmp.eq.s32.totalorder %s16, 0
    %p126 = por %p124, %p125
    %p127 = scmp.ne.s32.totalorder %s115, %s116
    %p128 = scmp.eq.s32.totalorder %s17, 1
    %p129 = por %p127, %p128
    %p131 = scmp.ne.s32.totalorder %s116, %s130
    %p132 = scmp.eq.s32.totalorder %s17, 0
    %p133 = por %p131, %p132
    %s134 = ssub.s32 %s11, %s18
    %p135 = scmp.eq.s32.totalorder %s134, 0
    %s137 = sadd.s32 %s136, 1
    %s138 = scalar_select %p135, %s136, %s137
    %p141 = pneg %p135
    %p142 = scmp.eq.s32.totalorder %s11, 1
    %p143 = por %p141, %p142
    %p144 = scmp.ne.s32.totalorder %s136, %s139
    %p145 = scmp.eq.s32.totalorder %s11, 0
    %p146 = por %p144, %p145
    %p147 = scmp.ne.s32.totalorder %s136, %s139
    %p148 = scmp.eq.s32.totalorder %s16, 1
    %p149 = por %p147, %p148
    %p150 = scmp.ne.s32.totalorder %s139, %s140
    %p151 = scmp.eq.s32.totalorder %s16, 0
    %p152 = por %p150, %p151
    %p153 = scmp.ne.s32.totalorder %s139, %s140
    %p154 = scmp.eq.s32.totalorder %s17, 1
    %p155 = por %p153, %p154
    %p157 = scmp.ne.s32.totalorder %s140, %s156
    %p158 = scmp.eq.s32.totalorder %s17, 0
    %p159 = por %p157, %p158
    %p160 = scmp.le.s32.totalorder 1, %s11
    %p161 = scmp.lt.s32.totalorder %s11, 3
    %p162 = pnand %p160, %p161
    %p163 = pneg %p162
    // Predicated region
    $region9: #{_lambda_.24} parent=5 // pred_check
      _
    $region10: #{_lambda_.24} parent=5 // pred_check_branch
      %165 = sbr.rel (%p162) target = $region12
    $region11: #{_lambda_.24} parent=5 // pred_region
      %s166 = ssub.s32 %s11, 1
      // Predicated region
      $region13: #{_lambda_.24} parent=11 // pred_check
        %p167 = pneg %p58
      $region14: #{_lambda_.24} parent=11 // pred_check_branch
        %169 = sbr.rel (%p167) target = $region16
      $region15: #{_lambda_.24} parent=11 // pred_region
        _
      $region16: #{_lambda_.24} parent=11 // pred_fallthru
        _
      // Predicated region
      $region17: #{_lambda_.24} parent=11 // pred_check
        %p170 = pneg %p79
      $region18: #{_lambda_.24} parent=11 // pred_check_branch
        %172 = sbr.rel (%p170) target = $region20
      $region19: #{_lambda_.24} parent=11 // pred_region
        _
      $region20: #{_lambda_.24} parent=11 // pred_fallthru
        _
      // Predicated region
      $region21: #{_lambda_.24} parent=11 // pred_check
        %p173 = pneg %p126
      $region22: #{_lambda_.24} parent=11 // pred_check_branch
        %175 = sbr.rel (%p173) target = $region24
      $region23: #{_lambda_.24} parent=11 // pred_region
        _
      $region24: #{_lambda_.24} parent=11 // pred_fallthru
        _
    $region12: #{_lambda_.24} parent=5 // pred_fallthru
      _
    %p176 = scmp.lt.s32.totalorder %s11, 2
    // Predicated region
    $region25: #{_lambda_.24} parent=5 // pred_check
      %p177 = pneg %p176
    $region26: #{_lambda_.24} parent=5 // pred_check_branch
      %179 = sbr.rel (%p177) target = $region28
    $region27: #{_lambda_.24} parent=5 // pred_region
      // Predicated region
      $region29: #{_lambda_.24} parent=27 // pred_check
        %p180 = pneg %p31
      $region30: #{_lambda_.24} parent=27 // pred_check_branch
        %182 = sbr.rel (%p180) target = $region32
      $region31: #{_lambda_.24} parent=27 // pred_region
        %p183 = scmp.lt.s32.totalorder %s11, 1
        %s184 = scalar_select %p183, %s11, 1
        %s185 = smul.addr %s184, 18
        %s186 = smul.addr %s185, 4
        %s187 = scalar_lea.vmem %s0, %s186
      $region32: #{_lambda_.24} parent=27 // pred_fallthru
        _
      // Predicated region
      $region33: #{_lambda_.24} parent=27 // pred_check
        %p188 = pneg %p99
      $region34: #{_lambda_.24} parent=27 // pred_check_branch
        %190 = sbr.rel (%p188) target = $region36
      $region35: #{_lambda_.24} parent=27 // pred_region
        %p191 = scmp.lt.s32.totalorder %s11, 1
        %s192 = scalar_select %p191, %s11, 1
        %s193 = smul.addr %s192, 4
        %s194 = scalar_lea.vmem %s3, %s193
      $region36: #{_lambda_.24} parent=27 // pred_fallthru
        _
    $region28: #{_lambda_.24} parent=5 // pred_fallthru
      _
    %p195 = scmp.le.s32.totalorder 1, %s11
    %p196 = scmp.lt.s32.totalorder %s11, 3
    %p197 = pnand %p195, %p196
    %p198 = pneg %p197
    // Predicated region
    $region37: #{_lambda_.24} parent=5 // pred_check
      _
    $region38: #{_lambda_.24} parent=5 // pred_check_branch
      %200 = sbr.rel (%p197) target = $region40
    $region39: #{_lambda_.24} parent=5 // pred_region
      %s201 = ssub.s32 %s11, 1
      %p202 = scmp.lt.s32.totalorder %s16, 1
      %s203 = scalar_select %p202, %s16, 1
      %s204 = smul.addr %s203, 18
      %s205 = smul.addr %s204, 4
      %s206 = scalar_lea.vmem %s0, %s205
      %p207 = pneg %p37
      %p208 = pneg %p34
      %p209 = pneg %p58
      %p210 = pneg %p55
      %p211 = pneg %p79
      %p212 = pneg %p76
      %p213 = scmp.lt.s32.totalorder %s16, 1
      %s214 = scalar_select %p213, %s16, 1
      %s215 = smul.addr %s214, 4
      %s216 = scalar_lea.vmem %s3, %s215
      %p217 = pneg %p105
      %p218 = pneg %p102
      %p219 = pneg %p126
      %p220 = pneg %p123
      %p221 = pneg %p152
      %p222 = pneg %p149
      %p223 = scmp.lt.s32.totalorder %s16, 1
      %s224 = scalar_select %p223, %s16, 1
      %s225 = smul.addr %s224, 2
      %s226 = smul.addr %s225, 4
      %s227 = scalar_lea.vmem %s5, %s226
      %p228 = scmp.lt.s32.totalorder %s16, 1
      %s229 = scalar_select %p228, %s16, 1
      %s230 = smul.addr %s229, 18
      %s231 = smul.addr %s230, 4
      %s232 = scalar_lea.vmem %s0, %s231
      %p233 = scmp.lt.s32.totalorder %s16, 1
      %s234 = scalar_select %p233, %s16, 1
      %s235 = smul.addr %s234, 4
      %s236 = scalar_lea.vmem %s3, %s235
      %p237 = scmp.lt.s32.totalorder %s16, 1
      %s238 = scalar_select %p237, %s16, 1
      %s239 = smul.addr %s238, 2
      %s240 = smul.addr %s239, 4
      %s241 = scalar_lea.vmem %s5, %s240
      %v243 = vld [vmem:[%s1] sm:$0xff]
      %v244 = vld [vmem:[%s1 + $0x8] sm:$0xff]
      %v245 = vld [vmem:[%s232] sm:$0xf]
      %v246 = vld [vmem:[%s232 + $0x4] sm:$0xf]
      %v247 = vld [vmem:[%s232 + $0x8] sm:$0xf]
      %v248 = vld [vmem:[%s232 + $0xc] sm:$0xf]
      %v249 = vld [vmem:[%s232 + $0x10] sm:$0xf]
      %v250 = vld [vmem:[%s232 + $0x14] sm:$0xf]
      %v251 = vld [vmem:[%s232 + $0x18] sm:$0xf]
      %v252 = vld [vmem:[%s232 + $0x1c] sm:$0xf]
      %v253 = vld [vmem:[%s232 + $0x20] sm:$0xf]
      %v254 = vld [vmem:[%s232 + $0x24] sm:$0xf]
      %v255 = vld [vmem:[%s232 + $0x28] sm:$0xf]
      %v256 = vld [vmem:[%s232 + $0x2c] sm:$0xf]
      %v257 = vld [vmem:[%s232 + $0x30] sm:$0xf]
      %v258 = vld [vmem:[%s232 + $0x34] sm:$0xf]
      %v259 = vld [vmem:[%s232 + $0x38] sm:$0xf]
      %v260 = vld [vmem:[%s232 + $0x3c] sm:$0xf]
      %v261 = vld [vmem:[%s232 + $0x40] sm:$0xf]
      %v262 = vld [vmem:[%s232 + $0x44] sm:$0xf]
      %v263 = vld [vmem:[%s2] sm:$0xff]
      %v264 = vld [vmem:[%s2 + $0x8] sm:$0xff]
      %266 = vset.pattern.permute.xlu0 0
      %267 = vperm.xlu0 %266, %v263
      %v268 = vpop.permute.xlu0 %267
      %271 = vset.pattern.permute.xlu0 0
      %272 = vperm.xlu0 %271, %v264
      %v273 = vpop.permute.xlu0 %272
      %v277 = vunpack.c.l.b16 %v243
      %v278 = vunpack.c.h.b16 %v243
      %v279 = vunpack.c.l.b16 %v244
      %v280 = vunpack.c.h.b16 %v244
      %v281 = vpack.c.b16 %v279, %v277
      %v282 = vpack.c.b16 %v280, %v278
      %v302 = vunpack.c.l.b16 %v245
      %v303 = vunpack.c.l.b16 %v246
      %v304 = vunpack.c.l.b16 %v247
      %v305 = vunpack.c.l.b16 %v248
      %v306 = vunpack.c.l.b16 %v249
      %v307 = vunpack.c.l.b16 %v250
      %v308 = vunpack.c.l.b16 %v251
      %v309 = vunpack.c.l.b16 %v252
      %v310 = vunpack.c.l.b16 %v253
      %v311 = vunpack.c.l.b16 %v254
      %v312 = vunpack.c.l.b16 %v255
      %v313 = vunpack.c.l.b16 %v256
      %v314 = vunpack.c.l.b16 %v257
      %v315 = vunpack.c.l.b16 %v258
      %v316 = vunpack.c.l.b16 %v259
      %v317 = vunpack.c.l.b16 %v260
      %v318 = vunpack.c.l.b16 %v261
      %v319 = vunpack.c.l.b16 %v262
      %v320 = vpack.c.b16 %v303, %v302
      %v321 = vpack.c.b16 %v305, %v304
      %v322 = vpack.c.b16 %v307, %v306
      %v323 = vpack.c.b16 %v309, %v308
      %v324 = vpack.c.b16 %v311, %v310
      %v325 = vpack.c.b16 %v313, %v312
      %v326 = vpack.c.b16 %v315, %v314
      %v327 = vpack.c.b16 %v317, %v316
      %v328 = vpack.c.b16 %v319, %v318
      %vm338 = vcmask 130048
      %v340 = vsel %vm338, %v282, 0
      %342 = vmatpush.bf16.msra.mxu0 %v327
      %343 = vmatpush.bf16.msra.mxu0 %v326
      %344 = vmatpush.bf16.msra.mxu0 %v325
      %345 = vmatpush.bf16.msra.mxu0 %v324
      %346 = vmatpush.bf16.msra.mxu0 %v323
      %347 = vmatpush.bf16.msra.mxu0 %v322
      %348 = vmatpush.bf16.msra.mxu0 %v321
      %349 = vmatpush.bf16.msra.mxu0 %v320
      %350 = vmatmul.bf16.gmra.mxu0 %v281
      %v351 = vpop.f32.mrf.mxu0
      %v352 = vadd.f32 %v268, %v351
      %v353 = vpop.f32.mrf.mxu0
      %v354 = vadd.f32 %v273, %v353
      %355 = vdwg.mxu0
      %356 = vmatpush.bf16.msra.mxu0 0
      %357 = vmatpush.bf16.msra.mxu0 0
      %358 = vmatpush.bf16.msra.mxu0 0
      %359 = vmatpush.bf16.msra.mxu0 0
      %360 = vmatpush.bf16.msra.mxu0 0
      %361 = vmatpush.bf16.msra.mxu0 0
      %362 = vmatpush.bf16.msra.mxu0 0
      %363 = vmatpush.bf16.msra.mxu0 %v328
      %364 = vmatmul.bf16.gmra.mxu0 %v340
      %v365 = vpop.f32.mrf.mxu0
      %v366 = vadd.f32 %v352, %v365
      %v367 = vpop.f32.mrf.mxu0
      %v368 = vadd.f32 %v354, %v367
      %369 = vdwg.mxu0
      %vm370 = vcmask 523264
      %v371 = vsel %vm370, %v366, 0.0
      %v372 = vsel %vm370, %v368, 0.0
      %v373 = vadd.f32 %v371, %v372
      %374 = vadd.xlane.f32.xlu0 %v373
      %v375 = vpop.xlane.xlu0 %374
      %v376 = vrot.slane %v375, 4
      %v377 = vadd.f32 %v375, %v376
      %v378 = vrot.slane %v377, 2
      %v379 = vadd.f32 %v377, %v378
      %v380 = vrot.slane %v379, 1
      %v381 = vadd.f32 %v379, %v380
      %s382 = vtos %v381
      %v383 = vstv %s382
      %v384 = vrcp.pop 1024.0
      %v385 = vmul.f32 1024.0, %v384
      %v386 = vsub.f32 1.0, %v385
      %v387 = vmul.f32 %v384, %v386
      %v388 = vadd.f32 %v384, %v387
      %vm389 = vweird.f32 %v384
      %v390 = vsel %vm389, %v384, %v388
      %v391 = vmul.f32 %v383, %v390
      %v392 = vmul.f32 %v366, %v366
      %v393 = vmul.f32 %v368, %v368
      %v394 = vsel %vm370, %v392, 0.0
      %v395 = vsel %vm370, %v393, 0.0
      %v396 = vadd.f32 %v394, %v395
      %397 = vadd.xlane.f32.xlu0 %v396
      %v398 = vpop.xlane.xlu0 %397
      %v399 = vrot.slane %v398, 4
      %v400 = vadd.f32 %v398, %v399
      %v401 = vrot.slane %v400, 2
      %v402 = vadd.f32 %v400, %v401
      %v403 = vrot.slane %v402, 1
      %v404 = vadd.f32 %v402, %v403
      %s405 = vtos %v404
      %v406 = vstv %s405
      %v407 = vmul.f32 %v406, %v390
      %v408 = vmul.f32 %v391, %v391
      %v409 = vsub.f32 %v407, %v408
      %v410 = vmax.f32 %v409, 0.0
      %v411 = vadd.f32 %v410, 1e-05
      %v412 = vrsqrt.pop %v411
      %v413 = vmul.f32 %v412, %v411
      %v414 = vmul.f32 %v413, %v412
      %v415 = vmul.f32 0.5, %v414
      %v416 = vsub.f32 1.5, %v415
      %v417 = vmul.f32 %v412, %v416
      %vm418 = vweird.f32 %v411
      %vm419 = vweird.f32 %v412
      %vm420 = vmor %vm418, %vm419
      %v421 = vsel %vm420, %v412, %v417
      %v422 = vmul.f32 %v263, %v421
      %v423 = vmul.f32 %v264, %v421
      %v424 = vmul.f32 %v391, %v422
      %v425 = vmul.f32 %v391, %v423
      %428 = vrot.lane.b32.xlu0 %v424, 1
      %v429 = vpop.permute.xlu0 %428
      %430 = vrot.lane.b32.xlu0 %v425, 1
      %v431 = vpop.permute.xlu0 %430
      %v434 = vsub.f32 %v263, %v429
      %v435 = vsub.f32 %v264, %v431
      %437 = vset.pattern.permute.xlu0 1
      %438 = vperm.xlu0 %437, %v422
      %v439 = vpop.permute.xlu0 %438
      %442 = vset.pattern.permute.xlu0 1
      %443 = vperm.xlu0 %442, %v423
      %v444 = vpop.permute.xlu0 %443
      %v446 = vmul.f32 %v366, %v439
      %v447 = vmul.f32 %v368, %v444
      %449 = vset.pattern.permute.xlu0 2
      %450 = vperm.xlu0 %449, %v434
      %v451 = vpop.permute.xlu0 %450
      %454 = vset.pattern.permute.xlu0 2
      %455 = vperm.xlu0 %454, %v435
      %v456 = vpop.permute.xlu0 %455
      %v458 = vadd.f32 %v446, %v451
      %v459 = vadd.f32 %v447, %v456
      %v460 = vld [vmem:[%s4] sm:$0xf]
      %v461 = vld [vmem:[%s4 + $0x4] sm:$0xf]
      %v462 = vld [vmem:[%s236] sm:$0xf]
      %v465 = vunpack.c.l.b16 %v460
      %v466 = vunpack.c.l.b16 %v461
      %v467 = vpack.c.b16 %v466, %v465
      %vm468 = vcmask 64512
      %v470 = vsel %vm468, %v467, 0
      %vm472 = vcmask 1043456
      %v474 = vsel %vm472, %v462, 0
      %476 = vmatpush.bf16.msra.mxu0 0
      %477 = vmatpush.bf16.msra.mxu0 0
      %478 = vmatpush.bf16.msra.mxu0 0
      %479 = vmatpush.bf16.msra.mxu0 0
      %480 = vmatpush.bf16.msra.mxu0 0
      %481 = vmatpush.bf16.msra.mxu0 0
      %482 = vmatpush.bf16.msra.mxu0 0
      %483 = vmatpush.bf16.msra.mxu0 %v474
      %484 = vmatmul.bf16.gmra.mxu0 %v470
      %v485 = vpop.f32.mrf.mxu0
      %v486 = vadd.f32 0.0, %v485
      %v487 = vpop.f32.mrf.mxu0
      %v488 = vadd.f32 0.0, %v487
      %489 = vdwg.mxu0
      %v490 = vadd.f32 %v458, %v486
      %v491 = vadd.f32 %v459, %v488
      %492 = vset.pattern.permute.xlu0 3
      %493 = vperm.xlu0 %492, %v263
      %v494 = vpop.permute.xlu0 %493
      %496 = vset.pattern.permute.xlu0 3
      %497 = vperm.xlu0 %496, %v264
      %v498 = vpop.permute.xlu0 %497
      %v500 = vadd.f32 %v490, %v494
      %v501 = vadd.f32 %v491, %v498
      %v502 = vmax.f32 %v500, 0.0
      %v503 = vmax.f32 %v501, 0.0
      %v504 = vpack.c.bf16 %v502, %v502
      %v505 = vpack.c.bf16 %v503, %v503
      %vm506 = vcmask 519168
      %507 = vst.msk [vmem:[%s241] sm:$0xf] %vm506, %v504
      %508 = vst.msk [vmem:[%s241 + $0x4] sm:$0xf] %vm506, %v505
      %p509 = scmp.lt.s32.totalorder %s16, 1
      %s510 = scalar_select %p509, %s16, 1
      %s511 = smul.addr %s510, 2
      %s512 = smul.addr %s511, 4
      %s513 = scalar_lea.vmem %s5, %s512
      // Predicated region
      $region41: #{_lambda_.24} parent=39 // pred_check
        %p514 = pneg %p149
      $region42: #{_lambda_.24} parent=39 // pred_check_branch
        %516 = sbr.rel (%p514) target = $region44
      $region43: #{_lambda_.24} parent=39 // pred_region
        _
      $region44: #{_lambda_.24} parent=39 // pred_fallthru
        _
    $region40: #{_lambda_.24} parent=5 // pred_fallthru
      _
    %p517 = scmp.le.s32.totalorder 2, %s11
    // Predicated region
    $region45: #{_lambda_.24} parent=5 // pred_check
      %p518 = pneg %p517
    $region46: #{_lambda_.24} parent=5 // pred_check_branch
      %520 = sbr.rel (%p518) target = $region48
    $region47: #{_lambda_.24} parent=5 // pred_region
      %s521 = ssub.s32 %s11, 2
      // Predicated region
      $region49: #{_lambda_.24} parent=47 // pred_check
        %p522 = pneg %p155
      $region50: #{_lambda_.24} parent=47 // pred_check_branch
        %524 = sbr.rel (%p522) target = $region52
      $region51: #{_lambda_.24} parent=47 // pred_region
        %p525 = scmp.lt.s32.totalorder %s17, 1
        %s526 = scalar_select %p525, %s17, 1
        %s527 = smul.addr %s526, 2
        %s528 = smul.addr %s527, 4
        %s529 = scalar_lea.vmem %s5, %s528
      $region52: #{_lambda_.24} parent=47 // pred_fallthru
        _
    $region48: #{_lambda_.24} parent=5 // pred_fallthru
      _
  $region6: #{_lambda_.24} parent=0 // loop_footer
    %s15 = sadd.s32 1, %s11
  $region7: #{_lambda_.24} parent=0 // loop_footer_branch
    %10 = sbr.rel target = $region3
  $region8: #{_lambda_.24} parent=0 // loop_exit
    _

// kernel: _lambda_.25
$region0: #{_lambda_.25}
  #allocation0 [shape = 'u32[]', space=smem, size = 0x4, offset = 0x4, fixed_abs, tag = 'smem constant byte address 0x4 - core index']
  #allocation1 [shape = 'u32[72,128]{1,0:T(1,128)}', space=vmem, size = 0x9000, scoped, tag = 'internal scratch']
  %s0 = inlined_call_operand.vmem [shape: bf16[16,128], index: 0, kind: input, shape index: {}]
  %s1 = inlined_call_operand.vmem [shape: bf16[48,16], index: 1, kind: input, shape index: {}]
  %s2 = inlined_call_operand.vmem [shape: f32[48,1], index: 2, kind: input, shape index: {}]
  %s3 = inlined_call_operand.vmem [shape: bf16[48,128], index: 3, kind: output, shape index: {}]
  %s4 = sld [smem:[#allocation0]]
  $region22: #{_lambda_.25} parent=0
    _
  %s6 = ssub.s32 1, %s4
  %s7 = scalar_select 0, %s6, %s4
  // Predicated region
  $region2: #{_lambda_.25} parent=0 // pred_check
    _
  $region3: #{_lambda_.25} parent=0 // pred_check_branch
    %9 = sbr.rel (0) target = $region5
  $region4: #{_lambda_.25} parent=0 // pred_region
    _
  $region5: #{_lambda_.25} parent=0 // pred_fallthru
    _
  // Predicated region
  $region6: #{_lambda_.25} parent=0 // pred_check
    _
  $region7: #{_lambda_.25} parent=0 // pred_check_branch
    %11 = sbr.rel (0) target = $region9
  $region8: #{_lambda_.25} parent=0 // pred_region
    _
  $region9: #{_lambda_.25} parent=0 // pred_fallthru
    _
  // Predicated region
  $region10: #{_lambda_.25} parent=0 // pred_check
    _
  $region11: #{_lambda_.25} parent=0 // pred_check_branch
    %13 = sbr.rel (0) target = $region13
  $region12: #{_lambda_.25} parent=0 // pred_region
    _
  $region13: #{_lambda_.25} parent=0 // pred_fallthru
    _
  %v15 = vld [vmem:[%s1] sm:$0xf]
  %v16 = vld [vmem:[%s1 + $0x4] sm:$0xf]
  %v17 = vld [vmem:[%s1 + $0x8] sm:$0xf]
  %v18 = vld [vmem:[%s1 + $0xc] sm:$0xf]
  %v19 = vld [vmem:[%s1 + $0x10] sm:$0xf]
  %v20 = vld [vmem:[%s1 + $0x14] sm:$0xf]
  %v21 = vld [vmem:[%s0] sm:$0xf]
  %v22 = vld [vmem:[%s0 + $0x4] sm:$0xf]
  %v23 = vld [vmem:[%s2] sm:$0xff]
  %v24 = vld [vmem:[%s2 + $0x8] sm:$0xff]
  %v25 = vld [vmem:[%s2 + $0x10] sm:$0xff]
  %v26 = vld [vmem:[%s2 + $0x18] sm:$0xff]
  %v27 = vld [vmem:[%s2 + $0x20] sm:$0xff]
  %v28 = vld [vmem:[%s2 + $0x28] sm:$0xff]
  %30 = vset.pattern.permute.xlu0 0
  %31 = vperm.xlu0 %30, %v23
  %v32 = vpop.permute.xlu0 %31
  %35 = vset.pattern.permute.xlu0 0
  %36 = vperm.xlu0 %35, %v24
  %v37 = vpop.permute.xlu0 %36
  %40 = vset.pattern.permute.xlu0 0
  %41 = vperm.xlu0 %40, %v25
  %v42 = vpop.permute.xlu0 %41
  %45 = vset.pattern.permute.xlu0 0
  %46 = vperm.xlu0 %45, %v26
  %v47 = vpop.permute.xlu0 %46
  %50 = vset.pattern.permute.xlu0 0
  %51 = vperm.xlu0 %50, %v27
  %v52 = vpop.permute.xlu0 %51
  %55 = vset.pattern.permute.xlu0 0
  %56 = vperm.xlu0 %55, %v28
  %v57 = vpop.permute.xlu0 %56
  %v65 = vunpack.c.l.b16 %v15
  %v66 = vunpack.c.l.b16 %v16
  %v67 = vunpack.c.l.b16 %v17
  %v68 = vunpack.c.l.b16 %v18
  %v69 = vunpack.c.l.b16 %v19
  %v70 = vunpack.c.l.b16 %v20
  %v71 = vpack.c.b16 %v66, %v65
  %v72 = vpack.c.b16 %v68, %v67
  %v73 = vpack.c.b16 %v70, %v69
  %v76 = vunpack.c.l.b16 %v21
  %v77 = vunpack.c.l.b16 %v22
  %v78 = vpack.c.b16 %v77, %v76
  %vm80 = vcmask 130048
  %v82 = vsel %vm80, %v71, 0
  %v85 = vsel %vm80, %v72, 0
  %v88 = vsel %vm80, %v73, 0
  %90 = vmatpush.bf16.msra.mxu0 0
  %91 = vmatpush.bf16.msra.mxu0 0
  %92 = vmatpush.bf16.msra.mxu0 0
  %93 = vmatpush.bf16.msra.mxu0 0
  %94 = vmatpush.bf16.msra.mxu0 0
  %95 = vmatpush.bf16.msra.mxu0 0
  %96 = vmatpush.bf16.msra.mxu0 0
  %97 = vmatpush.bf16.msra.mxu0 %v78
  %98 = vmatmul.bf16.gmra.mxu0 %v82
  %v99 = vpop.f32.mrf.mxu0
  %v100 = vadd.f32 %v32, %v99
  %v101 = vpop.f32.mrf.mxu0
  %v102 = vadd.f32 %v37, %v101
  %103 = vmatmul.bf16.gmra.mxu0 %v85
  %v104 = vpop.f32.mrf.mxu0
  %v105 = vadd.f32 %v42, %v104
  %v106 = vpop.f32.mrf.mxu0
  %v107 = vadd.f32 %v47, %v106
  %108 = vmatmul.bf16.gmra.mxu0 %v88
  %v109 = vpop.f32.mrf.mxu0
  %v110 = vadd.f32 %v52, %v109
  %v111 = vpop.f32.mrf.mxu0
  %v112 = vadd.f32 %v57, %v111
  %113 = vdwg.mxu0
  %v114 = vpack.c.bf16 %v100, %v100
  %v115 = vpack.c.bf16 %v102, %v102
  %v116 = vpack.c.bf16 %v105, %v105
  %v117 = vpack.c.bf16 %v107, %v107
  %v118 = vpack.c.bf16 %v110, %v110
  %v119 = vpack.c.bf16 %v112, %v112
  %120 = vst [vmem:[%s3] sm:$0xf] %v114
  %121 = vst [vmem:[%s3 + $0x4] sm:$0xf] %v115
  %122 = vst [vmem:[%s3 + $0x8] sm:$0xf] %v116
  %123 = vst [vmem:[%s3 + $0xc] sm:$0xf] %v117
  %124 = vst [vmem:[%s3 + $0x10] sm:$0xf] %v118
  %125 = vst [vmem:[%s3 + $0x14] sm:$0xf] %v119
  // Predicated region
  $region14: #{_lambda_.25} parent=0 // pred_check
    _
  $region15: #{_lambda_.25} parent=0 // pred_check_branch
    %127 = sbr.rel (0) target = $region17
  $region16: #{_lambda_.25} parent=0 // pred_region
    _
  $region17: #{_lambda_.25} parent=0 // pred_fallthru
    _
  // Predicated region
  $region18: #{_lambda_.25} parent=0 // pred_check
    _
  $region19: #{_lambda_.25} parent=0 // pred_check_branch
    %129 = sbr.rel (0) target = $region21
  $region20: #{_lambda_.25} parent=0 // pred_region
    _
  $region21: #{_lambda_.25} parent=0 // pred_fallthru
    _

// kernel: _lambda_.26
$region0: #{_lambda_.26}
  #allocation0 [shape = 'u32[]', space=smem, size = 0x4, offset = 0x4, fixed_abs, tag = 'smem constant byte address 0x4 - core index']
  #allocation1 [shape = 'u32[72,128]{1,0:T(1,128)}', space=vmem, size = 0x9000, scoped, tag = 'internal scratch']
  %s0 = inlined_call_operand.vmem [shape: bf16[2,48,64], index: 0, kind: input, shape index: {}, may-alias: {0,1,2}]
  %s1 = inlined_call_operand.vmem [shape: bf16[2,48,64], index: 1, kind: input, shape index: {}, may-alias: {0,1,2}]
  %s2 = inlined_call_operand.vmem [shape: bf16[2,48,64], index: 2, kind: input, shape index: {}, may-alias: {0,1,2}]
  %s3 = inlined_call_operand.vmem [shape: bf16[2,16,64], index: 3, kind: output, shape index: {}]
  %s4 = sld [smem:[#allocation0]]
  $region45: #{_lambda_.26} parent=0
    _
  %s6 = ssub.s32 1, %s4
  %s7 = scalar_select 0, %s6, %s4
  loop: start=0, step=1, limit=4
  $region2: #{_lambda_.26} parent=0 // loop_pre_header
    _
  $region3: #{_lambda_.26} parent=0 // loop_header
    %s9 = sphi 0, %s13
    %p10 = scmp.ge.s32.totalorder %s9, 4
    %s16 = sphi 0, %s35
    %s17 = sphi 0, %s31
    %s18 = sphi 0, %s27
    %s19 = sphi 0, %s16
    %s20 = sphi 0, %s17
    %s21 = sphi 0, %s18
    %s22 = sphi 0, %s19
    %s23 = sphi 0, %s20
    %s24 = sphi 0, %s21
    %s42 = sphi 0, %s44
    %s45 = sphi 0, %s42
    %s46 = sphi 0, %s45
    %s62 = sphi 0, %s46
    %s72 = sphi 0, %s74
    %s75 = sphi 0, %s72
    %s76 = sphi 0, %s75
    %s92 = sphi 0, %s76
    %s102 = sphi 0, %s104
    %s105 = sphi 0, %s102
    %s106 = sphi 0, %s105
    %s122 = sphi 0, %s106
    %s132 = sphi 0, %s134
    %s135 = sphi 0, %s132
    %s136 = sphi 0, %s135
    %s152 = sphi 0, %s136
  $region4: #{_lambda_.26} parent=0 // loop_header_branch
    %12 = sbr.rel (%p10) target = $region8
  $region5: #{_lambda_.26} parent=0 // loop_body
    %s14 = ssub.s32 %s9, 1
    %s15 = ssub.s32 %s9, 2
    %s25 = sadd.s32 1, %s18
    %p26 = scmp.ge.s32.totalorder %s25, 1
    %s27 = scalar_select %p26, 0, %s25
    %s28 = sadd.s32 1, %s17
    %s29 = scalar_select %p26, %s28, %s17
    %p30 = scmp.ge.s32.totalorder %s29, 1
    %s31 = scalar_select %p30, 0, %s29
    %s32 = sadd.s32 1, %s16
    %s33 = scalar_select %p30, %s32, %s16
    %p34 = scmp.ge.s32.totalorder %s33, 2
    %s35 = scalar_select %p34, 0, %s33
    %s36 = ssub.s32 %s16, %s35
    %s37 = ssub.s32 %s17, %s31
    %s38 = sor.u32 %s36, %s37
    %s39 = ssub.s32 %s18, %s27
    %s40 = sor.u32 %s38, %s39
    %p41 = scmp.eq.s32.totalorder %s40, 0
    %s43 = sadd.s32 %s42, 1
    %s44 = scalar_select %p41, %s42, %s43
    %p47 = pneg %p41
    %p48 = scmp.eq.s32.totalorder %s9, 1
    %p49 = por %p47, %p48
    %p50 = scmp.ne.s32.totalorder %s42, %s45
    %p51 = scmp.eq.s32.totalorder %s9, 0
    %p52 = por %p50, %p51
    %p53 = scmp.ne.s32.totalorder %s42, %s45
    %p54 = scmp.eq.s32.totalorder %s14, 1
    %p55 = por %p53, %p54
    %p56 = scmp.ne.s32.totalorder %s45, %s46
    %p57 = scmp.eq.s32.totalorder %s14, 0
    %p58 = por %p56, %p57
    %p59 = scmp.ne.s32.totalorder %s45, %s46
    %p60 = scmp.eq.s32.totalorder %s15, 1
    %p61 = por %p59, %p60
    %p63 = scmp.ne.s32.totalorder %s46, %s62
    %p64 = scmp.eq.s32.totalorder %s15, 0
    %p65 = por %p63, %p64
    %s66 = sadd.s32 %s17, 1
    %s67 = sadd.s32 %s31, 1
    %s68 = ssub.s32 %s16, %s35
    %s69 = ssub.s32 %s66, %s67
    %s70 = sor.u32 %s68, %s69
    %p71 = scmp.eq.s32.totalorder %s70, 0
    %s73 = sadd.s32 %s72, 1
    %s74 = scalar_select %p71, %s72, %s73
    %p77 = pneg %p71
    %p78 = scmp.eq.s32.totalorder %s9, 1
    %p79 = por %p77, %p78
    %p80 = scmp.ne.s32.totalorder %s72, %s75
    %p81 = scmp.eq.s32.totalorder %s9, 0
    %p82 = por %p80, %p81
    %p83 = scmp.ne.s32.totalorder %s72, %s75
    %p84 = scmp.eq.s32.totalorder %s14, 1
    %p85 = por %p83, %p84
    %p86 = scmp.ne.s32.totalorder %s75, %s76
    %p87 = scmp.eq.s32.totalorder %s14, 0
    %p88 = por %p86, %p87
    %p89 = scmp.ne.s32.totalorder %s75, %s76
    %p90 = scmp.eq.s32.totalorder %s15, 1
    %p91 = por %p89, %p90
    %p93 = scmp.ne.s32.totalorder %s76, %s92
    %p94 = scmp.eq.s32.totalorder %s15, 0
    %p95 = por %p93, %p94
    %s96 = sadd.s32 %s17, 2
    %s97 = sadd.s32 %s31, 2
    %s98 = ssub.s32 %s16, %s35
    %s99 = ssub.s32 %s96, %s97
    %s100 = sor.u32 %s98, %s99
    %p101 = scmp.eq.s32.totalorder %s100, 0
    %s103 = sadd.s32 %s102, 1
    %s104 = scalar_select %p101, %s102, %s103
    %p107 = pneg %p101
    %p108 = scmp.eq.s32.totalorder %s9, 1
    %p109 = por %p107, %p108
    %p110 = scmp.ne.s32.totalorder %s102, %s105
    %p111 = scmp.eq.s32.totalorder %s9, 0
    %p112 = por %p110, %p111
    %p113 = scmp.ne.s32.totalorder %s102, %s105
    %p114 = scmp.eq.s32.totalorder %s14, 1
    %p115 = por %p113, %p114
    %p116 = scmp.ne.s32.totalorder %s105, %s106
    %p117 = scmp.eq.s32.totalorder %s14, 0
    %p118 = por %p116, %p117
    %p119 = scmp.ne.s32.totalorder %s105, %s106
    %p120 = scmp.eq.s32.totalorder %s15, 1
    %p121 = por %p119, %p120
    %p123 = scmp.ne.s32.totalorder %s106, %s122
    %p124 = scmp.eq.s32.totalorder %s15, 0
    %p125 = por %p123, %p124
    %s126 = ssub.s32 %s16, %s35
    %s127 = ssub.s32 %s17, %s31
    %s128 = sor.u32 %s126, %s127
    %s129 = ssub.s32 %s18, %s27
    %s130 = sor.u32 %s128, %s129
    %p131 = scmp.eq.s32.totalorder %s130, 0
    %s133 = sadd.s32 %s132, 1
    %s134 = scalar_select %p131, %s132, %s133
    %p137 = pneg %p131
    %p138 = scmp.eq.s32.totalorder %s9, 1
    %p139 = por %p137, %p138
    %p140 = scmp.ne.s32.totalorder %s132, %s135
    %p141 = scmp.eq.s32.totalorder %s9, 0
    %p142 = por %p140, %p141
    %p143 = scmp.ne.s32.totalorder %s132, %s135
    %p144 = scmp.eq.s32.totalorder %s14, 1
    %p145 = por %p143, %p144
    %p146 = scmp.ne.s32.totalorder %s135, %s136
    %p147 = scmp.eq.s32.totalorder %s14, 0
    %p148 = por %p146, %p147
    %p149 = scmp.ne.s32.totalorder %s135, %s136
    %p150 = scmp.eq.s32.totalorder %s15, 1
    %p151 = por %p149, %p150
    %p153 = scmp.ne.s32.totalorder %s136, %s152
    %p154 = scmp.eq.s32.totalorder %s15, 0
    %p155 = por %p153, %p154
    %p156 = scmp.le.s32.totalorder 1, %s9
    %p157 = scmp.lt.s32.totalorder %s9, 3
    %p158 = pnand %p156, %p157
    %p159 = pneg %p158
    // Predicated region
    $region9: #{_lambda_.26} parent=5 // pred_check
      _
    $region10: #{_lambda_.26} parent=5 // pred_check_branch
      %161 = sbr.rel (%p158) target = $region12
    $region11: #{_lambda_.26} parent=5 // pred_region
      %s162 = ssub.s32 %s9, 1
    $region12: #{_lambda_.26} parent=5 // pred_fallthru
      _
    %p163 = scmp.lt.s32.totalorder %s9, 2
    // Predicated region
    $region13: #{_lambda_.26} parent=5 // pred_check
      %p164 = pneg %p163
    $region14: #{_lambda_.26} parent=5 // pred_check_branch
      %166 = sbr.rel (%p164) target = $region16
    $region15: #{_lambda_.26} parent=5 // pred_region
      // Predicated region
      $region17: #{_lambda_.26} parent=15 // pred_check
        %p167 = pneg %p52
      $region18: #{_lambda_.26} parent=15 // pred_check_branch
        %169 = sbr.rel (%p167) target = $region20
      $region19: #{_lambda_.26} parent=15 // pred_region
        %s170 = smul.u32 2, %s17
        %p171 = scmp.lt.s32.totalorder %s16, 1
        %s172 = scalar_select %p171, %s16, 1
        %p173 = scmp.lt.s32.totalorder %s170, 5
        %s174 = scalar_select %p173, %s170, 5
        %p175 = scmp.lt.s32.totalorder %s18, 0
        %s176 = scalar_select %p175, %s18, 0
        %s177 = sadd.s32 %s176, %s174
        %s178 = smul.addr %s172, 6
        %s179 = sadd.s32 %s177, %s178
        %s180 = smul.addr %s179, 4
        %s181 = scalar_lea.vmem %s0, %s180
        %s182 = smul.u32 2, %s17
      $region20: #{_lambda_.26} parent=15 // pred_fallthru
        _
      // Predicated region
      $region21: #{_lambda_.26} parent=15 // pred_check
        %p183 = pneg %p82
      $region22: #{_lambda_.26} parent=15 // pred_check_branch
        %185 = sbr.rel (%p183) target = $region24
      $region23: #{_lambda_.26} parent=15 // pred_region
        %s186 = sadd.s32 %s17, 1
        %s187 = smul.u32 2, %s186
        %p188 = scmp.lt.s32.totalorder %s16, 1
        %s189 = scalar_select %p188, %s16, 1
        %p190 = scmp.lt.s32.totalorder %s187, 5
        %s191 = scalar_select %p190, %s187, 5
        %s192 = smul.addr %s189, 6
        %s193 = sadd.s32 %s191, %s192
        %s194 = smul.addr %s193, 4
        %s195 = scalar_lea.vmem %s1, %s194
        %s196 = sadd.s32 %s17, 1
        %s197 = smul.u32 2, %s196
      $region24: #{_lambda_.26} parent=15 // pred_fallthru
        _
      // Predicated region
      $region25: #{_lambda_.26} parent=15 // pred_check
        %p198 = pneg %p112
      $region26: #{_lambda_.26} parent=15 // pred_check_branch
        %200 = sbr.rel (%p198) target = $region28
      $region27: #{_lambda_.26} parent=15 // pred_region
        %s201 = sadd.s32 %s17, 2
        %s202 = smul.u32 2, %s201
        %p203 = scmp.lt.s32.totalorder %s16, 1
        %s204 = scalar_select %p203, %s16, 1
        %p205 = scmp.lt.s32.totalorder %s202, 5
        %s206 = scalar_select %p205, %s202, 5
        %s207 = smul.addr %s204, 6
        %s208 = sadd.s32 %s206, %s207
        %s209 = smul.addr %s208, 4
        %s210 = scalar_lea.vmem %s2, %s209
        %s211 = sadd.s32 %s17, 2
        %s212 = smul.u32 2, %s211
      $region28: #{_lambda_.26} parent=15 // pred_fallthru
        _
    $region16: #{_lambda_.26} parent=5 // pred_fallthru
      _
    %p213 = scmp.le.s32.totalorder 1, %s9
    %p214 = scmp.lt.s32.totalorder %s9, 3
    %p215 = pnand %p213, %p214
    %p216 = pneg %p215
    // Predicated region
    $region29: #{_lambda_.26} parent=5 // pred_check
      _
    $region30: #{_lambda_.26} parent=5 // pred_check_branch
      %218 = sbr.rel (%p215) target = $region32
    $region31: #{_lambda_.26} parent=5 // pred_region
      %s219 = ssub.s32 %s9, 1
      %s220 = smul.u32 2, %s20
      %p221 = scmp.lt.s32.totalorder %s19, 1
      %s222 = scalar_select %p221, %s19, 1
      %p223 = scmp.lt.s32.totalorder %s220, 5
      %s224 = scalar_select %p223, %s220, 5
      %p225 = scmp.lt.s32.totalorder %s21, 0
      %s226 = scalar_select %p225, %s21, 0
      %s227 = sadd.s32 %s226, %s224
      %s228 = smul.addr %s222, 6
      %s229 = sadd.s32 %s227, %s228
      %s230 = smul.addr %s229, 4
      %s231 = scalar_lea.vmem %s0, %s230
      %p232 = pneg %p58
      %p233 = pneg %p55
      %s234 = sadd.s32 %s20, 1
      %s235 = smul.u32 2, %s234
      %p236 = scmp.lt.s32.totalorder %s19, 1
      %s237 = scalar_select %p236, %s19, 1
      %p238 = scmp.lt.s32.totalorder %s235, 5
      %s239 = scalar_select %p238, %s235, 5
      %s240 = smul.addr %s237, 6
      %s241 = sadd.s32 %s239, %s240
      %s242 = smul.addr %s241, 4
      %s243 = scalar_lea.vmem %s1, %s242
      %p244 = pneg %p88
      %p245 = pneg %p85
      %s246 = sadd.s32 %s20, 2
      %s247 = smul.u32 2, %s246
      %p248 = scmp.lt.s32.totalorder %s19, 1
      %s249 = scalar_select %p248, %s19, 1
      %p250 = scmp.lt.s32.totalorder %s247, 5
      %s251 = scalar_select %p250, %s247, 5
      %s252 = smul.addr %s249, 6
      %s253 = sadd.s32 %s251, %s252
      %s254 = smul.addr %s253, 4
      %s255 = scalar_lea.vmem %s2, %s254
      %p256 = pneg %p118
      %p257 = pneg %p115
      %p258 = pneg %p148
      %p259 = pneg %p145
      %s260 = smul.u32 2, %s20
      %p261 = scmp.lt.s32.totalorder %s19, 1
      %s262 = scalar_select %p261, %s19, 1
      %p263 = scmp.lt.s32.totalorder %s260, 1
      %s264 = scalar_select %p263, %s260, 1
      %p265 = scmp.lt.s32.totalorder %s21, 0
      %s266 = scalar_select %p265, %s21, 0
      %s267 = sadd.s32 %s266, %s264
      %s268 = smul.addr %s262, 2
      %s269 = sadd.s32 %s267, %s268
      %s270 = smul.addr %s269, 4
      %s271 = scalar_lea.vmem %s3, %s270
      %s272 = smul.u32 2, %s20
      %p273 = scmp.lt.s32.totalorder %s19, 1
      %s274 = scalar_select %p273, %s19, 1
      %p275 = scmp.lt.s32.totalorder %s272, 5
      %s276 = scalar_select %p275, %s272, 5
      %p277 = scmp.lt.s32.totalorder %s21, 0
      %s278 = scalar_select %p277, %s21, 0
      %s279 = sadd.s32 %s278, %s276
      %s280 = smul.addr %s274, 6
      %s281 = sadd.s32 %s279, %s280
      %s282 = smul.addr %s281, 4
      %s283 = scalar_lea.vmem %s0, %s282
      %s284 = smul.u32 2, %s20
      %s285 = sadd.s32 %s20, 1
      %s286 = smul.u32 2, %s285
      %p287 = scmp.lt.s32.totalorder %s19, 1
      %s288 = scalar_select %p287, %s19, 1
      %p289 = scmp.lt.s32.totalorder %s286, 5
      %s290 = scalar_select %p289, %s286, 5
      %s291 = smul.addr %s288, 6
      %s292 = sadd.s32 %s290, %s291
      %s293 = smul.addr %s292, 4
      %s294 = scalar_lea.vmem %s1, %s293
      %s295 = sadd.s32 %s20, 1
      %s296 = smul.u32 2, %s295
      %s297 = sadd.s32 %s20, 2
      %s298 = smul.u32 2, %s297
      %p299 = scmp.lt.s32.totalorder %s19, 1
      %s300 = scalar_select %p299, %s19, 1
      %p301 = scmp.lt.s32.totalorder %s298, 5
      %s302 = scalar_select %p301, %s298, 5
      %s303 = smul.addr %s300, 6
      %s304 = sadd.s32 %s302, %s303
      %s305 = smul.addr %s304, 4
      %s306 = scalar_lea.vmem %s2, %s305
      %s307 = sadd.s32 %s20, 2
      %s308 = smul.u32 2, %s307
      %s309 = smul.u32 2, %s20
      %p310 = scmp.lt.s32.totalorder %s19, 1
      %s311 = scalar_select %p310, %s19, 1
      %p312 = scmp.lt.s32.totalorder %s309, 1
      %s313 = scalar_select %p312, %s309, 1
      %p314 = scmp.lt.s32.totalorder %s21, 0
      %s315 = scalar_select %p314, %s21, 0
      %s316 = sadd.s32 %s315, %s313
      %s317 = smul.addr %s311, 2
      %s318 = sadd.s32 %s316, %s317
      %s319 = smul.addr %s318, 4
      %s320 = scalar_lea.vmem %s3, %s319
      %s321 = smul.u32 2, %s20
      %v323 = vld [vmem:[%s283] sm:$0xf]
      %v324 = vld [vmem:[%s283 + $0x4] sm:$0xf]
      %v325 = vld [vmem:[%s294] sm:$0xf]
      %v326 = vld [vmem:[%s294 + $0x4] sm:$0xf]
      %v327 = vld [vmem:[%s306] sm:$0xf]
      %v328 = vld [vmem:[%s306 + $0x4] sm:$0xf]
      %v331 = vunpack.c.l.b16 %v323
      %v332 = vunpack.c.l.b16 %v324
      %v333 = vpack.c.b16 %v332, %v331
      %335 = vxpose.xlu0.c.b16.start [1/8] %v333, 128
      %336 = vxpose.xlu0.c.b16.cont [2/8] 0, 128
      %337 = vxpose.xlu0.c.b16.cont [3/8] 0, 128
      %338 = vxpose.xlu0.c.b16.cont [4/8] 0, 128
      %339 = vxpose.xlu0.c.b16.cont [5/8] 0, 128
      %340 = vxpose.xlu0.c.b16.cont [6/8] 0, 128
      %341 = vxpose.xlu0.c.b16.cont [7/8] 0, 128
      %342 = vxpose.xlu0.c.b16.end [8/8] 0, 128
      %v343 = vpop.trf.xlu0
      %v344 = vpop.trf.xlu0
      %v345 = vpop.trf.xlu0
      %v346 = vpop.trf.xlu0
      %v347 = vpop.trf.xlu0
      %v348 = vpop.trf.xlu0
      %v349 = vpop.trf.xlu0
      %v350 = vpop.trf.xlu0
      %v353 = vunpack.c.l.b16 %v325
      %v354 = vunpack.c.l.b16 %v326
      %v355 = vpack.c.b16 %v354, %v353
      %vm357 = vcmask 130048
      %v359 = vsel %vm357, %v343, 0
      %v362 = vsel %vm357, %v344, 0
      %v365 = vsel %vm357, %v345, 0
      %v368 = vsel %vm357, %v346, 0
      %370 = vmatpush.bf16.msra.mxu0 0
      %371 = vmatpush.bf16.msra.mxu0 0
      %372 = vmatpush.bf16.msra.mxu0 0
      %373 = vmatpush.bf16.msra.mxu0 0
      %374 = vmatpush.bf16.msra.mxu0 0
      %375 = vmatpush.bf16.msra.mxu0 0
      %376 = vmatpush.bf16.msra.mxu0 0
      %377 = vmatpush.bf16.msra.mxu0 %v355
      %378 = vmatmul.bf16.gmra.mxu0 %v359
      %v379 = vpop.f32.mrf.mxu0
      %v380 = vadd.f32 0.0, %v379
      %v381 = vpop.f32.mrf.mxu0
      %v382 = vadd.f32 0.0, %v381
      %383 = vmatmul.bf16.gmra.mxu0 %v362
      %v384 = vpop.f32.mrf.mxu0
      %v385 = vadd.f32 0.0, %v384
      %v386 = vpop.f32.mrf.mxu0
      %v387 = vadd.f32 0.0, %v386
      %388 = vmatmul.bf16.gmra.mxu0 %v365
      %v389 = vpop.f32.mrf.mxu0
      %v390 = vadd.f32 0.0, %v389
      %v391 = vpop.f32.mrf.mxu0
      %v392 = vadd.f32 0.0, %v391
      %393 = vmatmul.bf16.gmra.mxu0 %v368
      %v394 = vpop.f32.mrf.mxu0
      %v395 = vadd.f32 0.0, %v394
      %v396 = vpop.f32.mrf.mxu0
      %v397 = vadd.f32 0.0, %v396
      %398 = vdwg.mxu0
      %v399 = vmul.f32 %v380, 0.25
      %v400 = vmul.f32 %v382, 0.25
      %v401 = vmul.f32 %v385, 0.25
      %v402 = vmul.f32 %v387, 0.25
      %v403 = vmul.f32 %v390, 0.25
      %v404 = vmul.f32 %v392, 0.25
      %v405 = vmul.f32 %v395, 0.25
      %v406 = vmul.f32 %v397, 0.25
      %vm407 = vcmask 523264
      %v408 = vsel %vm407, %v399, -inf
      %409 = vmax.xlane.f32.xlu0 %v408
      %v410 = vpop.xlane.xlu0 %409
      %v411 = vsel %vm407, %v400, -inf
      %412 = vmax.xlane.f32.xlu0 %v411
      %v413 = vpop.xlane.xlu0 %412
      %v414 = vsel %vm407, %v401, -inf
      %415 = vmax.xlane.f32.xlu0 %v414
      %v416 = vpop.xlane.xlu0 %415
      %v417 = vsel %vm407, %v402, -inf
      %418 = vmax.xlane.f32.xlu0 %v417
      %v419 = vpop.xlane.xlu0 %418
      %v420 = vsel %vm407, %v403, -inf
      %421 = vmax.xlane.f32.xlu0 %v420
      %v422 = vpop.xlane.xlu0 %421
      %v423 = vsel %vm407, %v404, -inf
      %424 = vmax.xlane.f32.xlu0 %v423
      %v425 = vpop.xlane.xlu0 %424
      %v426 = vsel %vm407, %v405, -inf
      %427 = vmax.xlane.f32.xlu0 %v426
      %v428 = vpop.xlane.xlu0 %427
      %v429 = vsel %vm407, %v406, -inf
      %430 = vmax.xlane.f32.xlu0 %v429
      %v431 = vpop.xlane.xlu0 %430
      %v432 = vsub.f32 %v399, %v410
      %v433 = vsub.f32 %v400, %v413
      %v434 = vsub.f32 %v401, %v416
      %v435 = vsub.f32 %v402, %v419
      %v436 = vsub.f32 %v403, %v422
      %v437 = vsub.f32 %v404, %v425
      %v438 = vsub.f32 %v405, %v428
      %v439 = vsub.f32 %v406, %v431
      %v440 = vmul.f32 %v432, 1.442695
      %v441 = vpow.pop %v440
      %v442 = vmul.f32 %v433, 1.442695
      %v443 = vpow.pop %v442
      %v444 = vmul.f32 %v434, 1.442695
      %v445 = vpow.pop %v444
      %v446 = vmul.f32 %v435, 1.442695
      %v447 = vpow.pop %v446
      %v448 = vmul.f32 %v436, 1.442695
      %v449 = vpow.pop %v448
      %v450 = vmul.f32 %v437, 1.442695
      %v451 = vpow.pop %v450
      %v452 = vmul.f32 %v438, 1.442695
      %v453 = vpow.pop %v452
      %v454 = vmul.f32 %v439, 1.442695
      %v455 = vpow.pop %v454
      %v456 = vsel %vm407, %v441, 0.0
      %457 = vadd.xlane.f32.xlu0 %v456
      %v458 = vpop.xlane.xlu0 %457
      %v459 = vsel %vm407, %v443, 0.0
      %460 = vadd.xlane.f32.xlu0 %v459
      %v461 = vpop.xlane.xlu0 %460
      %v462 = vsel %vm407, %v445, 0.0
      %463 = vadd.xlane.f32.xlu0 %v462
      %v464 = vpop.xlane.xlu0 %463
      %v465 = vsel %vm407, %v447, 0.0
      %466 = vadd.xlane.f32.xlu0 %v465
      %v467 = vpop.xlane.xlu0 %466
      %v468 = vsel %vm407, %v449, 0.0
      %469 = vadd.xlane.f32.xlu0 %v468
      %v470 = vpop.xlane.xlu0 %469
      %v471 = vsel %vm407, %v451, 0.0
      %472 = vadd.xlane.f32.xlu0 %v471
      %v473 = vpop.xlane.xlu0 %472
      %v474 = vsel %vm407, %v453, 0.0
      %475 = vadd.xlane.f32.xlu0 %v474
      %v476 = vpop.xlane.xlu0 %475
      %v477 = vsel %vm407, %v455, 0.0
      %478 = vadd.xlane.f32.xlu0 %v477
      %v479 = vpop.xlane.xlu0 %478
      %v480 = vrcp.pop %v458
      %v481 = vmul.f32 %v458, %v480
      %v482 = vsub.f32 1.0, %v481
      %v483 = vmul.f32 %v480, %v482
      %v484 = vadd.f32 %v480, %v483
      %vm485 = vweird.f32 %v458
      %vm486 = vweird.f32 %v480
      %vm487 = vmor %vm485, %vm486
      %v488 = vsel %vm487, %v480, %v484
      %v489 = vand.u32 2147483647, %v458
      %vm490 = vcmp.eq.f32.partialorder %v489, 8.507059e+37
      %v491 = vand.u32 %v458, 2147483648
      %v492 = vor.u32 1.1754944e-38, %v491
      %v493 = vsel %vm490, %v492, %v488
      %v494 = vmul.f32 %v441, %v493
      %v495 = vrcp.pop %v461
      %v496 = vmul.f32 %v461, %v495
      %v497 = vsub.f32 1.0, %v496
      %v498 = vmul.f32 %v495, %v497
      %v499 = vadd.f32 %v495, %v498
      %vm500 = vweird.f32 %v461
      %vm501 = vweird.f32 %v495
      %vm502 = vmor %vm500, %vm501
      %v503 = vsel %vm502, %v495, %v499
      %v504 = vand.u32 2147483647, %v461
      %vm505 = vcmp.eq.f32.partialorder %v504, 8.507059e+37
      %v506 = vand.u32 %v461, 2147483648
      %v507 = vor.u32 1.1754944e-38, %v506
      %v508 = vsel %vm505, %v507, %v503
      %v509 = vmul.f32 %v443, %v508
      %v510 = vrcp.pop %v464
      %v511 = vmul.f32 %v464, %v510
      %v512 = vsub.f32 1.0, %v511
      %v513 = vmul.f32 %v510, %v512
      %v514 = vadd.f32 %v510, %v513
      %vm515 = vweird.f32 %v464
      %vm516 = vweird.f32 %v510
      %vm517 = vmor %vm515, %vm516
      %v518 = vsel %vm517, %v510, %v514
      %v519 = vand.u32 2147483647, %v464
      %vm520 = vcmp.eq.f32.partialorder %v519, 8.507059e+37
      %v521 = vand.u32 %v464, 2147483648
      %v522 = vor.u32 1.1754944e-38, %v521
      %v523 = vsel %vm520, %v522, %v518
      %v524 = vmul.f32 %v445, %v523
      %v525 = vrcp.pop %v467
      %v526 = vmul.f32 %v467, %v525
      %v527 = vsub.f32 1.0, %v526
      %v528 = vmul.f32 %v525, %v527
      %v529 = vadd.f32 %v525, %v528
      %vm530 = vweird.f32 %v467
      %vm531 = vweird.f32 %v525
      %vm532 = vmor %vm530, %vm531
      %v533 = vsel %vm532, %v525, %v529
      %v534 = vand.u32 2147483647, %v467
      %vm535 = vcmp.eq.f32.partialorder %v534, 8.507059e+37
      %v536 = vand.u32 %v467, 2147483648
      %v537 = vor.u32 1.1754944e-38, %v536
      %v538 = vsel %vm535, %v537, %v533
      %v539 = vmul.f32 %v447, %v538
      %v540 = vrcp.pop %v470
      %v541 = vmul.f32 %v470, %v540
      %v542 = vsub.f32 1.0, %v541
      %v543 = vmul.f32 %v540, %v542
      %v544 = vadd.f32 %v540, %v543
      %vm545 = vweird.f32 %v470
      %vm546 = vweird.f32 %v540
      %vm547 = vmor %vm545, %vm546
      %v548 = vsel %vm547, %v540, %v544
      %v549 = vand.u32 2147483647, %v470
      %vm550 = vcmp.eq.f32.partialorder %v549, 8.507059e+37
      %v551 = vand.u32 %v470, 2147483648
      %v552 = vor.u32 1.1754944e-38, %v551
      %v553 = vsel %vm550, %v552, %v548
      %v554 = vmul.f32 %v449, %v553
      %v555 = vrcp.pop %v473
      %v556 = vmul.f32 %v473, %v555
      %v557 = vsub.f32 1.0, %v556
      %v558 = vmul.f32 %v555, %v557
      %v559 = vadd.f32 %v555, %v558
      %vm560 = vweird.f32 %v473
      %vm561 = vweird.f32 %v555
      %vm562 = vmor %vm560, %vm561
      %v563 = vsel %vm562, %v555, %v559
      %v564 = vand.u32 2147483647, %v473
      %vm565 = vcmp.eq.f32.partialorder %v564, 8.507059e+37
      %v566 = vand.u32 %v473, 2147483648
      %v567 = vor.u32 1.1754944e-38, %v566
      %v568 = vsel %vm565, %v567, %v563
      %v569 = vmul.f32 %v451, %v568
      %v570 = vrcp.pop %v476
      %v571 = vmul.f32 %v476, %v570
      %v572 = vsub.f32 1.0, %v571
      %v573 = vmul.f32 %v570, %v572
      %v574 = vadd.f32 %v570, %v573
      %vm575 = vweird.f32 %v476
      %vm576 = vweird.f32 %v570
      %vm577 = vmor %vm575, %vm576
      %v578 = vsel %vm577, %v570, %v574
      %v579 = vand.u32 2147483647, %v476
      %vm580 = vcmp.eq.f32.partialorder %v579, 8.507059e+37
      %v581 = vand.u32 %v476, 2147483648
      %v582 = vor.u32 1.1754944e-38, %v581
      %v583 = vsel %vm580, %v582, %v578
      %v584 = vmul.f32 %v453, %v583
      %v585 = vrcp.pop %v479
      %v586 = vmul.f32 %v479, %v585
      %v587 = vsub.f32 1.0, %v586
      %v588 = vmul.f32 %v585, %v587
      %v589 = vadd.f32 %v585, %v588
      %vm590 = vweird.f32 %v479
      %vm591 = vweird.f32 %v585
      %vm592 = vmor %vm590, %vm591
      %v593 = vsel %vm592, %v585, %v589
      %v594 = vand.u32 2147483647, %v479
      %vm595 = vcmp.eq.f32.partialorder %v594, 8.507059e+37
      %v596 = vand.u32 %v479, 2147483648
      %v597 = vor.u32 1.1754944e-38, %v596
      %v598 = vsel %vm595, %v597, %v593
      %v599 = vmul.f32 %v455, %v598
      %v600 = vpack.c.bf16 %v509, %v494
      %v601 = vpack.c.bf16 %v539, %v524
      %v602 = vpack.c.bf16 %v569, %v554
      %v603 = vpack.c.bf16 %v599, %v584
      %v606 = vunpack.c.l.b16 %v327
      %v607 = vunpack.c.l.b16 %v328
      %v608 = vpack.c.b16 %v607, %v606
      %v610 = vsel %vm407, %v608, 0
      %v613 = vsel %vm407, %v600, 0
      %v616 = vsel %vm407, %v601, 0
      %v619 = vsel %vm407, %v602, 0
      %v622 = vsel %vm407, %v603, 0
      %624 = vmatpush.bf16.xpose.msra.mxu0 0
      %625 = vmatpush.bf16.xpose.msra.mxu0 0
      %626 = vmatpush.bf16.xpose.msra.mxu0 0
      %627 = vmatpush.bf16.xpose.msra.mxu0 0
      %628 = vmatpush.bf16.xpose.msra.mxu0 %v622
      %629 = vmatpush.bf16.xpose.msra.mxu0 %v619
      %630 = vmatpush.bf16.xpose.msra.mxu0 %v616
      %631 = vmatpush.bf16.xpose.msra.mxu0 %v613
      %632 = vmatmul.bf16.gmra.mxu0 %v610
      %v633 = vpop.f32.mrf.mxu0
      %v634 = vadd.f32 0.0, %v633
      %v635 = vpop.f32.mrf.mxu0
      %v636 = vadd.f32 0.0, %v635
      %637 = vdwg.mxu0
      %v638 = vpack.c.bf16 %v634, %v634
      %v639 = vpack.c.bf16 %v636, %v636
      %vm640 = vcmask 519168
      %641 = vst.msk [vmem:[%s320] sm:$0xf] %vm640, %v638
      %642 = vst.msk [vmem:[%s320 + $0x4] sm:$0xf] %vm640, %v639
      %s643 = smul.u32 2, %s20
      %p644 = scmp.lt.s32.totalorder %s19, 1
      %s645 = scalar_select %p644, %s19, 1
      %p646 = scmp.lt.s32.totalorder %s643, 1
      %s647 = scalar_select %p646, %s643, 1
      %p648 = scmp.lt.s32.totalorder %s21, 0
      %s649 = scalar_select %p648, %s21, 0
      %s650 = sadd.s32 %s649, %s647
      %s651 = smul.addr %s645, 2
      %s652 = sadd.s32 %s650, %s651
      %s653 = smul.addr %s652, 4
      %s654 = scalar_lea.vmem %s3, %s653
      // Predicated region
      $region33: #{_lambda_.26} parent=31 // pred_check
        %p655 = pneg %p145
      $region34: #{_lambda_.26} parent=31 // pred_check_branch
        %657 = sbr.rel (%p655) target = $region36
      $region35: #{_lambda_.26} parent=31 // pred_region
        %s658 = smul.u32 2, %s20
      $region36: #{_lambda_.26} parent=31 // pred_fallthru
        _
    $region32: #{_lambda_.26} parent=5 // pred_fallthru
      _
    %p659 = scmp.le.s32.totalorder 2, %s9
    // Predicated region
    $region37: #{_lambda_.26} parent=5 // pred_check
      %p660 = pneg %p659
    $region38: #{_lambda_.26} parent=5 // pred_check_branch
      %662 = sbr.rel (%p660) target = $region40
    $region39: #{_lambda_.26} parent=5 // pred_region
      %s663 = ssub.s32 %s9, 2
      // Predicated region
      $region41: #{_lambda_.26} parent=39 // pred_check
        %p664 = pneg %p151
      $region42: #{_lambda_.26} parent=39 // pred_check_branch
        %666 = sbr.rel (%p664) target = $region44
      $region43: #{_lambda_.26} parent=39 // pred_region
        %s667 = smul.u32 2, %s23
        %p668 = scmp.lt.s32.totalorder %s22, 1
        %s669 = scalar_select %p668, %s22, 1
        %p670 = scmp.lt.s32.totalorder %s667, 1
        %s671 = scalar_select %p670, %s667, 1
        %p672 = scmp.lt.s32.totalorder %s24, 0
        %s673 = scalar_select %p672, %s24, 0
        %s674 = sadd.s32 %s673, %s671
        %s675 = smul.addr %s669, 2
        %s676 = sadd.s32 %s674, %s675
        %s677 = smul.addr %s676, 4
        %s678 = scalar_lea.vmem %s3, %s677
      $region44: #{_lambda_.26} parent=39 // pred_fallthru
        _
    $region40: #{_lambda_.26} parent=5 // pred_fallthru
      _
  $region6: #{_lambda_.26} parent=0 // loop_footer
    %s13 = sadd.s32 1, %s9
  $region7: #{_lambda_.26} parent=0 // loop_footer_branch
    %8 = sbr.rel target = $region3
  $region8: #{_lambda_.26} parent=0 // loop_exit
    _

// kernel: _lambda_.27
$region0: #{_lambda_.27}
  #allocation0 [shape = 'u32[]', space=smem, size = 0x4, offset = 0x4, fixed_abs, tag = 'smem constant byte address 0x4 - core index']
  #allocation1 [shape = 'u32[72,128]{1,0:T(1,128)}', space=vmem, size = 0x9000, scoped, tag = 'internal scratch']
  %s0 = inlined_call_operand.vmem [shape: bf16[16,128], index: 0, kind: input, shape index: {}]
  %s1 = inlined_call_operand.vmem [shape: bf16[16,16], index: 1, kind: input, shape index: {}]
  %s2 = inlined_call_operand.vmem [shape: f32[16,1], index: 2, kind: input, shape index: {}]
  %s3 = inlined_call_operand.vmem [shape: bf16[16,128], index: 3, kind: output, shape index: {}]
  %s4 = sld [smem:[#allocation0]]
  $region22: #{_lambda_.27} parent=0
    _
  %s6 = ssub.s32 1, %s4
  %s7 = scalar_select 0, %s6, %s4
  // Predicated region
  $region2: #{_lambda_.27} parent=0 // pred_check
    _
  $region3: #{_lambda_.27} parent=0 // pred_check_branch
    %9 = sbr.rel (0) target = $region5
  $region4: #{_lambda_.27} parent=0 // pred_region
    _
  $region5: #{_lambda_.27} parent=0 // pred_fallthru
    _
  // Predicated region
  $region6: #{_lambda_.27} parent=0 // pred_check
    _
  $region7: #{_lambda_.27} parent=0 // pred_check_branch
    %11 = sbr.rel (0) target = $region9
  $region8: #{_lambda_.27} parent=0 // pred_region
    _
  $region9: #{_lambda_.27} parent=0 // pred_fallthru
    _
  // Predicated region
  $region10: #{_lambda_.27} parent=0 // pred_check
    _
  $region11: #{_lambda_.27} parent=0 // pred_check_branch
    %13 = sbr.rel (0) target = $region13
  $region12: #{_lambda_.27} parent=0 // pred_region
    _
  $region13: #{_lambda_.27} parent=0 // pred_fallthru
    _
  %v15 = vld [vmem:[%s1] sm:$0xf]
  %v16 = vld [vmem:[%s1 + $0x4] sm:$0xf]
  %v17 = vld [vmem:[%s0] sm:$0xf]
  %v18 = vld [vmem:[%s0 + $0x4] sm:$0xf]
  %v19 = vld [vmem:[%s2] sm:$0xff]
  %v20 = vld [vmem:[%s2 + $0x8] sm:$0xff]
  %22 = vset.pattern.permute.xlu0 0
  %23 = vperm.xlu0 %22, %v19
  %v24 = vpop.permute.xlu0 %23
  %27 = vset.pattern.permute.xlu0 0
  %28 = vperm.xlu0 %27, %v20
  %v29 = vpop.permute.xlu0 %28
  %v33 = vunpack.c.l.b16 %v15
  %v34 = vunpack.c.l.b16 %v16
  %v35 = vpack.c.b16 %v34, %v33
  %v38 = vunpack.c.l.b16 %v17
  %v39 = vunpack.c.l.b16 %v18
  %v40 = vpack.c.b16 %v39, %v38
  %vm42 = vcmask 130048
  %v44 = vsel %vm42, %v35, 0
  %46 = vmatpush.bf16.msra.mxu0 0
  %47 = vmatpush.bf16.msra.mxu0 0
  %48 = vmatpush.bf16.msra.mxu0 0
  %49 = vmatpush.bf16.msra.mxu0 0
  %50 = vmatpush.bf16.msra.mxu0 0
  %51 = vmatpush.bf16.msra.mxu0 0
  %52 = vmatpush.bf16.msra.mxu0 0
  %53 = vmatpush.bf16.msra.mxu0 %v40
  %54 = vmatmul.bf16.gmra.mxu0 %v44
  %v55 = vpop.f32.mrf.mxu0
  %v56 = vadd.f32 %v24, %v55
  %v57 = vpop.f32.mrf.mxu0
  %v58 = vadd.f32 %v29, %v57
  %59 = vdwg.mxu0
  %v60 = vpack.c.bf16 %v56, %v56
  %v61 = vpack.c.bf16 %v58, %v58
  %62 = vst [vmem:[%s3] sm:$0xf] %v60
  %63 = vst [vmem:[%s3 + $0x4] sm:$0xf] %v61
  // Predicated region
  $region14: #{_lambda_.27} parent=0 // pred_check
    _
  $region15: #{_lambda_.27} parent=0 // pred_check_branch
    %65 = sbr.rel (0) target = $region17
  $region16: #{_lambda_.27} parent=0 // pred_region
    _
  $region17: #{_lambda_.27} parent=0 // pred_fallthru
    _
  // Predicated region
  $region18: #{_lambda_.27} parent=0 // pred_check
    _
  $region19: #{_lambda_.27} parent=0 // pred_check_branch
    %67 = sbr.rel (0) target = $region21
  $region20: #{_lambda_.27} parent=0 // pred_region
    _
  $region21: #{_lambda_.27} parent=0 // pred_fallthru
    _

// kernel: _lambda_.28
$region0: #{_lambda_.28}
  #allocation0 [shape = 'u32[]', space=smem, size = 0x4, offset = 0x4, fixed_abs, tag = 'smem constant byte address 0x4 - core index']
  #allocation1 [shape = 'u32[72,128]{1,0:T(1,128)}', space=vmem, size = 0x9000, scoped, tag = 'internal scratch']
  %s0 = inlined_call_operand.vmem [shape: bf16[144,128], index: 0, kind: input, shape index: {}]
  %s1 = inlined_call_operand.vmem [shape: bf16[16,144], index: 1, kind: input, shape index: {}]
  %s2 = inlined_call_operand.vmem [shape: f32[16,1], index: 2, kind: input, shape index: {}]
  %s3 = inlined_call_operand.vmem [shape: bf16[16,128], index: 3, kind: output, shape index: {}]
  %s4 = sld [smem:[#allocation0]]
  $region22: #{_lambda_.28} parent=0
    _
  %s6 = ssub.s32 1, %s4
  %s7 = scalar_select 0, %s6, %s4
  // Predicated region
  $region2: #{_lambda_.28} parent=0 // pred_check
    _
  $region3: #{_lambda_.28} parent=0 // pred_check_branch
    %9 = sbr.rel (0) target = $region5
  $region4: #{_lambda_.28} parent=0 // pred_region
    _
  $region5: #{_lambda_.28} parent=0 // pred_fallthru
    _
  // Predicated region
  $region6: #{_lambda_.28} parent=0 // pred_check
    _
  $region7: #{_lambda_.28} parent=0 // pred_check_branch
    %11 = sbr.rel (0) target = $region9
  $region8: #{_lambda_.28} parent=0 // pred_region
    _
  $region9: #{_lambda_.28} parent=0 // pred_fallthru
    _
  // Predicated region
  $region10: #{_lambda_.28} parent=0 // pred_check
    _
  $region11: #{_lambda_.28} parent=0 // pred_check_branch
    %13 = sbr.rel (0) target = $region13
  $region12: #{_lambda_.28} parent=0 // pred_region
    _
  $region13: #{_lambda_.28} parent=0 // pred_fallthru
    _
  %v15 = vld [vmem:[%s1] sm:$0xff]
  %v16 = vld [vmem:[%s1 + $0x8] sm:$0xff]
  %v17 = vld [vmem:[%s0] sm:$0xf]
  %v18 = vld [vmem:[%s0 + $0x4] sm:$0xf]
  %v19 = vld [vmem:[%s0 + $0x8] sm:$0xf]
  %v20 = vld [vmem:[%s0 + $0xc] sm:$0xf]
  %v21 = vld [vmem:[%s0 + $0x10] sm:$0xf]
  %v22 = vld [vmem:[%s0 + $0x14] sm:$0xf]
  %v23 = vld [vmem:[%s0 + $0x18] sm:$0xf]
  %v24 = vld [vmem:[%s0 + $0x1c] sm:$0xf]
  %v25 = vld [vmem:[%s0 + $0x20] sm:$0xf]
  %v26 = vld [vmem:[%s0 + $0x24] sm:$0xf]
  %v27 = vld [vmem:[%s0 + $0x28] sm:$0xf]
  %v28 = vld [vmem:[%s0 + $0x2c] sm:$0xf]
  %v29 = vld [vmem:[%s0 + $0x30] sm:$0xf]
  %v30 = vld [vmem:[%s0 + $0x34] sm:$0xf]
  %v31 = vld [vmem:[%s0 + $0x38] sm:$0xf]
  %v32 = vld [vmem:[%s0 + $0x3c] sm:$0xf]
  %v33 = vld [vmem:[%s0 + $0x40] sm:$0xf]
  %v34 = vld [vmem:[%s0 + $0x44] sm:$0xf]
  %v35 = vld [vmem:[%s2] sm:$0xff]
  %v36 = vld [vmem:[%s2 + $0x8] sm:$0xff]
  %38 = vset.pattern.permute.xlu0 0
  %39 = vperm.xlu0 %38, %v35
  %v40 = vpop.permute.xlu0 %39
  %43 = vset.pattern.permute.xlu0 0
  %44 = vperm.xlu0 %43, %v36
  %v45 = vpop.permute.xlu0 %44
  %v49 = vunpack.c.l.b16 %v15
  %v50 = vunpack.c.h.b16 %v15
  %v51 = vunpack.c.l.b16 %v16
  %v52 = vunpack.c.h.b16 %v16
  %v53 = vpack.c.b16 %v51, %v49
  %v54 = vpack.c.b16 %v52, %v50
  %v74 = vunpack.c.l.b16 %v17
  %v75 = vunpack.c.l.b16 %v18
  %v76 = vunpack.c.l.b16 %v19
  %v77 = vunpack.c.l.b16 %v20
  %v78 = vunpack.c.l.b16 %v21
  %v79 = vunpack.c.l.b16 %v22
  %v80 = vunpack.c.l.b16 %v23
  %v81 = vunpack.c.l.b16 %v24
  %v82 = vunpack.c.l.b16 %v25
  %v83 = vunpack.c.l.b16 %v26
  %v84 = vunpack.c.l.b16 %v27
  %v85 = vunpack.c.l.b16 %v28
  %v86 = vunpack.c.l.b16 %v29
  %v87 = vunpack.c.l.b16 %v30
  %v88 = vunpack.c.l.b16 %v31
  %v89 = vunpack.c.l.b16 %v32
  %v90 = vunpack.c.l.b16 %v33
  %v91 = vunpack.c.l.b16 %v34
  %v92 = vpack.c.b16 %v75, %v74
  %v93 = vpack.c.b16 %v77, %v76
  %v94 = vpack.c.b16 %v79, %v78
  %v95 = vpack.c.b16 %v81, %v80
  %v96 = vpack.c.b16 %v83, %v82
  %v97 = vpack.c.b16 %v85, %v84
  %v98 = vpack.c.b16 %v87, %v86
  %v99 = vpack.c.b16 %v89, %v88
  %v100 = vpack.c.b16 %v91, %v90
  %vm110 = vcmask 130048
  %v112 = vsel %vm110, %v54, 0
  %114 = vmatpush.bf16.msra.mxu0 %v99
  %115 = vmatpush.bf16.msra.mxu0 %v98
  %116 = vmatpush.bf16.msra.mxu0 %v97
  %117 = vmatpush.bf16.msra.mxu0 %v96
  %118 = vmatpush.bf16.msra.mxu0 %v95
  %119 = vmatpush.bf16.msra.mxu0 %v94
  %120 = vmatpush.bf16.msra.mxu0 %v93
  %121 = vmatpush.bf16.msra.mxu0 %v92
  %122 = vmatmul.bf16.gmra.mxu0 %v53
  %v123 = vpop.f32.mrf.mxu0
  %v124 = vadd.f32 %v40, %v123
  %v125 = vpop.f32.mrf.mxu0
  %v126 = vadd.f32 %v45, %v125
  %127 = vdwg.mxu0
  %128 = vmatpush.bf16.msra.mxu0 0
  %129 = vmatpush.bf16.msra.mxu0 0
  %130 = vmatpush.bf16.msra.mxu0 0
  %131 = vmatpush.bf16.msra.mxu0 0
  %132 = vmatpush.bf16.msra.mxu0 0
  %133 = vmatpush.bf16.msra.mxu0 0
  %134 = vmatpush.bf16.msra.mxu0 0
  %135 = vmatpush.bf16.msra.mxu0 %v100
  %136 = vmatmul.bf16.gmra.mxu0 %v112
  %v137 = vpop.f32.mrf.mxu0
  %v138 = vadd.f32 %v124, %v137
  %v139 = vpop.f32.mrf.mxu0
  %v140 = vadd.f32 %v126, %v139
  %141 = vdwg.mxu0
  %v142 = vpack.c.bf16 %v138, %v138
  %v143 = vpack.c.bf16 %v140, %v140
  %144 = vst [vmem:[%s3] sm:$0xf] %v142
  %145 = vst [vmem:[%s3 + $0x4] sm:$0xf] %v143
  // Predicated region
  $region14: #{_lambda_.28} parent=0 // pred_check
    _
  $region15: #{_lambda_.28} parent=0 // pred_check_branch
    %147 = sbr.rel (0) target = $region17
  $region16: #{_lambda_.28} parent=0 // pred_region
    _
  $region17: #{_lambda_.28} parent=0 // pred_fallthru
    _
  // Predicated region
  $region18: #{_lambda_.28} parent=0 // pred_check
    _
  $region19: #{_lambda_.28} parent=0 // pred_check_branch
    %149 = sbr.rel (0) target = $region21
  $region20: #{_lambda_.28} parent=0 // pred_region
    _
  $region21: #{_lambda_.28} parent=0 // pred_fallthru
    _

// kernel: _lambda_.30
$region0: #{_lambda_.30}
  #allocation0 [shape = 'u32[]', space=smem, size = 0x4, offset = 0x4, fixed_abs, tag = 'smem constant byte address 0x4 - core index']
  #allocation1 [shape = 'u32[72,128]{1,0:T(1,128)}', space=vmem, size = 0x9000, scoped, tag = 'internal scratch']
  %s0 = inlined_call_operand.vmem [shape: bf16[2,72,64], index: 0, kind: input, shape index: {}]
  %s1 = inlined_call_operand.vmem [shape: bf16[8,72], index: 1, kind: input, shape index: {}]
  %s2 = inlined_call_operand.vmem [shape: f32[8,4], index: 2, kind: input, shape index: {}]
  %s3 = inlined_call_operand.vmem [shape: bf16[2,16,64], index: 3, kind: input, shape index: {}]
  %s4 = inlined_call_operand.vmem [shape: bf16[8,16], index: 4, kind: input, shape index: {}]
  %s5 = inlined_call_operand.vmem [shape: bf16[2,8,64], index: 5, kind: output, shape index: {}]
  %s6 = sld [smem:[#allocation0]]
  $region53: #{_lambda_.30} parent=0
    _
  %s8 = ssub.s32 1, %s6
  %s9 = scalar_select 0, %s8, %s6
  loop: start=0, step=1, limit=4
  $region2: #{_lambda_.30} parent=0 // loop_pre_header
    _
  $region3: #{_lambda_.30} parent=0 // loop_header
    %s11 = sphi 0, %s15
    %p12 = scmp.ge.s32.totalorder %s11, 4
    %s21 = sphi 0, %s23
    %s24 = sphi 0, %s21
    %s25 = sphi 0, %s24
    %s41 = sphi 0, %s25
    %s45 = sphi 0, %s45
    %s47 = sphi 0, %s45
    %s48 = sphi 0, %s47
    %s62 = sphi 0, %s48
    %s66 = sphi 0, %s66
    %s68 = sphi 0, %s66
    %s69 = sphi 0, %s68
    %s83 = sphi 0, %s69
    %s89 = sphi 0, %s91
    %s92 = sphi 0, %s89
    %s93 = sphi 0, %s92
    %s109 = sphi 0, %s93
    %s113 = sphi 0, %s113
    %s115 = sphi 0, %s113
    %s116 = sphi 0, %s115
    %s130 = sphi 0, %s116
    %s136 = sphi 0, %s138
    %s139 = sphi 0, %s136
    %s140 = sphi 0, %s139
    %s156 = sphi 0, %s140
  $region4: #{_lambda_.30} parent=0 // loop_header_branch
    %14 = sbr.rel (%p12) target = $region8
  $region5: #{_lambda_.30} parent=0 // loop_body
    %s16 = ssub.s32 %s11, 1
    %s17 = ssub.s32 %s11, 2
    %s18 = sadd.s32 %s11, 1
    %s19 = ssub.s32 %s11, %s18
    %p20 = scmp.eq.s32.totalorder %s19, 0
    %s22 = sadd.s32 %s21, 1
    %s23 = scalar_select %p20, %s21, %s22
    %p26 = pneg %p20
    %p27 = scmp.eq.s32.totalorder %s11, 1
    %p28 = por %p26, %p27
    %p29 = scmp.ne.s32.totalorder %s21, %s24
    %p30 = scmp.eq.s32.totalorder %s11, 0
    %p31 = por %p29, %p30
    %p32 = scmp.ne.s32.totalorder %s21, %s24
    %p33 = scmp.eq.s32.totalorder %s16, 1
    %p34 = por %p32, %p33
    %p35 = scmp.ne.s32.totalorder %s24, %s25
    %p36 = scmp.eq.s32.totalorder %s16, 0
    %p37 = por %p35, %p36
    %p38 = scmp.ne.s32.totalorder %s24, %s25
    %p39 = scmp.eq.s32.totalorder %s17, 1
    %p40 = por %p38, %p39
    %p42 = scmp.ne.s32.totalorder %s25, %s41
    %p43 = scmp.eq.s32.totalorder %s17, 0
    %p44 = por %p42, %p43
    %s46 = sadd.s32 %s45, 1
    %p49 = scmp.eq.s32.totalorder %s11, 1
    %p50 = scmp.ne.s32.totalorder %s45, %s47
    %p51 = scmp.eq.s32.totalorder %s11, 0
    %p52 = por %p50, %p51
    %p53 = scmp.ne.s32.totalorder %s45, %s47
    %p54 = scmp.eq.s32.totalorder %s16, 1
    %p55 = por %p53, %p54
    %p56 = scmp.ne.s32.totalorder %s47, %s48
    %p57 = scmp.eq.s32.totalorder %s16, 0
    %p58 = por %p56, %p57
    %p59 = scmp.ne.s32.totalorder %s47, %s48
    %p60 = scmp.eq.s32.totalorder %s17, 1
    %p61 = por %p59, %p60
    %p63 = scmp.ne.s32.totalorder %s48, %s62
    %p64 = scmp.eq.s32.totalorder %s17, 0
    %p65 = por %p63, %p64
    %s67 = sadd.s32 %s66, 1
    %p70 = scmp.eq.s32.totalorder %s11, 1
    %p71 = scmp.ne.s32.totalorder %s66, %s68
    %p72 = scmp.eq.s32.totalorder %s11, 0
    %p73 = por %p71, %p72
    %p74 = scmp.ne.s32.totalorder %s66, %s68
    %p75 = scmp.eq.s32.totalorder %s16, 1
    %p76 = por %p74, %p75
    %p77 = scmp.ne.s32.totalorder %s68, %s69
    %p78 = scmp.eq.s32.totalorder %s16, 0
    %p79 = por %p77, %p78
    %p80 = scmp.ne.s32.totalorder %s68, %s69
    %p81 = scmp.eq.s32.totalorder %s17, 1
    %p82 = por %p80, %p81
    %p84 = scmp.ne.s32.totalorder %s69, %s83
    %p85 = scmp.eq.s32.totalorder %s17, 0
    %p86 = por %p84, %p85
    %s87 = ssub.s32 %s11, %s18
    %p88 = scmp.eq.s32.totalorder %s87, 0
    %s90 = sadd.s32 %s89, 1
    %s91 = scalar_select %p88, %s89, %s90
    %p94 = pneg %p88
    %p95 = scmp.eq.s32.totalorder %s11, 1
    %p96 = por %p94, %p95
    %p97 = scmp.ne.s32.totalorder %s89, %s92
    %p98 = scmp.eq.s32.totalorder %s11, 0
    %p99 = por %p97, %p98
    %p100 = scmp.ne.s32.totalorder %s89, %s92
    %p101 = scmp.eq.s32.totalorder %s16, 1
    %p102 = por %p100, %p101
    %p103 = scmp.ne.s32.totalorder %s92, %s93
    %p104 = scmp.eq.s32.totalorder %s16, 0
    %p105 = por %p103, %p104
    %p106 = scmp.ne.s32.totalorder %s92, %s93
    %p107 = scmp.eq.s32.totalorder %s17, 1
    %p108 = por %p106, %p107
    %p110 = scmp.ne.s32.totalorder %s93, %s109
    %p111 = scmp.eq.s32.totalorder %s17, 0
    %p112 = por %p110, %p111
    %s114 = sadd.s32 %s113, 1
    %p117 = scmp.eq.s32.totalorder %s11, 1
    %p118 = scmp.ne.s32.totalorder %s113, %s115
    %p119 = scmp.eq.s32.totalorder %s11, 0
    %p120 = por %p118, %p119
    %p121 = scmp.ne.s32.totalorder %s113, %s115
    %p122 = scmp.eq.s32.totalorder %s16, 1
    %p123 = por %p121, %p122
    %p124 = scmp.ne.s32.totalorder %s115, %s116
    %p125 = scmp.eq.s32.totalorder %s16, 0
    %p126 = por %p124, %p125
    %p127 = scmp.ne.s32.totalorder %s115, %s116
    %p128 = scmp.eq.s32.totalorder %s17, 1
    %p129 = por %p127, %p128
    %p131 = scmp.ne.s32.totalorder %s116, %s130
    %p132 = scmp.eq.s32.totalorder %s17, 0
    %p133 = por %p131, %p132
    %s134 = ssub.s32 %s11, %s18
    %p135 = scmp.eq.s32.totalorder %s134, 0
    %s137 = sadd.s32 %s136, 1
    %s138 = scalar_select %p135, %s136, %s137
    %p141 = pneg %p135
    %p142 = scmp.eq.s32.totalorder %s11, 1
    %p143 = por %p141, %p142
    %p144 = scmp.ne.s32.totalorder %s136, %s139
    %p145 = scmp.eq.s32.totalorder %s11, 0
    %p146 = por %p144, %p145
    %p147 = scmp.ne.s32.totalorder %s136, %s139
    %p148 = scmp.eq.s32.totalorder %s16, 1
    %p149 = por %p147, %p148
    %p150 = scmp.ne.s32.totalorder %s139, %s140
    %p151 = scmp.eq.s32.totalorder %s16, 0
    %p152 = por %p150, %p151
    %p153 = scmp.ne.s32.totalorder %s139, %s140
    %p154 = scmp.eq.s32.totalorder %s17, 1
    %p155 = por %p153, %p154
    %p157 = scmp.ne.s32.totalorder %s140, %s156
    %p158 = scmp.eq.s32.totalorder %s17, 0
    %p159 = por %p157, %p158
    %p160 = scmp.le.s32.totalorder 1, %s11
    %p161 = scmp.lt.s32.totalorder %s11, 3
    %p162 = pnand %p160, %p161
    %p163 = pneg %p162
    // Predicated region
    $region9: #{_lambda_.30} parent=5 // pred_check
      _
    $region10: #{_lambda_.30} parent=5 // pred_check_branch
      %165 = sbr.rel (%p162) target = $region12
    $region11: #{_lambda_.30} parent=5 // pred_region
      %s166 = ssub.s32 %s11, 1
      // Predicated region
      $region13: #{_lambda_.30} parent=11 // pred_check
        %p167 = pneg %p58
      $region14: #{_lambda_.30} parent=11 // pred_check_branch
        %169 = sbr.rel (%p167) target = $region16
      $region15: #{_lambda_.30} parent=11 // pred_region
        _
      $region16: #{_lambda_.30} parent=11 // pred_fallthru
        _
      // Predicated region
      $region17: #{_lambda_.30} parent=11 // pred_check
        %p170 = pneg %p79
      $region18: #{_lambda_.30} parent=11 // pred_check_branch
        %172 = sbr.rel (%p170) target = $region20
      $region19: #{_lambda_.30} parent=11 // pred_region
        _
      $region20: #{_lambda_.30} parent=11 // pred_fallthru
        _
      // Predicated region
      $region21: #{_lambda_.30} parent=11 // pred_check
        %p173 = pneg %p126
      $region22: #{_lambda_.30} parent=11 // pred_check_branch
        %175 = sbr.rel (%p173) target = $region24
      $region23: #{_lambda_.30} parent=11 // pred_region
        _
      $region24: #{_lambda_.30} parent=11 // pred_fallthru
        _
    $region12: #{_lambda_.30} parent=5 // pred_fallthru
      _
    %p176 = scmp.lt.s32.totalorder %s11, 2
    // Predicated region
    $region25: #{_lambda_.30} parent=5 // pred_check
      %p177 = pneg %p176
    $region26: #{_lambda_.30} parent=5 // pred_check_branch
      %179 = sbr.rel (%p177) target = $region28
    $region27: #{_lambda_.30} parent=5 // pred_region
      // Predicated region
      $region29: #{_lambda_.30} parent=27 // pred_check
        %p180 = pneg %p31
      $region30: #{_lambda_.30} parent=27 // pred_check_branch
        %182 = sbr.rel (%p180) target = $region32
      $region31: #{_lambda_.30} parent=27 // pred_region
        %p183 = scmp.lt.s32.totalorder %s11, 1
        %s184 = scalar_select %p183, %s11, 1
        %s185 = smul.addr %s184, 9
        %s186 = smul.addr %s185, 4
        %s187 = scalar_lea.vmem %s0, %s186
      $region32: #{_lambda_.30} parent=27 // pred_fallthru
        _
      // Predicated region
      $region33: #{_lambda_.30} parent=27 // pred_check
        %p188 = pneg %p99
      $region34: #{_lambda_.30} parent=27 // pred_check_branch
        %190 = sbr.rel (%p188) target = $region36
      $region35: #{_lambda_.30} parent=27 // pred_region
        %p191 = scmp.lt.s32.totalorder %s11, 1
        %s192 = scalar_select %p191, %s11, 1
        %s193 = smul.addr %s192, 2
        %s194 = smul.addr %s193, 4
        %s195 = scalar_lea.vmem %s3, %s194
      $region36: #{_lambda_.30} parent=27 // pred_fallthru
        _
    $region28: #{_lambda_.30} parent=5 // pred_fallthru
      _
    %p196 = scmp.le.s32.totalorder 1, %s11
    %p197 = scmp.lt.s32.totalorder %s11, 3
    %p198 = pnand %p196, %p197
    %p199 = pneg %p198
    // Predicated region
    $region37: #{_lambda_.30} parent=5 // pred_check
      _
    $region38: #{_lambda_.30} parent=5 // pred_check_branch
      %201 = sbr.rel (%p198) target = $region40
    $region39: #{_lambda_.30} parent=5 // pred_region
      %s202 = ssub.s32 %s11, 1
      %p203 = scmp.lt.s32.totalorder %s16, 1
      %s204 = scalar_select %p203, %s16, 1
      %s205 = smul.addr %s204, 9
      %s206 = smul.addr %s205, 4
      %s207 = scalar_lea.vmem %s0, %s206
      %p208 = pneg %p37
      %p209 = pneg %p34
      %p210 = pneg %p58
      %p211 = pneg %p55
      %p212 = pneg %p79
      %p213 = pneg %p76
      %p214 = scmp.lt.s32.totalorder %s16, 1
      %s215 = scalar_select %p214, %s16, 1
      %s216 = smul.addr %s215, 2
      %s217 = smul.addr %s216, 4
      %s218 = scalar_lea.vmem %s3, %s217
      %p219 = pneg %p105
      %p220 = pneg %p102
      %p221 = pneg %p126
      %p222 = pneg %p123
      %p223 = pneg %p152
      %p224 = pneg %p149
      %p225 = scmp.lt.s32.totalorder %s16, 1
      %s226 = scalar_select %p225, %s16, 1
      %s227 = smul.addr %s226, 4
      %s228 = scalar_lea.vmem %s5, %s227
      %p229 = scmp.lt.s32.totalorder %s16, 1
      %s230 = scalar_select %p229, %s16, 1
      %s231 = smul.addr %s230, 9
      %s232 = smul.addr %s231, 4
      %s233 = scalar_lea.vmem %s0, %s232
      %p234 = scmp.lt.s32.totalorder %s16, 1
      %s235 = scalar_select %p234, %s16, 1
      %s236 = smul.addr %s235, 2
      %s237 = smul.addr %s236, 4
      %s238 = scalar_lea.vmem %s3, %s237
      %p239 = scmp.lt.s32.totalorder %s16, 1
      %s240 = scalar_select %p239, %s16, 1
      %s241 = smul.addr %s240, 4
      %s242 = scalar_lea.vmem %s5, %s241
      %v244 = vld [vmem:[%s1] sm:$0xf]
      %v245 = vld [vmem:[%s233] sm:$0xf]
      %v246 = vld [vmem:[%s233 + $0x4] sm:$0xf]
      %v247 = vld [vmem:[%s233 + $0x8] sm:$0xf]
      %v248 = vld [vmem:[%s233 + $0xc] sm:$0xf]
      %v249 = vld [vmem:[%s233 + $0x10] sm:$0xf]
      %v250 = vld [vmem:[%s233 + $0x14] sm:$0xf]
      %v251 = vld [vmem:[%s233 + $0x18] sm:$0xf]
      %v252 = vld [vmem:[%s233 + $0x1c] sm:$0xf]
      %v253 = vld [vmem:[%s233 + $0x20] sm:$0xf]
      %v254 = vld [vmem:[%s2] sm:$0xff]
      %256 = vset.pattern.permute.xlu0 0
      %257 = vperm.xlu0 %256, %v254
      %v258 = vpop.permute.xlu0 %257
      %v269 = vunpack.c.l.b16 %v245
      %v270 = vunpack.c.l.b16 %v246
      %v271 = vunpack.c.l.b16 %v247
      %v272 = vunpack.c.l.b16 %v248
      %v273 = vunpack.c.l.b16 %v249
      %v274 = vunpack.c.l.b16 %v250
      %v275 = vunpack.c.l.b16 %v251
      %v276 = vunpack.c.l.b16 %v252
      %v277 = vunpack.c.l.b16 %v253
      %v278 = vpack.c.b16 %v270, %v269
      %v279 = vpack.c.b16 %v272, %v271
      %v280 = vpack.c.b16 %v274, %v273
      %v281 = vpack.c.b16 %v276, %v275
      %v282 = vpack.c.b16 %v277, %v277
      %vm287 = vcmask 588800
      %v289 = vsel %vm287, %v244, 0
      %vm291 = vcmask 1043456
      %v293 = vsel %vm291, %v282, 0
      %295 = vmatpush.bf16.msra.mxu0 0
      %296 = vmatpush.bf16.msra.mxu0 0
      %297 = vmatpush.bf16.msra.mxu0 0
      %298 = vmatpush.bf16.msra.mxu0 %v293
      %299 = vmatpush.bf16.msra.mxu0 %v281
      %300 = vmatpush.bf16.msra.mxu0 %v280
      %301 = vmatpush.bf16.msra.mxu0 %v279
      %302 = vmatpush.bf16.msra.mxu0 %v278
      %303 = vmatmul.bf16.gmra.mxu0 %v289
      %v304 = vpop.f32.mrf.mxu0
      %v305 = vadd.f32 %v258, %v304
      %v306 = vpop.f32.mrf.mxu0
      %307 = vdwg.mxu0
      %vm308 = vcmask 523264
      %v309 = vsel %vm308, %v305, 0.0
      %310 = vadd.xlane.f32.xlu0 %v309
      %v311 = vpop.xlane.xlu0 %310
      %v312 = vrot.slane %v311, 4
      %v313 = vadd.f32 %v311, %v312
      %v314 = vrot.slane %v313, 2
      %v315 = vadd.f32 %v313, %v314
      %v316 = vrot.slane %v315, 1
      %v317 = vadd.f32 %v315, %v316
      %s318 = vtos %v317
      %v319 = vstv %s318
      %v320 = vrcp.pop 512.0
      %v321 = vmul.f32 512.0, %v320
      %v322 = vsub.f32 1.0, %v321
      %v323 = vmul.f32 %v320, %v322
      %v324 = vadd.f32 %v320, %v323
      %vm325 = vweird.f32 %v320
      %v326 = vsel %vm325, %v320, %v324
      %v327 = vmul.f32 %v319, %v326
      %v328 = vmul.f32 %v305, %v305
      %v329 = vsel %vm308, %v328, 0.0
      %330 = vadd.xlane.f32.xlu0 %v329
      %v331 = vpop.xlane.xlu0 %330
      %v332 = vrot.slane %v331, 4
      %v333 = vadd.f32 %v331, %v332
      %v334 = vrot.slane %v333, 2
      %v335 = vadd.f32 %v333, %v334
      %v336 = vrot.slane %v335, 1
      %v337 = vadd.f32 %v335, %v336
      %s338 = vtos %v337
      %v339 = vstv %s338
      %v340 = vmul.f32 %v339, %v326
      %v341 = vmul.f32 %v327, %v327
      %v342 = vsub.f32 %v340, %v341
      %v343 = vmax.f32 %v342, 0.0
      %v344 = vadd.f32 %v343, 1e-05
      %v345 = vrsqrt.pop %v344
      %v346 = vmul.f32 %v345, %v344
      %v347 = vmul.f32 %v346, %v345
      %v348 = vmul.f32 0.5, %v347
      %v349 = vsub.f32 1.5, %v348
      %v350 = vmul.f32 %v345, %v349
      %vm351 = vweird.f32 %v344
      %vm352 = vweird.f32 %v345
      %vm353 = vmor %vm351, %vm352
      %v354 = vsel %vm353, %v345, %v350
      %v355 = vmul.f32 %v254, %v354
      %v356 = vmul.f32 %v327, %v355
      %358 = vrot.lane.b32.xlu0 %v356, 1
      %v359 = vpop.permute.xlu0 %358
      %v361 = vsub.f32 %v254, %v359
      %363 = vset.pattern.permute.xlu0 1
      %364 = vperm.xlu0 %363, %v355
      %v365 = vpop.permute.xlu0 %364
      %v367 = vmul.f32 %v305, %v365
      %369 = vset.pattern.permute.xlu0 2
      %370 = vperm.xlu0 %369, %v361
      %v371 = vpop.permute.xlu0 %370
      %v373 = vadd.f32 %v367, %v371
      %v374 = vld [vmem:[%s4] sm:$0xf]
      %v375 = vld [vmem:[%s238] sm:$0xf]
      %v376 = vld [vmem:[%s238 + $0x4] sm:$0xf]
      %v379 = vunpack.c.l.b16 %v375
      %v380 = vunpack.c.l.b16 %v376
      %v381 = vpack.c.b16 %v380, %v379
      %vm383 = vcmask 130048
      %v385 = vsel %vm383, %v374, 0
      %387 = vmatpush.bf16.msra.mxu0 0
      %388 = vmatpush.bf16.msra.mxu0 0
      %389 = vmatpush.bf16.msra.mxu0 0
      %390 = vmatpush.bf16.msra.mxu0 0
      %391 = vmatpush.bf16.msra.mxu0 0
      %392 = vmatpush.bf16.msra.mxu0 0
      %393 = vmatpush.bf16.msra.mxu0 0
      %394 = vmatpush.bf16.msra.mxu0 %v381
      %395 = vmatmul.bf16.gmra.mxu0 %v385
      %v396 = vpop.f32.mrf.mxu0
      %v397 = vadd.f32 0.0, %v396
      %v398 = vpop.f32.mrf.mxu0
      %399 = vdwg.mxu0
      %v400 = vadd.f32 %v373, %v397
      %401 = vset.pattern.permute.xlu0 3
      %402 = vperm.xlu0 %401, %v254
      %v403 = vpop.permute.xlu0 %402
      %v405 = vadd.f32 %v400, %v403
      %v406 = vmax.f32 %v405, 0.0
      %v407 = vpack.c.bf16 %v406, %v406
      %vm408 = vcmask 519168
      %409 = vst.msk [vmem:[%s242] sm:$0xf] %vm408, %v407
      %p410 = scmp.lt.s32.totalorder %s16, 1
      %s411 = scalar_select %p410, %s16, 1
      %s412 = smul.addr %s411, 4
      %s413 = scalar_lea.vmem %s5, %s412
      // Predicated region
      $region41: #{_lambda_.30} parent=39 // pred_check
        %p414 = pneg %p149
      $region42: #{_lambda_.30} parent=39 // pred_check_branch
        %416 = sbr.rel (%p414) target = $region44
      $region43: #{_lambda_.30} parent=39 // pred_region
        _
      $region44: #{_lambda_.30} parent=39 // pred_fallthru
        _
    $region40: #{_lambda_.30} parent=5 // pred_fallthru
      _
    %p417 = scmp.le.s32.totalorder 2, %s11
    // Predicated region
    $region45: #{_lambda_.30} parent=5 // pred_check
      %p418 = pneg %p417
    $region46: #{_lambda_.30} parent=5 // pred_check_branch
      %420 = sbr.rel (%p418) target = $region48
    $region47: #{_lambda_.30} parent=5 // pred_region
      %s421 = ssub.s32 %s11, 2
      // Predicated region
      $region49: #{_lambda_.30} parent=47 // pred_check
        %p422 = pneg %p155
      $region50: #{_lambda_.30} parent=47 // pred_check_branch
        %424 = sbr.rel (%p422) target = $region52
      $region51: #{_lambda_.30} parent=47 // pred_region
        %p425 = scmp.lt.s32.totalorder %s17, 1
        %s426 = scalar_select %p425, %s17, 1
        %s427 = smul.addr %s426, 4
        %s428 = scalar_lea.vmem %s5, %s427
      $region52: #{_lambda_.30} parent=47 // pred_fallthru
        _
    $region48: #{_lambda_.30} parent=5 // pred_fallthru
      _
  $region6: #{_lambda_.30} parent=0 // loop_footer
    %s15 = sadd.s32 1, %s11
  $region7: #{_lambda_.30} parent=0 // loop_footer_branch
    %10 = sbr.rel target = $region3
  $region8: #{_lambda_.30} parent=0 // loop_exit
    _

// kernel: _lambda_.29
$region0: #{_lambda_.29}
  #allocation0 [shape = 'u32[]', space=smem, size = 0x4, offset = 0x4, fixed_abs, tag = 'smem constant byte address 0x4 - core index']
  #allocation1 [shape = 'u32[72,128]{1,0:T(1,128)}', space=vmem, size = 0x9000, scoped, tag = 'internal scratch']
  %s0 = inlined_call_operand.vmem [shape: bf16[2,144,64], index: 0, kind: input, shape index: {}]
  %s1 = inlined_call_operand.vmem [shape: bf16[8,144], index: 1, kind: input, shape index: {}]
  %s2 = inlined_call_operand.vmem [shape: f32[8,4], index: 2, kind: input, shape index: {}]
  %s3 = inlined_call_operand.vmem [shape: bf16[2,8,64], index: 3, kind: output, shape index: {}]
  %s4 = sld [smem:[#allocation0]]
  $region45: #{_lambda_.29} parent=0
    _
  %s6 = ssub.s32 1, %s4
  %s7 = scalar_select 0, %s6, %s4
  loop: start=0, step=1, limit=4
  $region2: #{_lambda_.29} parent=0 // loop_pre_header
    _
  $region3: #{_lambda_.29} parent=0 // loop_header
    %s9 = sphi 0, %s13
    %p10 = scmp.ge.s32.totalorder %s9, 4
    %s19 = sphi 0, %s21
    %s22 = sphi 0, %s19
    %s23 = sphi 0, %s22
    %s39 = sphi 0, %s23
    %s43 = sphi 0, %s43
    %s45 = sphi 0, %s43
    %s46 = sphi 0, %s45
    %s60 = sphi 0, %s46
    %s64 = sphi 0, %s64
    %s66 = sphi 0, %s64
    %s67 = sphi 0, %s66
    %s81 = sphi 0, %s67
    %s87 = sphi 0, %s89
    %s90 = sphi 0, %s87
    %s91 = sphi 0, %s90
    %s107 = sphi 0, %s91
  $region4: #{_lambda_.29} parent=0 // loop_header_branch
    %12 = sbr.rel (%p10) target = $region8
  $region5: #{_lambda_.29} parent=0 // loop_body
    %s14 = ssub.s32 %s9, 1
    %s15 = ssub.s32 %s9, 2
    %s16 = sadd.s32 %s9, 1
    %s17 = ssub.s32 %s9, %s16
    %p18 = scmp.eq.s32.totalorder %s17, 0
    %s20 = sadd.s32 %s19, 1
    %s21 = scalar_select %p18, %s19, %s20
    %p24 = pneg %p18
    %p25 = scmp.eq.s32.totalorder %s9, 1
    %p26 = por %p24, %p25
    %p27 = scmp.ne.s32.totalorder %s19, %s22
    %p28 = scmp.eq.s32.totalorder %s9, 0
    %p29 = por %p27, %p28
    %p30 = scmp.ne.s32.totalorder %s19, %s22
    %p31 = scmp.eq.s32.totalorder %s14, 1
    %p32 = por %p30, %p31
    %p33 = scmp.ne.s32.totalorder %s22, %s23
    %p34 = scmp.eq.s32.totalorder %s14, 0
    %p35 = por %p33, %p34
    %p36 = scmp.ne.s32.totalorder %s22, %s23
    %p37 = scmp.eq.s32.totalorder %s15, 1
    %p38 = por %p36, %p37
    %p40 = scmp.ne.s32.totalorder %s23, %s39
    %p41 = scmp.eq.s32.totalorder %s15, 0
    %p42 = por %p40, %p41
    %s44 = sadd.s32 %s43, 1
    %p47 = scmp.eq.s32.totalorder %s9, 1
    %p48 = scmp.ne.s32.totalorder %s43, %s45
    %p49 = scmp.eq.s32.totalorder %s9, 0
    %p50 = por %p48, %p49
    %p51 = scmp.ne.s32.totalorder %s43, %s45
    %p52 = scmp.eq.s32.totalorder %s14, 1
    %p53 = por %p51, %p52
    %p54 = scmp.ne.s32.totalorder %s45, %s46
    %p55 = scmp.eq.s32.totalorder %s14, 0
    %p56 = por %p54, %p55
    %p57 = scmp.ne.s32.totalorder %s45, %s46
    %p58 = scmp.eq.s32.totalorder %s15, 1
    %p59 = por %p57, %p58
    %p61 = scmp.ne.s32.totalorder %s46, %s60
    %p62 = scmp.eq.s32.totalorder %s15, 0
    %p63 = por %p61, %p62
    %s65 = sadd.s32 %s64, 1
    %p68 = scmp.eq.s32.totalorder %s9, 1
    %p69 = scmp.ne.s32.totalorder %s64, %s66
    %p70 = scmp.eq.s32.totalorder %s9, 0
    %p71 = por %p69, %p70
    %p72 = scmp.ne.s32.totalorder %s64, %s66
    %p73 = scmp.eq.s32.totalorder %s14, 1
    %p74 = por %p72, %p73
    %p75 = scmp.ne.s32.totalorder %s66, %s67
    %p76 = scmp.eq.s32.totalorder %s14, 0
    %p77 = por %p75, %p76
    %p78 = scmp.ne.s32.totalorder %s66, %s67
    %p79 = scmp.eq.s32.totalorder %s15, 1
    %p80 = por %p78, %p79
    %p82 = scmp.ne.s32.totalorder %s67, %s81
    %p83 = scmp.eq.s32.totalorder %s15, 0
    %p84 = por %p82, %p83
    %s85 = ssub.s32 %s9, %s16
    %p86 = scmp.eq.s32.totalorder %s85, 0
    %s88 = sadd.s32 %s87, 1
    %s89 = scalar_select %p86, %s87, %s88
    %p92 = pneg %p86
    %p93 = scmp.eq.s32.totalorder %s9, 1
    %p94 = por %p92, %p93
    %p95 = scmp.ne.s32.totalorder %s87, %s90
    %p96 = scmp.eq.s32.totalorder %s9, 0
    %p97 = por %p95, %p96
    %p98 = scmp.ne.s32.totalorder %s87, %s90
    %p99 = scmp.eq.s32.totalorder %s14, 1
    %p100 = por %p98, %p99
    %p101 = scmp.ne.s32.totalorder %s90, %s91
    %p102 = scmp.eq.s32.totalorder %s14, 0
    %p103 = por %p101, %p102
    %p104 = scmp.ne.s32.totalorder %s90, %s91
    %p105 = scmp.eq.s32.totalorder %s15, 1
    %p106 = por %p104, %p105
    %p108 = scmp.ne.s32.totalorder %s91, %s107
    %p109 = scmp.eq.s32.totalorder %s15, 0
    %p110 = por %p108, %p109
    %p111 = scmp.le.s32.totalorder 1, %s9
    %p112 = scmp.lt.s32.totalorder %s9, 3
    %p113 = pnand %p111, %p112
    %p114 = pneg %p113
    // Predicated region
    $region9: #{_lambda_.29} parent=5 // pred_check
      _
    $region10: #{_lambda_.29} parent=5 // pred_check_branch
      %116 = sbr.rel (%p113) target = $region12
    $region11: #{_lambda_.29} parent=5 // pred_region
      %s117 = ssub.s32 %s9, 1
      // Predicated region
      $region13: #{_lambda_.29} parent=11 // pred_check
        %p118 = pneg %p56
      $region14: #{_lambda_.29} parent=11 // pred_check_branch
        %120 = sbr.rel (%p118) target = $region16
      $region15: #{_lambda_.29} parent=11 // pred_region
        _
      $region16: #{_lambda_.29} parent=11 // pred_fallthru
        _
      // Predicated region
      $region17: #{_lambda_.29} parent=11 // pred_check
        %p121 = pneg %p77
      $region18: #{_lambda_.29} parent=11 // pred_check_branch
        %123 = sbr.rel (%p121) target = $region20
      $region19: #{_lambda_.29} parent=11 // pred_region
        _
      $region20: #{_lambda_.29} parent=11 // pred_fallthru
        _
    $region12: #{_lambda_.29} parent=5 // pred_fallthru
      _
    %p124 = scmp.lt.s32.totalorder %s9, 2
    // Predicated region
    $region21: #{_lambda_.29} parent=5 // pred_check
      %p125 = pneg %p124
    $region22: #{_lambda_.29} parent=5 // pred_check_branch
      %127 = sbr.rel (%p125) target = $region24
    $region23: #{_lambda_.29} parent=5 // pred_region
      // Predicated region
      $region25: #{_lambda_.29} parent=23 // pred_check
        %p128 = pneg %p29
      $region26: #{_lambda_.29} parent=23 // pred_check_branch
        %130 = sbr.rel (%p128) target = $region28
      $region27: #{_lambda_.29} parent=23 // pred_region
        %p131 = scmp.lt.s32.totalorder %s9, 1
        %s132 = scalar_select %p131, %s9, 1
        %s133 = smul.addr %s132, 18
        %s134 = smul.addr %s133, 4
        %s135 = scalar_lea.vmem %s0, %s134
      $region28: #{_lambda_.29} parent=23 // pred_fallthru
        _
    $region24: #{_lambda_.29} parent=5 // pred_fallthru
      _
    %p136 = scmp.le.s32.totalorder 1, %s9
    %p137 = scmp.lt.s32.totalorder %s9, 3
    %p138 = pnand %p136, %p137
    %p139 = pneg %p138
    // Predicated region
    $region29: #{_lambda_.29} parent=5 // pred_check
      _
    $region30: #{_lambda_.29} parent=5 // pred_check_branch
      %141 = sbr.rel (%p138) target = $region32
    $region31: #{_lambda_.29} parent=5 // pred_region
      %s142 = ssub.s32 %s9, 1
      %p143 = scmp.lt.s32.totalorder %s14, 1
      %s144 = scalar_select %p143, %s14, 1
      %s145 = smul.addr %s144, 18
      %s146 = smul.addr %s145, 4
      %s147 = scalar_lea.vmem %s0, %s146
      %p148 = pneg %p35
      %p149 = pneg %p32
      %p150 = pneg %p56
      %p151 = pneg %p53
      %p152 = pneg %p77
      %p153 = pneg %p74
      %p154 = pneg %p103
      %p155 = pneg %p100
      %p156 = scmp.lt.s32.totalorder %s14, 1
      %s157 = scalar_select %p156, %s14, 1
      %s158 = smul.addr %s157, 4
      %s159 = scalar_lea.vmem %s3, %s158
      %p160 = scmp.lt.s32.totalorder %s14, 1
      %s161 = scalar_select %p160, %s14, 1
      %s162 = smul.addr %s161, 18
      %s163 = smul.addr %s162, 4
      %s164 = scalar_lea.vmem %s0, %s163
      %p165 = scmp.lt.s32.totalorder %s14, 1
      %s166 = scalar_select %p165, %s14, 1
      %s167 = smul.addr %s166, 4
      %s168 = scalar_lea.vmem %s3, %s167
      %v170 = vld [vmem:[%s1] sm:$0xff]
      %v171 = vld [vmem:[%s164] sm:$0xf]
      %v172 = vld [vmem:[%s164 + $0x4] sm:$0xf]
      %v173 = vld [vmem:[%s164 + $0x8] sm:$0xf]
      %v174 = vld [vmem:[%s164 + $0xc] sm:$0xf]
      %v175 = vld [vmem:[%s164 + $0x10] sm:$0xf]
      %v176 = vld [vmem:[%s164 + $0x14] sm:$0xf]
      %v177 = vld [vmem:[%s164 + $0x18] sm:$0xf]
      %v178 = vld [vmem:[%s164 + $0x1c] sm:$0xf]
      %v179 = vld [vmem:[%s164 + $0x20] sm:$0xf]
      %v180 = vld [vmem:[%s164 + $0x24] sm:$0xf]
      %v181 = vld [vmem:[%s164 + $0x28] sm:$0xf]
      %v182 = vld [vmem:[%s164 + $0x2c] sm:$0xf]
      %v183 = vld [vmem:[%s164 + $0x30] sm:$0xf]
      %v184 = vld [vmem:[%s164 + $0x34] sm:$0xf]
      %v185 = vld [vmem:[%s164 + $0x38] sm:$0xf]
      %v186 = vld [vmem:[%s164 + $0x3c] sm:$0xf]
      %v187 = vld [vmem:[%s164 + $0x40] sm:$0xf]
      %v188 = vld [vmem:[%s164 + $0x44] sm:$0xf]
      %v189 = vld [vmem:[%s2] sm:$0xff]
      %191 = vset.pattern.permute.xlu0 0
      %192 = vperm.xlu0 %191, %v189
      %v193 = vpop.permute.xlu0 %192
      %v196 = vunpack.c.l.b16 %v170
      %v197 = vunpack.c.h.b16 %v170
      %v198 = vpack.c.b16 %v196, %v196
      %v199 = vpack.c.b16 %v197, %v197
      %v219 = vunpack.c.l.b16 %v171
      %v220 = vunpack.c.l.b16 %v172
      %v221 = vunpack.c.l.b16 %v173
      %v222 = vunpack.c.l.b16 %v174
      %v223 = vunpack.c.l.b16 %v175
      %v224 = vunpack.c.l.b16 %v176
      %v225 = vunpack.c.l.b16 %v177
      %v226 = vunpack.c.l.b16 %v178
      %v227 = vunpack.c.l.b16 %v179
      %v228 = vunpack.c.l.b16 %v180
      %v229 = vunpack.c.l.b16 %v181
      %v230 = vunpack.c.l.b16 %v182
      %v231 = vunpack.c.l.b16 %v183
      %v232 = vunpack.c.l.b16 %v184
      %v233 = vunpack.c.l.b16 %v185
      %v234 = vunpack.c.l.b16 %v186
      %v235 = vunpack.c.l.b16 %v187
      %v236 = vunpack.c.l.b16 %v188
      %v237 = vpack.c.b16 %v220, %v219
      %v238 = vpack.c.b16 %v222, %v221
      %v239 = vpack.c.b16 %v224, %v223
      %v240 = vpack.c.b16 %v226, %v225
      %v241 = vpack.c.b16 %v228, %v227
      %v242 = vpack.c.b16 %v230, %v229
      %v243 = vpack.c.b16 %v232, %v231
      %v244 = vpack.c.b16 %v234, %v233
      %v245 = vpack.c.b16 %v236, %v235
      %vm255 = vcmask 130048
      %v257 = vsel %vm255, %v199, 0
      %259 = vmatpush.bf16.msra.mxu0 %v244
      %260 = vmatpush.bf16.msra.mxu0 %v243
      %261 = vmatpush.bf16.msra.mxu0 %v242
      %262 = vmatpush.bf16.msra.mxu0 %v241
      %263 = vmatpush.bf16.msra.mxu0 %v240
      %264 = vmatpush.bf16.msra.mxu0 %v239
      %265 = vmatpush.bf16.msra.mxu0 %v238
      %266 = vmatpush.bf16.msra.mxu0 %v237
      %267 = vmatmul.bf16.gmra.mxu0 %v198
      %v268 = vpop.f32.mrf.mxu0
      %v269 = vadd.f32 %v193, %v268
      %v270 = vpop.f32.mrf.mxu0
      %271 = vdwg.mxu0
      %272 = vmatpush.bf16.msra.mxu0 0
      %273 = vmatpush.bf16.msra.mxu0 0
      %274 = vmatpush.bf16.msra.mxu0 0
      %275 = vmatpush.bf16.msra.mxu0 0
      %276 = vmatpush.bf16.msra.mxu0 0
      %277 = vmatpush.bf16.msra.mxu0 0
      %278 = vmatpush.bf16.msra.mxu0 0
      %279 = vmatpush.bf16.msra.mxu0 %v245
      %280 = vmatmul.bf16.gmra.mxu0 %v257
      %v281 = vpop.f32.mrf.mxu0
      %v282 = vadd.f32 %v269, %v281
      %v283 = vpop.f32.mrf.mxu0
      %284 = vdwg.mxu0
      %vm285 = vcmask 523264
      %v286 = vsel %vm285, %v282, 0.0
      %287 = vadd.xlane.f32.xlu0 %v286
      %v288 = vpop.xlane.xlu0 %287
      %v289 = vrot.slane %v288, 4
      %v290 = vadd.f32 %v288, %v289
      %v291 = vrot.slane %v290, 2
      %v292 = vadd.f32 %v290, %v291
      %v293 = vrot.slane %v292, 1
      %v294 = vadd.f32 %v292, %v293
      %s295 = vtos %v294
      %v296 = vstv %s295
      %v297 = vrcp.pop 512.0
      %v298 = vmul.f32 512.0, %v297
      %v299 = vsub.f32 1.0, %v298
      %v300 = vmul.f32 %v297, %v299
      %v301 = vadd.f32 %v297, %v300
      %vm302 = vweird.f32 %v297
      %v303 = vsel %vm302, %v297, %v301
      %v304 = vmul.f32 %v296, %v303
      %v305 = vmul.f32 %v282, %v282
      %v306 = vsel %vm285, %v305, 0.0
      %307 = vadd.xlane.f32.xlu0 %v306
      %v308 = vpop.xlane.xlu0 %307
      %v309 = vrot.slane %v308, 4
      %v310 = vadd.f32 %v308, %v309
      %v311 = vrot.slane %v310, 2
      %v312 = vadd.f32 %v310, %v311
      %v313 = vrot.slane %v312, 1
      %v314 = vadd.f32 %v312, %v313
      %s315 = vtos %v314
      %v316 = vstv %s315
      %v317 = vmul.f32 %v316, %v303
      %v318 = vmul.f32 %v304, %v304
      %v319 = vsub.f32 %v317, %v318
      %v320 = vmax.f32 %v319, 0.0
      %v321 = vadd.f32 %v320, 1e-05
      %v322 = vrsqrt.pop %v321
      %v323 = vmul.f32 %v322, %v321
      %v324 = vmul.f32 %v323, %v322
      %v325 = vmul.f32 0.5, %v324
      %v326 = vsub.f32 1.5, %v325
      %v327 = vmul.f32 %v322, %v326
      %vm328 = vweird.f32 %v321
      %vm329 = vweird.f32 %v322
      %vm330 = vmor %vm328, %vm329
      %v331 = vsel %vm330, %v322, %v327
      %v332 = vmul.f32 %v189, %v331
      %v333 = vmul.f32 %v304, %v332
      %335 = vrot.lane.b32.xlu0 %v333, 1
      %v336 = vpop.permute.xlu0 %335
      %v338 = vsub.f32 %v189, %v336
      %340 = vset.pattern.permute.xlu0 1
      %341 = vperm.xlu0 %340, %v332
      %v342 = vpop.permute.xlu0 %341
      %v344 = vmul.f32 %v282, %v342
      %346 = vset.pattern.permute.xlu0 2
      %347 = vperm.xlu0 %346, %v338
      %v348 = vpop.permute.xlu0 %347
      %v350 = vadd.f32 %v344, %v348
      %v351 = vmax.f32 %v350, 0.0
      %v352 = vpack.c.bf16 %v351, %v351
      %vm353 = vcmask 519168
      %354 = vst.msk [vmem:[%s168] sm:$0xf] %vm353, %v352
      %p355 = scmp.lt.s32.totalorder %s14, 1
      %s356 = scalar_select %p355, %s14, 1
      %s357 = smul.addr %s356, 4
      %s358 = scalar_lea.vmem %s3, %s357
      // Predicated region
      $region33: #{_lambda_.29} parent=31 // pred_check
        %p359 = pneg %p100
      $region34: #{_lambda_.29} parent=31 // pred_check_branch
        %361 = sbr.rel (%p359) target = $region36
      $region35: #{_lambda_.29} parent=31 // pred_region
        _
      $region36: #{_lambda_.29} parent=31 // pred_fallthru
        _
    $region32: #{_lambda_.29} parent=5 // pred_fallthru
      _
    %p362 = scmp.le.s32.totalorder 2, %s9
    // Predicated region
    $region37: #{_lambda_.29} parent=5 // pred_check
      %p363 = pneg %p362
    $region38: #{_lambda_.29} parent=5 // pred_check_branch
      %365 = sbr.rel (%p363) target = $region40
    $region39: #{_lambda_.29} parent=5 // pred_region
      %s366 = ssub.s32 %s9, 2
      // Predicated region
      $region41: #{_lambda_.29} parent=39 // pred_check
        %p367 = pneg %p106
      $region42: #{_lambda_.29} parent=39 // pred_check_branch
        %369 = sbr.rel (%p367) target = $region44
      $region43: #{_lambda_.29} parent=39 // pred_region
        %p370 = scmp.lt.s32.totalorder %s15, 1
        %s371 = scalar_select %p370, %s15, 1
        %s372 = smul.addr %s371, 4
        %s373 = scalar_lea.vmem %s3, %s372
      $region44: #{_lambda_.29} parent=39 // pred_fallthru
        _
    $region40: #{_lambda_.29} parent=5 // pred_fallthru
      _
  $region6: #{_lambda_.29} parent=0 // loop_footer
    %s13 = sadd.s32 1, %s9
  $region7: #{_lambda_.29} parent=0 // loop_footer_branch
    %8 = sbr.rel target = $region3
  $region8: #{_lambda_.29} parent=0 // loop_exit
    _

// kernel: _lambda_.31
$region0: #{_lambda_.31}
  #allocation0 [shape = 'u32[]', space=smem, size = 0x4, offset = 0x4, fixed_abs, tag = 'smem constant byte address 0x4 - core index']
  #allocation1 [shape = 'u32[72,128]{1,0:T(1,128)}', space=vmem, size = 0x9000, scoped, tag = 'internal scratch']
  %s0 = inlined_call_operand.vmem [shape: bf16[8,128], index: 0, kind: input, shape index: {}]
  %s1 = inlined_call_operand.vmem [shape: bf16[24,8], index: 1, kind: input, shape index: {}]
  %s2 = inlined_call_operand.vmem [shape: f32[24,1], index: 2, kind: input, shape index: {}]
  %s3 = inlined_call_operand.vmem [shape: bf16[24,128], index: 3, kind: output, shape index: {}]
  %s4 = sld [smem:[#allocation0]]
  $region22: #{_lambda_.31} parent=0
    _
  %s6 = ssub.s32 1, %s4
  %s7 = scalar_select 0, %s6, %s4
  // Predicated region
  $region2: #{_lambda_.31} parent=0 // pred_check
    _
  $region3: #{_lambda_.31} parent=0 // pred_check_branch
    %9 = sbr.rel (0) target = $region5
  $region4: #{_lambda_.31} parent=0 // pred_region
    _
  $region5: #{_lambda_.31} parent=0 // pred_fallthru
    _
  // Predicated region
  $region6: #{_lambda_.31} parent=0 // pred_check
    _
  $region7: #{_lambda_.31} parent=0 // pred_check_branch
    %11 = sbr.rel (0) target = $region9
  $region8: #{_lambda_.31} parent=0 // pred_region
    _
  $region9: #{_lambda_.31} parent=0 // pred_fallthru
    _
  // Predicated region
  $region10: #{_lambda_.31} parent=0 // pred_check
    _
  $region11: #{_lambda_.31} parent=0 // pred_check_branch
    %13 = sbr.rel (0) target = $region13
  $region12: #{_lambda_.31} parent=0 // pred_region
    _
  $region13: #{_lambda_.31} parent=0 // pred_fallthru
    _
  %v15 = vld [vmem:[%s1] sm:$0xf]
  %v16 = vld [vmem:[%s1 + $0x4] sm:$0xf]
  %v17 = vld [vmem:[%s1 + $0x8] sm:$0xf]
  %v18 = vld [vmem:[%s0] sm:$0xf]
  %v19 = vld [vmem:[%s2] sm:$0xff]
  %v20 = vld [vmem:[%s2 + $0x8] sm:$0xff]
  %v21 = vld [vmem:[%s2 + $0x10] sm:$0xff]
  %23 = vset.pattern.permute.xlu0 0
  %24 = vperm.xlu0 %23, %v19
  %v25 = vpop.permute.xlu0 %24
  %28 = vset.pattern.permute.xlu0 0
  %29 = vperm.xlu0 %28, %v20
  %v30 = vpop.permute.xlu0 %29
  %33 = vset.pattern.permute.xlu0 0
  %34 = vperm.xlu0 %33, %v21
  %v35 = vpop.permute.xlu0 %34
  %v40 = vunpack.c.l.b16 %v15
  %v41 = vunpack.c.l.b16 %v16
  %v42 = vunpack.c.l.b16 %v17
  %v43 = vpack.c.b16 %v41, %v40
  %v44 = vpack.c.b16 %v42, %v42
  %vm45 = vcmask 64512
  %v47 = vsel %vm45, %v43, 0
  %v50 = vsel %vm45, %v44, 0
  %vm52 = vcmask 1043456
  %v54 = vsel %vm52, %v18, 0
  %56 = vmatpush.bf16.msra.mxu0 0
  %57 = vmatpush.bf16.msra.mxu0 0
  %58 = vmatpush.bf16.msra.mxu0 0
  %59 = vmatpush.bf16.msra.mxu0 0
  %60 = vmatpush.bf16.msra.mxu0 0
  %61 = vmatpush.bf16.msra.mxu0 0
  %62 = vmatpush.bf16.msra.mxu0 0
  %63 = vmatpush.bf16.msra.mxu0 %v54
  %64 = vmatmul.bf16.gmra.mxu0 %v47
  %v65 = vpop.f32.mrf.mxu0
  %v66 = vadd.f32 %v25, %v65
  %v67 = vpop.f32.mrf.mxu0
  %v68 = vadd.f32 %v30, %v67
  %69 = vmatmul.bf16.gmra.mxu0 %v50
  %v70 = vpop.f32.mrf.mxu0
  %v71 = vadd.f32 %v35, %v70
  %v72 = vpop.f32.mrf.mxu0
  %73 = vdwg.mxu0
  %v74 = vpack.c.bf16 %v66, %v66
  %v75 = vpack.c.bf16 %v68, %v68
  %v76 = vpack.c.bf16 %v71, %v71
  %77 = vst [vmem:[%s3] sm:$0xf] %v74
  %78 = vst [vmem:[%s3 + $0x4] sm:$0xf] %v75
  %79 = vst [vmem:[%s3 + $0x8] sm:$0xf] %v76
  // Predicated region
  $region14: #{_lambda_.31} parent=0 // pred_check
    _
  $region15: #{_lambda_.31} parent=0 // pred_check_branch
    %81 = sbr.rel (0) target = $region17
  $region16: #{_lambda_.31} parent=0 // pred_region
    _
  $region17: #{_lambda_.31} parent=0 // pred_fallthru
    _
  // Predicated region
  $region18: #{_lambda_.31} parent=0 // pred_check
    _
  $region19: #{_lambda_.31} parent=0 // pred_check_branch
    %83 = sbr.rel (0) target = $region21
  $region20: #{_lambda_.31} parent=0 // pred_region
    _
  $region21: #{_lambda_.31} parent=0 // pred_fallthru
    _

// kernel: _lambda_.32
$region0: #{_lambda_.32}
  #allocation0 [shape = 'u32[]', space=smem, size = 0x4, offset = 0x4, fixed_abs, tag = 'smem constant byte address 0x4 - core index']
  #allocation1 [shape = 'u32[72,128]{1,0:T(1,128)}', space=vmem, size = 0x9000, scoped, tag = 'internal scratch']
  %s0 = inlined_call_operand.vmem [shape: bf16[2,24,64], index: 0, kind: input, shape index: {}, may-alias: {0,1,2}]
  %s1 = inlined_call_operand.vmem [shape: bf16[2,24,64], index: 1, kind: input, shape index: {}, may-alias: {0,1,2}]
  %s2 = inlined_call_operand.vmem [shape: bf16[2,24,64], index: 2, kind: input, shape index: {}, may-alias: {0,1,2}]
  %s3 = inlined_call_operand.vmem [shape: bf16[2,8,64], index: 3, kind: output, shape index: {}]
  %s4 = sld [smem:[#allocation0]]
  $region45: #{_lambda_.32} parent=0
    _
  %s6 = ssub.s32 1, %s4
  %s7 = scalar_select 0, %s6, %s4
  loop: start=0, step=1, limit=4
  $region2: #{_lambda_.32} parent=0 // loop_pre_header
    _
  $region3: #{_lambda_.32} parent=0 // loop_header
    %s9 = sphi 0, %s13
    %p10 = scmp.ge.s32.totalorder %s9, 4
    %s16 = sphi 0, %s35
    %s17 = sphi 0, %s31
    %s18 = sphi 0, %s27
    %s19 = sphi 0, %s16
    %s20 = sphi 0, %s17
    %s21 = sphi 0, %s18
    %s22 = sphi 0, %s19
    %s23 = sphi 0, %s20
    %s24 = sphi 0, %s21
    %s42 = sphi 0, %s44
    %s45 = sphi 0, %s42
    %s46 = sphi 0, %s45
    %s62 = sphi 0, %s46
    %s72 = sphi 0, %s74
    %s75 = sphi 0, %s72
    %s76 = sphi 0, %s75
    %s92 = sphi 0, %s76
    %s102 = sphi 0, %s104
    %s105 = sphi 0, %s102
    %s106 = sphi 0, %s105
    %s122 = sphi 0, %s106
    %s132 = sphi 0, %s134
    %s135 = sphi 0, %s132
    %s136 = sphi 0, %s135
    %s152 = sphi 0, %s136
  $region4: #{_lambda_.32} parent=0 // loop_header_branch
    %12 = sbr.rel (%p10) target = $region8
  $region5: #{_lambda_.32} parent=0 // loop_body
    %s14 = ssub.s32 %s9, 1
    %s15 = ssub.s32 %s9, 2
    %s25 = sadd.s32 1, %s18
    %p26 = scmp.ge.s32.totalorder %s25, 1
    %s27 = scalar_select %p26, 0, %s25
    %s28 = sadd.s32 1, %s17
    %s29 = scalar_select %p26, %s28, %s17
    %p30 = scmp.ge.s32.totalorder %s29, 1
    %s31 = scalar_select %p30, 0, %s29
    %s32 = sadd.s32 1, %s16
    %s33 = scalar_select %p30, %s32, %s16
    %p34 = scmp.ge.s32.totalorder %s33, 2
    %s35 = scalar_select %p34, 0, %s33
    %s36 = ssub.s32 %s16, %s35
    %s37 = ssub.s32 %s17, %s31
    %s38 = sor.u32 %s36, %s37
    %s39 = ssub.s32 %s18, %s27
    %s40 = sor.u32 %s38, %s39
    %p41 = scmp.eq.s32.totalorder %s40, 0
    %s43 = sadd.s32 %s42, 1
    %s44 = scalar_select %p41, %s42, %s43
    %p47 = pneg %p41
    %p48 = scmp.eq.s32.totalorder %s9, 1
    %p49 = por %p47, %p48
    %p50 = scmp.ne.s32.totalorder %s42, %s45
    %p51 = scmp.eq.s32.totalorder %s9, 0
    %p52 = por %p50, %p51
    %p53 = scmp.ne.s32.totalorder %s42, %s45
    %p54 = scmp.eq.s32.totalorder %s14, 1
    %p55 = por %p53, %p54
    %p56 = scmp.ne.s32.totalorder %s45, %s46
    %p57 = scmp.eq.s32.totalorder %s14, 0
    %p58 = por %p56, %p57
    %p59 = scmp.ne.s32.totalorder %s45, %s46
    %p60 = scmp.eq.s32.totalorder %s15, 1
    %p61 = por %p59, %p60
    %p63 = scmp.ne.s32.totalorder %s46, %s62
    %p64 = scmp.eq.s32.totalorder %s15, 0
    %p65 = por %p63, %p64
    %s66 = sadd.s32 %s17, 1
    %s67 = sadd.s32 %s31, 1
    %s68 = ssub.s32 %s16, %s35
    %s69 = ssub.s32 %s66, %s67
    %s70 = sor.u32 %s68, %s69
    %p71 = scmp.eq.s32.totalorder %s70, 0
    %s73 = sadd.s32 %s72, 1
    %s74 = scalar_select %p71, %s72, %s73
    %p77 = pneg %p71
    %p78 = scmp.eq.s32.totalorder %s9, 1
    %p79 = por %p77, %p78
    %p80 = scmp.ne.s32.totalorder %s72, %s75
    %p81 = scmp.eq.s32.totalorder %s9, 0
    %p82 = por %p80, %p81
    %p83 = scmp.ne.s32.totalorder %s72, %s75
    %p84 = scmp.eq.s32.totalorder %s14, 1
    %p85 = por %p83, %p84
    %p86 = scmp.ne.s32.totalorder %s75, %s76
    %p87 = scmp.eq.s32.totalorder %s14, 0
    %p88 = por %p86, %p87
    %p89 = scmp.ne.s32.totalorder %s75, %s76
    %p90 = scmp.eq.s32.totalorder %s15, 1
    %p91 = por %p89, %p90
    %p93 = scmp.ne.s32.totalorder %s76, %s92
    %p94 = scmp.eq.s32.totalorder %s15, 0
    %p95 = por %p93, %p94
    %s96 = sadd.s32 %s17, 2
    %s97 = sadd.s32 %s31, 2
    %s98 = ssub.s32 %s16, %s35
    %s99 = ssub.s32 %s96, %s97
    %s100 = sor.u32 %s98, %s99
    %p101 = scmp.eq.s32.totalorder %s100, 0
    %s103 = sadd.s32 %s102, 1
    %s104 = scalar_select %p101, %s102, %s103
    %p107 = pneg %p101
    %p108 = scmp.eq.s32.totalorder %s9, 1
    %p109 = por %p107, %p108
    %p110 = scmp.ne.s32.totalorder %s102, %s105
    %p111 = scmp.eq.s32.totalorder %s9, 0
    %p112 = por %p110, %p111
    %p113 = scmp.ne.s32.totalorder %s102, %s105
    %p114 = scmp.eq.s32.totalorder %s14, 1
    %p115 = por %p113, %p114
    %p116 = scmp.ne.s32.totalorder %s105, %s106
    %p117 = scmp.eq.s32.totalorder %s14, 0
    %p118 = por %p116, %p117
    %p119 = scmp.ne.s32.totalorder %s105, %s106
    %p120 = scmp.eq.s32.totalorder %s15, 1
    %p121 = por %p119, %p120
    %p123 = scmp.ne.s32.totalorder %s106, %s122
    %p124 = scmp.eq.s32.totalorder %s15, 0
    %p125 = por %p123, %p124
    %s126 = ssub.s32 %s16, %s35
    %s127 = ssub.s32 %s17, %s31
    %s128 = sor.u32 %s126, %s127
    %s129 = ssub.s32 %s18, %s27
    %s130 = sor.u32 %s128, %s129
    %p131 = scmp.eq.s32.totalorder %s130, 0
    %s133 = sadd.s32 %s132, 1
    %s134 = scalar_select %p131, %s132, %s133
    %p137 = pneg %p131
    %p138 = scmp.eq.s32.totalorder %s9, 1
    %p139 = por %p137, %p138
    %p140 = scmp.ne.s32.totalorder %s132, %s135
    %p141 = scmp.eq.s32.totalorder %s9, 0
    %p142 = por %p140, %p141
    %p143 = scmp.ne.s32.totalorder %s132, %s135
    %p144 = scmp.eq.s32.totalorder %s14, 1
    %p145 = por %p143, %p144
    %p146 = scmp.ne.s32.totalorder %s135, %s136
    %p147 = scmp.eq.s32.totalorder %s14, 0
    %p148 = por %p146, %p147
    %p149 = scmp.ne.s32.totalorder %s135, %s136
    %p150 = scmp.eq.s32.totalorder %s15, 1
    %p151 = por %p149, %p150
    %p153 = scmp.ne.s32.totalorder %s136, %s152
    %p154 = scmp.eq.s32.totalorder %s15, 0
    %p155 = por %p153, %p154
    %p156 = scmp.le.s32.totalorder 1, %s9
    %p157 = scmp.lt.s32.totalorder %s9, 3
    %p158 = pnand %p156, %p157
    %p159 = pneg %p158
    // Predicated region
    $region9: #{_lambda_.32} parent=5 // pred_check
      _
    $region10: #{_lambda_.32} parent=5 // pred_check_branch
      %161 = sbr.rel (%p158) target = $region12
    $region11: #{_lambda_.32} parent=5 // pred_region
      %s162 = ssub.s32 %s9, 1
    $region12: #{_lambda_.32} parent=5 // pred_fallthru
      _
    %p163 = scmp.lt.s32.totalorder %s9, 2
    // Predicated region
    $region13: #{_lambda_.32} parent=5 // pred_check
      %p164 = pneg %p163
    $region14: #{_lambda_.32} parent=5 // pred_check_branch
      %166 = sbr.rel (%p164) target = $region16
    $region15: #{_lambda_.32} parent=5 // pred_region
      // Predicated region
      $region17: #{_lambda_.32} parent=15 // pred_check
        %p167 = pneg %p52
      $region18: #{_lambda_.32} parent=15 // pred_check_branch
        %169 = sbr.rel (%p167) target = $region20
      $region19: #{_lambda_.32} parent=15 // pred_region
        %p170 = scmp.lt.s32.totalorder %s16, 1
        %s171 = scalar_select %p170, %s16, 1
        %p172 = scmp.lt.s32.totalorder %s17, 2
        %s173 = scalar_select %p172, %s17, 2
        %p174 = scmp.lt.s32.totalorder %s18, 0
        %s175 = scalar_select %p174, %s18, 0
        %s176 = sadd.s32 %s175, %s173
        %s177 = smul.addr %s171, 3
        %s178 = sadd.s32 %s176, %s177
        %s179 = smul.addr %s178, 4
        %s180 = scalar_lea.vmem %s0, %s179
      $region20: #{_lambda_.32} parent=15 // pred_fallthru
        _
      // Predicated region
      $region21: #{_lambda_.32} parent=15 // pred_check
        %p181 = pneg %p82
      $region22: #{_lambda_.32} parent=15 // pred_check_branch
        %183 = sbr.rel (%p181) target = $region24
      $region23: #{_lambda_.32} parent=15 // pred_region
        %s184 = sadd.s32 %s17, 1
        %p185 = scmp.lt.s32.totalorder %s16, 1
        %s186 = scalar_select %p185, %s16, 1
        %p187 = scmp.lt.s32.totalorder %s184, 2
        %s188 = scalar_select %p187, %s184, 2
        %s189 = smul.addr %s186, 3
        %s190 = sadd.s32 %s188, %s189
        %s191 = smul.addr %s190, 4
        %s192 = scalar_lea.vmem %s1, %s191
        %s193 = sadd.s32 %s17, 1
      $region24: #{_lambda_.32} parent=15 // pred_fallthru
        _
      // Predicated region
      $region25: #{_lambda_.32} parent=15 // pred_check
        %p194 = pneg %p112
      $region26: #{_lambda_.32} parent=15 // pred_check_branch
        %196 = sbr.rel (%p194) target = $region28
      $region27: #{_lambda_.32} parent=15 // pred_region
        %s197 = sadd.s32 %s17, 2
        %p198 = scmp.lt.s32.totalorder %s16, 1
        %s199 = scalar_select %p198, %s16, 1
        %p200 = scmp.lt.s32.totalorder %s197, 2
        %s201 = scalar_select %p200, %s197, 2
        %s202 = smul.addr %s199, 3
        %s203 = sadd.s32 %s201, %s202
        %s204 = smul.addr %s203, 4
        %s205 = scalar_lea.vmem %s2, %s204
        %s206 = sadd.s32 %s17, 2
      $region28: #{_lambda_.32} parent=15 // pred_fallthru
        _
    $region16: #{_lambda_.32} parent=5 // pred_fallthru
      _
    %p207 = scmp.le.s32.totalorder 1, %s9
    %p208 = scmp.lt.s32.totalorder %s9, 3
    %p209 = pnand %p207, %p208
    %p210 = pneg %p209
    // Predicated region
    $region29: #{_lambda_.32} parent=5 // pred_check
      _
    $region30: #{_lambda_.32} parent=5 // pred_check_branch
      %212 = sbr.rel (%p209) target = $region32
    $region31: #{_lambda_.32} parent=5 // pred_region
      %s213 = ssub.s32 %s9, 1
      %p214 = scmp.lt.s32.totalorder %s19, 1
      %s215 = scalar_select %p214, %s19, 1
      %p216 = scmp.lt.s32.totalorder %s20, 2
      %s217 = scalar_select %p216, %s20, 2
      %p218 = scmp.lt.s32.totalorder %s21, 0
      %s219 = scalar_select %p218, %s21, 0
      %s220 = sadd.s32 %s219, %s217
      %s221 = smul.addr %s215, 3
      %s222 = sadd.s32 %s220, %s221
      %s223 = smul.addr %s222, 4
      %s224 = scalar_lea.vmem %s0, %s223
      %p225 = pneg %p58
      %p226 = pneg %p55
      %s227 = sadd.s32 %s20, 1
      %p228 = scmp.lt.s32.totalorder %s19, 1
      %s229 = scalar_select %p228, %s19, 1
      %p230 = scmp.lt.s32.totalorder %s227, 2
      %s231 = scalar_select %p230, %s227, 2
      %s232 = smul.addr %s229, 3
      %s233 = sadd.s32 %s231, %s232
      %s234 = smul.addr %s233, 4
      %s235 = scalar_lea.vmem %s1, %s234
      %p236 = pneg %p88
      %p237 = pneg %p85
      %s238 = sadd.s32 %s20, 2
      %p239 = scmp.lt.s32.totalorder %s19, 1
      %s240 = scalar_select %p239, %s19, 1
      %p241 = scmp.lt.s32.totalorder %s238, 2
      %s242 = scalar_select %p241, %s238, 2
      %s243 = smul.addr %s240, 3
      %s244 = sadd.s32 %s242, %s243
      %s245 = smul.addr %s244, 4
      %s246 = scalar_lea.vmem %s2, %s245
      %p247 = pneg %p118
      %p248 = pneg %p115
      %p249 = pneg %p148
      %p250 = pneg %p145
      %p251 = scmp.lt.s32.totalorder %s19, 1
      %s252 = scalar_select %p251, %s19, 1
      %p253 = scmp.lt.s32.totalorder %s20, 0
      %s254 = scalar_select %p253, %s20, 0
      %p255 = scmp.lt.s32.totalorder %s21, 0
      %s256 = scalar_select %p255, %s21, 0
      %s257 = sadd.s32 %s256, %s254
      %s258 = sadd.s32 %s257, %s252
      %s259 = smul.addr %s258, 4
      %s260 = scalar_lea.vmem %s3, %s259
      %p261 = scmp.lt.s32.totalorder %s19, 1
      %s262 = scalar_select %p261, %s19, 1
      %p263 = scmp.lt.s32.totalorder %s20, 2
      %s264 = scalar_select %p263, %s20, 2
      %p265 = scmp.lt.s32.totalorder %s21, 0
      %s266 = scalar_select %p265, %s21, 0
      %s267 = sadd.s32 %s266, %s264
      %s268 = smul.addr %s262, 3
      %s269 = sadd.s32 %s267, %s268
      %s270 = smul.addr %s269, 4
      %s271 = scalar_lea.vmem %s0, %s270
      %s272 = sadd.s32 %s20, 1
      %p273 = scmp.lt.s32.totalorder %s19, 1
      %s274 = scalar_select %p273, %s19, 1
      %p275 = scmp.lt.s32.totalorder %s272, 2
      %s276 = scalar_select %p275, %s272, 2
      %s277 = smul.addr %s274, 3
      %s278 = sadd.s32 %s276, %s277
      %s279 = smul.addr %s278, 4
      %s280 = scalar_lea.vmem %s1, %s279
      %s281 = sadd.s32 %s20, 1
      %s282 = sadd.s32 %s20, 2
      %p283 = scmp.lt.s32.totalorder %s19, 1
      %s284 = scalar_select %p283, %s19, 1
      %p285 = scmp.lt.s32.totalorder %s282, 2
      %s286 = scalar_select %p285, %s282, 2
      %s287 = smul.addr %s284, 3
      %s288 = sadd.s32 %s286, %s287
      %s289 = smul.addr %s288, 4
      %s290 = scalar_lea.vmem %s2, %s289
      %s291 = sadd.s32 %s20, 2
      %p292 = scmp.lt.s32.totalorder %s19, 1
      %s293 = scalar_select %p292, %s19, 1
      %p294 = scmp.lt.s32.totalorder %s20, 0
      %s295 = scalar_select %p294, %s20, 0
      %p296 = scmp.lt.s32.totalorder %s21, 0
      %s297 = scalar_select %p296, %s21, 0
      %s298 = sadd.s32 %s297, %s295
      %s299 = sadd.s32 %s298, %s293
      %s300 = smul.addr %s299, 4
      %s301 = scalar_lea.vmem %s3, %s300
      %v303 = vld [vmem:[%s271] sm:$0xf]
      %v304 = vld [vmem:[%s280] sm:$0xf]
      %v305 = vld [vmem:[%s290] sm:$0xf]
      %306 = vxpose.xlu0.c.b16.start [1/8] %v303, 128
      %307 = vxpose.xlu0.c.b16.cont [2/8] 0, 128
      %308 = vxpose.xlu0.c.b16.cont [3/8] 0, 128
      %309 = vxpose.xlu0.c.b16.cont [4/8] 0, 128
      %310 = vxpose.xlu0.c.b16.cont [5/8] 0, 128
      %311 = vxpose.xlu0.c.b16.cont [6/8] 0, 128
      %312 = vxpose.xlu0.c.b16.cont [7/8] 0, 128
      %313 = vxpose.xlu0.c.b16.end [8/8] 0, 128
      %v314 = vpop.trf.xlu0
      %v315 = vpop.trf.xlu0
      %v316 = vpop.trf.xlu0
      %v317 = vpop.trf.xlu0
      %v318 = vpop.trf.xlu0
      %v319 = vpop.trf.xlu0
      %v320 = vpop.trf.xlu0
      %v321 = vpop.trf.xlu0
      %vm322 = vcmask 64512
      %v324 = vsel %vm322, %v314, 0
      %v327 = vsel %vm322, %v315, 0
      %v330 = vsel %vm322, %v316, 0
      %v333 = vsel %vm322, %v317, 0
      %vm335 = vcmask 1043456
      %v337 = vsel %vm335, %v304, 0
      %339 = vmatpush.bf16.msra.mxu0 0
      %340 = vmatpush.bf16.msra.mxu0 0
      %341 = vmatpush.bf16.msra.mxu0 0
      %342 = vmatpush.bf16.msra.mxu0 0
      %343 = vmatpush.bf16.msra.mxu0 0
      %344 = vmatpush.bf16.msra.mxu0 0
      %345 = vmatpush.bf16.msra.mxu0 0
      %346 = vmatpush.bf16.msra.mxu0 %v337
      %347 = vmatmul.bf16.gmra.mxu0 %v324
      %v348 = vpop.f32.mrf.mxu0
      %v349 = vadd.f32 0.0, %v348
      %v350 = vpop.f32.mrf.mxu0
      %v351 = vadd.f32 0.0, %v350
      %352 = vmatmul.bf16.gmra.mxu0 %v327
      %v353 = vpop.f32.mrf.mxu0
      %v354 = vadd.f32 0.0, %v353
      %v355 = vpop.f32.mrf.mxu0
      %v356 = vadd.f32 0.0, %v355
      %357 = vmatmul.bf16.gmra.mxu0 %v330
      %v358 = vpop.f32.mrf.mxu0
      %v359 = vadd.f32 0.0, %v358
      %v360 = vpop.f32.mrf.mxu0
      %v361 = vadd.f32 0.0, %v360
      %362 = vmatmul.bf16.gmra.mxu0 %v333
      %v363 = vpop.f32.mrf.mxu0
      %v364 = vadd.f32 0.0, %v363
      %v365 = vpop.f32.mrf.mxu0
      %v366 = vadd.f32 0.0, %v365
      %367 = vdwg.mxu0
      %v368 = vmul.f32 %v349, 0.35355338
      %v369 = vmul.f32 %v351, 0.35355338
      %v370 = vmul.f32 %v354, 0.35355338
      %v371 = vmul.f32 %v356, 0.35355338
      %v372 = vmul.f32 %v359, 0.35355338
      %v373 = vmul.f32 %v361, 0.35355338
      %v374 = vmul.f32 %v364, 0.35355338
      %v375 = vmul.f32 %v366, 0.35355338
      %vm376 = vcmask 523264
      %v377 = vsel %vm376, %v368, -inf
      %378 = vmax.xlane.f32.xlu0 %v377
      %v379 = vpop.xlane.xlu0 %378
      %v380 = vsel %vm376, %v369, -inf
      %381 = vmax.xlane.f32.xlu0 %v380
      %v382 = vpop.xlane.xlu0 %381
      %v383 = vsel %vm376, %v370, -inf
      %384 = vmax.xlane.f32.xlu0 %v383
      %v385 = vpop.xlane.xlu0 %384
      %v386 = vsel %vm376, %v371, -inf
      %387 = vmax.xlane.f32.xlu0 %v386
      %v388 = vpop.xlane.xlu0 %387
      %v389 = vsel %vm376, %v372, -inf
      %390 = vmax.xlane.f32.xlu0 %v389
      %v391 = vpop.xlane.xlu0 %390
      %v392 = vsel %vm376, %v373, -inf
      %393 = vmax.xlane.f32.xlu0 %v392
      %v394 = vpop.xlane.xlu0 %393
      %v395 = vsel %vm376, %v374, -inf
      %396 = vmax.xlane.f32.xlu0 %v395
      %v397 = vpop.xlane.xlu0 %396
      %v398 = vsel %vm376, %v375, -inf
      %399 = vmax.xlane.f32.xlu0 %v398
      %v400 = vpop.xlane.xlu0 %399
      %v401 = vsub.f32 %v368, %v379
      %v402 = vsub.f32 %v369, %v382
      %v403 = vsub.f32 %v370, %v385
      %v404 = vsub.f32 %v371, %v388
      %v405 = vsub.f32 %v372, %v391
      %v406 = vsub.f32 %v373, %v394
      %v407 = vsub.f32 %v374, %v397
      %v408 = vsub.f32 %v375, %v400
      %v409 = vmul.f32 %v401, 1.442695
      %v410 = vpow.pop %v409
      %v411 = vmul.f32 %v402, 1.442695
      %v412 = vpow.pop %v411
      %v413 = vmul.f32 %v403, 1.442695
      %v414 = vpow.pop %v413
      %v415 = vmul.f32 %v404, 1.442695
      %v416 = vpow.pop %v415
      %v417 = vmul.f32 %v405, 1.442695
      %v418 = vpow.pop %v417
      %v419 = vmul.f32 %v406, 1.442695
      %v420 = vpow.pop %v419
      %v421 = vmul.f32 %v407, 1.442695
      %v422 = vpow.pop %v421
      %v423 = vmul.f32 %v408, 1.442695
      %v424 = vpow.pop %v423
      %v425 = vsel %vm376, %v410, 0.0
      %426 = vadd.xlane.f32.xlu0 %v425
      %v427 = vpop.xlane.xlu0 %426
      %v428 = vsel %vm376, %v412, 0.0
      %429 = vadd.xlane.f32.xlu0 %v428
      %v430 = vpop.xlane.xlu0 %429
      %v431 = vsel %vm376, %v414, 0.0
      %432 = vadd.xlane.f32.xlu0 %v431
      %v433 = vpop.xlane.xlu0 %432
      %v434 = vsel %vm376, %v416, 0.0
      %435 = vadd.xlane.f32.xlu0 %v434
      %v436 = vpop.xlane.xlu0 %435
      %v437 = vsel %vm376, %v418, 0.0
      %438 = vadd.xlane.f32.xlu0 %v437
      %v439 = vpop.xlane.xlu0 %438
      %v440 = vsel %vm376, %v420, 0.0
      %441 = vadd.xlane.f32.xlu0 %v440
      %v442 = vpop.xlane.xlu0 %441
      %v443 = vsel %vm376, %v422, 0.0
      %444 = vadd.xlane.f32.xlu0 %v443
      %v445 = vpop.xlane.xlu0 %444
      %v446 = vsel %vm376, %v424, 0.0
      %447 = vadd.xlane.f32.xlu0 %v446
      %v448 = vpop.xlane.xlu0 %447
      %v449 = vrcp.pop %v427
      %v450 = vmul.f32 %v427, %v449
      %v451 = vsub.f32 1.0, %v450
      %v452 = vmul.f32 %v449, %v451
      %v453 = vadd.f32 %v449, %v452
      %vm454 = vweird.f32 %v427
      %vm455 = vweird.f32 %v449
      %vm456 = vmor %vm454, %vm455
      %v457 = vsel %vm456, %v449, %v453
      %v458 = vand.u32 2147483647, %v427
      %vm459 = vcmp.eq.f32.partialorder %v458, 8.507059e+37
      %v460 = vand.u32 %v427, 2147483648
      %v461 = vor.u32 1.1754944e-38, %v460
      %v462 = vsel %vm459, %v461, %v457
      %v463 = vmul.f32 %v410, %v462
      %v464 = vrcp.pop %v430
      %v465 = vmul.f32 %v430, %v464
      %v466 = vsub.f32 1.0, %v465
      %v467 = vmul.f32 %v464, %v466
      %v468 = vadd.f32 %v464, %v467
      %vm469 = vweird.f32 %v430
      %vm470 = vweird.f32 %v464
      %vm471 = vmor %vm469, %vm470
      %v472 = vsel %vm471, %v464, %v468
      %v473 = vand.u32 2147483647, %v430
      %vm474 = vcmp.eq.f32.partialorder %v473, 8.507059e+37
      %v475 = vand.u32 %v430, 2147483648
      %v476 = vor.u32 1.1754944e-38, %v475
      %v477 = vsel %vm474, %v476, %v472
      %v478 = vmul.f32 %v412, %v477
      %v479 = vrcp.pop %v433
      %v480 = vmul.f32 %v433, %v479
      %v481 = vsub.f32 1.0, %v480
      %v482 = vmul.f32 %v479, %v481
      %v483 = vadd.f32 %v479, %v482
      %vm484 = vweird.f32 %v433
      %vm485 = vweird.f32 %v479
      %vm486 = vmor %vm484, %vm485
      %v487 = vsel %vm486, %v479, %v483
      %v488 = vand.u32 2147483647, %v433
      %vm489 = vcmp.eq.f32.partialorder %v488, 8.507059e+37
      %v490 = vand.u32 %v433, 2147483648
      %v491 = vor.u32 1.1754944e-38, %v490
      %v492 = vsel %vm489, %v491, %v487
      %v493 = vmul.f32 %v414, %v492
      %v494 = vrcp.pop %v436
      %v495 = vmul.f32 %v436, %v494
      %v496 = vsub.f32 1.0, %v495
      %v497 = vmul.f32 %v494, %v496
      %v498 = vadd.f32 %v494, %v497
      %vm499 = vweird.f32 %v436
      %vm500 = vweird.f32 %v494
      %vm501 = vmor %vm499, %vm500
      %v502 = vsel %vm501, %v494, %v498
      %v503 = vand.u32 2147483647, %v436
      %vm504 = vcmp.eq.f32.partialorder %v503, 8.507059e+37
      %v505 = vand.u32 %v436, 2147483648
      %v506 = vor.u32 1.1754944e-38, %v505
      %v507 = vsel %vm504, %v506, %v502
      %v508 = vmul.f32 %v416, %v507
      %v509 = vrcp.pop %v439
      %v510 = vmul.f32 %v439, %v509
      %v511 = vsub.f32 1.0, %v510
      %v512 = vmul.f32 %v509, %v511
      %v513 = vadd.f32 %v509, %v512
      %vm514 = vweird.f32 %v439
      %vm515 = vweird.f32 %v509
      %vm516 = vmor %vm514, %vm515
      %v517 = vsel %vm516, %v509, %v513
      %v518 = vand.u32 2147483647, %v439
      %vm519 = vcmp.eq.f32.partialorder %v518, 8.507059e+37
      %v520 = vand.u32 %v439, 2147483648
      %v521 = vor.u32 1.1754944e-38, %v520
      %v522 = vsel %vm519, %v521, %v517
      %v523 = vmul.f32 %v418, %v522
      %v524 = vrcp.pop %v442
      %v525 = vmul.f32 %v442, %v524
      %v526 = vsub.f32 1.0, %v525
      %v527 = vmul.f32 %v524, %v526
      %v528 = vadd.f32 %v524, %v527
      %vm529 = vweird.f32 %v442
      %vm530 = vweird.f32 %v524
      %vm531 = vmor %vm529, %vm530
      %v532 = vsel %vm531, %v524, %v528
      %v533 = vand.u32 2147483647, %v442
      %vm534 = vcmp.eq.f32.partialorder %v533, 8.507059e+37
      %v535 = vand.u32 %v442, 2147483648
      %v536 = vor.u32 1.1754944e-38, %v535
      %v537 = vsel %vm534, %v536, %v532
      %v538 = vmul.f32 %v420, %v537
      %v539 = vrcp.pop %v445
      %v540 = vmul.f32 %v445, %v539
      %v541 = vsub.f32 1.0, %v540
      %v542 = vmul.f32 %v539, %v541
      %v543 = vadd.f32 %v539, %v542
      %vm544 = vweird.f32 %v445
      %vm545 = vweird.f32 %v539
      %vm546 = vmor %vm544, %vm545
      %v547 = vsel %vm546, %v539, %v543
      %v548 = vand.u32 2147483647, %v445
      %vm549 = vcmp.eq.f32.partialorder %v548, 8.507059e+37
      %v550 = vand.u32 %v445, 2147483648
      %v551 = vor.u32 1.1754944e-38, %v550
      %v552 = vsel %vm549, %v551, %v547
      %v553 = vmul.f32 %v422, %v552
      %v554 = vrcp.pop %v448
      %v555 = vmul.f32 %v448, %v554
      %v556 = vsub.f32 1.0, %v555
      %v557 = vmul.f32 %v554, %v556
      %v558 = vadd.f32 %v554, %v557
      %vm559 = vweird.f32 %v448
      %vm560 = vweird.f32 %v554
      %vm561 = vmor %vm559, %vm560
      %v562 = vsel %vm561, %v554, %v558
      %v563 = vand.u32 2147483647, %v448
      %vm564 = vcmp.eq.f32.partialorder %v563, 8.507059e+37
      %v565 = vand.u32 %v448, 2147483648
      %v566 = vor.u32 1.1754944e-38, %v565
      %v567 = vsel %vm564, %v566, %v562
      %v568 = vmul.f32 %v424, %v567
      %v569 = vpack.c.bf16 %v478, %v463
      %v570 = vpack.c.bf16 %v508, %v493
      %v571 = vpack.c.bf16 %v538, %v523
      %v572 = vpack.c.bf16 %v568, %v553
      %v574 = vsel %vm376, %v305, 0
      %v577 = vsel %vm376, %v569, 0
      %v580 = vsel %vm376, %v570, 0
      %v583 = vsel %vm376, %v571, 0
      %v586 = vsel %vm376, %v572, 0
      %588 = vmatpush.bf16.xpose.msra.mxu0 0
      %589 = vmatpush.bf16.xpose.msra.mxu0 0
      %590 = vmatpush.bf16.xpose.msra.mxu0 0
      %591 = vmatpush.bf16.xpose.msra.mxu0 0
      %592 = vmatpush.bf16.xpose.msra.mxu0 %v586
      %593 = vmatpush.bf16.xpose.msra.mxu0 %v583
      %594 = vmatpush.bf16.xpose.msra.mxu0 %v580
      %595 = vmatpush.bf16.xpose.msra.mxu0 %v577
      %596 = vmatmul.bf16.gmra.mxu0 %v574
      %v597 = vpop.f32.mrf.mxu0
      %v598 = vadd.f32 0.0, %v597
      %v599 = vpop.f32.mrf.mxu0
      %600 = vdwg.mxu0
      %v601 = vpack.c.bf16 %v598, %v598
      %vm602 = vcmask 519168
      %603 = vst.msk [vmem:[%s301] sm:$0xf] %vm602, %v601
      %p604 = scmp.lt.s32.totalorder %s19, 1
      %s605 = scalar_select %p604, %s19, 1
      %p606 = scmp.lt.s32.totalorder %s20, 0
      %s607 = scalar_select %p606, %s20, 0
      %p608 = scmp.lt.s32.totalorder %s21, 0
      %s609 = scalar_select %p608, %s21, 0
      %s610 = sadd.s32 %s609, %s607
      %s611 = sadd.s32 %s610, %s605
      %s612 = smul.addr %s611, 4
      %s613 = scalar_lea.vmem %s3, %s612
      // Predicated region
      $region33: #{_lambda_.32} parent=31 // pred_check
        %p614 = pneg %p145
      $region34: #{_lambda_.32} parent=31 // pred_check_branch
        %616 = sbr.rel (%p614) target = $region36
      $region35: #{_lambda_.32} parent=31 // pred_region
        _
      $region36: #{_lambda_.32} parent=31 // pred_fallthru
        _
    $region32: #{_lambda_.32} parent=5 // pred_fallthru
      _
    %p617 = scmp.le.s32.totalorder 2, %s9
    // Predicated region
    $region37: #{_lambda_.32} parent=5 // pred_check
      %p618 = pneg %p617
    $region38: #{_lambda_.32} parent=5 // pred_check_branch
      %620 = sbr.rel (%p618) target = $region40
    $region39: #{_lambda_.32} parent=5 // pred_region
      %s621 = ssub.s32 %s9, 2
      // Predicated region
      $region41: #{_lambda_.32} parent=39 // pred_check
        %p622 = pneg %p151
      $region42: #{_lambda_.32} parent=39 // pred_check_branch
        %624 = sbr.rel (%p622) target = $region44
      $region43: #{_lambda_.32} parent=39 // pred_region
        %p625 = scmp.lt.s32.totalorder %s22, 1
        %s626 = scalar_select %p625, %s22, 1
        %p627 = scmp.lt.s32.totalorder %s23, 0
        %s628 = scalar_select %p627, %s23, 0
        %p629 = scmp.lt.s32.totalorder %s24, 0
        %s630 = scalar_select %p629, %s24, 0
        %s631 = sadd.s32 %s630, %s628
        %s632 = sadd.s32 %s631, %s626
        %s633 = smul.addr %s632, 4
        %s634 = scalar_lea.vmem %s3, %s633
      $region44: #{_lambda_.32} parent=39 // pred_fallthru
        _
    $region40: #{_lambda_.32} parent=5 // pred_fallthru
      _
  $region6: #{_lambda_.32} parent=0 // loop_footer
    %s13 = sadd.s32 1, %s9
  $region7: #{_lambda_.32} parent=0 // loop_footer_branch
    %8 = sbr.rel target = $region3
  $region8: #{_lambda_.32} parent=0 // loop_exit
    _

// kernel: _lambda_.33
$region0: #{_lambda_.33}
  #allocation0 [shape = 'u32[]', space=smem, size = 0x4, offset = 0x4, fixed_abs, tag = 'smem constant byte address 0x4 - core index']
  #allocation1 [shape = 'u32[72,128]{1,0:T(1,128)}', space=vmem, size = 0x9000, scoped, tag = 'internal scratch']
  %s0 = inlined_call_operand.vmem [shape: bf16[8,128], index: 0, kind: input, shape index: {}]
  %s1 = inlined_call_operand.vmem [shape: bf16[8,8], index: 1, kind: input, shape index: {}]
  %s2 = inlined_call_operand.vmem [shape: f32[8,1], index: 2, kind: input, shape index: {}]
  %s3 = inlined_call_operand.vmem [shape: bf16[8,128], index: 3, kind: output, shape index: {}]
  %s4 = sld [smem:[#allocation0]]
  $region22: #{_lambda_.33} parent=0
    _
  %s6 = ssub.s32 1, %s4
  %s7 = scalar_select 0, %s6, %s4
  // Predicated region
  $region2: #{_lambda_.33} parent=0 // pred_check
    _
  $region3: #{_lambda_.33} parent=0 // pred_check_branch
    %9 = sbr.rel (0) target = $region5
  $region4: #{_lambda_.33} parent=0 // pred_region
    _
  $region5: #{_lambda_.33} parent=0 // pred_fallthru
    _
  // Predicated region
  $region6: #{_lambda_.33} parent=0 // pred_check
    _
  $region7: #{_lambda_.33} parent=0 // pred_check_branch
    %11 = sbr.rel (0) target = $region9
  $region8: #{_lambda_.33} parent=0 // pred_region
    _
  $region9: #{_lambda_.33} parent=0 // pred_fallthru
    _
  // Predicated region
  $region10: #{_lambda_.33} parent=0 // pred_check
    _
  $region11: #{_lambda_.33} parent=0 // pred_check_branch
    %13 = sbr.rel (0) target = $region13
  $region12: #{_lambda_.33} parent=0 // pred_region
    _
  $region13: #{_lambda_.33} parent=0 // pred_fallthru
    _
  %v15 = vld [vmem:[%s1] sm:$0xf]
  %v16 = vld [vmem:[%s0] sm:$0xf]
  %v17 = vld [vmem:[%s2] sm:$0xff]
  %19 = vset.pattern.permute.xlu0 0
  %20 = vperm.xlu0 %19, %v17
  %v21 = vpop.permute.xlu0 %20
  %vm23 = vcmask 64512
  %v25 = vsel %vm23, %v15, 0
  %vm27 = vcmask 1043456
  %v29 = vsel %vm27, %v16, 0
  %31 = vmatpush.bf16.msra.mxu0 0
  %32 = vmatpush.bf16.msra.mxu0 0
  %33 = vmatpush.bf16.msra.mxu0 0
  %34 = vmatpush.bf16.msra.mxu0 0
  %35 = vmatpush.bf16.msra.mxu0 0
  %36 = vmatpush.bf16.msra.mxu0 0
  %37 = vmatpush.bf16.msra.mxu0 0
  %38 = vmatpush.bf16.msra.mxu0 %v29
  %39 = vmatmul.bf16.gmra.mxu0 %v25
  %v40 = vpop.f32.mrf.mxu0
  %v41 = vadd.f32 %v21, %v40
  %v42 = vpop.f32.mrf.mxu0
  %43 = vdwg.mxu0
  %v44 = vpack.c.bf16 %v41, %v41
  %45 = vst [vmem:[%s3] sm:$0xf] %v44
  // Predicated region
  $region14: #{_lambda_.33} parent=0 // pred_check
    _
  $region15: #{_lambda_.33} parent=0 // pred_check_branch
    %47 = sbr.rel (0) target = $region17
  $region16: #{_lambda_.33} parent=0 // pred_region
    _
  $region17: #{_lambda_.33} parent=0 // pred_fallthru
    _
  // Predicated region
  $region18: #{_lambda_.33} parent=0 // pred_check
    _
  $region19: #{_lambda_.33} parent=0 // pred_check_branch
    %49 = sbr.rel (0) target = $region21
  $region20: #{_lambda_.33} parent=0 // pred_region
    _
  $region21: #{_lambda_.33} parent=0 // pred_fallthru
    _

// kernel: _lambda_.34
$region0: #{_lambda_.34}
  #allocation0 [shape = 'u32[]', space=smem, size = 0x4, offset = 0x4, fixed_abs, tag = 'smem constant byte address 0x4 - core index']
  #allocation1 [shape = 'u32[72,128]{1,0:T(1,128)}', space=vmem, size = 0x9000, scoped, tag = 'internal scratch']
  %s0 = inlined_call_operand.vmem [shape: bf16[2,144,64], index: 0, kind: input, shape index: {}]
  %s1 = inlined_call_operand.vmem [shape: bf16[4,144], index: 1, kind: input, shape index: {}]
  %s2 = inlined_call_operand.vmem [shape: f32[4,4], index: 2, kind: input, shape index: {}]
  %s3 = inlined_call_operand.vmem [shape: bf16[2,4,64], index: 3, kind: output, shape index: {}]
  %s4 = sld [smem:[#allocation0]]
  $region45: #{_lambda_.34} parent=0
    _
  %s6 = ssub.s32 1, %s4
  %s7 = scalar_select 0, %s6, %s4
  loop: start=0, step=1, limit=4
  $region2: #{_lambda_.34} parent=0 // loop_pre_header
    _
  $region3: #{_lambda_.34} parent=0 // loop_header
    %s9 = sphi 0, %s13
    %p10 = scmp.ge.s32.totalorder %s9, 4
    %s19 = sphi 0, %s21
    %s22 = sphi 0, %s19
    %s23 = sphi 0, %s22
    %s39 = sphi 0, %s23
    %s43 = sphi 0, %s43
    %s45 = sphi 0, %s43
    %s46 = sphi 0, %s45
    %s60 = sphi 0, %s46
    %s64 = sphi 0, %s64
    %s66 = sphi 0, %s64
    %s67 = sphi 0, %s66
    %s81 = sphi 0, %s67
    %s87 = sphi 0, %s89
    %s90 = sphi 0, %s87
    %s91 = sphi 0, %s90
    %s107 = sphi 0, %s91
  $region4: #{_lambda_.34} parent=0 // loop_header_branch
    %12 = sbr.rel (%p10) target = $region8
  $region5: #{_lambda_.34} parent=0 // loop_body
    %s14 = ssub.s32 %s9, 1
    %s15 = ssub.s32 %s9, 2
    %s16 = sadd.s32 %s9, 1
    %s17 = ssub.s32 %s9, %s16
    %p18 = scmp.eq.s32.totalorder %s17, 0
    %s20 = sadd.s32 %s19, 1
    %s21 = scalar_select %p18, %s19, %s20
    %p24 = pneg %p18
    %p25 = scmp.eq.s32.totalorder %s9, 1
    %p26 = por %p24, %p25
    %p27 = scmp.ne.s32.totalorder %s19, %s22
    %p28 = scmp.eq.s32.totalorder %s9, 0
    %p29 = por %p27, %p28
    %p30 = scmp.ne.s32.totalorder %s19, %s22
    %p31 = scmp.eq.s32.totalorder %s14, 1
    %p32 = por %p30, %p31
    %p33 = scmp.ne.s32.totalorder %s22, %s23
    %p34 = scmp.eq.s32.totalorder %s14, 0
    %p35 = por %p33, %p34
    %p36 = scmp.ne.s32.totalorder %s22, %s23
    %p37 = scmp.eq.s32.totalorder %s15, 1
    %p38 = por %p36, %p37
    %p40 = scmp.ne.s32.totalorder %s23, %s39
    %p41 = scmp.eq.s32.totalorder %s15, 0
    %p42 = por %p40, %p41
    %s44 = sadd.s32 %s43, 1
    %p47 = scmp.eq.s32.totalorder %s9, 1
    %p48 = scmp.ne.s32.totalorder %s43, %s45
    %p49 = scmp.eq.s32.totalorder %s9, 0
    %p50 = por %p48, %p49
    %p51 = scmp.ne.s32.totalorder %s43, %s45
    %p52 = scmp.eq.s32.totalorder %s14, 1
    %p53 = por %p51, %p52
    %p54 = scmp.ne.s32.totalorder %s45, %s46
    %p55 = scmp.eq.s32.totalorder %s14, 0
    %p56 = por %p54, %p55
    %p57 = scmp.ne.s32.totalorder %s45, %s46
    %p58 = scmp.eq.s32.totalorder %s15, 1
    %p59 = por %p57, %p58
    %p61 = scmp.ne.s32.totalorder %s46, %s60
    %p62 = scmp.eq.s32.totalorder %s15, 0
    %p63 = por %p61, %p62
    %s65 = sadd.s32 %s64, 1
    %p68 = scmp.eq.s32.totalorder %s9, 1
    %p69 = scmp.ne.s32.totalorder %s64, %s66
    %p70 = scmp.eq.s32.totalorder %s9, 0
    %p71 = por %p69, %p70
    %p72 = scmp.ne.s32.totalorder %s64, %s66
    %p73 = scmp.eq.s32.totalorder %s14, 1
    %p74 = por %p72, %p73
    %p75 = scmp.ne.s32.totalorder %s66, %s67
    %p76 = scmp.eq.s32.totalorder %s14, 0
    %p77 = por %p75, %p76
    %p78 = scmp.ne.s32.totalorder %s66, %s67
    %p79 = scmp.eq.s32.totalorder %s15, 1
    %p80 = por %p78, %p79
    %p82 = scmp.ne.s32.totalorder %s67, %s81
    %p83 = scmp.eq.s32.totalorder %s15, 0
    %p84 = por %p82, %p83
    %s85 = ssub.s32 %s9, %s16
    %p86 = scmp.eq.s32.totalorder %s85, 0
    %s88 = sadd.s32 %s87, 1
    %s89 = scalar_select %p86, %s87, %s88
    %p92 = pneg %p86
    %p93 = scmp.eq.s32.totalorder %s9, 1
    %p94 = por %p92, %p93
    %p95 = scmp.ne.s32.totalorder %s87, %s90
    %p96 = scmp.eq.s32.totalorder %s9, 0
    %p97 = por %p95, %p96
    %p98 = scmp.ne.s32.totalorder %s87, %s90
    %p99 = scmp.eq.s32.totalorder %s14, 1
    %p100 = por %p98, %p99
    %p101 = scmp.ne.s32.totalorder %s90, %s91
    %p102 = scmp.eq.s32.totalorder %s14, 0
    %p103 = por %p101, %p102
    %p104 = scmp.ne.s32.totalorder %s90, %s91
    %p105 = scmp.eq.s32.totalorder %s15, 1
    %p106 = por %p104, %p105
    %p108 = scmp.ne.s32.totalorder %s91, %s107
    %p109 = scmp.eq.s32.totalorder %s15, 0
    %p110 = por %p108, %p109
    %p111 = scmp.le.s32.totalorder 1, %s9
    %p112 = scmp.lt.s32.totalorder %s9, 3
    %p113 = pnand %p111, %p112
    %p114 = pneg %p113
    // Predicated region
    $region9: #{_lambda_.34} parent=5 // pred_check
      _
    $region10: #{_lambda_.34} parent=5 // pred_check_branch
      %116 = sbr.rel (%p113) target = $region12
    $region11: #{_lambda_.34} parent=5 // pred_region
      %s117 = ssub.s32 %s9, 1
      // Predicated region
      $region13: #{_lambda_.34} parent=11 // pred_check
        %p118 = pneg %p56
      $region14: #{_lambda_.34} parent=11 // pred_check_branch
        %120 = sbr.rel (%p118) target = $region16
      $region15: #{_lambda_.34} parent=11 // pred_region
        _
      $region16: #{_lambda_.34} parent=11 // pred_fallthru
        _
      // Predicated region
      $region17: #{_lambda_.34} parent=11 // pred_check
        %p121 = pneg %p77
      $region18: #{_lambda_.34} parent=11 // pred_check_branch
        %123 = sbr.rel (%p121) target = $region20
      $region19: #{_lambda_.34} parent=11 // pred_region
        _
      $region20: #{_lambda_.34} parent=11 // pred_fallthru
        _
    $region12: #{_lambda_.34} parent=5 // pred_fallthru
      _
    %p124 = scmp.lt.s32.totalorder %s9, 2
    // Predicated region
    $region21: #{_lambda_.34} parent=5 // pred_check
      %p125 = pneg %p124
    $region22: #{_lambda_.34} parent=5 // pred_check_branch
      %127 = sbr.rel (%p125) target = $region24
    $region23: #{_lambda_.34} parent=5 // pred_region
      // Predicated region
      $region25: #{_lambda_.34} parent=23 // pred_check
        %p128 = pneg %p29
      $region26: #{_lambda_.34} parent=23 // pred_check_branch
        %130 = sbr.rel (%p128) target = $region28
      $region27: #{_lambda_.34} parent=23 // pred_region
        %p131 = scmp.lt.s32.totalorder %s9, 1
        %s132 = scalar_select %p131, %s9, 1
        %s133 = smul.addr %s132, 18
        %s134 = smul.addr %s133, 4
        %s135 = scalar_lea.vmem %s0, %s134
      $region28: #{_lambda_.34} parent=23 // pred_fallthru
        _
    $region24: #{_lambda_.34} parent=5 // pred_fallthru
      _
    %p136 = scmp.le.s32.totalorder 1, %s9
    %p137 = scmp.lt.s32.totalorder %s9, 3
    %p138 = pnand %p136, %p137
    %p139 = pneg %p138
    // Predicated region
    $region29: #{_lambda_.34} parent=5 // pred_check
      _
    $region30: #{_lambda_.34} parent=5 // pred_check_branch
      %141 = sbr.rel (%p138) target = $region32
    $region31: #{_lambda_.34} parent=5 // pred_region
      %s142 = ssub.s32 %s9, 1
      %p143 = scmp.lt.s32.totalorder %s14, 1
      %s144 = scalar_select %p143, %s14, 1
      %s145 = smul.addr %s144, 18
      %s146 = smul.addr %s145, 4
      %s147 = scalar_lea.vmem %s0, %s146
      %p148 = pneg %p35
      %p149 = pneg %p32
      %p150 = pneg %p56
      %p151 = pneg %p53
      %p152 = pneg %p77
      %p153 = pneg %p74
      %p154 = pneg %p103
      %p155 = pneg %p100
      %p156 = scmp.lt.s32.totalorder %s14, 1
      %s157 = scalar_select %p156, %s14, 1
      %s158 = smul.addr %s157, 2
      %s159 = scalar_lea.vmem %s3, %s158
      %p160 = scmp.lt.s32.totalorder %s14, 1
      %s161 = scalar_select %p160, %s14, 1
      %s162 = smul.addr %s161, 18
      %s163 = smul.addr %s162, 4
      %s164 = scalar_lea.vmem %s0, %s163
      %p165 = scmp.lt.s32.totalorder %s14, 1
      %s166 = scalar_select %p165, %s14, 1
      %s167 = smul.addr %s166, 2
      %s168 = scalar_lea.vmem %s3, %s167
      %v170 = vld [vmem:[%s1] sm:$0xf]
      %v171 = vld [vmem:[%s164] sm:$0xf]
      %v172 = vld [vmem:[%s164 + $0x4] sm:$0xf]
      %v173 = vld [vmem:[%s164 + $0x8] sm:$0xf]
      %v174 = vld [vmem:[%s164 + $0xc] sm:$0xf]
      %v175 = vld [vmem:[%s164 + $0x10] sm:$0xf]
      %v176 = vld [vmem:[%s164 + $0x14] sm:$0xf]
      %v177 = vld [vmem:[%s164 + $0x18] sm:$0xf]
      %v178 = vld [vmem:[%s164 + $0x1c] sm:$0xf]
      %v179 = vld [vmem:[%s164 + $0x20] sm:$0xf]
      %v180 = vld [vmem:[%s164 + $0x24] sm:$0xf]
      %v181 = vld [vmem:[%s164 + $0x28] sm:$0xf]
      %v182 = vld [vmem:[%s164 + $0x2c] sm:$0xf]
      %v183 = vld [vmem:[%s164 + $0x30] sm:$0xf]
      %v184 = vld [vmem:[%s164 + $0x34] sm:$0xf]
      %v185 = vld [vmem:[%s164 + $0x38] sm:$0xf]
      %v186 = vld [vmem:[%s164 + $0x3c] sm:$0xf]
      %v187 = vld [vmem:[%s164 + $0x40] sm:$0xf]
      %v188 = vld [vmem:[%s164 + $0x44] sm:$0xf]
      %v189 = vld [vmem:[%s2] sm:$0xf]
      %191 = vset.pattern.permute.xlu0 0
      %192 = vperm.xlu0 %191, %v189
      %v193 = vpop.permute.xlu0 %192
      %196 = vst [vmem:[#allocation1] ss:$4 sm:$0xff] %v170
      %v197 = vld.sshfl [vmem:[#allocation1] sm:$0xff pattern:$0x73625140]
      %v198 = vld.sshfl [vmem:[#allocation1 + $0x8] sm:$0xff pattern:$0x73625140]
      %v218 = vunpack.c.l.b16 %v171
      %v219 = vunpack.c.l.b16 %v172
      %v220 = vunpack.c.l.b16 %v173
      %v221 = vunpack.c.l.b16 %v174
      %v222 = vunpack.c.l.b16 %v175
      %v223 = vunpack.c.l.b16 %v176
      %v224 = vunpack.c.l.b16 %v177
      %v225 = vunpack.c.l.b16 %v178
      %v226 = vunpack.c.l.b16 %v179
      %v227 = vunpack.c.l.b16 %v180
      %v228 = vunpack.c.l.b16 %v181
      %v229 = vunpack.c.l.b16 %v182
      %v230 = vunpack.c.l.b16 %v183
      %v231 = vunpack.c.l.b16 %v184
      %v232 = vunpack.c.l.b16 %v185
      %v233 = vunpack.c.l.b16 %v186
      %v234 = vunpack.c.l.b16 %v187
      %v235 = vunpack.c.l.b16 %v188
      %v236 = vpack.c.b16 %v219, %v218
      %v237 = vpack.c.b16 %v221, %v220
      %v238 = vpack.c.b16 %v223, %v222
      %v239 = vpack.c.b16 %v225, %v224
      %v240 = vpack.c.b16 %v227, %v226
      %v241 = vpack.c.b16 %v229, %v228
      %v242 = vpack.c.b16 %v231, %v230
      %v243 = vpack.c.b16 %v233, %v232
      %v244 = vpack.c.b16 %v235, %v234
      %vm254 = vcmask 130048
      %v255 = vsel %vm254, %v198, 0
      %257 = vmatpush.bf16.msra.mxu0 %v243
      %258 = vmatpush.bf16.msra.mxu0 %v242
      %259 = vmatpush.bf16.msra.mxu0 %v241
      %260 = vmatpush.bf16.msra.mxu0 %v240
      %261 = vmatpush.bf16.msra.mxu0 %v239
      %262 = vmatpush.bf16.msra.mxu0 %v238
      %263 = vmatpush.bf16.msra.mxu0 %v237
      %264 = vmatpush.bf16.msra.mxu0 %v236
      %265 = vmatmul.bf16.gmra.mxu0 %v197
      %v266 = vpop.f32.mrf.mxu0
      %v267 = vadd.f32 %v193, %v266
      %v268 = vpop.f32.mrf.mxu0
      %269 = vdwg.mxu0
      %270 = vmatpush.bf16.msra.mxu0 0
      %271 = vmatpush.bf16.msra.mxu0 0
      %272 = vmatpush.bf16.msra.mxu0 0
      %273 = vmatpush.bf16.msra.mxu0 0
      %274 = vmatpush.bf16.msra.mxu0 0
      %275 = vmatpush.bf16.msra.mxu0 0
      %276 = vmatpush.bf16.msra.mxu0 0
      %277 = vmatpush.bf16.msra.mxu0 %v244
      %278 = vmatmul.bf16.gmra.mxu0 %v255
      %v279 = vpop.f32.mrf.mxu0
      %v280 = vadd.f32 %v267, %v279
      %v281 = vpop.f32.mrf.mxu0
      %282 = vdwg.mxu0
      %vm283 = vcmask 519168
      %v284 = vsel %vm283, %v280, 0.0
      %285 = vadd.xlane.f32.xlu0 %v284
      %v286 = vpop.xlane.xlu0 %285
      %v287 = vrot.slane %v286, 4
      %v288 = vadd.f32 %v286, %v287
      %v289 = vrot.slane %v288, 2
      %v290 = vadd.f32 %v288, %v289
      %v291 = vrot.slane %v290, 1
      %v292 = vadd.f32 %v290, %v291
      %s293 = vtos %v292
      %v294 = vstv %s293
      %v295 = vrcp.pop 256.0
      %v296 = vmul.f32 256.0, %v295
      %v297 = vsub.f32 1.0, %v296
      %v298 = vmul.f32 %v295, %v297
      %v299 = vadd.f32 %v295, %v298
      %vm300 = vweird.f32 %v295
      %v301 = vsel %vm300, %v295, %v299
      %v302 = vmul.f32 %v294, %v301
      %v303 = vmul.f32 %v280, %v280
      %v304 = vsel %vm283, %v303, 0.0
      %305 = vadd.xlane.f32.xlu0 %v304
      %v306 = vpop.xlane.xlu0 %305
      %v307 = vrot.slane %v306, 4
      %v308 = vadd.f32 %v306, %v307
      %v309 = vrot.slane %v308, 2
      %v310 = vadd.f32 %v308, %v309
      %v311 = vrot.slane %v310, 1
      %v312 = vadd.f32 %v310, %v311
      %s313 = vtos %v312
      %v314 = vstv %s313
      %v315 = vmul.f32 %v314, %v301
      %v316 = vmul.f32 %v302, %v302
      %v317 = vsub.f32 %v315, %v316
      %v318 = vmax.f32 %v317, 0.0
      %v319 = vld [vmem:[%s2] sm:$0xf]
      %v320 = vadd.f32 %v318, 1e-05
      %v321 = vrsqrt.pop %v320
      %v322 = vmul.f32 %v321, %v320
      %v323 = vmul.f32 %v322, %v321
      %v324 = vmul.f32 0.5, %v323
      %v325 = vsub.f32 1.5, %v324
      %v326 = vmul.f32 %v321, %v325
      %vm327 = vweird.f32 %v320
      %vm328 = vweird.f32 %v321
      %vm329 = vmor %vm327, %vm328
      %v330 = vsel %vm329, %v321, %v326
      %v331 = vmul.f32 %v319, %v330
      %v332 = vmul.f32 %v302, %v331
      %334 = vrot.lane.b32.xlu0 %v332, 1
      %v335 = vpop.permute.xlu0 %334
      %v337 = vsub.f32 %v319, %v335
      %339 = vset.pattern.permute.xlu0 1
      %340 = vperm.xlu0 %339, %v331
      %v341 = vpop.permute.xlu0 %340
      %v343 = vmul.f32 %v280, %v341
      %345 = vset.pattern.permute.xlu0 2
      %346 = vperm.xlu0 %345, %v337
      %v347 = vpop.permute.xlu0 %346
      %v349 = vadd.f32 %v343, %v347
      %v350 = vmax.f32 %v349, 0.0
      %v351 = vpack.c.bf16 %v350, %v350
      %vm352 = vcmask 517120
      %353 = vst.msk [vmem:[%s168] sm:$0x3] %vm352, %v351
      %p354 = scmp.lt.s32.totalorder %s14, 1
      %s355 = scalar_select %p354, %s14, 1
      %s356 = smul.addr %s355, 2
      %s357 = scalar_lea.vmem %s3, %s356
      // Predicated region
      $region33: #{_lambda_.34} parent=31 // pred_check
        %p358 = pneg %p100
      $region34: #{_lambda_.34} parent=31 // pred_check_branch
        %360 = sbr.rel (%p358) target = $region36
      $region35: #{_lambda_.34} parent=31 // pred_region
        _
      $region36: #{_lambda_.34} parent=31 // pred_fallthru
        _
    $region32: #{_lambda_.34} parent=5 // pred_fallthru
      _
    %p361 = scmp.le.s32.totalorder 2, %s9
    // Predicated region
    $region37: #{_lambda_.34} parent=5 // pred_check
      %p362 = pneg %p361
    $region38: #{_lambda_.34} parent=5 // pred_check_branch
      %364 = sbr.rel (%p362) target = $region40
    $region39: #{_lambda_.34} parent=5 // pred_region
      %s365 = ssub.s32 %s9, 2
      // Predicated region
      $region41: #{_lambda_.34} parent=39 // pred_check
        %p366 = pneg %p106
      $region42: #{_lambda_.34} parent=39 // pred_check_branch
        %368 = sbr.rel (%p366) target = $region44
      $region43: #{_lambda_.34} parent=39 // pred_region
        %p369 = scmp.lt.s32.totalorder %s15, 1
        %s370 = scalar_select %p369, %s15, 1
        %s371 = smul.addr %s370, 2
        %s372 = scalar_lea.vmem %s3, %s371
      $region44: #{_lambda_.34} parent=39 // pred_fallthru
        _
    $region40: #{_lambda_.34} parent=5 // pred_fallthru
      _
  $region6: #{_lambda_.34} parent=0 // loop_footer
    %s13 = sadd.s32 1, %s9
  $region7: #{_lambda_.34} parent=0 // loop_footer_branch
    %8 = sbr.rel target = $region3
  $region8: #{_lambda_.34} parent=0 // loop_exit
    _

// kernel: _lambda_.35
$region0: #{_lambda_.35}
  #allocation0 [shape = 'u32[]', space=smem, size = 0x4, offset = 0x4, fixed_abs, tag = 'smem constant byte address 0x4 - core index']
  #allocation1 [shape = 'u32[72,128]{1,0:T(1,128)}', space=vmem, size = 0x9000, scoped, tag = 'internal scratch']
  %s0 = inlined_call_operand.vmem [shape: bf16[2,36,64], index: 0, kind: input, shape index: {}]
  %s1 = inlined_call_operand.vmem [shape: bf16[4,36], index: 1, kind: input, shape index: {}]
  %s2 = inlined_call_operand.vmem [shape: f32[4,4], index: 2, kind: input, shape index: {}]
  %s3 = inlined_call_operand.vmem [shape: bf16[2,16,64], index: 3, kind: input, shape index: {}]
  %s4 = inlined_call_operand.vmem [shape: bf16[4,16], index: 4, kind: input, shape index: {}]
  %s5 = inlined_call_operand.vmem [shape: bf16[2,4,64], index: 5, kind: output, shape index: {}]
  %s6 = sld [smem:[#allocation0]]
  $region53: #{_lambda_.35} parent=0
    _
  %s8 = ssub.s32 1, %s6
  %s9 = scalar_select 0, %s8, %s6
  loop: start=0, step=1, limit=4
  $region2: #{_lambda_.35} parent=0 // loop_pre_header
    _
  $region3: #{_lambda_.35} parent=0 // loop_header
    %s11 = sphi 0, %s15
    %p12 = scmp.ge.s32.totalorder %s11, 4
    %s21 = sphi 0, %s23
    %s24 = sphi 0, %s21
    %s25 = sphi 0, %s24
    %s41 = sphi 0, %s25
    %s45 = sphi 0, %s45
    %s47 = sphi 0, %s45
    %s48 = sphi 0, %s47
    %s62 = sphi 0, %s48
    %s66 = sphi 0, %s66
    %s68 = sphi 0, %s66
    %s69 = sphi 0, %s68
    %s83 = sphi 0, %s69
    %s89 = sphi 0, %s91
    %s92 = sphi 0, %s89
    %s93 = sphi 0, %s92
    %s109 = sphi 0, %s93
    %s113 = sphi 0, %s113
    %s115 = sphi 0, %s113
    %s116 = sphi 0, %s115
    %s130 = sphi 0, %s116
    %s136 = sphi 0, %s138
    %s139 = sphi 0, %s136
    %s140 = sphi 0, %s139
    %s156 = sphi 0, %s140
  $region4: #{_lambda_.35} parent=0 // loop_header_branch
    %14 = sbr.rel (%p12) target = $region8
  $region5: #{_lambda_.35} parent=0 // loop_body
    %s16 = ssub.s32 %s11, 1
    %s17 = ssub.s32 %s11, 2
    %s18 = sadd.s32 %s11, 1
    %s19 = ssub.s32 %s11, %s18
    %p20 = scmp.eq.s32.totalorder %s19, 0
    %s22 = sadd.s32 %s21, 1
    %s23 = scalar_select %p20, %s21, %s22
    %p26 = pneg %p20
    %p27 = scmp.eq.s32.totalorder %s11, 1
    %p28 = por %p26, %p27
    %p29 = scmp.ne.s32.totalorder %s21, %s24
    %p30 = scmp.eq.s32.totalorder %s11, 0
    %p31 = por %p29, %p30
    %p32 = scmp.ne.s32.totalorder %s21, %s24
    %p33 = scmp.eq.s32.totalorder %s16, 1
    %p34 = por %p32, %p33
    %p35 = scmp.ne.s32.totalorder %s24, %s25
    %p36 = scmp.eq.s32.totalorder %s16, 0
    %p37 = por %p35, %p36
    %p38 = scmp.ne.s32.totalorder %s24, %s25
    %p39 = scmp.eq.s32.totalorder %s17, 1
    %p40 = por %p38, %p39
    %p42 = scmp.ne.s32.totalorder %s25, %s41
    %p43 = scmp.eq.s32.totalorder %s17, 0
    %p44 = por %p42, %p43
    %s46 = sadd.s32 %s45, 1
    %p49 = scmp.eq.s32.totalorder %s11, 1
    %p50 = scmp.ne.s32.totalorder %s45, %s47
    %p51 = scmp.eq.s32.totalorder %s11, 0
    %p52 = por %p50, %p51
    %p53 = scmp.ne.s32.totalorder %s45, %s47
    %p54 = scmp.eq.s32.totalorder %s16, 1
    %p55 = por %p53, %p54
    %p56 = scmp.ne.s32.totalorder %s47, %s48
    %p57 = scmp.eq.s32.totalorder %s16, 0
    %p58 = por %p56, %p57
    %p59 = scmp.ne.s32.totalorder %s47, %s48
    %p60 = scmp.eq.s32.totalorder %s17, 1
    %p61 = por %p59, %p60
    %p63 = scmp.ne.s32.totalorder %s48, %s62
    %p64 = scmp.eq.s32.totalorder %s17, 0
    %p65 = por %p63, %p64
    %s67 = sadd.s32 %s66, 1
    %p70 = scmp.eq.s32.totalorder %s11, 1
    %p71 = scmp.ne.s32.totalorder %s66, %s68
    %p72 = scmp.eq.s32.totalorder %s11, 0
    %p73 = por %p71, %p72
    %p74 = scmp.ne.s32.totalorder %s66, %s68
    %p75 = scmp.eq.s32.totalorder %s16, 1
    %p76 = por %p74, %p75
    %p77 = scmp.ne.s32.totalorder %s68, %s69
    %p78 = scmp.eq.s32.totalorder %s16, 0
    %p79 = por %p77, %p78
    %p80 = scmp.ne.s32.totalorder %s68, %s69
    %p81 = scmp.eq.s32.totalorder %s17, 1
    %p82 = por %p80, %p81
    %p84 = scmp.ne.s32.totalorder %s69, %s83
    %p85 = scmp.eq.s32.totalorder %s17, 0
    %p86 = por %p84, %p85
    %s87 = ssub.s32 %s11, %s18
    %p88 = scmp.eq.s32.totalorder %s87, 0
    %s90 = sadd.s32 %s89, 1
    %s91 = scalar_select %p88, %s89, %s90
    %p94 = pneg %p88
    %p95 = scmp.eq.s32.totalorder %s11, 1
    %p96 = por %p94, %p95
    %p97 = scmp.ne.s32.totalorder %s89, %s92
    %p98 = scmp.eq.s32.totalorder %s11, 0
    %p99 = por %p97, %p98
    %p100 = scmp.ne.s32.totalorder %s89, %s92
    %p101 = scmp.eq.s32.totalorder %s16, 1
    %p102 = por %p100, %p101
    %p103 = scmp.ne.s32.totalorder %s92, %s93
    %p104 = scmp.eq.s32.totalorder %s16, 0
    %p105 = por %p103, %p104
    %p106 = scmp.ne.s32.totalorder %s92, %s93
    %p107 = scmp.eq.s32.totalorder %s17, 1
    %p108 = por %p106, %p107
    %p110 = scmp.ne.s32.totalorder %s93, %s109
    %p111 = scmp.eq.s32.totalorder %s17, 0
    %p112 = por %p110, %p111
    %s114 = sadd.s32 %s113, 1
    %p117 = scmp.eq.s32.totalorder %s11, 1
    %p118 = scmp.ne.s32.totalorder %s113, %s115
    %p119 = scmp.eq.s32.totalorder %s11, 0
    %p120 = por %p118, %p119
    %p121 = scmp.ne.s32.totalorder %s113, %s115
    %p122 = scmp.eq.s32.totalorder %s16, 1
    %p123 = por %p121, %p122
    %p124 = scmp.ne.s32.totalorder %s115, %s116
    %p125 = scmp.eq.s32.totalorder %s16, 0
    %p126 = por %p124, %p125
    %p127 = scmp.ne.s32.totalorder %s115, %s116
    %p128 = scmp.eq.s32.totalorder %s17, 1
    %p129 = por %p127, %p128
    %p131 = scmp.ne.s32.totalorder %s116, %s130
    %p132 = scmp.eq.s32.totalorder %s17, 0
    %p133 = por %p131, %p132
    %s134 = ssub.s32 %s11, %s18
    %p135 = scmp.eq.s32.totalorder %s134, 0
    %s137 = sadd.s32 %s136, 1
    %s138 = scalar_select %p135, %s136, %s137
    %p141 = pneg %p135
    %p142 = scmp.eq.s32.totalorder %s11, 1
    %p143 = por %p141, %p142
    %p144 = scmp.ne.s32.totalorder %s136, %s139
    %p145 = scmp.eq.s32.totalorder %s11, 0
    %p146 = por %p144, %p145
    %p147 = scmp.ne.s32.totalorder %s136, %s139
    %p148 = scmp.eq.s32.totalorder %s16, 1
    %p149 = por %p147, %p148
    %p150 = scmp.ne.s32.totalorder %s139, %s140
    %p151 = scmp.eq.s32.totalorder %s16, 0
    %p152 = por %p150, %p151
    %p153 = scmp.ne.s32.totalorder %s139, %s140
    %p154 = scmp.eq.s32.totalorder %s17, 1
    %p155 = por %p153, %p154
    %p157 = scmp.ne.s32.totalorder %s140, %s156
    %p158 = scmp.eq.s32.totalorder %s17, 0
    %p159 = por %p157, %p158
    %p160 = scmp.le.s32.totalorder 1, %s11
    %p161 = scmp.lt.s32.totalorder %s11, 3
    %p162 = pnand %p160, %p161
    %p163 = pneg %p162
    // Predicated region
    $region9: #{_lambda_.35} parent=5 // pred_check
      _
    $region10: #{_lambda_.35} parent=5 // pred_check_branch
      %165 = sbr.rel (%p162) target = $region12
    $region11: #{_lambda_.35} parent=5 // pred_region
      %s166 = ssub.s32 %s11, 1
      // Predicated region
      $region13: #{_lambda_.35} parent=11 // pred_check
        %p167 = pneg %p58
      $region14: #{_lambda_.35} parent=11 // pred_check_branch
        %169 = sbr.rel (%p167) target = $region16
      $region15: #{_lambda_.35} parent=11 // pred_region
        _
      $region16: #{_lambda_.35} parent=11 // pred_fallthru
        _
      // Predicated region
      $region17: #{_lambda_.35} parent=11 // pred_check
        %p170 = pneg %p79
      $region18: #{_lambda_.35} parent=11 // pred_check_branch
        %172 = sbr.rel (%p170) target = $region20
      $region19: #{_lambda_.35} parent=11 // pred_region
        _
      $region20: #{_lambda_.35} parent=11 // pred_fallthru
        _
      // Predicated region
      $region21: #{_lambda_.35} parent=11 // pred_check
        %p173 = pneg %p126
      $region22: #{_lambda_.35} parent=11 // pred_check_branch
        %175 = sbr.rel (%p173) target = $region24
      $region23: #{_lambda_.35} parent=11 // pred_region
        _
      $region24: #{_lambda_.35} parent=11 // pred_fallthru
        _
    $region12: #{_lambda_.35} parent=5 // pred_fallthru
      _
    %p176 = scmp.lt.s32.totalorder %s11, 2
    // Predicated region
    $region25: #{_lambda_.35} parent=5 // pred_check
      %p177 = pneg %p176
    $region26: #{_lambda_.35} parent=5 // pred_check_branch
      %179 = sbr.rel (%p177) target = $region28
    $region27: #{_lambda_.35} parent=5 // pred_region
      // Predicated region
      $region29: #{_lambda_.35} parent=27 // pred_check
        %p180 = pneg %p31
      $region30: #{_lambda_.35} parent=27 // pred_check_branch
        %182 = sbr.rel (%p180) target = $region32
      $region31: #{_lambda_.35} parent=27 // pred_region
        %p183 = scmp.lt.s32.totalorder %s11, 1
        %s184 = scalar_select %p183, %s11, 1
        %s185 = smul.addr %s184, 5
        %s186 = smul.addr %s185, 4
        %s187 = scalar_lea.vmem %s0, %s186
      $region32: #{_lambda_.35} parent=27 // pred_fallthru
        _
      // Predicated region
      $region33: #{_lambda_.35} parent=27 // pred_check
        %p188 = pneg %p99
      $region34: #{_lambda_.35} parent=27 // pred_check_branch
        %190 = sbr.rel (%p188) target = $region36
      $region35: #{_lambda_.35} parent=27 // pred_region
        %p191 = scmp.lt.s32.totalorder %s11, 1
        %s192 = scalar_select %p191, %s11, 1
        %s193 = smul.addr %s192, 2
        %s194 = smul.addr %s193, 4
        %s195 = scalar_lea.vmem %s3, %s194
      $region36: #{_lambda_.35} parent=27 // pred_fallthru
        _
    $region28: #{_lambda_.35} parent=5 // pred_fallthru
      _
    %p196 = scmp.le.s32.totalorder 1, %s11
    %p197 = scmp.lt.s32.totalorder %s11, 3
    %p198 = pnand %p196, %p197
    %p199 = pneg %p198
    // Predicated region
    $region37: #{_lambda_.35} parent=5 // pred_check
      _
    $region38: #{_lambda_.35} parent=5 // pred_check_branch
      %201 = sbr.rel (%p198) target = $region40
    $region39: #{_lambda_.35} parent=5 // pred_region
      %s202 = ssub.s32 %s11, 1
      %p203 = scmp.lt.s32.totalorder %s16, 1
      %s204 = scalar_select %p203, %s16, 1
      %s205 = smul.addr %s204, 5
      %s206 = smul.addr %s205, 4
      %s207 = scalar_lea.vmem %s0, %s206
      %p208 = pneg %p37
      %p209 = pneg %p34
      %p210 = pneg %p58
      %p211 = pneg %p55
      %p212 = pneg %p79
      %p213 = pneg %p76
      %p214 = scmp.lt.s32.totalorder %s16, 1
      %s215 = scalar_select %p214, %s16, 1
      %s216 = smul.addr %s215, 2
      %s217 = smul.addr %s216, 4
      %s218 = scalar_lea.vmem %s3, %s217
      %p219 = pneg %p105
      %p220 = pneg %p102
      %p221 = pneg %p126
      %p222 = pneg %p123
      %p223 = pneg %p152
      %p224 = pneg %p149
      %p225 = scmp.lt.s32.totalorder %s16, 1
      %s226 = scalar_select %p225, %s16, 1
      %s227 = smul.addr %s226, 2
      %s228 = scalar_lea.vmem %s5, %s227
      %p229 = scmp.lt.s32.totalorder %s16, 1
      %s230 = scalar_select %p229, %s16, 1
      %s231 = smul.addr %s230, 5
      %s232 = smul.addr %s231, 4
      %s233 = scalar_lea.vmem %s0, %s232
      %p234 = scmp.lt.s32.totalorder %s16, 1
      %s235 = scalar_select %p234, %s16, 1
      %s236 = smul.addr %s235, 2
      %s237 = smul.addr %s236, 4
      %s238 = scalar_lea.vmem %s3, %s237
      %p239 = scmp.lt.s32.totalorder %s16, 1
      %s240 = scalar_select %p239, %s16, 1
      %s241 = smul.addr %s240, 2
      %s242 = scalar_lea.vmem %s5, %s241
      %v244 = vld [vmem:[%s1] sm:$0x3]
      %v245 = vld [vmem:[%s233] sm:$0xf]
      %v246 = vld [vmem:[%s233 + $0x4] sm:$0xf]
      %v247 = vld [vmem:[%s233 + $0x8] sm:$0xf]
      %v248 = vld [vmem:[%s233 + $0xc] sm:$0xf]
      %v249 = vld [vmem:[%s233 + $0x10] sm:$0x3]
      %v250 = vld [vmem:[%s2] sm:$0xf]
      %252 = vset.pattern.permute.xlu0 0
      %253 = vperm.xlu0 %252, %v250
      %v254 = vpop.permute.xlu0 %253
      %v261 = vunpack.c.l.b16 %v245
      %v262 = vunpack.c.l.b16 %v246
      %v263 = vunpack.c.l.b16 %v247
      %v264 = vunpack.c.l.b16 %v248
      %v265 = vunpack.c.l.b16 %v249
      %v266 = vpack.c.b16 %v262, %v261
      %v267 = vpack.c.b16 %v264, %v263
      %v268 = vpack.c.b16 %v265, %v265
      %vm271 = vcmask 293888
      %v273 = vsel %vm271, %v244, 0
      %vm275 = vcmask 1041408
      %v277 = vsel %vm275, %v268, 0
      %279 = vmatpush.bf16.msra.mxu0 0
      %280 = vmatpush.bf16.msra.mxu0 0
      %281 = vmatpush.bf16.msra.mxu0 0
      %282 = vmatpush.bf16.msra.mxu0 0
      %283 = vmatpush.bf16.msra.mxu0 0
      %284 = vmatpush.bf16.msra.mxu0 %v277
      %285 = vmatpush.bf16.msra.mxu0 %v267
      %286 = vmatpush.bf16.msra.mxu0 %v266
      %287 = vmatmul.bf16.gmra.mxu0 %v273
      %v288 = vpop.f32.mrf.mxu0
      %v289 = vadd.f32 %v254, %v288
      %v290 = vpop.f32.mrf.mxu0
      %291 = vdwg.mxu0
      %vm292 = vcmask 519168
      %v293 = vsel %vm292, %v289, 0.0
      %294 = vadd.xlane.f32.xlu0 %v293
      %v295 = vpop.xlane.xlu0 %294
      %v296 = vrot.slane %v295, 4
      %v297 = vadd.f32 %v295, %v296
      %v298 = vrot.slane %v297, 2
      %v299 = vadd.f32 %v297, %v298
      %v300 = vrot.slane %v299, 1
      %v301 = vadd.f32 %v299, %v300
      %s302 = vtos %v301
      %v303 = vstv %s302
      %v304 = vrcp.pop 256.0
      %v305 = vmul.f32 256.0, %v304
      %v306 = vsub.f32 1.0, %v305
      %v307 = vmul.f32 %v304, %v306
      %v308 = vadd.f32 %v304, %v307
      %vm309 = vweird.f32 %v304
      %v310 = vsel %vm309, %v304, %v308
      %v311 = vmul.f32 %v303, %v310
      %v312 = vmul.f32 %v289, %v289
      %v313 = vsel %vm292, %v312, 0.0
      %314 = vadd.xlane.f32.xlu0 %v313
      %v315 = vpop.xlane.xlu0 %314
      %v316 = vrot.slane %v315, 4
      %v317 = vadd.f32 %v315, %v316
      %v318 = vrot.slane %v317, 2
      %v319 = vadd.f32 %v317, %v318
      %v320 = vrot.slane %v319, 1
      %v321 = vadd.f32 %v319, %v320
      %s322 = vtos %v321
      %v323 = vstv %s322
      %v324 = vmul.f32 %v323, %v310
      %v325 = vmul.f32 %v311, %v311
      %v326 = vsub.f32 %v324, %v325
      %v327 = vmax.f32 %v326, 0.0
      %v328 = vadd.f32 %v327, 1e-05
      %v329 = vrsqrt.pop %v328
      %v330 = vmul.f32 %v329, %v328
      %v331 = vmul.f32 %v330, %v329
      %v332 = vmul.f32 0.5, %v331
      %v333 = vsub.f32 1.5, %v332
      %v334 = vmul.f32 %v329, %v333
      %vm335 = vweird.f32 %v328
      %vm336 = vweird.f32 %v329
      %vm337 = vmor %vm335, %vm336
      %v338 = vsel %vm337, %v329, %v334
      %v339 = vmul.f32 %v250, %v338
      %v340 = vmul.f32 %v311, %v339
      %342 = vrot.lane.b32.xlu0 %v340, 1
      %v343 = vpop.permute.xlu0 %342
      %v345 = vsub.f32 %v250, %v343
      %347 = vset.pattern.permute.xlu0 1
      %348 = vperm.xlu0 %347, %v339
      %v349 = vpop.permute.xlu0 %348
      %v351 = vmul.f32 %v289, %v349
      %353 = vset.pattern.permute.xlu0 2
      %354 = vperm.xlu0 %353, %v345
      %v355 = vpop.permute.xlu0 %354
      %v357 = vadd.f32 %v351, %v355
      %v358 = vld [vmem:[%s4] sm:$0x3]
      %v359 = vld [vmem:[%s238] sm:$0xf]
      %v360 = vld [vmem:[%s238 + $0x4] sm:$0xf]
      %v363 = vunpack.c.l.b16 %v359
      %v364 = vunpack.c.l.b16 %v360
      %v365 = vpack.c.b16 %v364, %v363
      %vm367 = vcmask 130048
      %v369 = vsel %vm367, %v358, 0
      %371 = vmatpush.bf16.msra.mxu0 0
      %372 = vmatpush.bf16.msra.mxu0 0
      %373 = vmatpush.bf16.msra.mxu0 0
      %374 = vmatpush.bf16.msra.mxu0 0
      %375 = vmatpush.bf16.msra.mxu0 0
      %376 = vmatpush.bf16.msra.mxu0 0
      %377 = vmatpush.bf16.msra.mxu0 0
      %378 = vmatpush.bf16.msra.mxu0 %v365
      %379 = vmatmul.bf16.gmra.mxu0 %v369
      %v380 = vpop.f32.mrf.mxu0
      %v381 = vadd.f32 0.0, %v380
      %v382 = vpop.f32.mrf.mxu0
      %383 = vdwg.mxu0
      %v384 = vadd.f32 %v357, %v381
      %385 = vset.pattern.permute.xlu0 3
      %386 = vperm.xlu0 %385, %v250
      %v387 = vpop.permute.xlu0 %386
      %v389 = vadd.f32 %v384, %v387
      %v390 = vmax.f32 %v389, 0.0
      %v391 = vpack.c.bf16 %v390, %v390
      %vm392 = vcmask 517120
      %393 = vst.msk [vmem:[%s242] sm:$0x3] %vm392, %v391
      %p394 = scmp.lt.s32.totalorder %s16, 1
      %s395 = scalar_select %p394, %s16, 1
      %s396 = smul.addr %s395, 2
      %s397 = scalar_lea.vmem %s5, %s396
      // Predicated region
      $region41: #{_lambda_.35} parent=39 // pred_check
        %p398 = pneg %p149
      $region42: #{_lambda_.35} parent=39 // pred_check_branch
        %400 = sbr.rel (%p398) target = $region44
      $region43: #{_lambda_.35} parent=39 // pred_region
        _
      $region44: #{_lambda_.35} parent=39 // pred_fallthru
        _
    $region40: #{_lambda_.35} parent=5 // pred_fallthru
      _
    %p401 = scmp.le.s32.totalorder 2, %s11
    // Predicated region
    $region45: #{_lambda_.35} parent=5 // pred_check
      %p402 = pneg %p401
    $region46: #{_lambda_.35} parent=5 // pred_check_branch
      %404 = sbr.rel (%p402) target = $region48
    $region47: #{_lambda_.35} parent=5 // pred_region
      %s405 = ssub.s32 %s11, 2
      // Predicated region
      $region49: #{_lambda_.35} parent=47 // pred_check
        %p406 = pneg %p155
      $region50: #{_lambda_.35} parent=47 // pred_check_branch
        %408 = sbr.rel (%p406) target = $region52
      $region51: #{_lambda_.35} parent=47 // pred_region
        %p409 = scmp.lt.s32.totalorder %s17, 1
        %s410 = scalar_select %p409, %s17, 1
        %s411 = smul.addr %s410, 2
        %s412 = scalar_lea.vmem %s5, %s411
      $region52: #{_lambda_.35} parent=47 // pred_fallthru
        _
    $region48: #{_lambda_.35} parent=5 // pred_fallthru
      _
  $region6: #{_lambda_.35} parent=0 // loop_footer
    %s15 = sadd.s32 1, %s11
  $region7: #{_lambda_.35} parent=0 // loop_footer_branch
    %10 = sbr.rel target = $region3
  $region8: #{_lambda_.35} parent=0 // loop_exit
    _

// kernel: _lambda_.36
$region0: #{_lambda_.36}
  #allocation0 [shape = 'u32[]', space=smem, size = 0x4, offset = 0x4, fixed_abs, tag = 'smem constant byte address 0x4 - core index']
  #allocation1 [shape = 'u32[72,128]{1,0:T(1,128)}', space=vmem, size = 0x9000, scoped, tag = 'internal scratch']
  %s0 = inlined_call_operand.vmem [shape: bf16[2,72,256], index: 0, kind: input, shape index: {}]
  %s1 = inlined_call_operand.vmem [shape: bf16[4,72], index: 1, kind: input, shape index: {}]
  %s2 = inlined_call_operand.vmem [shape: f32[4,4], index: 2, kind: input, shape index: {}]
  %s3 = inlined_call_operand.vmem [shape: bf16[2,4,256], index: 3, kind: output, shape index: {}]
  %s4 = sld [smem:[#allocation0]]
  $region45: #{_lambda_.36} parent=0
    _
  %s6 = ssub.s32 1, %s4
  %s7 = scalar_select 0, %s6, %s4
  loop: start=0, step=1, limit=4
  $region2: #{_lambda_.36} parent=0 // loop_pre_header
    _
  $region3: #{_lambda_.36} parent=0 // loop_header
    %s9 = sphi 0, %s13
    %p10 = scmp.ge.s32.totalorder %s9, 4
    %s19 = sphi 0, %s21
    %s22 = sphi 0, %s19
    %s23 = sphi 0, %s22
    %s39 = sphi 0, %s23
    %s43 = sphi 0, %s43
    %s45 = sphi 0, %s43
    %s46 = sphi 0, %s45
    %s60 = sphi 0, %s46
    %s64 = sphi 0, %s64
    %s66 = sphi 0, %s64
    %s67 = sphi 0, %s66
    %s81 = sphi 0, %s67
    %s87 = sphi 0, %s89
    %s90 = sphi 0, %s87
    %s91 = sphi 0, %s90
    %s107 = sphi 0, %s91
  $region4: #{_lambda_.36} parent=0 // loop_header_branch
    %12 = sbr.rel (%p10) target = $region8
  $region5: #{_lambda_.36} parent=0 // loop_body
    %s14 = ssub.s32 %s9, 1
    %s15 = ssub.s32 %s9, 2
    %s16 = sadd.s32 %s9, 1
    %s17 = ssub.s32 %s9, %s16
    %p18 = scmp.eq.s32.totalorder %s17, 0
    %s20 = sadd.s32 %s19, 1
    %s21 = scalar_select %p18, %s19, %s20
    %p24 = pneg %p18
    %p25 = scmp.eq.s32.totalorder %s9, 1
    %p26 = por %p24, %p25
    %p27 = scmp.ne.s32.totalorder %s19, %s22
    %p28 = scmp.eq.s32.totalorder %s9, 0
    %p29 = por %p27, %p28
    %p30 = scmp.ne.s32.totalorder %s19, %s22
    %p31 = scmp.eq.s32.totalorder %s14, 1
    %p32 = por %p30, %p31
    %p33 = scmp.ne.s32.totalorder %s22, %s23
    %p34 = scmp.eq.s32.totalorder %s14, 0
    %p35 = por %p33, %p34
    %p36 = scmp.ne.s32.totalorder %s22, %s23
    %p37 = scmp.eq.s32.totalorder %s15, 1
    %p38 = por %p36, %p37
    %p40 = scmp.ne.s32.totalorder %s23, %s39
    %p41 = scmp.eq.s32.totalorder %s15, 0
    %p42 = por %p40, %p41
    %s44 = sadd.s32 %s43, 1
    %p47 = scmp.eq.s32.totalorder %s9, 1
    %p48 = scmp.ne.s32.totalorder %s43, %s45
    %p49 = scmp.eq.s32.totalorder %s9, 0
    %p50 = por %p48, %p49
    %p51 = scmp.ne.s32.totalorder %s43, %s45
    %p52 = scmp.eq.s32.totalorder %s14, 1
    %p53 = por %p51, %p52
    %p54 = scmp.ne.s32.totalorder %s45, %s46
    %p55 = scmp.eq.s32.totalorder %s14, 0
    %p56 = por %p54, %p55
    %p57 = scmp.ne.s32.totalorder %s45, %s46
    %p58 = scmp.eq.s32.totalorder %s15, 1
    %p59 = por %p57, %p58
    %p61 = scmp.ne.s32.totalorder %s46, %s60
    %p62 = scmp.eq.s32.totalorder %s15, 0
    %p63 = por %p61, %p62
    %s65 = sadd.s32 %s64, 1
    %p68 = scmp.eq.s32.totalorder %s9, 1
    %p69 = scmp.ne.s32.totalorder %s64, %s66
    %p70 = scmp.eq.s32.totalorder %s9, 0
    %p71 = por %p69, %p70
    %p72 = scmp.ne.s32.totalorder %s64, %s66
    %p73 = scmp.eq.s32.totalorder %s14, 1
    %p74 = por %p72, %p73
    %p75 = scmp.ne.s32.totalorder %s66, %s67
    %p76 = scmp.eq.s32.totalorder %s14, 0
    %p77 = por %p75, %p76
    %p78 = scmp.ne.s32.totalorder %s66, %s67
    %p79 = scmp.eq.s32.totalorder %s15, 1
    %p80 = por %p78, %p79
    %p82 = scmp.ne.s32.totalorder %s67, %s81
    %p83 = scmp.eq.s32.totalorder %s15, 0
    %p84 = por %p82, %p83
    %s85 = ssub.s32 %s9, %s16
    %p86 = scmp.eq.s32.totalorder %s85, 0
    %s88 = sadd.s32 %s87, 1
    %s89 = scalar_select %p86, %s87, %s88
    %p92 = pneg %p86
    %p93 = scmp.eq.s32.totalorder %s9, 1
    %p94 = por %p92, %p93
    %p95 = scmp.ne.s32.totalorder %s87, %s90
    %p96 = scmp.eq.s32.totalorder %s9, 0
    %p97 = por %p95, %p96
    %p98 = scmp.ne.s32.totalorder %s87, %s90
    %p99 = scmp.eq.s32.totalorder %s14, 1
    %p100 = por %p98, %p99
    %p101 = scmp.ne.s32.totalorder %s90, %s91
    %p102 = scmp.eq.s32.totalorder %s14, 0
    %p103 = por %p101, %p102
    %p104 = scmp.ne.s32.totalorder %s90, %s91
    %p105 = scmp.eq.s32.totalorder %s15, 1
    %p106 = por %p104, %p105
    %p108 = scmp.ne.s32.totalorder %s91, %s107
    %p109 = scmp.eq.s32.totalorder %s15, 0
    %p110 = por %p108, %p109
    %p111 = scmp.le.s32.totalorder 1, %s9
    %p112 = scmp.lt.s32.totalorder %s9, 3
    %p113 = pnand %p111, %p112
    %p114 = pneg %p113
    // Predicated region
    $region9: #{_lambda_.36} parent=5 // pred_check
      _
    $region10: #{_lambda_.36} parent=5 // pred_check_branch
      %116 = sbr.rel (%p113) target = $region12
    $region11: #{_lambda_.36} parent=5 // pred_region
      %s117 = ssub.s32 %s9, 1
      // Predicated region
      $region13: #{_lambda_.36} parent=11 // pred_check
        %p118 = pneg %p56
      $region14: #{_lambda_.36} parent=11 // pred_check_branch
        %120 = sbr.rel (%p118) target = $region16
      $region15: #{_lambda_.36} parent=11 // pred_region
        _
      $region16: #{_lambda_.36} parent=11 // pred_fallthru
        _
      // Predicated region
      $region17: #{_lambda_.36} parent=11 // pred_check
        %p121 = pneg %p77
      $region18: #{_lambda_.36} parent=11 // pred_check_branch
        %123 = sbr.rel (%p121) target = $region20
      $region19: #{_lambda_.36} parent=11 // pred_region
        _
      $region20: #{_lambda_.36} parent=11 // pred_fallthru
        _
    $region12: #{_lambda_.36} parent=5 // pred_fallthru
      _
    %p124 = scmp.lt.s32.totalorder %s9, 2
    // Predicated region
    $region21: #{_lambda_.36} parent=5 // pred_check
      %p125 = pneg %p124
    $region22: #{_lambda_.36} parent=5 // pred_check_branch
      %127 = sbr.rel (%p125) target = $region24
    $region23: #{_lambda_.36} parent=5 // pred_region
      // Predicated region
      $region25: #{_lambda_.36} parent=23 // pred_check
        %p128 = pneg %p29
      $region26: #{_lambda_.36} parent=23 // pred_check_branch
        %130 = sbr.rel (%p128) target = $region28
      $region27: #{_lambda_.36} parent=23 // pred_region
        %p131 = scmp.lt.s32.totalorder %s9, 1
        %s132 = scalar_select %p131, %s9, 1
        %s133 = smul.addr %s132, 18
        %s134 = smul.addr %s133, 4
        %s135 = scalar_lea.vmem %s0, %s134
      $region28: #{_lambda_.36} parent=23 // pred_fallthru
        _
    $region24: #{_lambda_.36} parent=5 // pred_fallthru
      _
    %p136 = scmp.le.s32.totalorder 1, %s9
    %p137 = scmp.lt.s32.totalorder %s9, 3
    %p138 = pnand %p136, %p137
    %p139 = pneg %p138
    // Predicated region
    $region29: #{_lambda_.36} parent=5 // pred_check
      _
    $region30: #{_lambda_.36} parent=5 // pred_check_branch
      %141 = sbr.rel (%p138) target = $region32
    $region31: #{_lambda_.36} parent=5 // pred_region
      %s142 = ssub.s32 %s9, 1
      %p143 = scmp.lt.s32.totalorder %s14, 1
      %s144 = scalar_select %p143, %s14, 1
      %s145 = smul.addr %s144, 18
      %s146 = smul.addr %s145, 4
      %s147 = scalar_lea.vmem %s0, %s146
      %p148 = pneg %p35
      %p149 = pneg %p32
      %p150 = pneg %p56
      %p151 = pneg %p53
      %p152 = pneg %p77
      %p153 = pneg %p74
      %p154 = pneg %p103
      %p155 = pneg %p100
      %p156 = scmp.lt.s32.totalorder %s14, 1
      %s157 = scalar_select %p156, %s14, 1
      %s158 = smul.addr %s157, 2
      %s159 = smul.addr %s158, 2
      %s160 = scalar_lea.vmem %s3, %s159
      %p161 = scmp.lt.s32.totalorder %s14, 1
      %s162 = scalar_select %p161, %s14, 1
      %s163 = smul.addr %s162, 18
      %s164 = smul.addr %s163, 4
      %s165 = scalar_lea.vmem %s0, %s164
      %p166 = scmp.lt.s32.totalorder %s14, 1
      %s167 = scalar_select %p166, %s14, 1
      %s168 = smul.addr %s167, 2
      %s169 = smul.addr %s168, 2
      %s170 = scalar_lea.vmem %s3, %s169
      %v172 = vld [vmem:[%s1] sm:$0x3]
      %v173 = vld [vmem:[%s165] sm:$0xff]
      %v174 = vld [vmem:[%s165 + $0x8] sm:$0xff]
      %v175 = vld [vmem:[%s165 + $0x10] sm:$0xff]
      %v176 = vld [vmem:[%s165 + $0x18] sm:$0xff]
      %v177 = vld [vmem:[%s165 + $0x20] sm:$0xff]
      %v178 = vld [vmem:[%s165 + $0x28] sm:$0xff]
      %v179 = vld [vmem:[%s165 + $0x30] sm:$0xff]
      %v180 = vld [vmem:[%s165 + $0x38] sm:$0xff]
      %v181 = vld [vmem:[%s165 + $0x40] sm:$0xff]
      %v182 = vld [vmem:[%s2] sm:$0xf]
      %184 = vset.pattern.permute.xlu0 0
      %185 = vperm.xlu0 %184, %v182
      %v186 = vpop.permute.xlu0 %185
      %v197 = vunpack.c.l.b16 %v173
      %v198 = vunpack.c.h.b16 %v173
      %v199 = vunpack.c.l.b16 %v174
      %v200 = vunpack.c.h.b16 %v174
      %v201 = vunpack.c.l.b16 %v175
      %v202 = vunpack.c.h.b16 %v175
      %v203 = vunpack.c.l.b16 %v176
      %v204 = vunpack.c.h.b16 %v176
      %v205 = vunpack.c.l.b16 %v177
      %v206 = vunpack.c.h.b16 %v177
      %v207 = vunpack.c.l.b16 %v178
      %v208 = vunpack.c.h.b16 %v178
      %v209 = vunpack.c.l.b16 %v179
      %v210 = vunpack.c.h.b16 %v179
      %v211 = vunpack.c.l.b16 %v180
      %v212 = vunpack.c.h.b16 %v180
      %v213 = vunpack.c.l.b16 %v181
      %v214 = vunpack.c.h.b16 %v181
      %v215 = vpack.c.b16 %v199, %v197
      %v216 = vpack.c.b16 %v200, %v198
      %v217 = vpack.c.b16 %v203, %v201
      %v218 = vpack.c.b16 %v204, %v202
      %v219 = vpack.c.b16 %v207, %v205
      %v220 = vpack.c.b16 %v208, %v206
      %v221 = vpack.c.b16 %v211, %v209
      %v222 = vpack.c.b16 %v212, %v210
      %v223 = vpack.c.b16 %v213, %v213
      %v224 = vpack.c.b16 %v214, %v214
      %vm233 = vcmask 588800
      %v235 = vsel %vm233, %v172, 0
      %vm237 = vcmask 1043456
      %v239 = vsel %vm237, %v223, 0
      %v242 = vsel %vm237, %v224, 0
      %244 = vmatpush.bf16.msra.mxu0 0
      %245 = vmatpush.bf16.msra.mxu0 0
      %246 = vmatpush.bf16.msra.mxu0 0
      %247 = vmatpush.bf16.msra.mxu0 %v239
      %248 = vmatpush.bf16.msra.mxu0 %v221
      %249 = vmatpush.bf16.msra.mxu0 %v219
      %250 = vmatpush.bf16.msra.mxu0 %v217
      %251 = vmatpush.bf16.msra.mxu0 %v215
      %252 = vmatmul.bf16.gmra.mxu0 %v235
      %v253 = vpop.f32.mrf.mxu0
      %v254 = vadd.f32 %v186, %v253
      %v255 = vpop.f32.mrf.mxu0
      %256 = vdwg.mxu0
      %257 = vmatpush.bf16.msra.mxu0 0
      %258 = vmatpush.bf16.msra.mxu0 0
      %259 = vmatpush.bf16.msra.mxu0 0
      %260 = vmatpush.bf16.msra.mxu0 %v242
      %261 = vmatpush.bf16.msra.mxu0 %v222
      %262 = vmatpush.bf16.msra.mxu0 %v220
      %263 = vmatpush.bf16.msra.mxu0 %v218
      %264 = vmatpush.bf16.msra.mxu0 %v216
      %265 = vmatmul.bf16.gmra.mxu0 %v235
      %v266 = vpop.f32.mrf.mxu0
      %v267 = vadd.f32 %v186, %v266
      %v268 = vpop.f32.mrf.mxu0
      %269 = vdwg.mxu0
      %v270 = vsel %vm237, %v254, 0.0
      %v271 = vsel %vm237, %v267, 0.0
      %v272 = vadd.f32 %v270, %v271
      %273 = vadd.xlane.f32.xlu0 %v272
      %v274 = vpop.xlane.xlu0 %273
      %v275 = vrot.slane %v274, 4
      %v276 = vadd.f32 %v274, %v275
      %v277 = vrot.slane %v276, 2
      %v278 = vadd.f32 %v276, %v277
      %v279 = vrot.slane %v278, 1
      %v280 = vadd.f32 %v278, %v279
      %s281 = vtos %v280
      %v282 = vstv %s281
      %v283 = vrcp.pop 1024.0
      %v284 = vmul.f32 1024.0, %v283
      %v285 = vsub.f32 1.0, %v284
      %v286 = vmul.f32 %v283, %v285
      %v287 = vadd.f32 %v283, %v286
      %vm288 = vweird.f32 %v283
      %v289 = vsel %vm288, %v283, %v287
      %v290 = vmul.f32 %v282, %v289
      %v291 = vmul.f32 %v254, %v254
      %v292 = vmul.f32 %v267, %v267
      %v293 = vsel %vm237, %v291, 0.0
      %v294 = vsel %vm237, %v292, 0.0
      %v295 = vadd.f32 %v293, %v294
      %296 = vadd.xlane.f32.xlu0 %v295
      %v297 = vpop.xlane.xlu0 %296
      %v298 = vrot.slane %v297, 4
      %v299 = vadd.f32 %v297, %v298
      %v300 = vrot.slane %v299, 2
      %v301 = vadd.f32 %v299, %v300
      %v302 = vrot.slane %v301, 1
      %v303 = vadd.f32 %v301, %v302
      %s304 = vtos %v303
      %v305 = vstv %s304
      %v306 = vmul.f32 %v305, %v289
      %v307 = vmul.f32 %v290, %v290
      %v308 = vsub.f32 %v306, %v307
      %v309 = vmax.f32 %v308, 0.0
      %v310 = vadd.f32 %v309, 1e-05
      %v311 = vrsqrt.pop %v310
      %v312 = vmul.f32 %v311, %v310
      %v313 = vmul.f32 %v312, %v311
      %v314 = vmul.f32 0.5, %v313
      %v315 = vsub.f32 1.5, %v314
      %v316 = vmul.f32 %v311, %v315
      %vm317 = vweird.f32 %v310
      %vm318 = vweird.f32 %v311
      %vm319 = vmor %vm317, %vm318
      %v320 = vsel %vm319, %v311, %v316
      %v321 = vmul.f32 %v182, %v320
      %v322 = vmul.f32 %v290, %v321
      %324 = vrot.lane.b32.xlu0 %v322, 1
      %v325 = vpop.permute.xlu0 %324
      %v327 = vsub.f32 %v182, %v325
      %329 = vset.pattern.permute.xlu0 1
      %330 = vperm.xlu0 %329, %v321
      %v331 = vpop.permute.xlu0 %330
      %v333 = vmul.f32 %v254, %v331
      %v334 = vmul.f32 %v267, %v331
      %336 = vset.pattern.permute.xlu0 2
      %337 = vperm.xlu0 %336, %v327
      %v338 = vpop.permute.xlu0 %337
      %v340 = vadd.f32 %v333, %v338
      %v341 = vadd.f32 %v334, %v338
      %v342 = vmax.f32 %v340, 0.0
      %v343 = vmax.f32 %v341, 0.0
      %v344 = vpack.c.bf16 %v343, %v342
      %v346 = vrot.slane %v344, 2
      %vm347 = vcmask 1041408
      %v350 = vsel %vm347, %v344, %v346
      %352 = vst [vmem:[%s170] sm:$0xf] %v350
      %p353 = scmp.lt.s32.totalorder %s14, 1
      %s354 = scalar_select %p353, %s14, 1
      %s355 = smul.addr %s354, 2
      %s356 = smul.addr %s355, 2
      %s357 = scalar_lea.vmem %s3, %s356
      // Predicated region
      $region33: #{_lambda_.36} parent=31 // pred_check
        %p358 = pneg %p100
      $region34: #{_lambda_.36} parent=31 // pred_check_branch
        %360 = sbr.rel (%p358) target = $region36
      $region35: #{_lambda_.36} parent=31 // pred_region
        _
      $region36: #{_lambda_.36} parent=31 // pred_fallthru
        _
    $region32: #{_lambda_.36} parent=5 // pred_fallthru
      _
    %p361 = scmp.le.s32.totalorder 2, %s9
    // Predicated region
    $region37: #{_lambda_.36} parent=5 // pred_check
      %p362 = pneg %p361
    $region38: #{_lambda_.36} parent=5 // pred_check_branch
      %364 = sbr.rel (%p362) target = $region40
    $region39: #{_lambda_.36} parent=5 // pred_region
      %s365 = ssub.s32 %s9, 2
      // Predicated region
      $region41: #{_lambda_.36} parent=39 // pred_check
        %p366 = pneg %p106
      $region42: #{_lambda_.36} parent=39 // pred_check_branch
        %368 = sbr.rel (%p366) target = $region44
      $region43: #{_lambda_.36} parent=39 // pred_region
        %p369 = scmp.lt.s32.totalorder %s15, 1
        %s370 = scalar_select %p369, %s15, 1
        %s371 = smul.addr %s370, 2
        %s372 = smul.addr %s371, 2
        %s373 = scalar_lea.vmem %s3, %s372
      $region44: #{_lambda_.36} parent=39 // pred_fallthru
        _
    $region40: #{_lambda_.36} parent=5 // pred_fallthru
      _
  $region6: #{_lambda_.36} parent=0 // loop_footer
    %s13 = sadd.s32 1, %s9
  $region7: #{_lambda_.36} parent=0 // loop_footer_branch
    %8 = sbr.rel target = $region3
  $region8: #{_lambda_.36} parent=0 // loop_exit
    _

// kernel: _lambda_.37
$region0: #{_lambda_.37}
  #allocation0 [shape = 'u32[]', space=smem, size = 0x4, offset = 0x4, fixed_abs, tag = 'smem constant byte address 0x4 - core index']
  #allocation1 [shape = 'u32[72,128]{1,0:T(1,128)}', space=vmem, size = 0x9000, scoped, tag = 'internal scratch']
  %s0 = inlined_call_operand.vmem [shape: bf16[2,36,256], index: 0, kind: input, shape index: {}]
  %s1 = inlined_call_operand.vmem [shape: bf16[4,36], index: 1, kind: input, shape index: {}]
  %s2 = inlined_call_operand.vmem [shape: f32[4,4], index: 2, kind: input, shape index: {}]
  %s3 = inlined_call_operand.vmem [shape: bf16[2,8,256], index: 3, kind: input, shape index: {}]
  %s4 = inlined_call_operand.vmem [shape: bf16[4,8], index: 4, kind: input, shape index: {}]
  %s5 = inlined_call_operand.vmem [shape: f32[2,4,256], index: 5, kind: output, shape index: {}]
  %s6 = sld [smem:[#allocation0]]
  $region53: #{_lambda_.37} parent=0
    _
  %s8 = ssub.s32 1, %s6
  %s9 = scalar_select 0, %s8, %s6
  loop: start=0, step=1, limit=4
  $region2: #{_lambda_.37} parent=0 // loop_pre_header
    _
  $region3: #{_lambda_.37} parent=0 // loop_header
    %s11 = sphi 0, %s15
    %p12 = scmp.ge.s32.totalorder %s11, 4
    %s21 = sphi 0, %s23
    %s24 = sphi 0, %s21
    %s25 = sphi 0, %s24
    %s41 = sphi 0, %s25
    %s45 = sphi 0, %s45
    %s47 = sphi 0, %s45
    %s48 = sphi 0, %s47
    %s62 = sphi 0, %s48
    %s66 = sphi 0, %s66
    %s68 = sphi 0, %s66
    %s69 = sphi 0, %s68
    %s83 = sphi 0, %s69
    %s89 = sphi 0, %s91
    %s92 = sphi 0, %s89
    %s93 = sphi 0, %s92
    %s109 = sphi 0, %s93
    %s113 = sphi 0, %s113
    %s115 = sphi 0, %s113
    %s116 = sphi 0, %s115
    %s130 = sphi 0, %s116
    %s136 = sphi 0, %s138
    %s139 = sphi 0, %s136
    %s140 = sphi 0, %s139
    %s156 = sphi 0, %s140
  $region4: #{_lambda_.37} parent=0 // loop_header_branch
    %14 = sbr.rel (%p12) target = $region8
  $region5: #{_lambda_.37} parent=0 // loop_body
    %s16 = ssub.s32 %s11, 1
    %s17 = ssub.s32 %s11, 2
    %s18 = sadd.s32 %s11, 1
    %s19 = ssub.s32 %s11, %s18
    %p20 = scmp.eq.s32.totalorder %s19, 0
    %s22 = sadd.s32 %s21, 1
    %s23 = scalar_select %p20, %s21, %s22
    %p26 = pneg %p20
    %p27 = scmp.eq.s32.totalorder %s11, 1
    %p28 = por %p26, %p27
    %p29 = scmp.ne.s32.totalorder %s21, %s24
    %p30 = scmp.eq.s32.totalorder %s11, 0
    %p31 = por %p29, %p30
    %p32 = scmp.ne.s32.totalorder %s21, %s24
    %p33 = scmp.eq.s32.totalorder %s16, 1
    %p34 = por %p32, %p33
    %p35 = scmp.ne.s32.totalorder %s24, %s25
    %p36 = scmp.eq.s32.totalorder %s16, 0
    %p37 = por %p35, %p36
    %p38 = scmp.ne.s32.totalorder %s24, %s25
    %p39 = scmp.eq.s32.totalorder %s17, 1
    %p40 = por %p38, %p39
    %p42 = scmp.ne.s32.totalorder %s25, %s41
    %p43 = scmp.eq.s32.totalorder %s17, 0
    %p44 = por %p42, %p43
    %s46 = sadd.s32 %s45, 1
    %p49 = scmp.eq.s32.totalorder %s11, 1
    %p50 = scmp.ne.s32.totalorder %s45, %s47
    %p51 = scmp.eq.s32.totalorder %s11, 0
    %p52 = por %p50, %p51
    %p53 = scmp.ne.s32.totalorder %s45, %s47
    %p54 = scmp.eq.s32.totalorder %s16, 1
    %p55 = por %p53, %p54
    %p56 = scmp.ne.s32.totalorder %s47, %s48
    %p57 = scmp.eq.s32.totalorder %s16, 0
    %p58 = por %p56, %p57
    %p59 = scmp.ne.s32.totalorder %s47, %s48
    %p60 = scmp.eq.s32.totalorder %s17, 1
    %p61 = por %p59, %p60
    %p63 = scmp.ne.s32.totalorder %s48, %s62
    %p64 = scmp.eq.s32.totalorder %s17, 0
    %p65 = por %p63, %p64
    %s67 = sadd.s32 %s66, 1
    %p70 = scmp.eq.s32.totalorder %s11, 1
    %p71 = scmp.ne.s32.totalorder %s66, %s68
    %p72 = scmp.eq.s32.totalorder %s11, 0
    %p73 = por %p71, %p72
    %p74 = scmp.ne.s32.totalorder %s66, %s68
    %p75 = scmp.eq.s32.totalorder %s16, 1
    %p76 = por %p74, %p75
    %p77 = scmp.ne.s32.totalorder %s68, %s69
    %p78 = scmp.eq.s32.totalorder %s16, 0
    %p79 = por %p77, %p78
    %p80 = scmp.ne.s32.totalorder %s68, %s69
    %p81 = scmp.eq.s32.totalorder %s17, 1
    %p82 = por %p80, %p81
    %p84 = scmp.ne.s32.totalorder %s69, %s83
    %p85 = scmp.eq.s32.totalorder %s17, 0
    %p86 = por %p84, %p85
    %s87 = ssub.s32 %s11, %s18
    %p88 = scmp.eq.s32.totalorder %s87, 0
    %s90 = sadd.s32 %s89, 1
    %s91 = scalar_select %p88, %s89, %s90
    %p94 = pneg %p88
    %p95 = scmp.eq.s32.totalorder %s11, 1
    %p96 = por %p94, %p95
    %p97 = scmp.ne.s32.totalorder %s89, %s92
    %p98 = scmp.eq.s32.totalorder %s11, 0
    %p99 = por %p97, %p98
    %p100 = scmp.ne.s32.totalorder %s89, %s92
    %p101 = scmp.eq.s32.totalorder %s16, 1
    %p102 = por %p100, %p101
    %p103 = scmp.ne.s32.totalorder %s92, %s93
    %p104 = scmp.eq.s32.totalorder %s16, 0
    %p105 = por %p103, %p104
    %p106 = scmp.ne.s32.totalorder %s92, %s93
    %p107 = scmp.eq.s32.totalorder %s17, 1
    %p108 = por %p106, %p107
    %p110 = scmp.ne.s32.totalorder %s93, %s109
    %p111 = scmp.eq.s32.totalorder %s17, 0
    %p112 = por %p110, %p111
    %s114 = sadd.s32 %s113, 1
    %p117 = scmp.eq.s32.totalorder %s11, 1
    %p118 = scmp.ne.s32.totalorder %s113, %s115
    %p119 = scmp.eq.s32.totalorder %s11, 0
    %p120 = por %p118, %p119
    %p121 = scmp.ne.s32.totalorder %s113, %s115
    %p122 = scmp.eq.s32.totalorder %s16, 1
    %p123 = por %p121, %p122
    %p124 = scmp.ne.s32.totalorder %s115, %s116
    %p125 = scmp.eq.s32.totalorder %s16, 0
    %p126 = por %p124, %p125
    %p127 = scmp.ne.s32.totalorder %s115, %s116
    %p128 = scmp.eq.s32.totalorder %s17, 1
    %p129 = por %p127, %p128
    %p131 = scmp.ne.s32.totalorder %s116, %s130
    %p132 = scmp.eq.s32.totalorder %s17, 0
    %p133 = por %p131, %p132
    %s134 = ssub.s32 %s11, %s18
    %p135 = scmp.eq.s32.totalorder %s134, 0
    %s137 = sadd.s32 %s136, 1
    %s138 = scalar_select %p135, %s136, %s137
    %p141 = pneg %p135
    %p142 = scmp.eq.s32.totalorder %s11, 1
    %p143 = por %p141, %p142
    %p144 = scmp.ne.s32.totalorder %s136, %s139
    %p145 = scmp.eq.s32.totalorder %s11, 0
    %p146 = por %p144, %p145
    %p147 = scmp.ne.s32.totalorder %s136, %s139
    %p148 = scmp.eq.s32.totalorder %s16, 1
    %p149 = por %p147, %p148
    %p150 = scmp.ne.s32.totalorder %s139, %s140
    %p151 = scmp.eq.s32.totalorder %s16, 0
    %p152 = por %p150, %p151
    %p153 = scmp.ne.s32.totalorder %s139, %s140
    %p154 = scmp.eq.s32.totalorder %s17, 1
    %p155 = por %p153, %p154
    %p157 = scmp.ne.s32.totalorder %s140, %s156
    %p158 = scmp.eq.s32.totalorder %s17, 0
    %p159 = por %p157, %p158
    %p160 = scmp.le.s32.totalorder 1, %s11
    %p161 = scmp.lt.s32.totalorder %s11, 3
    %p162 = pnand %p160, %p161
    %p163 = pneg %p162
    // Predicated region
    $region9: #{_lambda_.37} parent=5 // pred_check
      _
    $region10: #{_lambda_.37} parent=5 // pred_check_branch
      %165 = sbr.rel (%p162) target = $region12
    $region11: #{_lambda_.37} parent=5 // pred_region
      %s166 = ssub.s32 %s11, 1
      // Predicated region
      $region13: #{_lambda_.37} parent=11 // pred_check
        %p167 = pneg %p58
      $region14: #{_lambda_.37} parent=11 // pred_check_branch
        %169 = sbr.rel (%p167) target = $region16
      $region15: #{_lambda_.37} parent=11 // pred_region
        _
      $region16: #{_lambda_.37} parent=11 // pred_fallthru
        _
      // Predicated region
      $region17: #{_lambda_.37} parent=11 // pred_check
        %p170 = pneg %p79
      $region18: #{_lambda_.37} parent=11 // pred_check_branch
        %172 = sbr.rel (%p170) target = $region20
      $region19: #{_lambda_.37} parent=11 // pred_region
        _
      $region20: #{_lambda_.37} parent=11 // pred_fallthru
        _
      // Predicated region
      $region21: #{_lambda_.37} parent=11 // pred_check
        %p173 = pneg %p126
      $region22: #{_lambda_.37} parent=11 // pred_check_branch
        %175 = sbr.rel (%p173) target = $region24
      $region23: #{_lambda_.37} parent=11 // pred_region
        _
      $region24: #{_lambda_.37} parent=11 // pred_fallthru
        _
    $region12: #{_lambda_.37} parent=5 // pred_fallthru
      _
    %p176 = scmp.lt.s32.totalorder %s11, 2
    // Predicated region
    $region25: #{_lambda_.37} parent=5 // pred_check
      %p177 = pneg %p176
    $region26: #{_lambda_.37} parent=5 // pred_check_branch
      %179 = sbr.rel (%p177) target = $region28
    $region27: #{_lambda_.37} parent=5 // pred_region
      // Predicated region
      $region29: #{_lambda_.37} parent=27 // pred_check
        %p180 = pneg %p31
      $region30: #{_lambda_.37} parent=27 // pred_check_branch
        %182 = sbr.rel (%p180) target = $region32
      $region31: #{_lambda_.37} parent=27 // pred_region
        %p183 = scmp.lt.s32.totalorder %s11, 1
        %s184 = scalar_select %p183, %s11, 1
        %s185 = smul.addr %s184, 10
        %s186 = smul.addr %s185, 4
        %s187 = scalar_lea.vmem %s0, %s186
      $region32: #{_lambda_.37} parent=27 // pred_fallthru
        _
      // Predicated region
      $region33: #{_lambda_.37} parent=27 // pred_check
        %p188 = pneg %p99
      $region34: #{_lambda_.37} parent=27 // pred_check_branch
        %190 = sbr.rel (%p188) target = $region36
      $region35: #{_lambda_.37} parent=27 // pred_region
        %p191 = scmp.lt.s32.totalorder %s11, 1
        %s192 = scalar_select %p191, %s11, 1
        %s193 = smul.addr %s192, 2
        %s194 = smul.addr %s193, 4
        %s195 = scalar_lea.vmem %s3, %s194
      $region36: #{_lambda_.37} parent=27 // pred_fallthru
        _
    $region28: #{_lambda_.37} parent=5 // pred_fallthru
      _
    %p196 = scmp.le.s32.totalorder 1, %s11
    %p197 = scmp.lt.s32.totalorder %s11, 3
    %p198 = pnand %p196, %p197
    %p199 = pneg %p198
    // Predicated region
    $region37: #{_lambda_.37} parent=5 // pred_check
      _
    $region38: #{_lambda_.37} parent=5 // pred_check_branch
      %201 = sbr.rel (%p198) target = $region40
    $region39: #{_lambda_.37} parent=5 // pred_region
      %s202 = ssub.s32 %s11, 1
      %p203 = scmp.lt.s32.totalorder %s16, 1
      %s204 = scalar_select %p203, %s16, 1
      %s205 = smul.addr %s204, 10
      %s206 = smul.addr %s205, 4
      %s207 = scalar_lea.vmem %s0, %s206
      %p208 = pneg %p37
      %p209 = pneg %p34
      %p210 = pneg %p58
      %p211 = pneg %p55
      %p212 = pneg %p79
      %p213 = pneg %p76
      %p214 = scmp.lt.s32.totalorder %s16, 1
      %s215 = scalar_select %p214, %s16, 1
      %s216 = smul.addr %s215, 2
      %s217 = smul.addr %s216, 4
      %s218 = scalar_lea.vmem %s3, %s217
      %p219 = pneg %p105
      %p220 = pneg %p102
      %p221 = pneg %p126
      %p222 = pneg %p123
      %p223 = pneg %p152
      %p224 = pneg %p149
      %p225 = scmp.lt.s32.totalorder %s16, 1
      %s226 = scalar_select %p225, %s16, 1
      %s227 = smul.addr %s226, 2
      %s228 = smul.addr %s227, 4
      %s229 = scalar_lea.vmem %s5, %s228
      %p230 = scmp.lt.s32.totalorder %s16, 1
      %s231 = scalar_select %p230, %s16, 1
      %s232 = smul.addr %s231, 10
      %s233 = smul.addr %s232, 4
      %s234 = scalar_lea.vmem %s0, %s233
      %p235 = scmp.lt.s32.totalorder %s16, 1
      %s236 = scalar_select %p235, %s16, 1
      %s237 = smul.addr %s236, 2
      %s238 = smul.addr %s237, 4
      %s239 = scalar_lea.vmem %s3, %s238
      %p240 = scmp.lt.s32.totalorder %s16, 1
      %s241 = scalar_select %p240, %s16, 1
      %s242 = smul.addr %s241, 2
      %s243 = smul.addr %s242, 4
      %s244 = scalar_lea.vmem %s5, %s243
      %v246 = vld [vmem:[%s1] sm:$0x3]
      %v247 = vld [vmem:[%s234] sm:$0xff]
      %v248 = vld [vmem:[%s234 + $0x8] sm:$0xff]
      %v249 = vld [vmem:[%s234 + $0x10] sm:$0xff]
      %v250 = vld [vmem:[%s234 + $0x18] sm:$0xff]
      %v251 = vld [vmem:[%s234 + $0x20] sm:$0x33]
      %v252 = vld [vmem:[%s2] sm:$0xf]
      %254 = vset.pattern.permute.xlu0 0
      %255 = vperm.xlu0 %254, %v252
      %v256 = vpop.permute.xlu0 %255
      %v263 = vunpack.c.l.b16 %v247
      %v264 = vunpack.c.h.b16 %v247
      %v265 = vunpack.c.l.b16 %v248
      %v266 = vunpack.c.h.b16 %v248
      %v267 = vunpack.c.l.b16 %v249
      %v268 = vunpack.c.h.b16 %v249
      %v269 = vunpack.c.l.b16 %v250
      %v270 = vunpack.c.h.b16 %v250
      %v271 = vunpack.c.l.b16 %v251
      %v272 = vunpack.c.h.b16 %v251
      %v273 = vpack.c.b16 %v265, %v263
      %v274 = vpack.c.b16 %v266, %v264
      %v275 = vpack.c.b16 %v269, %v267
      %v276 = vpack.c.b16 %v270, %v268
      %v277 = vpack.c.b16 %v271, %v271
      %v278 = vpack.c.b16 %v272, %v272
      %vm283 = vcmask 293888
      %v285 = vsel %vm283, %v246, 0
      %vm287 = vcmask 1041408
      %v289 = vsel %vm287, %v277, 0
      %v292 = vsel %vm287, %v278, 0
      %294 = vmatpush.bf16.msra.mxu0 0
      %295 = vmatpush.bf16.msra.mxu0 0
      %296 = vmatpush.bf16.msra.mxu0 0
      %297 = vmatpush.bf16.msra.mxu0 0
      %298 = vmatpush.bf16.msra.mxu0 0
      %299 = vmatpush.bf16.msra.mxu0 %v289
      %300 = vmatpush.bf16.msra.mxu0 %v275
      %301 = vmatpush.bf16.msra.mxu0 %v273
      %302 = vmatmul.bf16.gmra.mxu0 %v285
      %v303 = vpop.f32.mrf.mxu0
      %v304 = vadd.f32 %v256, %v303
      %v305 = vpop.f32.mrf.mxu0
      %306 = vdwg.mxu0
      %307 = vmatpush.bf16.msra.mxu0 0
      %308 = vmatpush.bf16.msra.mxu0 0
      %309 = vmatpush.bf16.msra.mxu0 0
      %310 = vmatpush.bf16.msra.mxu0 0
      %311 = vmatpush.bf16.msra.mxu0 0
      %312 = vmatpush.bf16.msra.mxu0 %v292
      %313 = vmatpush.bf16.msra.mxu0 %v276
      %314 = vmatpush.bf16.msra.mxu0 %v274
      %315 = vmatmul.bf16.gmra.mxu0 %v285
      %v316 = vpop.f32.mrf.mxu0
      %v317 = vadd.f32 %v256, %v316
      %v318 = vpop.f32.mrf.mxu0
      %319 = vdwg.mxu0
      %vm320 = vcmask 1043456
      %v321 = vsel %vm320, %v304, 0.0
      %v322 = vsel %vm320, %v317, 0.0
      %v323 = vadd.f32 %v321, %v322
      %324 = vadd.xlane.f32.xlu0 %v323
      %v325 = vpop.xlane.xlu0 %324
      %v326 = vrot.slane %v325, 4
      %v327 = vadd.f32 %v325, %v326
      %v328 = vrot.slane %v327, 2
      %v329 = vadd.f32 %v327, %v328
      %v330 = vrot.slane %v329, 1
      %v331 = vadd.f32 %v329, %v330
      %s332 = vtos %v331
      %v333 = vstv %s332
      %v334 = vrcp.pop 1024.0
      %v335 = vmul.f32 1024.0, %v334
      %v336 = vsub.f32 1.0, %v335
      %v337 = vmul.f32 %v334, %v336
      %v338 = vadd.f32 %v334, %v337
      %vm339 = vweird.f32 %v334
      %v340 = vsel %vm339, %v334, %v338
      %v341 = vmul.f32 %v333, %v340
      %v342 = vmul.f32 %v304, %v304
      %v343 = vmul.f32 %v317, %v317
      %v344 = vsel %vm320, %v342, 0.0
      %v345 = vsel %vm320, %v343, 0.0
      %v346 = vadd.f32 %v344, %v345
      %347 = vadd.xlane.f32.xlu0 %v346
      %v348 = vpop.xlane.xlu0 %347
      %v349 = vrot.slane %v348, 4
      %v350 = vadd.f32 %v348, %v349
      %v351 = vrot.slane %v350, 2
      %v352 = vadd.f32 %v350, %v351
      %v353 = vrot.slane %v352, 1
      %v354 = vadd.f32 %v352, %v353
      %s355 = vtos %v354
      %v356 = vstv %s355
      %v357 = vmul.f32 %v356, %v340
      %v358 = vmul.f32 %v341, %v341
      %v359 = vsub.f32 %v357, %v358
      %v360 = vmax.f32 %v359, 0.0
      %v361 = vadd.f32 %v360, 1e-05
      %v362 = vrsqrt.pop %v361
      %v363 = vmul.f32 %v362, %v361
      %v364 = vmul.f32 %v363, %v362
      %v365 = vmul.f32 0.5, %v364
      %v366 = vsub.f32 1.5, %v365
      %v367 = vmul.f32 %v362, %v366
      %vm368 = vweird.f32 %v361
      %vm369 = vweird.f32 %v362
      %vm370 = vmor %vm368, %vm369
      %v371 = vsel %vm370, %v362, %v367
      %v372 = vmul.f32 %v252, %v371
      %v373 = vmul.f32 %v341, %v372
      %375 = vrot.lane.b32.xlu0 %v373, 1
      %v376 = vpop.permute.xlu0 %375
      %v378 = vsub.f32 %v252, %v376
      %380 = vset.pattern.permute.xlu0 1
      %381 = vperm.xlu0 %380, %v372
      %v382 = vpop.permute.xlu0 %381
      %v384 = vmul.f32 %v304, %v382
      %v385 = vmul.f32 %v317, %v382
      %387 = vset.pattern.permute.xlu0 2
      %388 = vperm.xlu0 %387, %v378
      %v389 = vpop.permute.xlu0 %388
      %v391 = vadd.f32 %v384, %v389
      %v392 = vadd.f32 %v385, %v389
      %v393 = vld [vmem:[%s4] sm:$0x3]
      %v394 = vld [vmem:[%s239] sm:$0xff]
      %v396 = vunpack.c.l.b16 %v394
      %v397 = vunpack.c.h.b16 %v394
      %v398 = vpack.c.b16 %v396, %v396
      %v399 = vpack.c.b16 %v397, %v397
      %vm400 = vcmask 64512
      %v402 = vsel %vm400, %v393, 0
      %v405 = vsel %vm320, %v398, 0
      %v408 = vsel %vm320, %v399, 0
      %410 = vmatpush.bf16.msra.mxu0 0
      %411 = vmatpush.bf16.msra.mxu0 0
      %412 = vmatpush.bf16.msra.mxu0 0
      %413 = vmatpush.bf16.msra.mxu0 0
      %414 = vmatpush.bf16.msra.mxu0 0
      %415 = vmatpush.bf16.msra.mxu0 0
      %416 = vmatpush.bf16.msra.mxu0 0
      %417 = vmatpush.bf16.msra.mxu0 %v405
      %418 = vmatmul.bf16.gmra.mxu0 %v402
      %v419 = vpop.f32.mrf.mxu0
      %v420 = vadd.f32 0.0, %v419
      %v421 = vpop.f32.mrf.mxu0
      %422 = vdwg.mxu0
      %423 = vmatpush.bf16.msra.mxu0 0
      %424 = vmatpush.bf16.msra.mxu0 0
      %425 = vmatpush.bf16.msra.mxu0 0
      %426 = vmatpush.bf16.msra.mxu0 0
      %427 = vmatpush.bf16.msra.mxu0 0
      %428 = vmatpush.bf16.msra.mxu0 0
      %429 = vmatpush.bf16.msra.mxu0 0
      %430 = vmatpush.bf16.msra.mxu0 %v408
      %431 = vmatmul.bf16.gmra.mxu0 %v402
      %v432 = vpop.f32.mrf.mxu0
      %v433 = vadd.f32 0.0, %v432
      %v434 = vpop.f32.mrf.mxu0
      %435 = vdwg.mxu0
      %v436 = vadd.f32 %v391, %v420
      %v437 = vadd.f32 %v392, %v433
      %438 = vset.pattern.permute.xlu0 3
      %439 = vperm.xlu0 %438, %v252
      %v440 = vpop.permute.xlu0 %439
      %v442 = vadd.f32 %v436, %v440
      %v443 = vadd.f32 %v437, %v440
      %v444 = vmax.f32 %v442, 0.0
      %v445 = vmax.f32 %v443, 0.0
      %v448 = vrot.slane %v445, 4
      %v449 = vsel %vm320, %v444, %v448
      %451 = vst [vmem:[%s244] sm:$0xff] %v449
      %p452 = scmp.lt.s32.totalorder %s16, 1
      %s453 = scalar_select %p452, %s16, 1
      %s454 = smul.addr %s453, 2
      %s455 = smul.addr %s454, 4
      %s456 = scalar_lea.vmem %s5, %s455
      // Predicated region
      $region41: #{_lambda_.37} parent=39 // pred_check
        %p457 = pneg %p149
      $region42: #{_lambda_.37} parent=39 // pred_check_branch
        %459 = sbr.rel (%p457) target = $region44
      $region43: #{_lambda_.37} parent=39 // pred_region
        _
      $region44: #{_lambda_.37} parent=39 // pred_fallthru
        _
    $region40: #{_lambda_.37} parent=5 // pred_fallthru
      _
    %p460 = scmp.le.s32.totalorder 2, %s11
    // Predicated region
    $region45: #{_lambda_.37} parent=5 // pred_check
      %p461 = pneg %p460
    $region46: #{_lambda_.37} parent=5 // pred_check_branch
      %463 = sbr.rel (%p461) target = $region48
    $region47: #{_lambda_.37} parent=5 // pred_region
      %s464 = ssub.s32 %s11, 2
      // Predicated region
      $region49: #{_lambda_.37} parent=47 // pred_check
        %p465 = pneg %p155
      $region50: #{_lambda_.37} parent=47 // pred_check_branch
        %467 = sbr.rel (%p465) target = $region52
      $region51: #{_lambda_.37} parent=47 // pred_region
        %p468 = scmp.lt.s32.totalorder %s17, 1
        %s469 = scalar_select %p468, %s17, 1
        %s470 = smul.addr %s469, 2
        %s471 = smul.addr %s470, 4
        %s472 = scalar_lea.vmem %s5, %s471
      $region52: #{_lambda_.37} parent=47 // pred_fallthru
        _
    $region48: #{_lambda_.37} parent=5 // pred_fallthru
      _
  $region6: #{_lambda_.37} parent=0 // loop_footer
    %s15 = sadd.s32 1, %s11
  $region7: #{_lambda_.37} parent=0 // loop_footer_branch
    %10 = sbr.rel target = $region3
  $region8: #{_lambda_.37} parent=0 // loop_exit
    _

</llo_original>
